<compile_context>
chip_gen: v7x
topology: tpu7x:2x2x1
jax: 0.10.0
libtpu: 0.0.40
codegen_flags: <defaults>
</compile_context>

<pallas_src>
import functools

import jax
import jax.numpy as jnp
from jax.experimental import pallas as pl
from jax.experimental.pallas import tpu as pltpu


VMEM_LIMIT = 32 * 1024 * 1024  # bytes; largest per-call footprint here is ~27 MB (fc1 @ 224).


# ---------------------------------------------------------------------------
# Tile-size helpers (prefer tiles that divide the problem exactly).
# ---------------------------------------------------------------------------
def _tile_rows(M, target):
    """Largest multiple-of-8 divisor of M that is <= target (fallback: padded tile)."""
    if M <= 8:
        return M
    t = max((min(target, M) // 8) * 8, 8)
    d = t
    while d >= 8:
        if M % d == 0:
            return d
        d -= 8
    return t


def _largest_divisor(n, cap):
    for d in range(max(min(cap, n), 1), 0, -1):
        if n % d == 0:
            return d
    return 1


def _pick_tk(K, N, elem_bytes=2, max_block_bytes=13 * 1024 * 1024):
    """Largest tk (K itself, or a divisor of K that is a multiple of 128) whose
    full-width (tk, N) weight block stays <= max_block_bytes."""
    if K * N * elem_bytes <= max_block_bytes:
        return K
    cap = max(max_block_bytes // (N * elem_bytes), 128)
    d = (cap // 128) * 128
    while d >= 128:
        if K % d == 0:
            return d
        d -= 128
    return K  # fallback: single huge block (not hit for the shapes used here)


# ---------------------------------------------------------------------------
# Conv matmul kernel:  out = relu( (patches @ w) * bn_scale + bn_bias )
# Single K block (all conv layers): no accumulator scratch, 1-D parallel grid.
# Epilogue runs in f32 on the MXU accumulator (v5e has no bf16 VPU); cast at store.
# ---------------------------------------------------------------------------
def _conv_mm_kernel(x_ref, w_ref, s_ref, b_ref, o_ref):
    y = jnp.dot(x_ref[...], w_ref[...], preferred_element_type=jnp.float32)
    y = y * s_ref[...] + b_ref[...]
    o_ref[...] = jnp.maximum(y, 0.0).astype(o_ref.dtype)


def conv_bn_relu_matmul(patches, w_mat, scale, bias, *, tm, out_dtype=jnp.bfloat16):
    M, K = patches.shape
    N = w_mat.shape[1]
    Mp = pl.cdiv(M, tm) * tm
    if Mp != M:
        patches = jnp.pad(patches, ((0, Mp - M), (0, 0)))
    scale2 = scale.reshape(1, N).astype(jnp.float32)
    bias2 = bias.reshape(1, N).astype(jnp.float32)
    out = pl.pallas_call(
        _conv_mm_kernel,
        out_shape=jax.ShapeDtypeStruct((Mp, N), out_dtype),
        grid=(Mp // tm,),
        in_specs=[
            pl.BlockSpec((tm, K), lambda i: (i, 0)),
            pl.BlockSpec((K, N), lambda i: (0, 0)),
            pl.BlockSpec((1, N), lambda i: (0, 0)),
            pl.BlockSpec((1, N), lambda i: (0, 0)),
        ],
        out_specs=pl.BlockSpec((tm, N), lambda i: (i, 0)),
        compiler_params=pltpu.CompilerParams(
            dimension_semantics=("parallel",),
            vmem_limit_bytes=VMEM_LIMIT),
    )(patches, w_mat, scale2, bias2)
    return out[:M] if Mp != M else out


# ---------------------------------------------------------------------------
# Fused MaxPool 2x2 stride 2 (NHWC) — single Pallas kernel over the free
# row-major view (N*Ho, 2, Wo, 2*C).
# ---------------------------------------------------------------------------
def _maxpool_kernel(x_ref, o_ref, *, C):
    x = x_ref[...]                                      # (th, 2, Wo, 2*C)
    m = jnp.maximum(x[:, 0], x[:, 1])                   # max over the H pair
    o_ref[...] = jnp.maximum(m[:, :, :C], m[:, :, C:])  # max over the W pair


def maxpool2x2(x):
    N, H, W, C = x.shape
    Ho, Wo = H // 2, W // 2
    R = N * Ho
    x4 = x.reshape(R, 2, Wo, 2 * C)          # pure row-major view (free)
    # >= 2 grid blocks whenever possible so both v7x TensorCores get work.
    th = _largest_divisor(R, min(64, max(R // 2, 1)))
    out = pl.pallas_call(
        functools.partial(_maxpool_kernel, C=C),
        out_shape=jax.ShapeDtypeStruct((R, Wo, C), x.dtype),
        grid=(R // th,),
        in_specs=[pl.BlockSpec((th, 2, Wo, 2 * C), lambda i: (i, 0, 0, 0))],
        out_specs=pl.BlockSpec((th, Wo, C), lambda i: (i, 0, 0)),
        compiler_params=pltpu.CompilerParams(
            dimension_semantics=("parallel",),
            vmem_limit_bytes=VMEM_LIMIT),
    )(x4)
    return out.reshape(N, Ho, Wo, C)


# ---------------------------------------------------------------------------
# conv3x3(pad=1) + BatchNorm(eval) + ReLU via bf16 im2col + fused matmul.
# ---------------------------------------------------------------------------
def conv3x3_bn_relu(x, w_mat, conv_b, gamma, beta, run_mean, run_var, *,
                    tm_target, eps=1e-5):
    """x: (N, H, W, Cin) bf16 NHWC; w_mat: (9*Cin, Cout) bf16 (tap-major rows)."""
    N, H, W, Cin = x.shape
    Cout = w_mat.shape[1]
    xp = jnp.pad(x, ((0, 0), (1, 1), (1, 1), (0, 0)))
    # TODO(synk): fully fusing im2col (and the 2x2 pool) into the conv kernel would
    # avoid ~54 MB of patch-matrix HBM traffic at 224x224, but needs halo-row DMA /
    # in-kernel relayouts; kept as XLA-built bf16 patches for robust lowering.
    patches = jnp.concatenate(
        [xp[:, kh:kh + H, kw:kw + W, :] for kh in range(3) for kw in range(3)],
        axis=-1).reshape(N * H * W, 9 * Cin)

    inv_std = 1.0 / jnp.sqrt(run_var.astype(jnp.float32) + eps)
    scale = gamma * inv_std                          # BN scale
    bias = (conv_b - run_mean) * scale + beta        # conv bias folded into BN shift

    tm = _tile_rows(N * H * W, tm_target)
    y = conv_bn_relu_matmul(patches, w_mat, scale, bias, tm=tm)
    return y.reshape(N, H, W, Cout)


# ---------------------------------------------------------------------------
# Fused head:  logits = relu(flat @ W1 + b1) @ W2 + b2   (dropout = identity, eval)
# Multi-K grid with an f32 accumulator; W1 blocks are full-width (contiguous HBM
# reads); the tiny fc2 GEMM runs in the last-K epilogue.
# ---------------------------------------------------------------------------
def _head_kernel(x_ref, w1_ref, b1_ref, w2_ref, b2_ref, o_ref, acc_ref):
    k = pl.program_id(1)

    @pl.when(k == 0)
    def _():
        acc_ref[...] = jnp.zeros_like(acc_ref)

    acc_ref[...] += jnp.dot(x_ref[...], w1_ref[...],
                            preferred_element_type=jnp.float32)

    @pl.when(k == pl.num_programs(1) - 1)
    def _():
        h = jnp.maximum(acc_ref[...] + b1_ref[...], 0.0)     # fc1 bias + ReLU
        # TODO(synk): Dropout(0.5) is identity in eval mode.
        y = jnp.dot(h, w2_ref[...], preferred_element_type=jnp.float32) + b2_ref[...]
        o_ref[...] = y.astype(o_ref.dtype)


def fc_head(flat, w1, b1, w2, b2):
    M, K = flat.shape
    N1 = w1.shape[1]
    N2 = w2.shape[1]
    tk = _pick_tk(K, N1)           # full-width weight blocks; <= ~13 MB each
    assert K % tk == 0
    nk = K // tk

    if M <= 8:
        tm, Mp, x = M, M, flat     # block dim == full array dim -> legal, no pad
    else:
        tm = _tile_rows(M, 256)
        Mp = pl.cdiv(M, tm) * tm
        x = jnp.pad(flat, ((0, Mp - M), (0, 0))) if Mp != M else flat

    b1r = b1.reshape(1, N1).astype(jnp.float32)
    b2r = b2.reshape(1, N2).astype(jnp.float32)
    w2f = w2.astype(jnp.float32)

    # NOTE(v7x): for 2 TensorCores one would instead split N1 into pre-reshaped
    # contiguous column halves; here we take the single-TC-optimal contiguous stream.
    out = pl.pallas_call(
        _head_kernel,
        out_shape=jax.ShapeDtypeStruct((Mp, N2), jnp.float32),
        grid_spec=pltpu.PrefetchScalarGridSpec(
            num_scalar_prefetch=0,
            grid=(Mp // tm, nk),
            in_specs=[
                pl.BlockSpec((tm, tk), lambda i, k: (i, k)),
                pl.BlockSpec((tk, N1), lambda i, k: (k, 0)),   # contiguous weight blocks
                pl.BlockSpec((1, N1), lambda i, k: (0, 0)),
                pl.BlockSpec((N1, N2), lambda i, k: (0, 0)),
                pl.BlockSpec((1, N2), lambda i, k: (0, 0)),
            ],
            out_specs=pl.BlockSpec((tm, N2), lambda i, k: (i, 0)),
            scratch_shapes=[pltpu.VMEM((tm, N1), jnp.float32)]),
        compiler_params=pltpu.CompilerParams(
            dimension_semantics=("parallel", "arbitrary"),
            vmem_limit_bytes=VMEM_LIMIT),
    )(x, w1, b1r, w2f, b2r)
    return out[:M] if Mp != M else out


# ---------------------------------------------------------------------------
# Full forward pass (eval-mode semantics).
# ---------------------------------------------------------------------------
_CONV_TM_TARGET = {"l1": 14336, "l2": 4096, "l3": 4096}


def simple_cnn_forward(x_nchw, params):
    x = jnp.transpose(x_nchw, (0, 2, 3, 1)).astype(jnp.bfloat16)  # NCHW -> NHWC

    for layer in ("l1", "l2", "l3"):
        p = params[layer]
        x = conv3x3_bn_relu(x, p["w_mat"], p["b"], p["gamma"], p["beta"],
                            p["mean"], p["var"], tm_target=_CONV_TM_TARGET[layer])
        x = maxpool2x2(x)

    # Flatten in NHWC order (free reshape); fc1 weight rows were pre-permuted
    # from PyTorch's NCHW flatten order to match.
    Nb = x.shape[0]
    flat = x.reshape(Nb, -1)
    return fc_head(flat, params["fc1"]["w"], params["fc1"]["b"],
                   params["fc2"]["w"], params["fc2"]["b"])


# ---------------------------------------------------------------------------
# Parameter init (PyTorch-layout shapes) + one-time kernel-friendly preparation.
# fc1's in-features track the spatial size (the module's 128*28*28 implies 224x224).
# ---------------------------------------------------------------------------
def init_params(key, spatial):
    keys = jax.random.split(key, 12)
    params = {}
    conv_defs = [("l1", 3, 32), ("l2", 32, 64), ("l3", 64, 128)]
    for idx, (name, cin, cout) in enumerate(conv_defs):
        fan_in = cin * 9
        params[name] = dict(
            w=jax.random.normal(keys[2 * idx], (cout, cin, 3, 3), jnp.float32)
              / jnp.sqrt(fan_in),
            b=jax.random.normal(keys[2 * idx + 1], (cout,), jnp.float32) * 0.01,
            gamma=jnp.ones((cout,), jnp.float32),
            beta=jnp.zeros((cout,), jnp.float32),
            mean=jnp.zeros((cout,), jnp.float32),
            var=jnp.ones((cout,), jnp.float32),
        )
    hw = spatial // 8
    k_in = 128 * hw * hw
    params["fc1"] = dict(
        w=jax.random.normal(keys[8], (k_in, 512), jnp.float32) / jnp.sqrt(k_in),
        b=jax.random.normal(keys[9], (512,), jnp.float32) * 0.01,
    )
    params["fc2"] = dict(
        w=jax.random.normal(keys[10], (512, 2), jnp.float32) / jnp.sqrt(512.0),
        b=jax.random.normal(keys[11], (2,), jnp.float32) * 0.01,
    )
    return params


def prepare_params(params, spatial):
    """One-time conversion (outside jit): conv weights -> (9*Cin, Cout) bf16 matmul
    layout; fc1 weight rows permuted from NCHW flatten order to NHWC and cast to bf16."""
    prepped = {}
    for name in ("l1", "l2", "l3"):
        p = params[name]
        w = p["w"]  # (Cout, Cin, 3, 3) PyTorch layout
        w_mat = jnp.transpose(w, (2, 3, 1, 0)).reshape(-1, w.shape[0])
        prepped[name] = dict(
            w_mat=w_mat.astype(jnp.bfloat16),
            b=p["b"], gamma=p["gamma"], beta=p["beta"],
            mean=p["mean"], var=p["var"],
        )
    hw = spatial // 8
    # fc1 rows are indexed (c, h, w) in PyTorch's x.view(-1, 128*hw*hw);
    # permute to (h, w, c) to match the NHWC flatten used here.
    w1 = params["fc1"]["w"].reshape(128, hw, hw, 512)
    w1 = jnp.transpose(w1, (1, 2, 0, 3)).reshape(128 * hw * hw, 512)
    prepped["fc1"] = dict(w=w1.astype(jnp.bfloat16), b=params["fc1"]["b"])
    prepped["fc2"] = dict(w=params["fc2"]["w"], b=params["fc2"]["b"])
    return prepped


if __name__ == "__main__":
    # Small, fast test shape. The module's own fc1 (128*28*28) implies 224x224 input;
    # the kernels and tiling handle that case too (fc1 tk=12544, conv1 tm=14336).
    SPATIAL = 32
    key = jax.random.PRNGKey(0)
    k_inp, k_par = jax.random.split(key)
    x = jax.random.normal(k_inp, (2, 3, SPATIAL, SPATIAL), jnp.float32)
    params = prepare_params(init_params(k_par, SPATIAL), SPATIAL)

    fwd = jax.jit(simple_cnn_forward)
    out = fwd(x, params)
    jax.block_until_ready(out)
    assert out.shape == (2, 2) and out.dtype == jnp.float32
    assert bool(jnp.all(jnp.isfinite(out)))
    print("KERNEL_OK")
</pallas_src>

<mosaic_0001>
module attributes {stable_mosaic.version = 11 : i64} {
  func.func @_conv_mm_kernel(%arg0: i32, %arg1: memref<2048x27xbf16, #tpu.memory_space<vmem>>, %arg2: memref<27x32xbf16, #tpu.memory_space<vmem>>, %arg3: memref<1x32xf32, #tpu.memory_space<vmem>>, %arg4: memref<1x32xf32, #tpu.memory_space<vmem>>, %arg5: memref<2048x32xbf16, #tpu.memory_space<vmem>>) attributes {dimension_semantics = [#tpu.dimension_semantics<parallel>], iteration_bounds = array<i64: 1>, scalar_prefetch = 0 : i64, scratch_operands = 0 : i64, tpu.core_type = #tpu.core_type<tc>, window_params = [{transform_indices = @transform_0, window_bounds = array<i64: 2048, 27>}, {pipeline_mode = #tpu.pipeline_mode<synchronous>, transform_indices = @transform_1, window_bounds = array<i64: 27, 32>}, {pipeline_mode = #tpu.pipeline_mode<synchronous>, transform_indices = @transform_2, window_bounds = array<i64: 1, 32>}, {pipeline_mode = #tpu.pipeline_mode<synchronous>, transform_indices = @transform_3, window_bounds = array<i64: 1, 32>}, {transform_indices = @transform_4, window_bounds = array<i64: 2048, 32>}]} {
    %c0 = arith.constant 0 : index
    %c0_0 = arith.constant 0 : index
    %0 = vector.load %arg1[%c0, %c0_0] : memref<2048x27xbf16, #tpu.memory_space<vmem>>, vector<2048x27xbf16>
    %c0_1 = arith.constant 0 : index
    %c0_2 = arith.constant 0 : index
    %1 = vector.load %arg2[%c0_1, %c0_2] : memref<27x32xbf16, #tpu.memory_space<vmem>>, vector<27x32xbf16>
    %cst = arith.constant dense<0.000000e+00> : vector<2048x32xf32>
    %2 = tpu.matmul %0, %1, %cst {dimension_numbers = #tpu.dot_dimension_numbers<[1], [0], [0], [1], [0, 0, 1, 1], [], []>} : vector<2048x27xbf16>, vector<27x32xbf16>, vector<2048x32xf32> -> vector<2048x32xf32>
    %c0_3 = arith.constant 0 : index
    %c0_4 = arith.constant 0 : index
    %3 = vector.load %arg3[%c0_3, %c0_4] : memref<1x32xf32, #tpu.memory_space<vmem>>, vector<1x32xf32>
    %4 = vector.broadcast %3 : vector<1x32xf32> to vector<2048x32xf32>
    %5 = arith.mulf %2, %4 : vector<2048x32xf32>
    %c0_5 = arith.constant 0 : index
    %c0_6 = arith.constant 0 : index
    %6 = vector.load %arg4[%c0_5, %c0_6] : memref<1x32xf32, #tpu.memory_space<vmem>>, vector<1x32xf32>
    %7 = vector.broadcast %6 : vector<1x32xf32> to vector<2048x32xf32>
    %8 = arith.addf %5, %7 : vector<2048x32xf32>
    %cst_7 = arith.constant 0.000000e+00 : f32
    %9 = vector.broadcast %cst_7 : f32 to vector<2048x32xf32>
    %10 = arith.maximumf %8, %9 : vector<2048x32xf32>
    %11 = arith.truncf %10 : vector<2048x32xf32> to vector<2048x32xbf16>
    %c0_8 = arith.constant 0 : index
    %c0_9 = arith.constant 0 : index
    %12 = vector.load %arg5[%c0_8, %c0_9] : memref<2048x32xbf16, #tpu.memory_space<vmem>>, vector<2048x32xbf16>
    tpu.vector_store %arg5[%c0_8, %c0_9], %11 {strides = array<i32>} : memref<2048x32xbf16, #tpu.memory_space<vmem>>, vector<2048x32xbf16>,
    return
  }
  func.func @transform_0(%arg0: i32) -> (i32, i32) {
    %c0_i32 = arith.constant 0 : i32
    %c0_i32_0 = arith.constant 0 : i32
    return %arg0, %c0_i32 : i32, i32
  }
  func.func @transform_1(%arg0: i32) -> (i32, i32) {
    %c0_i32 = arith.constant 0 : i32
    %c0_i32_0 = arith.constant 0 : i32
    %c0_i32_1 = arith.constant 0 : i32
    return %c0_i32, %c0_i32_0 : i32, i32
  }
  func.func @transform_2(%arg0: i32) -> (i32, i32) {
    %c0_i32 = arith.constant 0 : i32
    %c0_i32_0 = arith.constant 0 : i32
    %c0_i32_1 = arith.constant 0 : i32
    return %c0_i32, %c0_i32_0 : i32, i32
  }
  func.func @transform_3(%arg0: i32) -> (i32, i32) {
    %c0_i32 = arith.constant 0 : i32
    %c0_i32_0 = arith.constant 0 : i32
    %c0_i32_1 = arith.constant 0 : i32
    return %c0_i32, %c0_i32_0 : i32, i32
  }
  func.func @transform_4(%arg0: i32) -> (i32, i32) {
    %c0_i32 = arith.constant 0 : i32
    %c0_i32_0 = arith.constant 0 : i32
    return %arg0, %c0_i32 : i32, i32
  }
}

module attributes {stable_mosaic.version = 11 : i64} {
  func.func @_maxpool_kernel(%arg0: i32, %arg1: memref<16x2x16x64xbf16, #tpu.memory_space<vmem>>, %arg2: memref<16x16x32xbf16, #tpu.memory_space<vmem>>) attributes {dimension_semantics = [#tpu.dimension_semantics<parallel>], iteration_bounds = array<i64: 2>, scalar_prefetch = 0 : i64, scratch_operands = 0 : i64, tpu.core_type = #tpu.core_type<tc>, window_params = [{transform_indices = @transform_0, window_bounds = array<i64: 16, 2, 16, 64>}, {transform_indices = @transform_1, window_bounds = array<i64: 16, 16, 32>}]} {
    %c0 = arith.constant 0 : index
    %c0_0 = arith.constant 0 : index
    %c0_1 = arith.constant 0 : index
    %c0_2 = arith.constant 0 : index
    %0 = vector.load %arg1[%c0, %c0_0, %c0_1, %c0_2] : memref<16x2x16x64xbf16, #tpu.memory_space<vmem>>, vector<16x2x16x64xbf16>
    %1 = vector.extract_strided_slice %0 {offsets = [0, 0, 0, 0], sizes = [16, 1, 16, 64], strides = [1, 1, 1, 1]} : vector<16x2x16x64xbf16> to vector<16x1x16x64xbf16>
    %2 = vector.shape_cast %1 : vector<16x1x16x64xbf16> to vector<16x16x64xbf16>
    %3 = vector.extract_strided_slice %0 {offsets = [0, 1, 0, 0], sizes = [16, 1, 16, 64], strides = [1, 1, 1, 1]} : vector<16x2x16x64xbf16> to vector<16x1x16x64xbf16>
    %4 = vector.shape_cast %3 : vector<16x1x16x64xbf16> to vector<16x16x64xbf16>
    %5 = arith.maximumf %2, %4 : vector<16x16x64xbf16>
    %6 = vector.extract_strided_slice %5 {offsets = [0, 0, 0], sizes = [16, 16, 32], strides = [1, 1, 1]} : vector<16x16x64xbf16> to vector<16x16x32xbf16>
    %7 = vector.extract_strided_slice %5 {offsets = [0, 0, 32], sizes = [16, 16, 32], strides = [1, 1, 1]} : vector<16x16x64xbf16> to vector<16x16x32xbf16>
    %8 = arith.maximumf %6, %7 : vector<16x16x32xbf16>
    %c0_3 = arith.constant 0 : index
    %c0_4 = arith.constant 0 : index
    %c0_5 = arith.constant 0 : index
    %9 = vector.load %arg2[%c0_3, %c0_4, %c0_5] : memref<16x16x32xbf16, #tpu.memory_space<vmem>>, vector<16x16x32xbf16>
    tpu.vector_store %arg2[%c0_3, %c0_4, %c0_5], %8 {strides = array<i32>} : memref<16x16x32xbf16, #tpu.memory_space<vmem>>, vector<16x16x32xbf16>,
    return
  }
  func.func @transform_0(%arg0: i32) -> (i32, i32, i32, i32) {
    %c0_i32 = arith.constant 0 : i32
    %c0_i32_0 = arith.constant 0 : i32
    %c0_i32_1 = arith.constant 0 : i32
    %c0_i32_2 = arith.constant 0 : i32
    return %arg0, %c0_i32, %c0_i32_0, %c0_i32_1 : i32, i32, i32, i32
  }
  func.func @transform_1(%arg0: i32) -> (i32, i32, i32) {
    %c0_i32 = arith.constant 0 : i32
    %c0_i32_0 = arith.constant 0 : i32
    %c0_i32_1 = arith.constant 0 : i32
    return %arg0, %c0_i32, %c0_i32_0 : i32, i32, i32
  }
}

module attributes {stable_mosaic.version = 11 : i64} {
  func.func @_conv_mm_kernel(%arg0: i32, %arg1: memref<512x288xbf16, #tpu.memory_space<vmem>>, %arg2: memref<288x64xbf16, #tpu.memory_space<vmem>>, %arg3: memref<1x64xf32, #tpu.memory_space<vmem>>, %arg4: memref<1x64xf32, #tpu.memory_space<vmem>>, %arg5: memref<512x64xbf16, #tpu.memory_space<vmem>>) attributes {dimension_semantics = [#tpu.dimension_semantics<parallel>], iteration_bounds = array<i64: 1>, scalar_prefetch = 0 : i64, scratch_operands = 0 : i64, tpu.core_type = #tpu.core_type<tc>, window_params = [{transform_indices = @transform_0, window_bounds = array<i64: 512, 288>}, {pipeline_mode = #tpu.pipeline_mode<synchronous>, transform_indices = @transform_1, window_bounds = array<i64: 288, 64>}, {pipeline_mode = #tpu.pipeline_mode<synchronous>, transform_indices = @transform_2, window_bounds = array<i64: 1, 64>}, {pipeline_mode = #tpu.pipeline_mode<synchronous>, transform_indices = @transform_3, window_bounds = array<i64: 1, 64>}, {transform_indices = @transform_4, window_bounds = array<i64: 512, 64>}]} {
    %c0 = arith.constant 0 : index
    %c0_0 = arith.constant 0 : index
    %0 = vector.load %arg1[%c0, %c0_0] : memref<512x288xbf16, #tpu.memory_space<vmem>>, vector<512x288xbf16>
    %c0_1 = arith.constant 0 : index
    %c0_2 = arith.constant 0 : index
    %1 = vector.load %arg2[%c0_1, %c0_2] : memref<288x64xbf16, #tpu.memory_space<vmem>>, vector<288x64xbf16>
    %cst = arith.constant dense<0.000000e+00> : vector<512x64xf32>
    %2 = tpu.matmul %0, %1, %cst {dimension_numbers = #tpu.dot_dimension_numbers<[1], [0], [0], [1], [0, 0, 1, 1], [], []>} : vector<512x288xbf16>, vector<288x64xbf16>, vector<512x64xf32> -> vector<512x64xf32>
    %c0_3 = arith.constant 0 : index
    %c0_4 = arith.constant 0 : index
    %3 = vector.load %arg3[%c0_3, %c0_4] : memref<1x64xf32, #tpu.memory_space<vmem>>, vector<1x64xf32>
    %4 = vector.broadcast %3 : vector<1x64xf32> to vector<512x64xf32>
    %5 = arith.mulf %2, %4 : vector<512x64xf32>
    %c0_5 = arith.constant 0 : index
    %c0_6 = arith.constant 0 : index
    %6 = vector.load %arg4[%c0_5, %c0_6] : memref<1x64xf32, #tpu.memory_space<vmem>>, vector<1x64xf32>
    %7 = vector.broadcast %6 : vector<1x64xf32> to vector<512x64xf32>
    %8 = arith.addf %5, %7 : vector<512x64xf32>
    %cst_7 = arith.constant 0.000000e+00 : f32
    %9 = vector.broadcast %cst_7 : f32 to vector<512x64xf32>
    %10 = arith.maximumf %8, %9 : vector<512x64xf32>
    %11 = arith.truncf %10 : vector<512x64xf32> to vector<512x64xbf16>
    %c0_8 = arith.constant 0 : index
    %c0_9 = arith.constant 0 : index
    %12 = vector.load %arg5[%c0_8, %c0_9] : memref<512x64xbf16, #tpu.memory_space<vmem>>, vector<512x64xbf16>
    tpu.vector_store %arg5[%c0_8, %c0_9], %11 {strides = array<i32>} : memref<512x64xbf16, #tpu.memory_space<vmem>>, vector<512x64xbf16>,
    return
  }
  func.func @transform_0(%arg0: i32) -> (i32, i32) {
    %c0_i32 = arith.constant 0 : i32
    %c0_i32_0 = arith.constant 0 : i32
    return %arg0, %c0_i32 : i32, i32
  }
  func.func @transform_1(%arg0: i32) -> (i32, i32) {
    %c0_i32 = arith.constant 0 : i32
    %c0_i32_0 = arith.constant 0 : i32
    %c0_i32_1 = arith.constant 0 : i32
    return %c0_i32, %c0_i32_0 : i32, i32
  }
  func.func @transform_2(%arg0: i32) -> (i32, i32) {
    %c0_i32 = arith.constant 0 : i32
    %c0_i32_0 = arith.constant 0 : i32
    %c0_i32_1 = arith.constant 0 : i32
    return %c0_i32, %c0_i32_0 : i32, i32
  }
  func.func @transform_3(%arg0: i32) -> (i32, i32) {
    %c0_i32 = arith.constant 0 : i32
    %c0_i32_0 = arith.constant 0 : i32
    %c0_i32_1 = arith.constant 0 : i32
    return %c0_i32, %c0_i32_0 : i32, i32
  }
  func.func @transform_4(%arg0: i32) -> (i32, i32) {
    %c0_i32 = arith.constant 0 : i32
    %c0_i32_0 = arith.constant 0 : i32
    return %arg0, %c0_i32 : i32, i32
  }
}

module attributes {stable_mosaic.version = 11 : i64} {
  func.func @_maxpool_kernel(%arg0: i32, %arg1: memref<8x2x8x128xbf16, #tpu.memory_space<vmem>>, %arg2: memref<8x8x64xbf16, #tpu.memory_space<vmem>>) attributes {dimension_semantics = [#tpu.dimension_semantics<parallel>], iteration_bounds = array<i64: 2>, scalar_prefetch = 0 : i64, scratch_operands = 0 : i64, tpu.core_type = #tpu.core_type<tc>, window_params = [{transform_indices = @transform_0, window_bounds = array<i64: 8, 2, 8, 128>}, {transform_indices = @transform_1, window_bounds = array<i64: 8, 8, 64>}]} {
    %c0 = arith.constant 0 : index
    %c0_0 = arith.constant 0 : index
    %c0_1 = arith.constant 0 : index
    %c0_2 = arith.constant 0 : index
    %0 = vector.load %arg1[%c0, %c0_0, %c0_1, %c0_2] : memref<8x2x8x128xbf16, #tpu.memory_space<vmem>>, vector<8x2x8x128xbf16>
    %1 = vector.extract_strided_slice %0 {offsets = [0, 0, 0, 0], sizes = [8, 1, 8, 128], strides = [1, 1, 1, 1]} : vector<8x2x8x128xbf16> to vector<8x1x8x128xbf16>
    %2 = vector.shape_cast %1 : vector<8x1x8x128xbf16> to vector<8x8x128xbf16>
    %3 = vector.extract_strided_slice %0 {offsets = [0, 1, 0, 0], sizes = [8, 1, 8, 128], strides = [1, 1, 1, 1]} : vector<8x2x8x128xbf16> to vector<8x1x8x128xbf16>
    %4 = vector.shape_cast %3 : vector<8x1x8x128xbf16> to vector<8x8x128xbf16>
    %5 = arith.maximumf %2, %4 : vector<8x8x128xbf16>
    %6 = vector.extract_strided_slice %5 {offsets = [0, 0, 0], sizes = [8, 8, 64], strides = [1, 1, 1]} : vector<8x8x128xbf16> to vector<8x8x64xbf16>
    %7 = vector.extract_strided_slice %5 {offsets = [0, 0, 64], sizes = [8, 8, 64], strides = [1, 1, 1]} : vector<8x8x128xbf16> to vector<8x8x64xbf16>
    %8 = arith.maximumf %6, %7 : vector<8x8x64xbf16>
    %c0_3 = arith.constant 0 : index
    %c0_4 = arith.constant 0 : index
    %c0_5 = arith.constant 0 : index
    %9 = vector.load %arg2[%c0_3, %c0_4, %c0_5] : memref<8x8x64xbf16, #tpu.memory_space<vmem>>, vector<8x8x64xbf16>
    tpu.vector_store %arg2[%c0_3, %c0_4, %c0_5], %8 {strides = array<i32>} : memref<8x8x64xbf16, #tpu.memory_space<vmem>>, vector<8x8x64xbf16>,
    return
  }
  func.func @transform_0(%arg0: i32) -> (i32, i32, i32, i32) {
    %c0_i32 = arith.constant 0 : i32
    %c0_i32_0 = arith.constant 0 : i32
    %c0_i32_1 = arith.constant 0 : i32
    %c0_i32_2 = arith.constant 0 : i32
    return %arg0, %c0_i32, %c0_i32_0, %c0_i32_1 : i32, i32, i32, i32
  }
  func.func @transform_1(%arg0: i32) -> (i32, i32, i32) {
    %c0_i32 = arith.constant 0 : i32
    %c0_i32_0 = arith.constant 0 : i32
    %c0_i32_1 = arith.constant 0 : i32
    return %arg0, %c0_i32, %c0_i32_0 : i32, i32, i32
  }
}

module attributes {stable_mosaic.version = 11 : i64} {
  func.func @_conv_mm_kernel(%arg0: i32, %arg1: memref<128x576xbf16, #tpu.memory_space<vmem>>, %arg2: memref<576x128xbf16, #tpu.memory_space<vmem>>, %arg3: memref<1x128xf32, #tpu.memory_space<vmem>>, %arg4: memref<1x128xf32, #tpu.memory_space<vmem>>, %arg5: memref<128x128xbf16, #tpu.memory_space<vmem>>) attributes {dimension_semantics = [#tpu.dimension_semantics<parallel>], iteration_bounds = array<i64: 1>, scalar_prefetch = 0 : i64, scratch_operands = 0 : i64, tpu.core_type = #tpu.core_type<tc>, window_params = [{transform_indices = @transform_0, window_bounds = array<i64: 128, 576>}, {pipeline_mode = #tpu.pipeline_mode<synchronous>, transform_indices = @transform_1, window_bounds = array<i64: 576, 128>}, {pipeline_mode = #tpu.pipeline_mode<synchronous>, transform_indices = @transform_2, window_bounds = array<i64: 1, 128>}, {pipeline_mode = #tpu.pipeline_mode<synchronous>, transform_indices = @transform_3, window_bounds = array<i64: 1, 128>}, {transform_indices = @transform_4, window_bounds = array<i64: 128, 128>}]} {
    %c0 = arith.constant 0 : index
    %c0_0 = arith.constant 0 : index
    %0 = vector.load %arg1[%c0, %c0_0] : memref<128x576xbf16, #tpu.memory_space<vmem>>, vector<128x576xbf16>
    %c0_1 = arith.constant 0 : index
    %c0_2 = arith.constant 0 : index
    %1 = vector.load %arg2[%c0_1, %c0_2] : memref<576x128xbf16, #tpu.memory_space<vmem>>, vector<576x128xbf16>
    %cst = arith.constant dense<0.000000e+00> : vector<128x128xf32>
    %2 = tpu.matmul %0, %1, %cst {dimension_numbers = #tpu.dot_dimension_numbers<[1], [0], [0], [1], [0, 0, 1, 1], [], []>} : vector<128x576xbf16>, vector<576x128xbf16>, vector<128x128xf32> -> vector<128x128xf32>
    %c0_3 = arith.constant 0 : index
    %c0_4 = arith.constant 0 : index
    %3 = vector.load %arg3[%c0_3, %c0_4] : memref<1x128xf32, #tpu.memory_space<vmem>>, vector<1x128xf32>
    %4 = vector.broadcast %3 : vector<1x128xf32> to vector<128x128xf32>
    %5 = arith.mulf %2, %4 : vector<128x128xf32>
    %c0_5 = arith.constant 0 : index
    %c0_6 = arith.constant 0 : index
    %6 = vector.load %arg4[%c0_5, %c0_6] : memref<1x128xf32, #tpu.memory_space<vmem>>, vector<1x128xf32>
    %7 = vector.broadcast %6 : vector<1x128xf32> to vector<128x128xf32>
    %8 = arith.addf %5, %7 : vector<128x128xf32>
    %cst_7 = arith.constant 0.000000e+00 : f32
    %9 = vector.broadcast %cst_7 : f32 to vector<128x128xf32>
    %10 = arith.maximumf %8, %9 : vector<128x128xf32>
    %11 = arith.truncf %10 : vector<128x128xf32> to vector<128x128xbf16>
    %c0_8 = arith.constant 0 : index
    %c0_9 = arith.constant 0 : index
    %12 = vector.load %arg5[%c0_8, %c0_9] : memref<128x128xbf16, #tpu.memory_space<vmem>>, vector<128x128xbf16>
    tpu.vector_store %arg5[%c0_8, %c0_9], %11 {strides = array<i32>} : memref<128x128xbf16, #tpu.memory_space<vmem>>, vector<128x128xbf16>,
    return
  }
  func.func @transform_0(%arg0: i32) -> (i32, i32) {
    %c0_i32 = arith.constant 0 : i32
    %c0_i32_0 = arith.constant 0 : i32
    return %arg0, %c0_i32 : i32, i32
  }
  func.func @transform_1(%arg0: i32) -> (i32, i32) {
    %c0_i32 = arith.constant 0 : i32
    %c0_i32_0 = arith.constant 0 : i32
    %c0_i32_1 = arith.constant 0 : i32
    return %c0_i32, %c0_i32_0 : i32, i32
  }
  func.func @transform_2(%arg0: i32) -> (i32, i32) {
    %c0_i32 = arith.constant 0 : i32
    %c0_i32_0 = arith.constant 0 : i32
    %c0_i32_1 = arith.constant 0 : i32
    return %c0_i32, %c0_i32_0 : i32, i32
  }
  func.func @transform_3(%arg0: i32) -> (i32, i32) {
    %c0_i32 = arith.constant 0 : i32
    %c0_i32_0 = arith.constant 0 : i32
    %c0_i32_1 = arith.constant 0 : i32
    return %c0_i32, %c0_i32_0 : i32, i32
  }
  func.func @transform_4(%arg0: i32) -> (i32, i32) {
    %c0_i32 = arith.constant 0 : i32
    %c0_i32_0 = arith.constant 0 : i32
    return %arg0, %c0_i32 : i32, i32
  }
}

module attributes {stable_mosaic.version = 11 : i64} {
  func.func @_maxpool_kernel(%arg0: i32, %arg1: memref<4x2x4x256xbf16, #tpu.memory_space<vmem>>, %arg2: memref<4x4x128xbf16, #tpu.memory_space<vmem>>) attributes {dimension_semantics = [#tpu.dimension_semantics<parallel>], iteration_bounds = array<i64: 2>, scalar_prefetch = 0 : i64, scratch_operands = 0 : i64, tpu.core_type = #tpu.core_type<tc>, window_params = [{transform_indices = @transform_0, window_bounds = array<i64: 4, 2, 4, 256>}, {transform_indices = @transform_1, window_bounds = array<i64: 4, 4, 128>}]} {
    %c0 = arith.constant 0 : index
    %c0_0 = arith.constant 0 : index
    %c0_1 = arith.constant 0 : index
    %c0_2 = arith.constant 0 : index
    %0 = vector.load %arg1[%c0, %c0_0, %c0_1, %c0_2] : memref<4x2x4x256xbf16, #tpu.memory_space<vmem>>, vector<4x2x4x256xbf16>
    %1 = vector.extract_strided_slice %0 {offsets = [0, 0, 0, 0], sizes = [4, 1, 4, 256], strides = [1, 1, 1, 1]} : vector<4x2x4x256xbf16> to vector<4x1x4x256xbf16>
    %2 = vector.shape_cast %1 : vector<4x1x4x256xbf16> to vector<4x4x256xbf16>
    %3 = vector.extract_strided_slice %0 {offsets = [0, 1, 0, 0], sizes = [4, 1, 4, 256], strides = [1, 1, 1, 1]} : vector<4x2x4x256xbf16> to vector<4x1x4x256xbf16>
    %4 = vector.shape_cast %3 : vector<4x1x4x256xbf16> to vector<4x4x256xbf16>
    %5 = arith.maximumf %2, %4 : vector<4x4x256xbf16>
    %6 = vector.extract_strided_slice %5 {offsets = [0, 0, 0], sizes = [4, 4, 128], strides = [1, 1, 1]} : vector<4x4x256xbf16> to vector<4x4x128xbf16>
    %7 = vector.extract_strided_slice %5 {offsets = [0, 0, 128], sizes = [4, 4, 128], strides = [1, 1, 1]} : vector<4x4x256xbf16> to vector<4x4x128xbf16>
    %8 = arith.maximumf %6, %7 : vector<4x4x128xbf16>
    %c0_3 = arith.constant 0 : index
    %c0_4 = arith.constant 0 : index
    %c0_5 = arith.constant 0 : index
    %9 = vector.load %arg2[%c0_3, %c0_4, %c0_5] : memref<4x4x128xbf16, #tpu.memory_space<vmem>>, vector<4x4x128xbf16>
    tpu.vector_store %arg2[%c0_3, %c0_4, %c0_5], %8 {strides = array<i32>} : memref<4x4x128xbf16, #tpu.memory_space<vmem>>, vector<4x4x128xbf16>,
    return
  }
  func.func @transform_0(%arg0: i32) -> (i32, i32, i32, i32) {
    %c0_i32 = arith.constant 0 : i32
    %c0_i32_0 = arith.constant 0 : i32
    %c0_i32_1 = arith.constant 0 : i32
    %c0_i32_2 = arith.constant 0 : i32
    return %arg0, %c0_i32, %c0_i32_0, %c0_i32_1 : i32, i32, i32, i32
  }
  func.func @transform_1(%arg0: i32) -> (i32, i32, i32) {
    %c0_i32 = arith.constant 0 : i32
    %c0_i32_0 = arith.constant 0 : i32
    %c0_i32_1 = arith.constant 0 : i32
    return %arg0, %c0_i32, %c0_i32_0 : i32, i32, i32
  }
}

module attributes {stable_mosaic.version = 11 : i64} {
  func.func @_head_kernel(%arg0: i32, %arg1: i32, %arg2: memref<2x2048xbf16, #tpu.memory_space<vmem>>, %arg3: memref<2048x512xbf16, #tpu.memory_space<vmem>>, %arg4: memref<1x512xf32, #tpu.memory_space<vmem>>, %arg5: memref<512x2xf32, #tpu.memory_space<vmem>>, %arg6: memref<1x2xf32, #tpu.memory_space<vmem>>, %arg7: memref<2x2xf32, #tpu.memory_space<vmem>>, %arg8: memref<2x512xf32, #tpu.memory_space<vmem>>) attributes {dimension_semantics = [#tpu.dimension_semantics<parallel>, #tpu.dimension_semantics<arbitrary>], iteration_bounds = array<i64: 1, 1>, scalar_prefetch = 0 : i64, scratch_operands = 1 : i64, tpu.core_type = #tpu.core_type<tc>, window_params = [{transform_indices = @transform_0, window_bounds = array<i64: 2, 2048>}, {transform_indices = @transform_1, window_bounds = array<i64: 2048, 512>}, {pipeline_mode = #tpu.pipeline_mode<synchronous>, transform_indices = @transform_2, window_bounds = array<i64: 1, 512>}, {pipeline_mode = #tpu.pipeline_mode<synchronous>, transform_indices = @transform_3, window_bounds = array<i64: 512, 2>}, {pipeline_mode = #tpu.pipeline_mode<synchronous>, transform_indices = @transform_4, window_bounds = array<i64: 1, 2>}, {transform_indices = @transform_5, window_bounds = array<i64: 2, 2>}]} {
    %c0_i32 = arith.constant 0 : i32
    %0 = arith.cmpi eq, %arg1, %c0_i32 : i32
    %1 = arith.extui %0 : i1 to i32
    %c0_i32_0 = arith.constant 0 : i32
    %2 = arith.cmpi ne, %1, %c0_i32_0 : i32
    scf.if %2 {
      %cst_10 = arith.constant 0.000000e+00 : f32
      %12 = vector.broadcast %cst_10 : f32 to vector<2x512xf32>
      %c0_11 = arith.constant 0 : index
      %c0_12 = arith.constant 0 : index
      %13 = vector.load %arg8[%c0_11, %c0_12] : memref<2x512xf32, #tpu.memory_space<vmem>>, vector<2x512xf32>
      tpu.vector_store %arg8[%c0_11, %c0_12], %12 {strides = array<i32>} : memref<2x512xf32, #tpu.memory_space<vmem>>, vector<2x512xf32>,
    } else {
    }
    %c0 = arith.constant 0 : index
    %c0_1 = arith.constant 0 : index
    %3 = vector.load %arg8[%c0, %c0_1] : memref<2x512xf32, #tpu.memory_space<vmem>>, vector<2x512xf32>
    %c0_2 = arith.constant 0 : index
    %c0_3 = arith.constant 0 : index
    %4 = vector.load %arg2[%c0_2, %c0_3] : memref<2x2048xbf16, #tpu.memory_space<vmem>>, vector<2x2048xbf16>
    %c0_4 = arith.constant 0 : index
    %c0_5 = arith.constant 0 : index
    %5 = vector.load %arg3[%c0_4, %c0_5] : memref<2048x512xbf16, #tpu.memory_space<vmem>>, vector<2048x512xbf16>
    %cst = arith.constant dense<0.000000e+00> : vector<2x512xf32>
    %6 = tpu.matmul %4, %5, %cst {dimension_numbers = #tpu.dot_dimension_numbers<[1], [0], [0], [1], [0, 0, 1, 1], [], []>} : vector<2x2048xbf16>, vector<2048x512xbf16>, vector<2x512xf32> -> vector<2x512xf32>
    %7 = arith.addf %3, %6 : vector<2x512xf32>
    %c0_6 = arith.constant 0 : index
    %c0_7 = arith.constant 0 : index
    %8 = vector.load %arg8[%c0_6, %c0_7] : memref<2x512xf32, #tpu.memory_space<vmem>>, vector<2x512xf32>
    tpu.vector_store %arg8[%c0_6, %c0_7], %7 {strides = array<i32>} : memref<2x512xf32, #tpu.memory_space<vmem>>, vector<2x512xf32>,
    %c0_i32_8 = arith.constant 0 : i32
    %9 = arith.cmpi eq, %arg1, %c0_i32_8 : i32
    %10 = arith.extui %9 : i1 to i32
    %c0_i32_9 = arith.constant 0 : i32
    %11 = arith.cmpi ne, %10, %c0_i32_9 : i32
    scf.if %11 {
      %c0_10 = arith.constant 0 : index
      %c0_11 = arith.constant 0 : index
      %12 = vector.load %arg8[%c0_10, %c0_11] : memref<2x512xf32, #tpu.memory_space<vmem>>, vector<2x512xf32>
      %c0_12 = arith.constant 0 : index
      %c0_13 = arith.constant 0 : index
      %13 = vector.load %arg4[%c0_12, %c0_13] : memref<1x512xf32, #tpu.memory_space<vmem>>, vector<1x512xf32>
      %14 = vector.broadcast %13 : vector<1x512xf32> to vector<2x512xf32>
      %15 = arith.addf %12, %14 : vector<2x512xf32>
      %cst_14 = arith.constant 0.000000e+00 : f32
      %16 = vector.broadcast %cst_14 : f32 to vector<2x512xf32>
      %17 = arith.maximumf %15, %16 : vector<2x512xf32>
      %c0_15 = arith.constant 0 : index
      %c0_16 = arith.constant 0 : index
      %18 = vector.load %arg5[%c0_15, %c0_16] : memref<512x2xf32, #tpu.memory_space<vmem>>, vector<512x2xf32>
      %cst_17 = arith.constant dense<0.000000e+00> : vector<2x2xf32>
      %19 = tpu.matmul %17, %18, %cst_17 {dimension_numbers = #tpu.dot_dimension_numbers<[1], [0], [0], [1], [0, 0, 1, 1], [], []>} : vector<2x512xf32>, vector<512x2xf32>, vector<2x2xf32> -> vector<2x2xf32>
      %c0_18 = arith.constant 0 : index
      %c0_19 = arith.constant 0 : index
      %20 = vector.load %arg6[%c0_18, %c0_19] : memref<1x2xf32, #tpu.memory_space<vmem>>, vector<1x2xf32>
      %21 = vector.broadcast %20 : vector<1x2xf32> to vector<2x2xf32>
      %22 = arith.addf %19, %21 : vector<2x2xf32>
      %c0_20 = arith.constant 0 : index
      %c0_21 = arith.constant 0 : index
      %23 = vector.load %arg7[%c0_20, %c0_21] : memref<2x2xf32, #tpu.memory_space<vmem>>, vector<2x2xf32>
      tpu.vector_store %arg7[%c0_20, %c0_21], %22 {strides = array<i32>} : memref<2x2xf32, #tpu.memory_space<vmem>>, vector<2x2xf32>,
    } else {
    }
    return
  }
  func.func @transform_0(%arg0: i32, %arg1: i32) -> (i32, i32) {
    %c0_i32 = arith.constant 0 : i32
    return %arg0, %arg1 : i32, i32
  }
  func.func @transform_1(%arg0: i32, %arg1: i32) -> (i32, i32) {
    %c0_i32 = arith.constant 0 : i32
    %c0_i32_0 = arith.constant 0 : i32
    return %arg1, %c0_i32 : i32, i32
  }
  func.func @transform_2(%arg0: i32, %arg1: i32) -> (i32, i32) {
    %c0_i32 = arith.constant 0 : i32
    %c0_i32_0 = arith.constant 0 : i32
    %c0_i32_1 = arith.constant 0 : i32
    return %c0_i32, %c0_i32_0 : i32, i32
  }
  func.func @transform_3(%arg0: i32, %arg1: i32) -> (i32, i32) {
    %c0_i32 = arith.constant 0 : i32
    %c0_i32_0 = arith.constant 0 : i32
    %c0_i32_1 = arith.constant 0 : i32
    return %c0_i32, %c0_i32_0 : i32, i32
  }
  func.func @transform_4(%arg0: i32, %arg1: i32) -> (i32, i32) {
    %c0_i32 = arith.constant 0 : i32
    %c0_i32_0 = arith.constant 0 : i32
    %c0_i32_1 = arith.constant 0 : i32
    return %c0_i32, %c0_i32_0 : i32, i32
  }
  func.func @transform_5(%arg0: i32, %arg1: i32) -> (i32, i32) {
    %c0_i32 = arith.constant 0 : i32
    %c0_i32_0 = arith.constant 0 : i32
    return %arg0, %c0_i32 : i32, i32
  }
}

</mosaic_0001>

<llo_original>
// kernel: simple_cnn_forward.8
$region0: #{simple_cnn_forward.8}
  #allocation0 [shape = 'u32[]', space=smem, size = 0x4, offset = 0x4, fixed_abs, tag = 'smem constant byte address 0x4 - core index']
  #allocation1 [shape = 'u32[144,128]{1,0:T(1,128)}', space=vmem, size = 0x12000, scoped, tag = 'internal scratch']
  %s0 = inlined_call_operand.vmem [shape: bf16[32,2,16,64], index: 0, kind: input, shape index: {}]
  %s1 = inlined_call_operand.vmem [shape: bf16[32,16,32], index: 1, kind: output, shape index: {}]
  %s2 = sld [smem:[#allocation0]]
  $region37: #{simple_cnn_forward.8} parent=0
    _
  %s4 = ssub.s32 1, %s2
  %s5 = scalar_select 0, %s4, %s2
  loop: start=0, step=1, limit=4
  $region2: #{simple_cnn_forward.8} parent=0 // loop_pre_header
    _
  $region3: #{simple_cnn_forward.8} parent=0 // loop_header
    %s7 = sphi 0, %s11
    %p8 = scmp.ge.s32.totalorder %s7, 4
    %s17 = sphi 0, %s19
    %s20 = sphi 0, %s17
    %s21 = sphi 0, %s20
    %s37 = sphi 0, %s21
    %s43 = sphi 0, %s45
    %s46 = sphi 0, %s43
    %s47 = sphi 0, %s46
    %s63 = sphi 0, %s47
  $region4: #{simple_cnn_forward.8} parent=0 // loop_header_branch
    %10 = sbr.rel (%p8) target = $region8
  $region5: #{simple_cnn_forward.8} parent=0 // loop_body
    %s12 = ssub.s32 %s7, 1
    %s13 = ssub.s32 %s7, 2
    %s14 = sadd.s32 %s7, 1
    %s15 = ssub.s32 %s7, %s14
    %p16 = scmp.eq.s32.totalorder %s15, 0
    %s18 = sadd.s32 %s17, 1
    %s19 = scalar_select %p16, %s17, %s18
    %p22 = pneg %p16
    %p23 = scmp.eq.s32.totalorder %s7, 1
    %p24 = por %p22, %p23
    %p25 = scmp.ne.s32.totalorder %s17, %s20
    %p26 = scmp.eq.s32.totalorder %s7, 0
    %p27 = por %p25, %p26
    %p28 = scmp.ne.s32.totalorder %s17, %s20
    %p29 = scmp.eq.s32.totalorder %s12, 1
    %p30 = por %p28, %p29
    %p31 = scmp.ne.s32.totalorder %s20, %s21
    %p32 = scmp.eq.s32.totalorder %s12, 0
    %p33 = por %p31, %p32
    %p34 = scmp.ne.s32.totalorder %s20, %s21
    %p35 = scmp.eq.s32.totalorder %s13, 1
    %p36 = por %p34, %p35
    %p38 = scmp.ne.s32.totalorder %s21, %s37
    %p39 = scmp.eq.s32.totalorder %s13, 0
    %p40 = por %p38, %p39
    %s41 = ssub.s32 %s7, %s14
    %p42 = scmp.eq.s32.totalorder %s41, 0
    %s44 = sadd.s32 %s43, 1
    %s45 = scalar_select %p42, %s43, %s44
    %p48 = pneg %p42
    %p49 = scmp.eq.s32.totalorder %s7, 1
    %p50 = por %p48, %p49
    %p51 = scmp.ne.s32.totalorder %s43, %s46
    %p52 = scmp.eq.s32.totalorder %s7, 0
    %p53 = por %p51, %p52
    %p54 = scmp.ne.s32.totalorder %s43, %s46
    %p55 = scmp.eq.s32.totalorder %s12, 1
    %p56 = por %p54, %p55
    %p57 = scmp.ne.s32.totalorder %s46, %s47
    %p58 = scmp.eq.s32.totalorder %s12, 0
    %p59 = por %p57, %p58
    %p60 = scmp.ne.s32.totalorder %s46, %s47
    %p61 = scmp.eq.s32.totalorder %s13, 1
    %p62 = por %p60, %p61
    %p64 = scmp.ne.s32.totalorder %s47, %s63
    %p65 = scmp.eq.s32.totalorder %s13, 0
    %p66 = por %p64, %p65
    %p67 = scmp.le.s32.totalorder 1, %s7
    %p68 = scmp.lt.s32.totalorder %s7, 3
    %p69 = pnand %p67, %p68
    %p70 = pneg %p69
    // Predicated region
    $region9: #{simple_cnn_forward.8} parent=5 // pred_check
      _
    $region10: #{simple_cnn_forward.8} parent=5 // pred_check_branch
      %72 = sbr.rel (%p69) target = $region12
    $region11: #{simple_cnn_forward.8} parent=5 // pred_region
      %s73 = ssub.s32 %s7, 1
    $region12: #{simple_cnn_forward.8} parent=5 // pred_fallthru
      _
    %p74 = scmp.lt.s32.totalorder %s7, 2
    // Predicated region
    $region13: #{simple_cnn_forward.8} parent=5 // pred_check
      %p75 = pneg %p74
    $region14: #{simple_cnn_forward.8} parent=5 // pred_check_branch
      %77 = sbr.rel (%p75) target = $region16
    $region15: #{simple_cnn_forward.8} parent=5 // pred_region
      // Predicated region
      $region17: #{simple_cnn_forward.8} parent=15 // pred_check
        %p78 = pneg %p27
      $region18: #{simple_cnn_forward.8} parent=15 // pred_check_branch
        %80 = sbr.rel (%p78) target = $region20
      $region19: #{simple_cnn_forward.8} parent=15 // pred_region
        %s81 = smul.u32 16, %s7
        %p82 = scmp.lt.s32.totalorder %s81, 31
        %s83 = scalar_select %p82, %s81, 31
        %s84 = smul.addr %s83, 4
        %s85 = smul.addr %s84, 4
        %s86 = scalar_lea.vmem %s0, %s85
        %s87 = smul.u32 16, %s7
      $region20: #{simple_cnn_forward.8} parent=15 // pred_fallthru
        _
    $region16: #{simple_cnn_forward.8} parent=5 // pred_fallthru
      _
    %p88 = scmp.le.s32.totalorder 1, %s7
    %p89 = scmp.lt.s32.totalorder %s7, 3
    %p90 = pnand %p88, %p89
    %p91 = pneg %p90
    // Predicated region
    $region21: #{simple_cnn_forward.8} parent=5 // pred_check
      _
    $region22: #{simple_cnn_forward.8} parent=5 // pred_check_branch
      %93 = sbr.rel (%p90) target = $region24
    $region23: #{simple_cnn_forward.8} parent=5 // pred_region
      %s94 = ssub.s32 %s7, 1
      %s95 = smul.u32 16, %s12
      %p96 = scmp.lt.s32.totalorder %s95, 31
      %s97 = scalar_select %p96, %s95, 31
      %s98 = smul.addr %s97, 4
      %s99 = smul.addr %s98, 4
      %s100 = scalar_lea.vmem %s0, %s99
      %p101 = pneg %p33
      %p102 = pneg %p30
      %p103 = pneg %p59
      %p104 = pneg %p56
      %s105 = smul.u32 16, %s12
      %p106 = scmp.lt.s32.totalorder %s105, 31
      %s107 = scalar_select %p106, %s105, 31
      %s108 = smul.addr %s107, 2
      %s109 = smul.addr %s108, 4
      %s110 = scalar_lea.vmem %s1, %s109
      %s111 = smul.u32 16, %s12
      %p112 = scmp.lt.s32.totalorder %s111, 31
      %s113 = scalar_select %p112, %s111, 31
      %s114 = smul.addr %s113, 4
      %s115 = smul.addr %s114, 4
      %s116 = scalar_lea.vmem %s0, %s115
      %s117 = smul.u32 16, %s12
      %s118 = smul.u32 16, %s12
      %p119 = scmp.lt.s32.totalorder %s118, 31
      %s120 = scalar_select %p119, %s118, 31
      %s121 = smul.addr %s120, 2
      %s122 = smul.addr %s121, 4
      %s123 = scalar_lea.vmem %s1, %s122
      %s124 = smul.u32 16, %s12
      %v125 = vld [vmem:[%s116] sm:$0xf]
      %v126 = vld [vmem:[%s116 + $0x4] sm:$0xf]
      %v127 = vld [vmem:[%s116 + $0x8] sm:$0xf]
      %v128 = vld [vmem:[%s116 + $0xc] sm:$0xf]
      %v129 = vld [vmem:[%s116 + $0x10] sm:$0xf]
      %v130 = vld [vmem:[%s116 + $0x14] sm:$0xf]
      %v131 = vld [vmem:[%s116 + $0x18] sm:$0xf]
      %v132 = vld [vmem:[%s116 + $0x1c] sm:$0xf]
      %v133 = vld [vmem:[%s116 + $0x20] sm:$0xf]
      %v134 = vld [vmem:[%s116 + $0x24] sm:$0xf]
      %v135 = vld [vmem:[%s116 + $0x28] sm:$0xf]
      %v136 = vld [vmem:[%s116 + $0x2c] sm:$0xf]
      %v137 = vld [vmem:[%s116 + $0x30] sm:$0xf]
      %v138 = vld [vmem:[%s116 + $0x34] sm:$0xf]
      %v139 = vld [vmem:[%s116 + $0x38] sm:$0xf]
      %v140 = vld [vmem:[%s116 + $0x3c] sm:$0xf]
      %v141 = vld [vmem:[%s116 + $0x40] sm:$0xf]
      %v142 = vld [vmem:[%s116 + $0x44] sm:$0xf]
      %v143 = vld [vmem:[%s116 + $0x48] sm:$0xf]
      %v144 = vld [vmem:[%s116 + $0x4c] sm:$0xf]
      %v145 = vld [vmem:[%s116 + $0x50] sm:$0xf]
      %v146 = vld [vmem:[%s116 + $0x54] sm:$0xf]
      %v147 = vld [vmem:[%s116 + $0x58] sm:$0xf]
      %v148 = vld [vmem:[%s116 + $0x5c] sm:$0xf]
      %v149 = vld [vmem:[%s116 + $0x60] sm:$0xf]
      %v150 = vld [vmem:[%s116 + $0x64] sm:$0xf]
      %v151 = vld [vmem:[%s116 + $0x68] sm:$0xf]
      %v152 = vld [vmem:[%s116 + $0x6c] sm:$0xf]
      %v153 = vld [vmem:[%s116 + $0x70] sm:$0xf]
      %v154 = vld [vmem:[%s116 + $0x74] sm:$0xf]
      %v155 = vld [vmem:[%s116 + $0x78] sm:$0xf]
      %v156 = vld [vmem:[%s116 + $0x7c] sm:$0xf]
      %v157 = vld [vmem:[%s116 + $0x80] sm:$0xf]
      %v158 = vld [vmem:[%s116 + $0x84] sm:$0xf]
      %v159 = vld [vmem:[%s116 + $0x88] sm:$0xf]
      %v160 = vld [vmem:[%s116 + $0x8c] sm:$0xf]
      %v161 = vld [vmem:[%s116 + $0x90] sm:$0xf]
      %v162 = vld [vmem:[%s116 + $0x94] sm:$0xf]
      %v163 = vld [vmem:[%s116 + $0x98] sm:$0xf]
      %v164 = vld [vmem:[%s116 + $0x9c] sm:$0xf]
      %v165 = vld [vmem:[%s116 + $0xa0] sm:$0xf]
      %v166 = vld [vmem:[%s116 + $0xa4] sm:$0xf]
      %v167 = vld [vmem:[%s116 + $0xa8] sm:$0xf]
      %v168 = vld [vmem:[%s116 + $0xac] sm:$0xf]
      %v169 = vld [vmem:[%s116 + $0xb0] sm:$0xf]
      %v170 = vld [vmem:[%s116 + $0xb4] sm:$0xf]
      %v171 = vld [vmem:[%s116 + $0xb8] sm:$0xf]
      %v172 = vld [vmem:[%s116 + $0xbc] sm:$0xf]
      %v173 = vld [vmem:[%s116 + $0xc0] sm:$0xf]
      %v174 = vld [vmem:[%s116 + $0xc4] sm:$0xf]
      %v175 = vld [vmem:[%s116 + $0xc8] sm:$0xf]
      %v176 = vld [vmem:[%s116 + $0xcc] sm:$0xf]
      %v177 = vld [vmem:[%s116 + $0xd0] sm:$0xf]
      %v178 = vld [vmem:[%s116 + $0xd4] sm:$0xf]
      %v179 = vld [vmem:[%s116 + $0xd8] sm:$0xf]
      %v180 = vld [vmem:[%s116 + $0xdc] sm:$0xf]
      %v181 = vld [vmem:[%s116 + $0xe0] sm:$0xf]
      %v182 = vld [vmem:[%s116 + $0xe4] sm:$0xf]
      %v183 = vld [vmem:[%s116 + $0xe8] sm:$0xf]
      %v184 = vld [vmem:[%s116 + $0xec] sm:$0xf]
      %v185 = vld [vmem:[%s116 + $0xf0] sm:$0xf]
      %v186 = vld [vmem:[%s116 + $0xf4] sm:$0xf]
      %v187 = vld [vmem:[%s116 + $0xf8] sm:$0xf]
      %v188 = vld [vmem:[%s116 + $0xfc] sm:$0xf]
      %v189 = vmax.bf16 %v125, %v127
      %v190 = vmax.bf16 %v126, %v128
      %v191 = vmax.bf16 %v129, %v131
      %v192 = vmax.bf16 %v130, %v132
      %v193 = vmax.bf16 %v133, %v135
      %v194 = vmax.bf16 %v134, %v136
      %v195 = vmax.bf16 %v137, %v139
      %v196 = vmax.bf16 %v138, %v140
      %v197 = vmax.bf16 %v141, %v143
      %v198 = vmax.bf16 %v142, %v144
      %v199 = vmax.bf16 %v145, %v147
      %v200 = vmax.bf16 %v146, %v148
      %v201 = vmax.bf16 %v149, %v151
      %v202 = vmax.bf16 %v150, %v152
      %v203 = vmax.bf16 %v153, %v155
      %v204 = vmax.bf16 %v154, %v156
      %v205 = vmax.bf16 %v157, %v159
      %v206 = vmax.bf16 %v158, %v160
      %v207 = vmax.bf16 %v161, %v163
      %v208 = vmax.bf16 %v162, %v164
      %v209 = vmax.bf16 %v165, %v167
      %v210 = vmax.bf16 %v166, %v168
      %v211 = vmax.bf16 %v169, %v171
      %v212 = vmax.bf16 %v170, %v172
      %v213 = vmax.bf16 %v173, %v175
      %v214 = vmax.bf16 %v174, %v176
      %v215 = vmax.bf16 %v177, %v179
      %v216 = vmax.bf16 %v178, %v180
      %v217 = vmax.bf16 %v181, %v183
      %v218 = vmax.bf16 %v182, %v184
      %v219 = vmax.bf16 %v185, %v187
      %v220 = vmax.bf16 %v186, %v188
      %253 = vrot.lane.b32.xlu0 %v189, 96
      %v254 = vpop.permute.xlu0 %253
      %255 = vrot.lane.b32.xlu0 %v190, 96
      %v256 = vpop.permute.xlu0 %255
      %257 = vrot.lane.b32.xlu0 %v191, 96
      %v258 = vpop.permute.xlu0 %257
      %259 = vrot.lane.b32.xlu0 %v192, 96
      %v260 = vpop.permute.xlu0 %259
      %261 = vrot.lane.b32.xlu0 %v193, 96
      %v262 = vpop.permute.xlu0 %261
      %263 = vrot.lane.b32.xlu0 %v194, 96
      %v264 = vpop.permute.xlu0 %263
      %265 = vrot.lane.b32.xlu0 %v195, 96
      %v266 = vpop.permute.xlu0 %265
      %267 = vrot.lane.b32.xlu0 %v196, 96
      %v268 = vpop.permute.xlu0 %267
      %269 = vrot.lane.b32.xlu0 %v197, 96
      %v270 = vpop.permute.xlu0 %269
      %271 = vrot.lane.b32.xlu0 %v198, 96
      %v272 = vpop.permute.xlu0 %271
      %273 = vrot.lane.b32.xlu0 %v199, 96
      %v274 = vpop.permute.xlu0 %273
      %275 = vrot.lane.b32.xlu0 %v200, 96
      %v276 = vpop.permute.xlu0 %275
      %277 = vrot.lane.b32.xlu0 %v201, 96
      %v278 = vpop.permute.xlu0 %277
      %279 = vrot.lane.b32.xlu0 %v202, 96
      %v280 = vpop.permute.xlu0 %279
      %281 = vrot.lane.b32.xlu0 %v203, 96
      %v282 = vpop.permute.xlu0 %281
      %283 = vrot.lane.b32.xlu0 %v204, 96
      %v284 = vpop.permute.xlu0 %283
      %285 = vrot.lane.b32.xlu0 %v205, 96
      %v286 = vpop.permute.xlu0 %285
      %287 = vrot.lane.b32.xlu0 %v206, 96
      %v288 = vpop.permute.xlu0 %287
      %289 = vrot.lane.b32.xlu0 %v207, 96
      %v290 = vpop.permute.xlu0 %289
      %291 = vrot.lane.b32.xlu0 %v208, 96
      %v292 = vpop.permute.xlu0 %291
      %293 = vrot.lane.b32.xlu0 %v209, 96
      %v294 = vpop.permute.xlu0 %293
      %295 = vrot.lane.b32.xlu0 %v210, 96
      %v296 = vpop.permute.xlu0 %295
      %297 = vrot.lane.b32.xlu0 %v211, 96
      %v298 = vpop.permute.xlu0 %297
      %299 = vrot.lane.b32.xlu0 %v212, 96
      %v300 = vpop.permute.xlu0 %299
      %301 = vrot.lane.b32.xlu0 %v213, 96
      %v302 = vpop.permute.xlu0 %301
      %303 = vrot.lane.b32.xlu0 %v214, 96
      %v304 = vpop.permute.xlu0 %303
      %305 = vrot.lane.b32.xlu0 %v215, 96
      %v306 = vpop.permute.xlu0 %305
      %307 = vrot.lane.b32.xlu0 %v216, 96
      %v308 = vpop.permute.xlu0 %307
      %309 = vrot.lane.b32.xlu0 %v217, 96
      %v310 = vpop.permute.xlu0 %309
      %311 = vrot.lane.b32.xlu0 %v218, 96
      %v312 = vpop.permute.xlu0 %311
      %313 = vrot.lane.b32.xlu0 %v219, 96
      %v314 = vpop.permute.xlu0 %313
      %315 = vrot.lane.b32.xlu0 %v220, 96
      %v316 = vpop.permute.xlu0 %315
      %v349 = vmax.bf16 %v189, %v254
      %v350 = vmax.bf16 %v190, %v256
      %v351 = vmax.bf16 %v191, %v258
      %v352 = vmax.bf16 %v192, %v260
      %v353 = vmax.bf16 %v193, %v262
      %v354 = vmax.bf16 %v194, %v264
      %v355 = vmax.bf16 %v195, %v266
      %v356 = vmax.bf16 %v196, %v268
      %v357 = vmax.bf16 %v197, %v270
      %v358 = vmax.bf16 %v198, %v272
      %v359 = vmax.bf16 %v199, %v274
      %v360 = vmax.bf16 %v200, %v276
      %v361 = vmax.bf16 %v201, %v278
      %v362 = vmax.bf16 %v202, %v280
      %v363 = vmax.bf16 %v203, %v282
      %v364 = vmax.bf16 %v204, %v284
      %v365 = vmax.bf16 %v205, %v286
      %v366 = vmax.bf16 %v206, %v288
      %v367 = vmax.bf16 %v207, %v290
      %v368 = vmax.bf16 %v208, %v292
      %v369 = vmax.bf16 %v209, %v294
      %v370 = vmax.bf16 %v210, %v296
      %v371 = vmax.bf16 %v211, %v298
      %v372 = vmax.bf16 %v212, %v300
      %v373 = vmax.bf16 %v213, %v302
      %v374 = vmax.bf16 %v214, %v304
      %v375 = vmax.bf16 %v215, %v306
      %v376 = vmax.bf16 %v216, %v308
      %v377 = vmax.bf16 %v217, %v310
      %v378 = vmax.bf16 %v218, %v312
      %v379 = vmax.bf16 %v219, %v314
      %v380 = vmax.bf16 %v220, %v316
      %vm381 = vcmask 257024
      %382 = vst.msk [vmem:[%s123] sm:$0xf] %vm381, %v349
      %383 = vst.msk [vmem:[%s123 + $0x4] sm:$0xf] %vm381, %v350
      %384 = vst.msk [vmem:[%s123 + $0x8] sm:$0xf] %vm381, %v351
      %385 = vst.msk [vmem:[%s123 + $0xc] sm:$0xf] %vm381, %v352
      %386 = vst.msk [vmem:[%s123 + $0x10] sm:$0xf] %vm381, %v353
      %387 = vst.msk [vmem:[%s123 + $0x14] sm:$0xf] %vm381, %v354
      %388 = vst.msk [vmem:[%s123 + $0x18] sm:$0xf] %vm381, %v355
      %389 = vst.msk [vmem:[%s123 + $0x1c] sm:$0xf] %vm381, %v356
      %390 = vst.msk [vmem:[%s123 + $0x20] sm:$0xf] %vm381, %v357
      %391 = vst.msk [vmem:[%s123 + $0x24] sm:$0xf] %vm381, %v358
      %392 = vst.msk [vmem:[%s123 + $0x28] sm:$0xf] %vm381, %v359
      %393 = vst.msk [vmem:[%s123 + $0x2c] sm:$0xf] %vm381, %v360
      %394 = vst.msk [vmem:[%s123 + $0x30] sm:$0xf] %vm381, %v361
      %395 = vst.msk [vmem:[%s123 + $0x34] sm:$0xf] %vm381, %v362
      %396 = vst.msk [vmem:[%s123 + $0x38] sm:$0xf] %vm381, %v363
      %397 = vst.msk [vmem:[%s123 + $0x3c] sm:$0xf] %vm381, %v364
      %398 = vst.msk [vmem:[%s123 + $0x40] sm:$0xf] %vm381, %v365
      %399 = vst.msk [vmem:[%s123 + $0x44] sm:$0xf] %vm381, %v366
      %400 = vst.msk [vmem:[%s123 + $0x48] sm:$0xf] %vm381, %v367
      %401 = vst.msk [vmem:[%s123 + $0x4c] sm:$0xf] %vm381, %v368
      %402 = vst.msk [vmem:[%s123 + $0x50] sm:$0xf] %vm381, %v369
      %403 = vst.msk [vmem:[%s123 + $0x54] sm:$0xf] %vm381, %v370
      %404 = vst.msk [vmem:[%s123 + $0x58] sm:$0xf] %vm381, %v371
      %405 = vst.msk [vmem:[%s123 + $0x5c] sm:$0xf] %vm381, %v372
      %406 = vst.msk [vmem:[%s123 + $0x60] sm:$0xf] %vm381, %v373
      %407 = vst.msk [vmem:[%s123 + $0x64] sm:$0xf] %vm381, %v374
      %408 = vst.msk [vmem:[%s123 + $0x68] sm:$0xf] %vm381, %v375
      %409 = vst.msk [vmem:[%s123 + $0x6c] sm:$0xf] %vm381, %v376
      %410 = vst.msk [vmem:[%s123 + $0x70] sm:$0xf] %vm381, %v377
      %411 = vst.msk [vmem:[%s123 + $0x74] sm:$0xf] %vm381, %v378
      %412 = vst.msk [vmem:[%s123 + $0x78] sm:$0xf] %vm381, %v379
      %413 = vst.msk [vmem:[%s123 + $0x7c] sm:$0xf] %vm381, %v380
      %s414 = smul.u32 16, %s12
      %p415 = scmp.lt.s32.totalorder %s414, 31
      %s416 = scalar_select %p415, %s414, 31
      %s417 = smul.addr %s416, 2
      %s418 = smul.addr %s417, 4
      %s419 = scalar_lea.vmem %s1, %s418
      // Predicated region
      $region25: #{simple_cnn_forward.8} parent=23 // pred_check
        %p420 = pneg %p56
      $region26: #{simple_cnn_forward.8} parent=23 // pred_check_branch
        %422 = sbr.rel (%p420) target = $region28
      $region27: #{simple_cnn_forward.8} parent=23 // pred_region
        %s423 = smul.u32 16, %s12
      $region28: #{simple_cnn_forward.8} parent=23 // pred_fallthru
        _
    $region24: #{simple_cnn_forward.8} parent=5 // pred_fallthru
      _
    %p424 = scmp.le.s32.totalorder 2, %s7
    // Predicated region
    $region29: #{simple_cnn_forward.8} parent=5 // pred_check
      %p425 = pneg %p424
    $region30: #{simple_cnn_forward.8} parent=5 // pred_check_branch
      %427 = sbr.rel (%p425) target = $region32
    $region31: #{simple_cnn_forward.8} parent=5 // pred_region
      %s428 = ssub.s32 %s7, 2
      // Predicated region
      $region33: #{simple_cnn_forward.8} parent=31 // pred_check
        %p429 = pneg %p62
      $region34: #{simple_cnn_forward.8} parent=31 // pred_check_branch
        %431 = sbr.rel (%p429) target = $region36
      $region35: #{simple_cnn_forward.8} parent=31 // pred_region
        %s432 = smul.u32 16, %s13
        %p433 = scmp.lt.s32.totalorder %s432, 31
        %s434 = scalar_select %p433, %s432, 31
        %s435 = smul.addr %s434, 2
        %s436 = smul.addr %s435, 4
        %s437 = scalar_lea.vmem %s1, %s436
      $region36: #{simple_cnn_forward.8} parent=31 // pred_fallthru
        _
    $region32: #{simple_cnn_forward.8} parent=5 // pred_fallthru
      _
  $region6: #{simple_cnn_forward.8} parent=0 // loop_footer
    %s11 = sadd.s32 1, %s7
  $region7: #{simple_cnn_forward.8} parent=0 // loop_footer_branch
    %6 = sbr.rel target = $region3
  $region8: #{simple_cnn_forward.8} parent=0 // loop_exit
    _

// kernel: simple_cnn_forward.7
$region0: #{simple_cnn_forward.7}
  #allocation0 [shape = 'u32[]', space=smem, size = 0x4, offset = 0x4, fixed_abs, tag = 'smem constant byte address 0x4 - core index']
  #allocation1 [shape = 'u32[144,128]{1,0:T(1,128)}', space=vmem, size = 0x12000, scoped, tag = 'internal scratch']
  %s0 = inlined_call_operand.vmem [shape: bf16[2048,27], index: 0, kind: input, shape index: {}]
  %s1 = inlined_call_operand.hbm [shape: bf16[27,32], index: 1, kind: input, shape index: {}]
  %s2 = inlined_call_operand.vmem [shape: f32[1,32], index: 2, kind: input, shape index: {}]
  %s3 = inlined_call_operand.vmem [shape: f32[1,32], index: 3, kind: input, shape index: {}]
  %s4 = inlined_call_operand.vmem [shape: bf16[2048,32], index: 4, kind: output, shape index: {}]
  %s5 = sld [smem:[#allocation0]]
  $region30: #{simple_cnn_forward.7} parent=0
    _
  %s7 = ssub.s32 1, %s5
  %s8 = scalar_select 0, %s7, %s5
  $region1: #{simple_cnn_forward.7} parent=0
    #allocation2 [shape = 'u8[8192]{0}', space=vmem, size = 0x2000, scoped, tag = 'input window, operand 1, single buffered']
    #allocation3 [shape = 's32[1]{0}', space=sflag, size = 0x4, scoped, tag = 'scoped memory for simple_cnn_forward.7']
    %9 = vsyncpa [#allocation3], 0
    // Predicated region
    $region2: #{simple_cnn_forward.7} parent=1 // pred_check
      _
    $region3: #{simple_cnn_forward.7} parent=1 // pred_check_branch
      %11 = sbr.rel (0) target = $region5
    $region4: #{simple_cnn_forward.7} parent=1 // pred_region
      _
    $region5: #{simple_cnn_forward.7} parent=1 // pred_fallthru
      _
    // Predicated region
    $region6: #{simple_cnn_forward.7} parent=1 // pred_check
      _
    $region7: #{simple_cnn_forward.7} parent=1 // pred_check_branch
      %13 = sbr.rel (0) target = $region9
    $region8: #{simple_cnn_forward.7} parent=1 // pred_region
      %s15 = ssub.s32 256, 256
      %16 = vsyncadd [#allocation3], %s15
      %s17 = sshll.u32 [#allocation2], 4
      %s18 = int_to_ptr.vmem [resolvable:$true] %s17
      %23 = dma.hbm_to_vmem [thread:$0]  %s1, 256, %s18, [#allocation3], 64, 64, 4
    $region9: #{simple_cnn_forward.7} parent=1 // pred_fallthru
      _
    // Predicated region
    $region10: #{simple_cnn_forward.7} parent=1 // pred_check
      _
    $region11: #{simple_cnn_forward.7} parent=1 // pred_check_branch
      %25 = sbr.rel (0) target = $region13
    $region12: #{simple_cnn_forward.7} parent=1 // pred_region
      _
    $region13: #{simple_cnn_forward.7} parent=1 // pred_fallthru
      _
    // Predicated region
    $region14: #{simple_cnn_forward.7} parent=1 // pred_check
      _
    $region15: #{simple_cnn_forward.7} parent=1 // pred_check_branch
      %27 = sbr.rel (0) target = $region17
    $region16: #{simple_cnn_forward.7} parent=1 // pred_region
      _
    $region17: #{simple_cnn_forward.7} parent=1 // pred_fallthru
      _
    // Predicated region
    $region18: #{simple_cnn_forward.7} parent=1 // pred_check
      _
    $region19: #{simple_cnn_forward.7} parent=1 // pred_check_branch
      %29 = sbr.rel (0) target = $region21
    $region20: #{simple_cnn_forward.7} parent=1 // pred_region
      %30 = dma.done [#allocation3], 256
    $region21: #{simple_cnn_forward.7} parent=1 // pred_fallthru
      _
    %v32 = vld [vmem:[%s0] sm:$0xf]
    %v33 = vld [vmem:[%s0 + $0x4] sm:$0xf]
    %v34 = vld [vmem:[%s0 + $0x8] sm:$0xf]
    %v35 = vld [vmem:[%s0 + $0xc] sm:$0xf]
    %v36 = vld [vmem:[%s0 + $0x10] sm:$0xf]
    %v37 = vld [vmem:[%s0 + $0x14] sm:$0xf]
    %v38 = vld [vmem:[%s0 + $0x18] sm:$0xf]
    %v39 = vld [vmem:[%s0 + $0x1c] sm:$0xf]
    %v40 = vld [vmem:[%s0 + $0x20] sm:$0xf]
    %v41 = vld [vmem:[%s0 + $0x24] sm:$0xf]
    %v42 = vld [vmem:[%s0 + $0x28] sm:$0xf]
    %v43 = vld [vmem:[%s0 + $0x2c] sm:$0xf]
    %v44 = vld [vmem:[%s0 + $0x30] sm:$0xf]
    %v45 = vld [vmem:[%s0 + $0x34] sm:$0xf]
    %v46 = vld [vmem:[%s0 + $0x38] sm:$0xf]
    %v47 = vld [vmem:[%s0 + $0x3c] sm:$0xf]
    %v48 = vld [vmem:[%s0 + $0x40] sm:$0xf]
    %v49 = vld [vmem:[%s0 + $0x44] sm:$0xf]
    %v50 = vld [vmem:[%s0 + $0x48] sm:$0xf]
    %v51 = vld [vmem:[%s0 + $0x4c] sm:$0xf]
    %v52 = vld [vmem:[%s0 + $0x50] sm:$0xf]
    %v53 = vld [vmem:[%s0 + $0x54] sm:$0xf]
    %v54 = vld [vmem:[%s0 + $0x58] sm:$0xf]
    %v55 = vld [vmem:[%s0 + $0x5c] sm:$0xf]
    %v56 = vld [vmem:[%s0 + $0x60] sm:$0xf]
    %v57 = vld [vmem:[%s0 + $0x64] sm:$0xf]
    %v58 = vld [vmem:[%s0 + $0x68] sm:$0xf]
    %v59 = vld [vmem:[%s0 + $0x6c] sm:$0xf]
    %v60 = vld [vmem:[%s0 + $0x70] sm:$0xf]
    %v61 = vld [vmem:[%s0 + $0x74] sm:$0xf]
    %v62 = vld [vmem:[%s0 + $0x78] sm:$0xf]
    %v63 = vld [vmem:[%s0 + $0x7c] sm:$0xf]
    %v64 = vld [vmem:[%s0 + $0x80] sm:$0xf]
    %v65 = vld [vmem:[%s0 + $0x84] sm:$0xf]
    %v66 = vld [vmem:[%s0 + $0x88] sm:$0xf]
    %v67 = vld [vmem:[%s0 + $0x8c] sm:$0xf]
    %v68 = vld [vmem:[%s0 + $0x90] sm:$0xf]
    %v69 = vld [vmem:[%s0 + $0x94] sm:$0xf]
    %v70 = vld [vmem:[%s0 + $0x98] sm:$0xf]
    %v71 = vld [vmem:[%s0 + $0x9c] sm:$0xf]
    %v72 = vld [vmem:[%s0 + $0xa0] sm:$0xf]
    %v73 = vld [vmem:[%s0 + $0xa4] sm:$0xf]
    %v74 = vld [vmem:[%s0 + $0xa8] sm:$0xf]
    %v75 = vld [vmem:[%s0 + $0xac] sm:$0xf]
    %v76 = vld [vmem:[%s0 + $0xb0] sm:$0xf]
    %v77 = vld [vmem:[%s0 + $0xb4] sm:$0xf]
    %v78 = vld [vmem:[%s0 + $0xb8] sm:$0xf]
    %v79 = vld [vmem:[%s0 + $0xbc] sm:$0xf]
    %v80 = vld [vmem:[%s0 + $0xc0] sm:$0xf]
    %v81 = vld [vmem:[%s0 + $0xc4] sm:$0xf]
    %v82 = vld [vmem:[%s0 + $0xc8] sm:$0xf]
    %v83 = vld [vmem:[%s0 + $0xcc] sm:$0xf]
    %v84 = vld [vmem:[%s0 + $0xd0] sm:$0xf]
    %v85 = vld [vmem:[%s0 + $0xd4] sm:$0xf]
    %v86 = vld [vmem:[%s0 + $0xd8] sm:$0xf]
    %v87 = vld [vmem:[%s0 + $0xdc] sm:$0xf]
    %v88 = vld [vmem:[%s0 + $0xe0] sm:$0xf]
    %v89 = vld [vmem:[%s0 + $0xe4] sm:$0xf]
    %v90 = vld [vmem:[%s0 + $0xe8] sm:$0xf]
    %v91 = vld [vmem:[%s0 + $0xec] sm:$0xf]
    %v92 = vld [vmem:[%s0 + $0xf0] sm:$0xf]
    %v93 = vld [vmem:[%s0 + $0xf4] sm:$0xf]
    %v94 = vld [vmem:[%s0 + $0xf8] sm:$0xf]
    %v95 = vld [vmem:[%s0 + $0xfc] sm:$0xf]
    %v96 = vld [vmem:[%s0 + $0x100] sm:$0xf]
    %v97 = vld [vmem:[%s0 + $0x104] sm:$0xf]
    %v98 = vld [vmem:[%s0 + $0x108] sm:$0xf]
    %v99 = vld [vmem:[%s0 + $0x10c] sm:$0xf]
    %v100 = vld [vmem:[%s0 + $0x110] sm:$0xf]
    %v101 = vld [vmem:[%s0 + $0x114] sm:$0xf]
    %v102 = vld [vmem:[%s0 + $0x118] sm:$0xf]
    %v103 = vld [vmem:[%s0 + $0x11c] sm:$0xf]
    %v104 = vld [vmem:[%s0 + $0x120] sm:$0xf]
    %v105 = vld [vmem:[%s0 + $0x124] sm:$0xf]
    %v106 = vld [vmem:[%s0 + $0x128] sm:$0xf]
    %v107 = vld [vmem:[%s0 + $0x12c] sm:$0xf]
    %v108 = vld [vmem:[%s0 + $0x130] sm:$0xf]
    %v109 = vld [vmem:[%s0 + $0x134] sm:$0xf]
    %v110 = vld [vmem:[%s0 + $0x138] sm:$0xf]
    %v111 = vld [vmem:[%s0 + $0x13c] sm:$0xf]
    %v112 = vld [vmem:[%s0 + $0x140] sm:$0xf]
    %v113 = vld [vmem:[%s0 + $0x144] sm:$0xf]
    %v114 = vld [vmem:[%s0 + $0x148] sm:$0xf]
    %v115 = vld [vmem:[%s0 + $0x14c] sm:$0xf]
    %v116 = vld [vmem:[%s0 + $0x150] sm:$0xf]
    %v117 = vld [vmem:[%s0 + $0x154] sm:$0xf]
    %v118 = vld [vmem:[%s0 + $0x158] sm:$0xf]
    %v119 = vld [vmem:[%s0 + $0x15c] sm:$0xf]
    %v120 = vld [vmem:[%s0 + $0x160] sm:$0xf]
    %v121 = vld [vmem:[%s0 + $0x164] sm:$0xf]
    %v122 = vld [vmem:[%s0 + $0x168] sm:$0xf]
    %v123 = vld [vmem:[%s0 + $0x16c] sm:$0xf]
    %v124 = vld [vmem:[%s0 + $0x170] sm:$0xf]
    %v125 = vld [vmem:[%s0 + $0x174] sm:$0xf]
    %v126 = vld [vmem:[%s0 + $0x178] sm:$0xf]
    %v127 = vld [vmem:[%s0 + $0x17c] sm:$0xf]
    %v128 = vld [vmem:[%s0 + $0x180] sm:$0xf]
    %v129 = vld [vmem:[%s0 + $0x184] sm:$0xf]
    %v130 = vld [vmem:[%s0 + $0x188] sm:$0xf]
    %v131 = vld [vmem:[%s0 + $0x18c] sm:$0xf]
    %v132 = vld [vmem:[%s0 + $0x190] sm:$0xf]
    %v133 = vld [vmem:[%s0 + $0x194] sm:$0xf]
    %v134 = vld [vmem:[%s0 + $0x198] sm:$0xf]
    %v135 = vld [vmem:[%s0 + $0x19c] sm:$0xf]
    %v136 = vld [vmem:[%s0 + $0x1a0] sm:$0xf]
    %v137 = vld [vmem:[%s0 + $0x1a4] sm:$0xf]
    %v138 = vld [vmem:[%s0 + $0x1a8] sm:$0xf]
    %v139 = vld [vmem:[%s0 + $0x1ac] sm:$0xf]
    %v140 = vld [vmem:[%s0 + $0x1b0] sm:$0xf]
    %v141 = vld [vmem:[%s0 + $0x1b4] sm:$0xf]
    %v142 = vld [vmem:[%s0 + $0x1b8] sm:$0xf]
    %v143 = vld [vmem:[%s0 + $0x1bc] sm:$0xf]
    %v144 = vld [vmem:[%s0 + $0x1c0] sm:$0xf]
    %v145 = vld [vmem:[%s0 + $0x1c4] sm:$0xf]
    %v146 = vld [vmem:[%s0 + $0x1c8] sm:$0xf]
    %v147 = vld [vmem:[%s0 + $0x1cc] sm:$0xf]
    %v148 = vld [vmem:[%s0 + $0x1d0] sm:$0xf]
    %v149 = vld [vmem:[%s0 + $0x1d4] sm:$0xf]
    %v150 = vld [vmem:[%s0 + $0x1d8] sm:$0xf]
    %v151 = vld [vmem:[%s0 + $0x1dc] sm:$0xf]
    %v152 = vld [vmem:[%s0 + $0x1e0] sm:$0xf]
    %v153 = vld [vmem:[%s0 + $0x1e4] sm:$0xf]
    %v154 = vld [vmem:[%s0 + $0x1e8] sm:$0xf]
    %v155 = vld [vmem:[%s0 + $0x1ec] sm:$0xf]
    %v156 = vld [vmem:[%s0 + $0x1f0] sm:$0xf]
    %v157 = vld [vmem:[%s0 + $0x1f4] sm:$0xf]
    %v158 = vld [vmem:[%s0 + $0x1f8] sm:$0xf]
    %v159 = vld [vmem:[%s0 + $0x1fc] sm:$0xf]
    %v160 = vld [vmem:[%s0 + $0x200] sm:$0xf]
    %v161 = vld [vmem:[%s0 + $0x204] sm:$0xf]
    %v162 = vld [vmem:[%s0 + $0x208] sm:$0xf]
    %v163 = vld [vmem:[%s0 + $0x20c] sm:$0xf]
    %v164 = vld [vmem:[%s0 + $0x210] sm:$0xf]
    %v165 = vld [vmem:[%s0 + $0x214] sm:$0xf]
    %v166 = vld [vmem:[%s0 + $0x218] sm:$0xf]
    %v167 = vld [vmem:[%s0 + $0x21c] sm:$0xf]
    %v168 = vld [vmem:[%s0 + $0x220] sm:$0xf]
    %v169 = vld [vmem:[%s0 + $0x224] sm:$0xf]
    %v170 = vld [vmem:[%s0 + $0x228] sm:$0xf]
    %v171 = vld [vmem:[%s0 + $0x22c] sm:$0xf]
    %v172 = vld [vmem:[%s0 + $0x230] sm:$0xf]
    %v173 = vld [vmem:[%s0 + $0x234] sm:$0xf]
    %v174 = vld [vmem:[%s0 + $0x238] sm:$0xf]
    %v175 = vld [vmem:[%s0 + $0x23c] sm:$0xf]
    %v176 = vld [vmem:[%s0 + $0x240] sm:$0xf]
    %v177 = vld [vmem:[%s0 + $0x244] sm:$0xf]
    %v178 = vld [vmem:[%s0 + $0x248] sm:$0xf]
    %v179 = vld [vmem:[%s0 + $0x24c] sm:$0xf]
    %v180 = vld [vmem:[%s0 + $0x250] sm:$0xf]
    %v181 = vld [vmem:[%s0 + $0x254] sm:$0xf]
    %v182 = vld [vmem:[%s0 + $0x258] sm:$0xf]
    %v183 = vld [vmem:[%s0 + $0x25c] sm:$0xf]
    %v184 = vld [vmem:[%s0 + $0x260] sm:$0xf]
    %v185 = vld [vmem:[%s0 + $0x264] sm:$0xf]
    %v186 = vld [vmem:[%s0 + $0x268] sm:$0xf]
    %v187 = vld [vmem:[%s0 + $0x26c] sm:$0xf]
    %v188 = vld [vmem:[%s0 + $0x270] sm:$0xf]
    %v189 = vld [vmem:[%s0 + $0x274] sm:$0xf]
    %v190 = vld [vmem:[%s0 + $0x278] sm:$0xf]
    %v191 = vld [vmem:[%s0 + $0x27c] sm:$0xf]
    %v192 = vld [vmem:[%s0 + $0x280] sm:$0xf]
    %v193 = vld [vmem:[%s0 + $0x284] sm:$0xf]
    %v194 = vld [vmem:[%s0 + $0x288] sm:$0xf]
    %v195 = vld [vmem:[%s0 + $0x28c] sm:$0xf]
    %v196 = vld [vmem:[%s0 + $0x290] sm:$0xf]
    %v197 = vld [vmem:[%s0 + $0x294] sm:$0xf]
    %v198 = vld [vmem:[%s0 + $0x298] sm:$0xf]
    %v199 = vld [vmem:[%s0 + $0x29c] sm:$0xf]
    %v200 = vld [vmem:[%s0 + $0x2a0] sm:$0xf]
    %v201 = vld [vmem:[%s0 + $0x2a4] sm:$0xf]
    %v202 = vld [vmem:[%s0 + $0x2a8] sm:$0xf]
    %v203 = vld [vmem:[%s0 + $0x2ac] sm:$0xf]
    %v204 = vld [vmem:[%s0 + $0x2b0] sm:$0xf]
    %v205 = vld [vmem:[%s0 + $0x2b4] sm:$0xf]
    %v206 = vld [vmem:[%s0 + $0x2b8] sm:$0xf]
    %v207 = vld [vmem:[%s0 + $0x2bc] sm:$0xf]
    %v208 = vld [vmem:[%s0 + $0x2c0] sm:$0xf]
    %v209 = vld [vmem:[%s0 + $0x2c4] sm:$0xf]
    %v210 = vld [vmem:[%s0 + $0x2c8] sm:$0xf]
    %v211 = vld [vmem:[%s0 + $0x2cc] sm:$0xf]
    %v212 = vld [vmem:[%s0 + $0x2d0] sm:$0xf]
    %v213 = vld [vmem:[%s0 + $0x2d4] sm:$0xf]
    %v214 = vld [vmem:[%s0 + $0x2d8] sm:$0xf]
    %v215 = vld [vmem:[%s0 + $0x2dc] sm:$0xf]
    %v216 = vld [vmem:[%s0 + $0x2e0] sm:$0xf]
    %v217 = vld [vmem:[%s0 + $0x2e4] sm:$0xf]
    %v218 = vld [vmem:[%s0 + $0x2e8] sm:$0xf]
    %v219 = vld [vmem:[%s0 + $0x2ec] sm:$0xf]
    %v220 = vld [vmem:[%s0 + $0x2f0] sm:$0xf]
    %v221 = vld [vmem:[%s0 + $0x2f4] sm:$0xf]
    %v222 = vld [vmem:[%s0 + $0x2f8] sm:$0xf]
    %v223 = vld [vmem:[%s0 + $0x2fc] sm:$0xf]
    %v224 = vld [vmem:[%s0 + $0x300] sm:$0xf]
    %v225 = vld [vmem:[%s0 + $0x304] sm:$0xf]
    %v226 = vld [vmem:[%s0 + $0x308] sm:$0xf]
    %v227 = vld [vmem:[%s0 + $0x30c] sm:$0xf]
    %v228 = vld [vmem:[%s0 + $0x310] sm:$0xf]
    %v229 = vld [vmem:[%s0 + $0x314] sm:$0xf]
    %v230 = vld [vmem:[%s0 + $0x318] sm:$0xf]
    %v231 = vld [vmem:[%s0 + $0x31c] sm:$0xf]
    %v232 = vld [vmem:[%s0 + $0x320] sm:$0xf]
    %v233 = vld [vmem:[%s0 + $0x324] sm:$0xf]
    %v234 = vld [vmem:[%s0 + $0x328] sm:$0xf]
    %v235 = vld [vmem:[%s0 + $0x32c] sm:$0xf]
    %v236 = vld [vmem:[%s0 + $0x330] sm:$0xf]
    %v237 = vld [vmem:[%s0 + $0x334] sm:$0xf]
    %v238 = vld [vmem:[%s0 + $0x338] sm:$0xf]
    %v239 = vld [vmem:[%s0 + $0x33c] sm:$0xf]
    %v240 = vld [vmem:[%s0 + $0x340] sm:$0xf]
    %v241 = vld [vmem:[%s0 + $0x344] sm:$0xf]
    %v242 = vld [vmem:[%s0 + $0x348] sm:$0xf]
    %v243 = vld [vmem:[%s0 + $0x34c] sm:$0xf]
    %v244 = vld [vmem:[%s0 + $0x350] sm:$0xf]
    %v245 = vld [vmem:[%s0 + $0x354] sm:$0xf]
    %v246 = vld [vmem:[%s0 + $0x358] sm:$0xf]
    %v247 = vld [vmem:[%s0 + $0x35c] sm:$0xf]
    %v248 = vld [vmem:[%s0 + $0x360] sm:$0xf]
    %v249 = vld [vmem:[%s0 + $0x364] sm:$0xf]
    %v250 = vld [vmem:[%s0 + $0x368] sm:$0xf]
    %v251 = vld [vmem:[%s0 + $0x36c] sm:$0xf]
    %v252 = vld [vmem:[%s0 + $0x370] sm:$0xf]
    %v253 = vld [vmem:[%s0 + $0x374] sm:$0xf]
    %v254 = vld [vmem:[%s0 + $0x378] sm:$0xf]
    %v255 = vld [vmem:[%s0 + $0x37c] sm:$0xf]
    %v256 = vld [vmem:[%s0 + $0x380] sm:$0xf]
    %v257 = vld [vmem:[%s0 + $0x384] sm:$0xf]
    %v258 = vld [vmem:[%s0 + $0x388] sm:$0xf]
    %v259 = vld [vmem:[%s0 + $0x38c] sm:$0xf]
    %v260 = vld [vmem:[%s0 + $0x390] sm:$0xf]
    %v261 = vld [vmem:[%s0 + $0x394] sm:$0xf]
    %v262 = vld [vmem:[%s0 + $0x398] sm:$0xf]
    %v263 = vld [vmem:[%s0 + $0x39c] sm:$0xf]
    %v264 = vld [vmem:[%s0 + $0x3a0] sm:$0xf]
    %v265 = vld [vmem:[%s0 + $0x3a4] sm:$0xf]
    %v266 = vld [vmem:[%s0 + $0x3a8] sm:$0xf]
    %v267 = vld [vmem:[%s0 + $0x3ac] sm:$0xf]
    %v268 = vld [vmem:[%s0 + $0x3b0] sm:$0xf]
    %v269 = vld [vmem:[%s0 + $0x3b4] sm:$0xf]
    %v270 = vld [vmem:[%s0 + $0x3b8] sm:$0xf]
    %v271 = vld [vmem:[%s0 + $0x3bc] sm:$0xf]
    %v272 = vld [vmem:[%s0 + $0x3c0] sm:$0xf]
    %v273 = vld [vmem:[%s0 + $0x3c4] sm:$0xf]
    %v274 = vld [vmem:[%s0 + $0x3c8] sm:$0xf]
    %v275 = vld [vmem:[%s0 + $0x3cc] sm:$0xf]
    %v276 = vld [vmem:[%s0 + $0x3d0] sm:$0xf]
    %v277 = vld [vmem:[%s0 + $0x3d4] sm:$0xf]
    %v278 = vld [vmem:[%s0 + $0x3d8] sm:$0xf]
    %v279 = vld [vmem:[%s0 + $0x3dc] sm:$0xf]
    %v280 = vld [vmem:[%s0 + $0x3e0] sm:$0xf]
    %v281 = vld [vmem:[%s0 + $0x3e4] sm:$0xf]
    %v282 = vld [vmem:[%s0 + $0x3e8] sm:$0xf]
    %v283 = vld [vmem:[%s0 + $0x3ec] sm:$0xf]
    %v284 = vld [vmem:[%s0 + $0x3f0] sm:$0xf]
    %v285 = vld [vmem:[%s0 + $0x3f4] sm:$0xf]
    %v286 = vld [vmem:[%s0 + $0x3f8] sm:$0xf]
    %v287 = vld [vmem:[%s0 + $0x3fc] sm:$0xf]
    %v288 = vld [vmem:[#allocation2] sm:$0xf]
    %v289 = vld [vmem:[#allocation2 + $0x4] sm:$0xf]
    %v290 = vld [vmem:[#allocation2 + $0x8] sm:$0xf]
    %v291 = vld [vmem:[#allocation2 + $0xc] sm:$0x3]
    %v548 = vunpack.c.l.b16 %v32
    %v549 = vunpack.c.l.b16 %v33
    %v550 = vunpack.c.l.b16 %v34
    %v551 = vunpack.c.l.b16 %v35
    %v552 = vunpack.c.l.b16 %v36
    %v553 = vunpack.c.l.b16 %v37
    %v554 = vunpack.c.l.b16 %v38
    %v555 = vunpack.c.l.b16 %v39
    %v556 = vunpack.c.l.b16 %v40
    %v557 = vunpack.c.l.b16 %v41
    %v558 = vunpack.c.l.b16 %v42
    %v559 = vunpack.c.l.b16 %v43
    %v560 = vunpack.c.l.b16 %v44
    %v561 = vunpack.c.l.b16 %v45
    %v562 = vunpack.c.l.b16 %v46
    %v563 = vunpack.c.l.b16 %v47
    %v564 = vunpack.c.l.b16 %v48
    %v565 = vunpack.c.l.b16 %v49
    %v566 = vunpack.c.l.b16 %v50
    %v567 = vunpack.c.l.b16 %v51
    %v568 = vunpack.c.l.b16 %v52
    %v569 = vunpack.c.l.b16 %v53
    %v570 = vunpack.c.l.b16 %v54
    %v571 = vunpack.c.l.b16 %v55
    %v572 = vunpack.c.l.b16 %v56
    %v573 = vunpack.c.l.b16 %v57
    %v574 = vunpack.c.l.b16 %v58
    %v575 = vunpack.c.l.b16 %v59
    %v576 = vunpack.c.l.b16 %v60
    %v577 = vunpack.c.l.b16 %v61
    %v578 = vunpack.c.l.b16 %v62
    %v579 = vunpack.c.l.b16 %v63
    %v580 = vunpack.c.l.b16 %v64
    %v581 = vunpack.c.l.b16 %v65
    %v582 = vunpack.c.l.b16 %v66
    %v583 = vunpack.c.l.b16 %v67
    %v584 = vunpack.c.l.b16 %v68
    %v585 = vunpack.c.l.b16 %v69
    %v586 = vunpack.c.l.b16 %v70
    %v587 = vunpack.c.l.b16 %v71
    %v588 = vunpack.c.l.b16 %v72
    %v589 = vunpack.c.l.b16 %v73
    %v590 = vunpack.c.l.b16 %v74
    %v591 = vunpack.c.l.b16 %v75
    %v592 = vunpack.c.l.b16 %v76
    %v593 = vunpack.c.l.b16 %v77
    %v594 = vunpack.c.l.b16 %v78
    %v595 = vunpack.c.l.b16 %v79
    %v596 = vunpack.c.l.b16 %v80
    %v597 = vunpack.c.l.b16 %v81
    %v598 = vunpack.c.l.b16 %v82
    %v599 = vunpack.c.l.b16 %v83
    %v600 = vunpack.c.l.b16 %v84
    %v601 = vunpack.c.l.b16 %v85
    %v602 = vunpack.c.l.b16 %v86
    %v603 = vunpack.c.l.b16 %v87
    %v604 = vunpack.c.l.b16 %v88
    %v605 = vunpack.c.l.b16 %v89
    %v606 = vunpack.c.l.b16 %v90
    %v607 = vunpack.c.l.b16 %v91
    %v608 = vunpack.c.l.b16 %v92
    %v609 = vunpack.c.l.b16 %v93
    %v610 = vunpack.c.l.b16 %v94
    %v611 = vunpack.c.l.b16 %v95
    %v612 = vunpack.c.l.b16 %v96
    %v613 = vunpack.c.l.b16 %v97
    %v614 = vunpack.c.l.b16 %v98
    %v615 = vunpack.c.l.b16 %v99
    %v616 = vunpack.c.l.b16 %v100
    %v617 = vunpack.c.l.b16 %v101
    %v618 = vunpack.c.l.b16 %v102
    %v619 = vunpack.c.l.b16 %v103
    %v620 = vunpack.c.l.b16 %v104
    %v621 = vunpack.c.l.b16 %v105
    %v622 = vunpack.c.l.b16 %v106
    %v623 = vunpack.c.l.b16 %v107
    %v624 = vunpack.c.l.b16 %v108
    %v625 = vunpack.c.l.b16 %v109
    %v626 = vunpack.c.l.b16 %v110
    %v627 = vunpack.c.l.b16 %v111
    %v628 = vunpack.c.l.b16 %v112
    %v629 = vunpack.c.l.b16 %v113
    %v630 = vunpack.c.l.b16 %v114
    %v631 = vunpack.c.l.b16 %v115
    %v632 = vunpack.c.l.b16 %v116
    %v633 = vunpack.c.l.b16 %v117
    %v634 = vunpack.c.l.b16 %v118
    %v635 = vunpack.c.l.b16 %v119
    %v636 = vunpack.c.l.b16 %v120
    %v637 = vunpack.c.l.b16 %v121
    %v638 = vunpack.c.l.b16 %v122
    %v639 = vunpack.c.l.b16 %v123
    %v640 = vunpack.c.l.b16 %v124
    %v641 = vunpack.c.l.b16 %v125
    %v642 = vunpack.c.l.b16 %v126
    %v643 = vunpack.c.l.b16 %v127
    %v644 = vunpack.c.l.b16 %v128
    %v645 = vunpack.c.l.b16 %v129
    %v646 = vunpack.c.l.b16 %v130
    %v647 = vunpack.c.l.b16 %v131
    %v648 = vunpack.c.l.b16 %v132
    %v649 = vunpack.c.l.b16 %v133
    %v650 = vunpack.c.l.b16 %v134
    %v651 = vunpack.c.l.b16 %v135
    %v652 = vunpack.c.l.b16 %v136
    %v653 = vunpack.c.l.b16 %v137
    %v654 = vunpack.c.l.b16 %v138
    %v655 = vunpack.c.l.b16 %v139
    %v656 = vunpack.c.l.b16 %v140
    %v657 = vunpack.c.l.b16 %v141
    %v658 = vunpack.c.l.b16 %v142
    %v659 = vunpack.c.l.b16 %v143
    %v660 = vunpack.c.l.b16 %v144
    %v661 = vunpack.c.l.b16 %v145
    %v662 = vunpack.c.l.b16 %v146
    %v663 = vunpack.c.l.b16 %v147
    %v664 = vunpack.c.l.b16 %v148
    %v665 = vunpack.c.l.b16 %v149
    %v666 = vunpack.c.l.b16 %v150
    %v667 = vunpack.c.l.b16 %v151
    %v668 = vunpack.c.l.b16 %v152
    %v669 = vunpack.c.l.b16 %v153
    %v670 = vunpack.c.l.b16 %v154
    %v671 = vunpack.c.l.b16 %v155
    %v672 = vunpack.c.l.b16 %v156
    %v673 = vunpack.c.l.b16 %v157
    %v674 = vunpack.c.l.b16 %v158
    %v675 = vunpack.c.l.b16 %v159
    %v676 = vunpack.c.l.b16 %v160
    %v677 = vunpack.c.l.b16 %v161
    %v678 = vunpack.c.l.b16 %v162
    %v679 = vunpack.c.l.b16 %v163
    %v680 = vunpack.c.l.b16 %v164
    %v681 = vunpack.c.l.b16 %v165
    %v682 = vunpack.c.l.b16 %v166
    %v683 = vunpack.c.l.b16 %v167
    %v684 = vunpack.c.l.b16 %v168
    %v685 = vunpack.c.l.b16 %v169
    %v686 = vunpack.c.l.b16 %v170
    %v687 = vunpack.c.l.b16 %v171
    %v688 = vunpack.c.l.b16 %v172
    %v689 = vunpack.c.l.b16 %v173
    %v690 = vunpack.c.l.b16 %v174
    %v691 = vunpack.c.l.b16 %v175
    %v692 = vunpack.c.l.b16 %v176
    %v693 = vunpack.c.l.b16 %v177
    %v694 = vunpack.c.l.b16 %v178
    %v695 = vunpack.c.l.b16 %v179
    %v696 = vunpack.c.l.b16 %v180
    %v697 = vunpack.c.l.b16 %v181
    %v698 = vunpack.c.l.b16 %v182
    %v699 = vunpack.c.l.b16 %v183
    %v700 = vunpack.c.l.b16 %v184
    %v701 = vunpack.c.l.b16 %v185
    %v702 = vunpack.c.l.b16 %v186
    %v703 = vunpack.c.l.b16 %v187
    %v704 = vunpack.c.l.b16 %v188
    %v705 = vunpack.c.l.b16 %v189
    %v706 = vunpack.c.l.b16 %v190
    %v707 = vunpack.c.l.b16 %v191
    %v708 = vunpack.c.l.b16 %v192
    %v709 = vunpack.c.l.b16 %v193
    %v710 = vunpack.c.l.b16 %v194
    %v711 = vunpack.c.l.b16 %v195
    %v712 = vunpack.c.l.b16 %v196
    %v713 = vunpack.c.l.b16 %v197
    %v714 = vunpack.c.l.b16 %v198
    %v715 = vunpack.c.l.b16 %v199
    %v716 = vunpack.c.l.b16 %v200
    %v717 = vunpack.c.l.b16 %v201
    %v718 = vunpack.c.l.b16 %v202
    %v719 = vunpack.c.l.b16 %v203
    %v720 = vunpack.c.l.b16 %v204
    %v721 = vunpack.c.l.b16 %v205
    %v722 = vunpack.c.l.b16 %v206
    %v723 = vunpack.c.l.b16 %v207
    %v724 = vunpack.c.l.b16 %v208
    %v725 = vunpack.c.l.b16 %v209
    %v726 = vunpack.c.l.b16 %v210
    %v727 = vunpack.c.l.b16 %v211
    %v728 = vunpack.c.l.b16 %v212
    %v729 = vunpack.c.l.b16 %v213
    %v730 = vunpack.c.l.b16 %v214
    %v731 = vunpack.c.l.b16 %v215
    %v732 = vunpack.c.l.b16 %v216
    %v733 = vunpack.c.l.b16 %v217
    %v734 = vunpack.c.l.b16 %v218
    %v735 = vunpack.c.l.b16 %v219
    %v736 = vunpack.c.l.b16 %v220
    %v737 = vunpack.c.l.b16 %v221
    %v738 = vunpack.c.l.b16 %v222
    %v739 = vunpack.c.l.b16 %v223
    %v740 = vunpack.c.l.b16 %v224
    %v741 = vunpack.c.l.b16 %v225
    %v742 = vunpack.c.l.b16 %v226
    %v743 = vunpack.c.l.b16 %v227
    %v744 = vunpack.c.l.b16 %v228
    %v745 = vunpack.c.l.b16 %v229
    %v746 = vunpack.c.l.b16 %v230
    %v747 = vunpack.c.l.b16 %v231
    %v748 = vunpack.c.l.b16 %v232
    %v749 = vunpack.c.l.b16 %v233
    %v750 = vunpack.c.l.b16 %v234
    %v751 = vunpack.c.l.b16 %v235
    %v752 = vunpack.c.l.b16 %v236
    %v753 = vunpack.c.l.b16 %v237
    %v754 = vunpack.c.l.b16 %v238
    %v755 = vunpack.c.l.b16 %v239
    %v756 = vunpack.c.l.b16 %v240
    %v757 = vunpack.c.l.b16 %v241
    %v758 = vunpack.c.l.b16 %v242
    %v759 = vunpack.c.l.b16 %v243
    %v760 = vunpack.c.l.b16 %v244
    %v761 = vunpack.c.l.b16 %v245
    %v762 = vunpack.c.l.b16 %v246
    %v763 = vunpack.c.l.b16 %v247
    %v764 = vunpack.c.l.b16 %v248
    %v765 = vunpack.c.l.b16 %v249
    %v766 = vunpack.c.l.b16 %v250
    %v767 = vunpack.c.l.b16 %v251
    %v768 = vunpack.c.l.b16 %v252
    %v769 = vunpack.c.l.b16 %v253
    %v770 = vunpack.c.l.b16 %v254
    %v771 = vunpack.c.l.b16 %v255
    %v772 = vunpack.c.l.b16 %v256
    %v773 = vunpack.c.l.b16 %v257
    %v774 = vunpack.c.l.b16 %v258
    %v775 = vunpack.c.l.b16 %v259
    %v776 = vunpack.c.l.b16 %v260
    %v777 = vunpack.c.l.b16 %v261
    %v778 = vunpack.c.l.b16 %v262
    %v779 = vunpack.c.l.b16 %v263
    %v780 = vunpack.c.l.b16 %v264
    %v781 = vunpack.c.l.b16 %v265
    %v782 = vunpack.c.l.b16 %v266
    %v783 = vunpack.c.l.b16 %v267
    %v784 = vunpack.c.l.b16 %v268
    %v785 = vunpack.c.l.b16 %v269
    %v786 = vunpack.c.l.b16 %v270
    %v787 = vunpack.c.l.b16 %v271
    %v788 = vunpack.c.l.b16 %v272
    %v789 = vunpack.c.l.b16 %v273
    %v790 = vunpack.c.l.b16 %v274
    %v791 = vunpack.c.l.b16 %v275
    %v792 = vunpack.c.l.b16 %v276
    %v793 = vunpack.c.l.b16 %v277
    %v794 = vunpack.c.l.b16 %v278
    %v795 = vunpack.c.l.b16 %v279
    %v796 = vunpack.c.l.b16 %v280
    %v797 = vunpack.c.l.b16 %v281
    %v798 = vunpack.c.l.b16 %v282
    %v799 = vunpack.c.l.b16 %v283
    %v800 = vunpack.c.l.b16 %v284
    %v801 = vunpack.c.l.b16 %v285
    %v802 = vunpack.c.l.b16 %v286
    %v803 = vunpack.c.l.b16 %v287
    %v804 = vpack.c.b16 %v549, %v548
    %v805 = vpack.c.b16 %v551, %v550
    %v806 = vpack.c.b16 %v553, %v552
    %v807 = vpack.c.b16 %v555, %v554
    %v808 = vpack.c.b16 %v557, %v556
    %v809 = vpack.c.b16 %v559, %v558
    %v810 = vpack.c.b16 %v561, %v560
    %v811 = vpack.c.b16 %v563, %v562
    %v812 = vpack.c.b16 %v565, %v564
    %v813 = vpack.c.b16 %v567, %v566
    %v814 = vpack.c.b16 %v569, %v568
    %v815 = vpack.c.b16 %v571, %v570
    %v816 = vpack.c.b16 %v573, %v572
    %v817 = vpack.c.b16 %v575, %v574
    %v818 = vpack.c.b16 %v577, %v576
    %v819 = vpack.c.b16 %v579, %v578
    %v820 = vpack.c.b16 %v581, %v580
    %v821 = vpack.c.b16 %v583, %v582
    %v822 = vpack.c.b16 %v585, %v584
    %v823 = vpack.c.b16 %v587, %v586
    %v824 = vpack.c.b16 %v589, %v588
    %v825 = vpack.c.b16 %v591, %v590
    %v826 = vpack.c.b16 %v593, %v592
    %v827 = vpack.c.b16 %v595, %v594
    %v828 = vpack.c.b16 %v597, %v596
    %v829 = vpack.c.b16 %v599, %v598
    %v830 = vpack.c.b16 %v601, %v600
    %v831 = vpack.c.b16 %v603, %v602
    %v832 = vpack.c.b16 %v605, %v604
    %v833 = vpack.c.b16 %v607, %v606
    %v834 = vpack.c.b16 %v609, %v608
    %v835 = vpack.c.b16 %v611, %v610
    %v836 = vpack.c.b16 %v613, %v612
    %v837 = vpack.c.b16 %v615, %v614
    %v838 = vpack.c.b16 %v617, %v616
    %v839 = vpack.c.b16 %v619, %v618
    %v840 = vpack.c.b16 %v621, %v620
    %v841 = vpack.c.b16 %v623, %v622
    %v842 = vpack.c.b16 %v625, %v624
    %v843 = vpack.c.b16 %v627, %v626
    %v844 = vpack.c.b16 %v629, %v628
    %v845 = vpack.c.b16 %v631, %v630
    %v846 = vpack.c.b16 %v633, %v632
    %v847 = vpack.c.b16 %v635, %v634
    %v848 = vpack.c.b16 %v637, %v636
    %v849 = vpack.c.b16 %v639, %v638
    %v850 = vpack.c.b16 %v641, %v640
    %v851 = vpack.c.b16 %v643, %v642
    %v852 = vpack.c.b16 %v645, %v644
    %v853 = vpack.c.b16 %v647, %v646
    %v854 = vpack.c.b16 %v649, %v648
    %v855 = vpack.c.b16 %v651, %v650
    %v856 = vpack.c.b16 %v653, %v652
    %v857 = vpack.c.b16 %v655, %v654
    %v858 = vpack.c.b16 %v657, %v656
    %v859 = vpack.c.b16 %v659, %v658
    %v860 = vpack.c.b16 %v661, %v660
    %v861 = vpack.c.b16 %v663, %v662
    %v862 = vpack.c.b16 %v665, %v664
    %v863 = vpack.c.b16 %v667, %v666
    %v864 = vpack.c.b16 %v669, %v668
    %v865 = vpack.c.b16 %v671, %v670
    %v866 = vpack.c.b16 %v673, %v672
    %v867 = vpack.c.b16 %v675, %v674
    %v868 = vpack.c.b16 %v677, %v676
    %v869 = vpack.c.b16 %v679, %v678
    %v870 = vpack.c.b16 %v681, %v680
    %v871 = vpack.c.b16 %v683, %v682
    %v872 = vpack.c.b16 %v685, %v684
    %v873 = vpack.c.b16 %v687, %v686
    %v874 = vpack.c.b16 %v689, %v688
    %v875 = vpack.c.b16 %v691, %v690
    %v876 = vpack.c.b16 %v693, %v692
    %v877 = vpack.c.b16 %v695, %v694
    %v878 = vpack.c.b16 %v697, %v696
    %v879 = vpack.c.b16 %v699, %v698
    %v880 = vpack.c.b16 %v701, %v700
    %v881 = vpack.c.b16 %v703, %v702
    %v882 = vpack.c.b16 %v705, %v704
    %v883 = vpack.c.b16 %v707, %v706
    %v884 = vpack.c.b16 %v709, %v708
    %v885 = vpack.c.b16 %v711, %v710
    %v886 = vpack.c.b16 %v713, %v712
    %v887 = vpack.c.b16 %v715, %v714
    %v888 = vpack.c.b16 %v717, %v716
    %v889 = vpack.c.b16 %v719, %v718
    %v890 = vpack.c.b16 %v721, %v720
    %v891 = vpack.c.b16 %v723, %v722
    %v892 = vpack.c.b16 %v725, %v724
    %v893 = vpack.c.b16 %v727, %v726
    %v894 = vpack.c.b16 %v729, %v728
    %v895 = vpack.c.b16 %v731, %v730
    %v896 = vpack.c.b16 %v733, %v732
    %v897 = vpack.c.b16 %v735, %v734
    %v898 = vpack.c.b16 %v737, %v736
    %v899 = vpack.c.b16 %v739, %v738
    %v900 = vpack.c.b16 %v741, %v740
    %v901 = vpack.c.b16 %v743, %v742
    %v902 = vpack.c.b16 %v745, %v744
    %v903 = vpack.c.b16 %v747, %v746
    %v904 = vpack.c.b16 %v749, %v748
    %v905 = vpack.c.b16 %v751, %v750
    %v906 = vpack.c.b16 %v753, %v752
    %v907 = vpack.c.b16 %v755, %v754
    %v908 = vpack.c.b16 %v757, %v756
    %v909 = vpack.c.b16 %v759, %v758
    %v910 = vpack.c.b16 %v761, %v760
    %v911 = vpack.c.b16 %v763, %v762
    %v912 = vpack.c.b16 %v765, %v764
    %v913 = vpack.c.b16 %v767, %v766
    %v914 = vpack.c.b16 %v769, %v768
    %v915 = vpack.c.b16 %v771, %v770
    %v916 = vpack.c.b16 %v773, %v772
    %v917 = vpack.c.b16 %v775, %v774
    %v918 = vpack.c.b16 %v777, %v776
    %v919 = vpack.c.b16 %v779, %v778
    %v920 = vpack.c.b16 %v781, %v780
    %v921 = vpack.c.b16 %v783, %v782
    %v922 = vpack.c.b16 %v785, %v784
    %v923 = vpack.c.b16 %v787, %v786
    %v924 = vpack.c.b16 %v789, %v788
    %v925 = vpack.c.b16 %v791, %v790
    %v926 = vpack.c.b16 %v793, %v792
    %v927 = vpack.c.b16 %v795, %v794
    %v928 = vpack.c.b16 %v797, %v796
    %v929 = vpack.c.b16 %v799, %v798
    %v930 = vpack.c.b16 %v801, %v800
    %v931 = vpack.c.b16 %v803, %v802
    %v936 = vunpack.c.l.b16 %v288
    %v937 = vunpack.c.l.b16 %v289
    %v938 = vunpack.c.l.b16 %v290
    %v939 = vunpack.c.l.b16 %v291
    %v940 = vpack.c.b16 %v937, %v936
    %v941 = vpack.c.b16 %v939, %v938
    %vm943 = vcmask 220160
    %v945 = vsel %vm943, %v804, 0
    %v948 = vsel %vm943, %v805, 0
    %v951 = vsel %vm943, %v806, 0
    %v954 = vsel %vm943, %v807, 0
    %v957 = vsel %vm943, %v808, 0
    %v960 = vsel %vm943, %v809, 0
    %v963 = vsel %vm943, %v810, 0
    %v966 = vsel %vm943, %v811, 0
    %v969 = vsel %vm943, %v812, 0
    %v972 = vsel %vm943, %v813, 0
    %v975 = vsel %vm943, %v814, 0
    %v978 = vsel %vm943, %v815, 0
    %v981 = vsel %vm943, %v816, 0
    %v984 = vsel %vm943, %v817, 0
    %v987 = vsel %vm943, %v818, 0
    %v990 = vsel %vm943, %v819, 0
    %v993 = vsel %vm943, %v820, 0
    %v996 = vsel %vm943, %v821, 0
    %v999 = vsel %vm943, %v822, 0
    %v1002 = vsel %vm943, %v823, 0
    %v1005 = vsel %vm943, %v824, 0
    %v1008 = vsel %vm943, %v825, 0
    %v1011 = vsel %vm943, %v826, 0
    %v1014 = vsel %vm943, %v827, 0
    %v1017 = vsel %vm943, %v828, 0
    %v1020 = vsel %vm943, %v829, 0
    %v1023 = vsel %vm943, %v830, 0
    %v1026 = vsel %vm943, %v831, 0
    %v1029 = vsel %vm943, %v832, 0
    %v1032 = vsel %vm943, %v833, 0
    %v1035 = vsel %vm943, %v834, 0
    %v1038 = vsel %vm943, %v835, 0
    %v1041 = vsel %vm943, %v836, 0
    %v1044 = vsel %vm943, %v837, 0
    %v1047 = vsel %vm943, %v838, 0
    %v1050 = vsel %vm943, %v839, 0
    %v1053 = vsel %vm943, %v840, 0
    %v1056 = vsel %vm943, %v841, 0
    %v1059 = vsel %vm943, %v842, 0
    %v1062 = vsel %vm943, %v843, 0
    %v1065 = vsel %vm943, %v844, 0
    %v1068 = vsel %vm943, %v845, 0
    %v1071 = vsel %vm943, %v846, 0
    %v1074 = vsel %vm943, %v847, 0
    %v1077 = vsel %vm943, %v848, 0
    %v1080 = vsel %vm943, %v849, 0
    %v1083 = vsel %vm943, %v850, 0
    %v1086 = vsel %vm943, %v851, 0
    %v1089 = vsel %vm943, %v852, 0
    %v1092 = vsel %vm943, %v853, 0
    %v1095 = vsel %vm943, %v854, 0
    %v1098 = vsel %vm943, %v855, 0
    %v1101 = vsel %vm943, %v856, 0
    %v1104 = vsel %vm943, %v857, 0
    %v1107 = vsel %vm943, %v858, 0
    %v1110 = vsel %vm943, %v859, 0
    %v1113 = vsel %vm943, %v860, 0
    %v1116 = vsel %vm943, %v861, 0
    %v1119 = vsel %vm943, %v862, 0
    %v1122 = vsel %vm943, %v863, 0
    %v1125 = vsel %vm943, %v864, 0
    %v1128 = vsel %vm943, %v865, 0
    %v1131 = vsel %vm943, %v866, 0
    %v1134 = vsel %vm943, %v867, 0
    %v1137 = vsel %vm943, %v868, 0
    %v1140 = vsel %vm943, %v869, 0
    %v1143 = vsel %vm943, %v870, 0
    %v1146 = vsel %vm943, %v871, 0
    %v1149 = vsel %vm943, %v872, 0
    %v1152 = vsel %vm943, %v873, 0
    %v1155 = vsel %vm943, %v874, 0
    %v1158 = vsel %vm943, %v875, 0
    %v1161 = vsel %vm943, %v876, 0
    %v1164 = vsel %vm943, %v877, 0
    %v1167 = vsel %vm943, %v878, 0
    %v1170 = vsel %vm943, %v879, 0
    %v1173 = vsel %vm943, %v880, 0
    %v1176 = vsel %vm943, %v881, 0
    %v1179 = vsel %vm943, %v882, 0
    %v1182 = vsel %vm943, %v883, 0
    %v1185 = vsel %vm943, %v884, 0
    %v1188 = vsel %vm943, %v885, 0
    %v1191 = vsel %vm943, %v886, 0
    %v1194 = vsel %vm943, %v887, 0
    %v1197 = vsel %vm943, %v888, 0
    %v1200 = vsel %vm943, %v889, 0
    %v1203 = vsel %vm943, %v890, 0
    %v1206 = vsel %vm943, %v891, 0
    %v1209 = vsel %vm943, %v892, 0
    %v1212 = vsel %vm943, %v893, 0
    %v1215 = vsel %vm943, %v894, 0
    %v1218 = vsel %vm943, %v895, 0
    %v1221 = vsel %vm943, %v896, 0
    %v1224 = vsel %vm943, %v897, 0
    %v1227 = vsel %vm943, %v898, 0
    %v1230 = vsel %vm943, %v899, 0
    %v1233 = vsel %vm943, %v900, 0
    %v1236 = vsel %vm943, %v901, 0
    %v1239 = vsel %vm943, %v902, 0
    %v1242 = vsel %vm943, %v903, 0
    %v1245 = vsel %vm943, %v904, 0
    %v1248 = vsel %vm943, %v905, 0
    %v1251 = vsel %vm943, %v906, 0
    %v1254 = vsel %vm943, %v907, 0
    %v1257 = vsel %vm943, %v908, 0
    %v1260 = vsel %vm943, %v909, 0
    %v1263 = vsel %vm943, %v910, 0
    %v1266 = vsel %vm943, %v911, 0
    %v1269 = vsel %vm943, %v912, 0
    %v1272 = vsel %vm943, %v913, 0
    %v1275 = vsel %vm943, %v914, 0
    %v1278 = vsel %vm943, %v915, 0
    %v1281 = vsel %vm943, %v916, 0
    %v1284 = vsel %vm943, %v917, 0
    %v1287 = vsel %vm943, %v918, 0
    %v1290 = vsel %vm943, %v919, 0
    %v1293 = vsel %vm943, %v920, 0
    %v1296 = vsel %vm943, %v921, 0
    %v1299 = vsel %vm943, %v922, 0
    %v1302 = vsel %vm943, %v923, 0
    %v1305 = vsel %vm943, %v924, 0
    %v1308 = vsel %vm943, %v925, 0
    %v1311 = vsel %vm943, %v926, 0
    %v1314 = vsel %vm943, %v927, 0
    %v1317 = vsel %vm943, %v928, 0
    %v1320 = vsel %vm943, %v929, 0
    %v1323 = vsel %vm943, %v930, 0
    %v1326 = vsel %vm943, %v931, 0
    %vm1328 = vcmask 1044480
    %vm1329 = vcmask 1045504
    %v1330 = vsel %vm1328, 4294967295, 65535
    %v1331 = vsel %vm1329, %v1330, 0
    %v1333 = vand.u32 %v941, %v1331
    %1335 = vmatprep.subr.bf16.mxu0 0
    %1336 = vmatpush1.bf16.msra.mxu0 %v940
    %1337 = vmatprep.subr.bf16.mxu0 0
    %1338 = vmatpush1.bf16.msra.mxu0 %v1333
    %1339 = vmatprep.subr.bf16.mxu0 0
    %1340 = vmatpush1.bf16.msra.mxu0 0
    %1341 = vmatprep.subr.bf16.mxu0 0
    %1342 = vmatpush1.bf16.msra.mxu0 0
    %1343 = vmatprep.subr.bf16.mxu0 0
    %1344 = vmatpush1.bf16.msra.mxu0 0
    %1345 = vmatprep.subr.bf16.mxu0 0
    %1346 = vmatpush1.bf16.msra.mxu0 0
    %1347 = vmatprep.subr.bf16.mxu0 0
    %1348 = vmatpush1.bf16.msra.mxu0 0
    %1349 = vmatprep.subr.bf16.mxu0 0
    %1350 = vmatpush1.bf16.msra.mxu0 0
    %1351 = vmatprep.subr.bf16.mxu0 0
    %1352 = vmatpush1.bf16.msra.mxu0 0
    %1353 = vmatprep.subr.bf16.mxu0 0
    %1354 = vmatpush1.bf16.msra.mxu0 0
    %1355 = vmatprep.subr.bf16.mxu0 0
    %1356 = vmatpush1.bf16.msra.mxu0 0
    %1357 = vmatprep.subr.bf16.mxu0 0
    %1358 = vmatpush1.bf16.msra.mxu0 0
    %1359 = vmatprep.subr.bf16.mxu0 0
    %1360 = vmatpush1.bf16.msra.mxu0 0
    %1361 = vmatprep.subr.bf16.mxu0 0
    %1362 = vmatpush1.bf16.msra.mxu0 0
    %1363 = vmatprep.subr.bf16.mxu0 0
    %1364 = vmatpush1.bf16.msra.mxu0 0
    %1365 = vmatprep.subr.bf16.mxu0 0
    %1366 = vmatpush1.bf16.msra.mxu0 0
    %1367 = vmatprep.mubr.bf16.mxu0 0
    %1368 = vmatmul.mubr.bf16.gmra.mrb[0].mxu0 %v945
    %v1369 = vpop.f32.mrb[0].mxu0
    %v1370 = vadd.f32 0.0, %v1369
    %v1371 = vpop.f32.mrb[0].mxu0
    %v1372 = vpop.f32.mrb[0].mxu0
    %v1373 = vadd.f32 0.0, %v1372
    %v1374 = vpop.f32.mrb[0].mxu0
    %1375 = vmatprep.mubr.bf16.mxu0 0
    %1376 = vmatmul.mubr.bf16.gmra.mrb[0].mxu0 %v948
    %v1377 = vpop.f32.mrb[0].mxu0
    %v1378 = vadd.f32 0.0, %v1377
    %v1379 = vpop.f32.mrb[0].mxu0
    %v1380 = vpop.f32.mrb[0].mxu0
    %v1381 = vadd.f32 0.0, %v1380
    %v1382 = vpop.f32.mrb[0].mxu0
    %1383 = vmatprep.mubr.bf16.mxu0 0
    %1384 = vmatmul.mubr.bf16.gmra.mrb[0].mxu0 %v951
    %v1385 = vpop.f32.mrb[0].mxu0
    %v1386 = vadd.f32 0.0, %v1385
    %v1387 = vpop.f32.mrb[0].mxu0
    %v1388 = vpop.f32.mrb[0].mxu0
    %v1389 = vadd.f32 0.0, %v1388
    %v1390 = vpop.f32.mrb[0].mxu0
    %1391 = vmatprep.mubr.bf16.mxu0 0
    %1392 = vmatmul.mubr.bf16.gmra.mrb[0].mxu0 %v954
    %v1393 = vpop.f32.mrb[0].mxu0
    %v1394 = vadd.f32 0.0, %v1393
    %v1395 = vpop.f32.mrb[0].mxu0
    %v1396 = vpop.f32.mrb[0].mxu0
    %v1397 = vadd.f32 0.0, %v1396
    %v1398 = vpop.f32.mrb[0].mxu0
    %1399 = vmatprep.mubr.bf16.mxu0 0
    %1400 = vmatmul.mubr.bf16.gmra.mrb[0].mxu0 %v957
    %v1401 = vpop.f32.mrb[0].mxu0
    %v1402 = vadd.f32 0.0, %v1401
    %v1403 = vpop.f32.mrb[0].mxu0
    %v1404 = vpop.f32.mrb[0].mxu0
    %v1405 = vadd.f32 0.0, %v1404
    %v1406 = vpop.f32.mrb[0].mxu0
    %1407 = vmatprep.mubr.bf16.mxu0 0
    %1408 = vmatmul.mubr.bf16.gmra.mrb[0].mxu0 %v960
    %v1409 = vpop.f32.mrb[0].mxu0
    %v1410 = vadd.f32 0.0, %v1409
    %v1411 = vpop.f32.mrb[0].mxu0
    %v1412 = vpop.f32.mrb[0].mxu0
    %v1413 = vadd.f32 0.0, %v1412
    %v1414 = vpop.f32.mrb[0].mxu0
    %1415 = vmatprep.mubr.bf16.mxu0 0
    %1416 = vmatmul.mubr.bf16.gmra.mrb[0].mxu0 %v963
    %v1417 = vpop.f32.mrb[0].mxu0
    %v1418 = vadd.f32 0.0, %v1417
    %v1419 = vpop.f32.mrb[0].mxu0
    %v1420 = vpop.f32.mrb[0].mxu0
    %v1421 = vadd.f32 0.0, %v1420
    %v1422 = vpop.f32.mrb[0].mxu0
    %1423 = vmatprep.mubr.bf16.mxu0 0
    %1424 = vmatmul.mubr.bf16.gmra.mrb[0].mxu0 %v966
    %v1425 = vpop.f32.mrb[0].mxu0
    %v1426 = vadd.f32 0.0, %v1425
    %v1427 = vpop.f32.mrb[0].mxu0
    %v1428 = vpop.f32.mrb[0].mxu0
    %v1429 = vadd.f32 0.0, %v1428
    %v1430 = vpop.f32.mrb[0].mxu0
    %1431 = vmatprep.mubr.bf16.mxu0 0
    %1432 = vmatmul.mubr.bf16.gmra.mrb[0].mxu0 %v969
    %v1433 = vpop.f32.mrb[0].mxu0
    %v1434 = vadd.f32 0.0, %v1433
    %v1435 = vpop.f32.mrb[0].mxu0
    %v1436 = vpop.f32.mrb[0].mxu0
    %v1437 = vadd.f32 0.0, %v1436
    %v1438 = vpop.f32.mrb[0].mxu0
    %1439 = vmatprep.mubr.bf16.mxu0 0
    %1440 = vmatmul.mubr.bf16.gmra.mrb[0].mxu0 %v972
    %v1441 = vpop.f32.mrb[0].mxu0
    %v1442 = vadd.f32 0.0, %v1441
    %v1443 = vpop.f32.mrb[0].mxu0
    %v1444 = vpop.f32.mrb[0].mxu0
    %v1445 = vadd.f32 0.0, %v1444
    %v1446 = vpop.f32.mrb[0].mxu0
    %1447 = vmatprep.mubr.bf16.mxu0 0
    %1448 = vmatmul.mubr.bf16.gmra.mrb[0].mxu0 %v975
    %v1449 = vpop.f32.mrb[0].mxu0
    %v1450 = vadd.f32 0.0, %v1449
    %v1451 = vpop.f32.mrb[0].mxu0
    %v1452 = vpop.f32.mrb[0].mxu0
    %v1453 = vadd.f32 0.0, %v1452
    %v1454 = vpop.f32.mrb[0].mxu0
    %1455 = vmatprep.mubr.bf16.mxu0 0
    %1456 = vmatmul.mubr.bf16.gmra.mrb[0].mxu0 %v978
    %v1457 = vpop.f32.mrb[0].mxu0
    %v1458 = vadd.f32 0.0, %v1457
    %v1459 = vpop.f32.mrb[0].mxu0
    %v1460 = vpop.f32.mrb[0].mxu0
    %v1461 = vadd.f32 0.0, %v1460
    %v1462 = vpop.f32.mrb[0].mxu0
    %1463 = vmatprep.mubr.bf16.mxu0 0
    %1464 = vmatmul.mubr.bf16.gmra.mrb[0].mxu0 %v981
    %v1465 = vpop.f32.mrb[0].mxu0
    %v1466 = vadd.f32 0.0, %v1465
    %v1467 = vpop.f32.mrb[0].mxu0
    %v1468 = vpop.f32.mrb[0].mxu0
    %v1469 = vadd.f32 0.0, %v1468
    %v1470 = vpop.f32.mrb[0].mxu0
    %1471 = vmatprep.mubr.bf16.mxu0 0
    %1472 = vmatmul.mubr.bf16.gmra.mrb[0].mxu0 %v984
    %v1473 = vpop.f32.mrb[0].mxu0
    %v1474 = vadd.f32 0.0, %v1473
    %v1475 = vpop.f32.mrb[0].mxu0
    %v1476 = vpop.f32.mrb[0].mxu0
    %v1477 = vadd.f32 0.0, %v1476
    %v1478 = vpop.f32.mrb[0].mxu0
    %1479 = vmatprep.mubr.bf16.mxu0 0
    %1480 = vmatmul.mubr.bf16.gmra.mrb[0].mxu0 %v987
    %v1481 = vpop.f32.mrb[0].mxu0
    %v1482 = vadd.f32 0.0, %v1481
    %v1483 = vpop.f32.mrb[0].mxu0
    %v1484 = vpop.f32.mrb[0].mxu0
    %v1485 = vadd.f32 0.0, %v1484
    %v1486 = vpop.f32.mrb[0].mxu0
    %1487 = vmatprep.mubr.bf16.mxu0 0
    %1488 = vmatmul.mubr.bf16.gmra.mrb[0].mxu0 %v990
    %v1489 = vpop.f32.mrb[0].mxu0
    %v1490 = vadd.f32 0.0, %v1489
    %v1491 = vpop.f32.mrb[0].mxu0
    %v1492 = vpop.f32.mrb[0].mxu0
    %v1493 = vadd.f32 0.0, %v1492
    %v1494 = vpop.f32.mrb[0].mxu0
    %1495 = vmatprep.mubr.bf16.mxu0 0
    %1496 = vmatmul.mubr.bf16.gmra.mrb[0].mxu0 %v993
    %v1497 = vpop.f32.mrb[0].mxu0
    %v1498 = vadd.f32 0.0, %v1497
    %v1499 = vpop.f32.mrb[0].mxu0
    %v1500 = vpop.f32.mrb[0].mxu0
    %v1501 = vadd.f32 0.0, %v1500
    %v1502 = vpop.f32.mrb[0].mxu0
    %1503 = vmatprep.mubr.bf16.mxu0 0
    %1504 = vmatmul.mubr.bf16.gmra.mrb[0].mxu0 %v996
    %v1505 = vpop.f32.mrb[0].mxu0
    %v1506 = vadd.f32 0.0, %v1505
    %v1507 = vpop.f32.mrb[0].mxu0
    %v1508 = vpop.f32.mrb[0].mxu0
    %v1509 = vadd.f32 0.0, %v1508
    %v1510 = vpop.f32.mrb[0].mxu0
    %1511 = vmatprep.mubr.bf16.mxu0 0
    %1512 = vmatmul.mubr.bf16.gmra.mrb[0].mxu0 %v999
    %v1513 = vpop.f32.mrb[0].mxu0
    %v1514 = vadd.f32 0.0, %v1513
    %v1515 = vpop.f32.mrb[0].mxu0
    %v1516 = vpop.f32.mrb[0].mxu0
    %v1517 = vadd.f32 0.0, %v1516
    %v1518 = vpop.f32.mrb[0].mxu0
    %1519 = vmatprep.mubr.bf16.mxu0 0
    %1520 = vmatmul.mubr.bf16.gmra.mrb[0].mxu0 %v1002
    %v1521 = vpop.f32.mrb[0].mxu0
    %v1522 = vadd.f32 0.0, %v1521
    %v1523 = vpop.f32.mrb[0].mxu0
    %v1524 = vpop.f32.mrb[0].mxu0
    %v1525 = vadd.f32 0.0, %v1524
    %v1526 = vpop.f32.mrb[0].mxu0
    %1527 = vmatprep.mubr.bf16.mxu0 0
    %1528 = vmatmul.mubr.bf16.gmra.mrb[0].mxu0 %v1005
    %v1529 = vpop.f32.mrb[0].mxu0
    %v1530 = vadd.f32 0.0, %v1529
    %v1531 = vpop.f32.mrb[0].mxu0
    %v1532 = vpop.f32.mrb[0].mxu0
    %v1533 = vadd.f32 0.0, %v1532
    %v1534 = vpop.f32.mrb[0].mxu0
    %1535 = vmatprep.mubr.bf16.mxu0 0
    %1536 = vmatmul.mubr.bf16.gmra.mrb[0].mxu0 %v1008
    %v1537 = vpop.f32.mrb[0].mxu0
    %v1538 = vadd.f32 0.0, %v1537
    %v1539 = vpop.f32.mrb[0].mxu0
    %v1540 = vpop.f32.mrb[0].mxu0
    %v1541 = vadd.f32 0.0, %v1540
    %v1542 = vpop.f32.mrb[0].mxu0
    %1543 = vmatprep.mubr.bf16.mxu0 0
    %1544 = vmatmul.mubr.bf16.gmra.mrb[0].mxu0 %v1011
    %v1545 = vpop.f32.mrb[0].mxu0
    %v1546 = vadd.f32 0.0, %v1545
    %v1547 = vpop.f32.mrb[0].mxu0
    %v1548 = vpop.f32.mrb[0].mxu0
    %v1549 = vadd.f32 0.0, %v1548
    %v1550 = vpop.f32.mrb[0].mxu0
    %1551 = vmatprep.mubr.bf16.mxu0 0
    %1552 = vmatmul.mubr.bf16.gmra.mrb[0].mxu0 %v1014
    %v1553 = vpop.f32.mrb[0].mxu0
    %v1554 = vadd.f32 0.0, %v1553
    %v1555 = vpop.f32.mrb[0].mxu0
    %v1556 = vpop.f32.mrb[0].mxu0
    %v1557 = vadd.f32 0.0, %v1556
    %v1558 = vpop.f32.mrb[0].mxu0
    %1559 = vmatprep.mubr.bf16.mxu0 0
    %1560 = vmatmul.mubr.bf16.gmra.mrb[0].mxu0 %v1017
    %v1561 = vpop.f32.mrb[0].mxu0
    %v1562 = vadd.f32 0.0, %v1561
    %v1563 = vpop.f32.mrb[0].mxu0
    %v1564 = vpop.f32.mrb[0].mxu0
    %v1565 = vadd.f32 0.0, %v1564
    %v1566 = vpop.f32.mrb[0].mxu0
    %1567 = vmatprep.mubr.bf16.mxu0 0
    %1568 = vmatmul.mubr.bf16.gmra.mrb[0].mxu0 %v1020
    %v1569 = vpop.f32.mrb[0].mxu0
    %v1570 = vadd.f32 0.0, %v1569
    %v1571 = vpop.f32.mrb[0].mxu0
    %v1572 = vpop.f32.mrb[0].mxu0
    %v1573 = vadd.f32 0.0, %v1572
    %v1574 = vpop.f32.mrb[0].mxu0
    %1575 = vmatprep.mubr.bf16.mxu0 0
    %1576 = vmatmul.mubr.bf16.gmra.mrb[0].mxu0 %v1023
    %v1577 = vpop.f32.mrb[0].mxu0
    %v1578 = vadd.f32 0.0, %v1577
    %v1579 = vpop.f32.mrb[0].mxu0
    %v1580 = vpop.f32.mrb[0].mxu0
    %v1581 = vadd.f32 0.0, %v1580
    %v1582 = vpop.f32.mrb[0].mxu0
    %1583 = vmatprep.mubr.bf16.mxu0 0
    %1584 = vmatmul.mubr.bf16.gmra.mrb[0].mxu0 %v1026
    %v1585 = vpop.f32.mrb[0].mxu0
    %v1586 = vadd.f32 0.0, %v1585
    %v1587 = vpop.f32.mrb[0].mxu0
    %v1588 = vpop.f32.mrb[0].mxu0
    %v1589 = vadd.f32 0.0, %v1588
    %v1590 = vpop.f32.mrb[0].mxu0
    %1591 = vmatprep.mubr.bf16.mxu0 0
    %1592 = vmatmul.mubr.bf16.gmra.mrb[0].mxu0 %v1029
    %v1593 = vpop.f32.mrb[0].mxu0
    %v1594 = vadd.f32 0.0, %v1593
    %v1595 = vpop.f32.mrb[0].mxu0
    %v1596 = vpop.f32.mrb[0].mxu0
    %v1597 = vadd.f32 0.0, %v1596
    %v1598 = vpop.f32.mrb[0].mxu0
    %1599 = vmatprep.mubr.bf16.mxu0 0
    %1600 = vmatmul.mubr.bf16.gmra.mrb[0].mxu0 %v1032
    %v1601 = vpop.f32.mrb[0].mxu0
    %v1602 = vadd.f32 0.0, %v1601
    %v1603 = vpop.f32.mrb[0].mxu0
    %v1604 = vpop.f32.mrb[0].mxu0
    %v1605 = vadd.f32 0.0, %v1604
    %v1606 = vpop.f32.mrb[0].mxu0
    %1607 = vmatprep.mubr.bf16.mxu0 0
    %1608 = vmatmul.mubr.bf16.gmra.mrb[0].mxu0 %v1035
    %v1609 = vpop.f32.mrb[0].mxu0
    %v1610 = vadd.f32 0.0, %v1609
    %v1611 = vpop.f32.mrb[0].mxu0
    %v1612 = vpop.f32.mrb[0].mxu0
    %v1613 = vadd.f32 0.0, %v1612
    %v1614 = vpop.f32.mrb[0].mxu0
    %1615 = vmatprep.mubr.bf16.mxu0 0
    %1616 = vmatmul.mubr.bf16.gmra.mrb[0].mxu0 %v1038
    %v1617 = vpop.f32.mrb[0].mxu0
    %v1618 = vadd.f32 0.0, %v1617
    %v1619 = vpop.f32.mrb[0].mxu0
    %v1620 = vpop.f32.mrb[0].mxu0
    %v1621 = vadd.f32 0.0, %v1620
    %v1622 = vpop.f32.mrb[0].mxu0
    %1623 = vmatprep.mubr.bf16.mxu0 0
    %1624 = vmatmul.mubr.bf16.gmra.mrb[0].mxu0 %v1041
    %v1625 = vpop.f32.mrb[0].mxu0
    %v1626 = vadd.f32 0.0, %v1625
    %v1627 = vpop.f32.mrb[0].mxu0
    %v1628 = vpop.f32.mrb[0].mxu0
    %v1629 = vadd.f32 0.0, %v1628
    %v1630 = vpop.f32.mrb[0].mxu0
    %1631 = vmatprep.mubr.bf16.mxu0 0
    %1632 = vmatmul.mubr.bf16.gmra.mrb[0].mxu0 %v1044
    %v1633 = vpop.f32.mrb[0].mxu0
    %v1634 = vadd.f32 0.0, %v1633
    %v1635 = vpop.f32.mrb[0].mxu0
    %v1636 = vpop.f32.mrb[0].mxu0
    %v1637 = vadd.f32 0.0, %v1636
    %v1638 = vpop.f32.mrb[0].mxu0
    %1639 = vmatprep.mubr.bf16.mxu0 0
    %1640 = vmatmul.mubr.bf16.gmra.mrb[0].mxu0 %v1047
    %v1641 = vpop.f32.mrb[0].mxu0
    %v1642 = vadd.f32 0.0, %v1641
    %v1643 = vpop.f32.mrb[0].mxu0
    %v1644 = vpop.f32.mrb[0].mxu0
    %v1645 = vadd.f32 0.0, %v1644
    %v1646 = vpop.f32.mrb[0].mxu0
    %1647 = vmatprep.mubr.bf16.mxu0 0
    %1648 = vmatmul.mubr.bf16.gmra.mrb[0].mxu0 %v1050
    %v1649 = vpop.f32.mrb[0].mxu0
    %v1650 = vadd.f32 0.0, %v1649
    %v1651 = vpop.f32.mrb[0].mxu0
    %v1652 = vpop.f32.mrb[0].mxu0
    %v1653 = vadd.f32 0.0, %v1652
    %v1654 = vpop.f32.mrb[0].mxu0
    %1655 = vmatprep.mubr.bf16.mxu0 0
    %1656 = vmatmul.mubr.bf16.gmra.mrb[0].mxu0 %v1053
    %v1657 = vpop.f32.mrb[0].mxu0
    %v1658 = vadd.f32 0.0, %v1657
    %v1659 = vpop.f32.mrb[0].mxu0
    %v1660 = vpop.f32.mrb[0].mxu0
    %v1661 = vadd.f32 0.0, %v1660
    %v1662 = vpop.f32.mrb[0].mxu0
    %1663 = vmatprep.mubr.bf16.mxu0 0
    %1664 = vmatmul.mubr.bf16.gmra.mrb[0].mxu0 %v1056
    %v1665 = vpop.f32.mrb[0].mxu0
    %v1666 = vadd.f32 0.0, %v1665
    %v1667 = vpop.f32.mrb[0].mxu0
    %v1668 = vpop.f32.mrb[0].mxu0
    %v1669 = vadd.f32 0.0, %v1668
    %v1670 = vpop.f32.mrb[0].mxu0
    %1671 = vmatprep.mubr.bf16.mxu0 0
    %1672 = vmatmul.mubr.bf16.gmra.mrb[0].mxu0 %v1059
    %v1673 = vpop.f32.mrb[0].mxu0
    %v1674 = vadd.f32 0.0, %v1673
    %v1675 = vpop.f32.mrb[0].mxu0
    %v1676 = vpop.f32.mrb[0].mxu0
    %v1677 = vadd.f32 0.0, %v1676
    %v1678 = vpop.f32.mrb[0].mxu0
    %1679 = vmatprep.mubr.bf16.mxu0 0
    %1680 = vmatmul.mubr.bf16.gmra.mrb[0].mxu0 %v1062
    %v1681 = vpop.f32.mrb[0].mxu0
    %v1682 = vadd.f32 0.0, %v1681
    %v1683 = vpop.f32.mrb[0].mxu0
    %v1684 = vpop.f32.mrb[0].mxu0
    %v1685 = vadd.f32 0.0, %v1684
    %v1686 = vpop.f32.mrb[0].mxu0
    %1687 = vmatprep.mubr.bf16.mxu0 0
    %1688 = vmatmul.mubr.bf16.gmra.mrb[0].mxu0 %v1065
    %v1689 = vpop.f32.mrb[0].mxu0
    %v1690 = vadd.f32 0.0, %v1689
    %v1691 = vpop.f32.mrb[0].mxu0
    %v1692 = vpop.f32.mrb[0].mxu0
    %v1693 = vadd.f32 0.0, %v1692
    %v1694 = vpop.f32.mrb[0].mxu0
    %1695 = vmatprep.mubr.bf16.mxu0 0
    %1696 = vmatmul.mubr.bf16.gmra.mrb[0].mxu0 %v1068
    %v1697 = vpop.f32.mrb[0].mxu0
    %v1698 = vadd.f32 0.0, %v1697
    %v1699 = vpop.f32.mrb[0].mxu0
    %v1700 = vpop.f32.mrb[0].mxu0
    %v1701 = vadd.f32 0.0, %v1700
    %v1702 = vpop.f32.mrb[0].mxu0
    %1703 = vmatprep.mubr.bf16.mxu0 0
    %1704 = vmatmul.mubr.bf16.gmra.mrb[0].mxu0 %v1071
    %v1705 = vpop.f32.mrb[0].mxu0
    %v1706 = vadd.f32 0.0, %v1705
    %v1707 = vpop.f32.mrb[0].mxu0
    %v1708 = vpop.f32.mrb[0].mxu0
    %v1709 = vadd.f32 0.0, %v1708
    %v1710 = vpop.f32.mrb[0].mxu0
    %1711 = vmatprep.mubr.bf16.mxu0 0
    %1712 = vmatmul.mubr.bf16.gmra.mrb[0].mxu0 %v1074
    %v1713 = vpop.f32.mrb[0].mxu0
    %v1714 = vadd.f32 0.0, %v1713
    %v1715 = vpop.f32.mrb[0].mxu0
    %v1716 = vpop.f32.mrb[0].mxu0
    %v1717 = vadd.f32 0.0, %v1716
    %v1718 = vpop.f32.mrb[0].mxu0
    %1719 = vmatprep.mubr.bf16.mxu0 0
    %1720 = vmatmul.mubr.bf16.gmra.mrb[0].mxu0 %v1077
    %v1721 = vpop.f32.mrb[0].mxu0
    %v1722 = vadd.f32 0.0, %v1721
    %v1723 = vpop.f32.mrb[0].mxu0
    %v1724 = vpop.f32.mrb[0].mxu0
    %v1725 = vadd.f32 0.0, %v1724
    %v1726 = vpop.f32.mrb[0].mxu0
    %1727 = vmatprep.mubr.bf16.mxu0 0
    %1728 = vmatmul.mubr.bf16.gmra.mrb[0].mxu0 %v1080
    %v1729 = vpop.f32.mrb[0].mxu0
    %v1730 = vadd.f32 0.0, %v1729
    %v1731 = vpop.f32.mrb[0].mxu0
    %v1732 = vpop.f32.mrb[0].mxu0
    %v1733 = vadd.f32 0.0, %v1732
    %v1734 = vpop.f32.mrb[0].mxu0
    %1735 = vmatprep.mubr.bf16.mxu0 0
    %1736 = vmatmul.mubr.bf16.gmra.mrb[0].mxu0 %v1083
    %v1737 = vpop.f32.mrb[0].mxu0
    %v1738 = vadd.f32 0.0, %v1737
    %v1739 = vpop.f32.mrb[0].mxu0
    %v1740 = vpop.f32.mrb[0].mxu0
    %v1741 = vadd.f32 0.0, %v1740
    %v1742 = vpop.f32.mrb[0].mxu0
    %1743 = vmatprep.mubr.bf16.mxu0 0
    %1744 = vmatmul.mubr.bf16.gmra.mrb[0].mxu0 %v1086
    %v1745 = vpop.f32.mrb[0].mxu0
    %v1746 = vadd.f32 0.0, %v1745
    %v1747 = vpop.f32.mrb[0].mxu0
    %v1748 = vpop.f32.mrb[0].mxu0
    %v1749 = vadd.f32 0.0, %v1748
    %v1750 = vpop.f32.mrb[0].mxu0
    %1751 = vmatprep.mubr.bf16.mxu0 0
    %1752 = vmatmul.mubr.bf16.gmra.mrb[0].mxu0 %v1089
    %v1753 = vpop.f32.mrb[0].mxu0
    %v1754 = vadd.f32 0.0, %v1753
    %v1755 = vpop.f32.mrb[0].mxu0
    %v1756 = vpop.f32.mrb[0].mxu0
    %v1757 = vadd.f32 0.0, %v1756
    %v1758 = vpop.f32.mrb[0].mxu0
    %1759 = vmatprep.mubr.bf16.mxu0 0
    %1760 = vmatmul.mubr.bf16.gmra.mrb[0].mxu0 %v1092
    %v1761 = vpop.f32.mrb[0].mxu0
    %v1762 = vadd.f32 0.0, %v1761
    %v1763 = vpop.f32.mrb[0].mxu0
    %v1764 = vpop.f32.mrb[0].mxu0
    %v1765 = vadd.f32 0.0, %v1764
    %v1766 = vpop.f32.mrb[0].mxu0
    %1767 = vmatprep.mubr.bf16.mxu0 0
    %1768 = vmatmul.mubr.bf16.gmra.mrb[0].mxu0 %v1095
    %v1769 = vpop.f32.mrb[0].mxu0
    %v1770 = vadd.f32 0.0, %v1769
    %v1771 = vpop.f32.mrb[0].mxu0
    %v1772 = vpop.f32.mrb[0].mxu0
    %v1773 = vadd.f32 0.0, %v1772
    %v1774 = vpop.f32.mrb[0].mxu0
    %1775 = vmatprep.mubr.bf16.mxu0 0
    %1776 = vmatmul.mubr.bf16.gmra.mrb[0].mxu0 %v1098
    %v1777 = vpop.f32.mrb[0].mxu0
    %v1778 = vadd.f32 0.0, %v1777
    %v1779 = vpop.f32.mrb[0].mxu0
    %v1780 = vpop.f32.mrb[0].mxu0
    %v1781 = vadd.f32 0.0, %v1780
    %v1782 = vpop.f32.mrb[0].mxu0
    %1783 = vmatprep.mubr.bf16.mxu0 0
    %1784 = vmatmul.mubr.bf16.gmra.mrb[0].mxu0 %v1101
    %v1785 = vpop.f32.mrb[0].mxu0
    %v1786 = vadd.f32 0.0, %v1785
    %v1787 = vpop.f32.mrb[0].mxu0
    %v1788 = vpop.f32.mrb[0].mxu0
    %v1789 = vadd.f32 0.0, %v1788
    %v1790 = vpop.f32.mrb[0].mxu0
    %1791 = vmatprep.mubr.bf16.mxu0 0
    %1792 = vmatmul.mubr.bf16.gmra.mrb[0].mxu0 %v1104
    %v1793 = vpop.f32.mrb[0].mxu0
    %v1794 = vadd.f32 0.0, %v1793
    %v1795 = vpop.f32.mrb[0].mxu0
    %v1796 = vpop.f32.mrb[0].mxu0
    %v1797 = vadd.f32 0.0, %v1796
    %v1798 = vpop.f32.mrb[0].mxu0
    %1799 = vmatprep.mubr.bf16.mxu0 0
    %1800 = vmatmul.mubr.bf16.gmra.mrb[0].mxu0 %v1107
    %v1801 = vpop.f32.mrb[0].mxu0
    %v1802 = vadd.f32 0.0, %v1801
    %v1803 = vpop.f32.mrb[0].mxu0
    %v1804 = vpop.f32.mrb[0].mxu0
    %v1805 = vadd.f32 0.0, %v1804
    %v1806 = vpop.f32.mrb[0].mxu0
    %1807 = vmatprep.mubr.bf16.mxu0 0
    %1808 = vmatmul.mubr.bf16.gmra.mrb[0].mxu0 %v1110
    %v1809 = vpop.f32.mrb[0].mxu0
    %v1810 = vadd.f32 0.0, %v1809
    %v1811 = vpop.f32.mrb[0].mxu0
    %v1812 = vpop.f32.mrb[0].mxu0
    %v1813 = vadd.f32 0.0, %v1812
    %v1814 = vpop.f32.mrb[0].mxu0
    %1815 = vmatprep.mubr.bf16.mxu0 0
    %1816 = vmatmul.mubr.bf16.gmra.mrb[0].mxu0 %v1113
    %v1817 = vpop.f32.mrb[0].mxu0
    %v1818 = vadd.f32 0.0, %v1817
    %v1819 = vpop.f32.mrb[0].mxu0
    %v1820 = vpop.f32.mrb[0].mxu0
    %v1821 = vadd.f32 0.0, %v1820
    %v1822 = vpop.f32.mrb[0].mxu0
    %1823 = vmatprep.mubr.bf16.mxu0 0
    %1824 = vmatmul.mubr.bf16.gmra.mrb[0].mxu0 %v1116
    %v1825 = vpop.f32.mrb[0].mxu0
    %v1826 = vadd.f32 0.0, %v1825
    %v1827 = vpop.f32.mrb[0].mxu0
    %v1828 = vpop.f32.mrb[0].mxu0
    %v1829 = vadd.f32 0.0, %v1828
    %v1830 = vpop.f32.mrb[0].mxu0
    %1831 = vmatprep.mubr.bf16.mxu0 0
    %1832 = vmatmul.mubr.bf16.gmra.mrb[0].mxu0 %v1119
    %v1833 = vpop.f32.mrb[0].mxu0
    %v1834 = vadd.f32 0.0, %v1833
    %v1835 = vpop.f32.mrb[0].mxu0
    %v1836 = vpop.f32.mrb[0].mxu0
    %v1837 = vadd.f32 0.0, %v1836
    %v1838 = vpop.f32.mrb[0].mxu0
    %1839 = vmatprep.mubr.bf16.mxu0 0
    %1840 = vmatmul.mubr.bf16.gmra.mrb[0].mxu0 %v1122
    %v1841 = vpop.f32.mrb[0].mxu0
    %v1842 = vadd.f32 0.0, %v1841
    %v1843 = vpop.f32.mrb[0].mxu0
    %v1844 = vpop.f32.mrb[0].mxu0
    %v1845 = vadd.f32 0.0, %v1844
    %v1846 = vpop.f32.mrb[0].mxu0
    %1847 = vmatprep.mubr.bf16.mxu0 0
    %1848 = vmatmul.mubr.bf16.gmra.mrb[0].mxu0 %v1125
    %v1849 = vpop.f32.mrb[0].mxu0
    %v1850 = vadd.f32 0.0, %v1849
    %v1851 = vpop.f32.mrb[0].mxu0
    %v1852 = vpop.f32.mrb[0].mxu0
    %v1853 = vadd.f32 0.0, %v1852
    %v1854 = vpop.f32.mrb[0].mxu0
    %1855 = vmatprep.mubr.bf16.mxu0 0
    %1856 = vmatmul.mubr.bf16.gmra.mrb[0].mxu0 %v1128
    %v1857 = vpop.f32.mrb[0].mxu0
    %v1858 = vadd.f32 0.0, %v1857
    %v1859 = vpop.f32.mrb[0].mxu0
    %v1860 = vpop.f32.mrb[0].mxu0
    %v1861 = vadd.f32 0.0, %v1860
    %v1862 = vpop.f32.mrb[0].mxu0
    %1863 = vmatprep.mubr.bf16.mxu0 0
    %1864 = vmatmul.mubr.bf16.gmra.mrb[0].mxu0 %v1131
    %v1865 = vpop.f32.mrb[0].mxu0
    %v1866 = vadd.f32 0.0, %v1865
    %v1867 = vpop.f32.mrb[0].mxu0
    %v1868 = vpop.f32.mrb[0].mxu0
    %v1869 = vadd.f32 0.0, %v1868
    %v1870 = vpop.f32.mrb[0].mxu0
    %1871 = vmatprep.mubr.bf16.mxu0 0
    %1872 = vmatmul.mubr.bf16.gmra.mrb[0].mxu0 %v1134
    %v1873 = vpop.f32.mrb[0].mxu0
    %v1874 = vadd.f32 0.0, %v1873
    %v1875 = vpop.f32.mrb[0].mxu0
    %v1876 = vpop.f32.mrb[0].mxu0
    %v1877 = vadd.f32 0.0, %v1876
    %v1878 = vpop.f32.mrb[0].mxu0
    %1879 = vmatprep.mubr.bf16.mxu0 0
    %1880 = vmatmul.mubr.bf16.gmra.mrb[0].mxu0 %v1137
    %v1881 = vpop.f32.mrb[0].mxu0
    %v1882 = vadd.f32 0.0, %v1881
    %v1883 = vpop.f32.mrb[0].mxu0
    %v1884 = vpop.f32.mrb[0].mxu0
    %v1885 = vadd.f32 0.0, %v1884
    %v1886 = vpop.f32.mrb[0].mxu0
    %1887 = vmatprep.mubr.bf16.mxu0 0
    %1888 = vmatmul.mubr.bf16.gmra.mrb[0].mxu0 %v1140
    %v1889 = vpop.f32.mrb[0].mxu0
    %v1890 = vadd.f32 0.0, %v1889
    %v1891 = vpop.f32.mrb[0].mxu0
    %v1892 = vpop.f32.mrb[0].mxu0
    %v1893 = vadd.f32 0.0, %v1892
    %v1894 = vpop.f32.mrb[0].mxu0
    %1895 = vmatprep.mubr.bf16.mxu0 0
    %1896 = vmatmul.mubr.bf16.gmra.mrb[0].mxu0 %v1143
    %v1897 = vpop.f32.mrb[0].mxu0
    %v1898 = vadd.f32 0.0, %v1897
    %v1899 = vpop.f32.mrb[0].mxu0
    %v1900 = vpop.f32.mrb[0].mxu0
    %v1901 = vadd.f32 0.0, %v1900
    %v1902 = vpop.f32.mrb[0].mxu0
    %1903 = vmatprep.mubr.bf16.mxu0 0
    %1904 = vmatmul.mubr.bf16.gmra.mrb[0].mxu0 %v1146
    %v1905 = vpop.f32.mrb[0].mxu0
    %v1906 = vadd.f32 0.0, %v1905
    %v1907 = vpop.f32.mrb[0].mxu0
    %v1908 = vpop.f32.mrb[0].mxu0
    %v1909 = vadd.f32 0.0, %v1908
    %v1910 = vpop.f32.mrb[0].mxu0
    %1911 = vmatprep.mubr.bf16.mxu0 0
    %1912 = vmatmul.mubr.bf16.gmra.mrb[0].mxu0 %v1149
    %v1913 = vpop.f32.mrb[0].mxu0
    %v1914 = vadd.f32 0.0, %v1913
    %v1915 = vpop.f32.mrb[0].mxu0
    %v1916 = vpop.f32.mrb[0].mxu0
    %v1917 = vadd.f32 0.0, %v1916
    %v1918 = vpop.f32.mrb[0].mxu0
    %1919 = vmatprep.mubr.bf16.mxu0 0
    %1920 = vmatmul.mubr.bf16.gmra.mrb[0].mxu0 %v1152
    %v1921 = vpop.f32.mrb[0].mxu0
    %v1922 = vadd.f32 0.0, %v1921
    %v1923 = vpop.f32.mrb[0].mxu0
    %v1924 = vpop.f32.mrb[0].mxu0
    %v1925 = vadd.f32 0.0, %v1924
    %v1926 = vpop.f32.mrb[0].mxu0
    %1927 = vmatprep.mubr.bf16.mxu0 0
    %1928 = vmatmul.mubr.bf16.gmra.mrb[0].mxu0 %v1155
    %v1929 = vpop.f32.mrb[0].mxu0
    %v1930 = vadd.f32 0.0, %v1929
    %v1931 = vpop.f32.mrb[0].mxu0
    %v1932 = vpop.f32.mrb[0].mxu0
    %v1933 = vadd.f32 0.0, %v1932
    %v1934 = vpop.f32.mrb[0].mxu0
    %1935 = vmatprep.mubr.bf16.mxu0 0
    %1936 = vmatmul.mubr.bf16.gmra.mrb[0].mxu0 %v1158
    %v1937 = vpop.f32.mrb[0].mxu0
    %v1938 = vadd.f32 0.0, %v1937
    %v1939 = vpop.f32.mrb[0].mxu0
    %v1940 = vpop.f32.mrb[0].mxu0
    %v1941 = vadd.f32 0.0, %v1940
    %v1942 = vpop.f32.mrb[0].mxu0
    %1943 = vmatprep.mubr.bf16.mxu0 0
    %1944 = vmatmul.mubr.bf16.gmra.mrb[0].mxu0 %v1161
    %v1945 = vpop.f32.mrb[0].mxu0
    %v1946 = vadd.f32 0.0, %v1945
    %v1947 = vpop.f32.mrb[0].mxu0
    %v1948 = vpop.f32.mrb[0].mxu0
    %v1949 = vadd.f32 0.0, %v1948
    %v1950 = vpop.f32.mrb[0].mxu0
    %1951 = vmatprep.mubr.bf16.mxu0 0
    %1952 = vmatmul.mubr.bf16.gmra.mrb[0].mxu0 %v1164
    %v1953 = vpop.f32.mrb[0].mxu0
    %v1954 = vadd.f32 0.0, %v1953
    %v1955 = vpop.f32.mrb[0].mxu0
    %v1956 = vpop.f32.mrb[0].mxu0
    %v1957 = vadd.f32 0.0, %v1956
    %v1958 = vpop.f32.mrb[0].mxu0
    %1959 = vmatprep.mubr.bf16.mxu0 0
    %1960 = vmatmul.mubr.bf16.gmra.mrb[0].mxu0 %v1167
    %v1961 = vpop.f32.mrb[0].mxu0
    %v1962 = vadd.f32 0.0, %v1961
    %v1963 = vpop.f32.mrb[0].mxu0
    %v1964 = vpop.f32.mrb[0].mxu0
    %v1965 = vadd.f32 0.0, %v1964
    %v1966 = vpop.f32.mrb[0].mxu0
    %1967 = vmatprep.mubr.bf16.mxu0 0
    %1968 = vmatmul.mubr.bf16.gmra.mrb[0].mxu0 %v1170
    %v1969 = vpop.f32.mrb[0].mxu0
    %v1970 = vadd.f32 0.0, %v1969
    %v1971 = vpop.f32.mrb[0].mxu0
    %v1972 = vpop.f32.mrb[0].mxu0
    %v1973 = vadd.f32 0.0, %v1972
    %v1974 = vpop.f32.mrb[0].mxu0
    %1975 = vmatprep.mubr.bf16.mxu0 0
    %1976 = vmatmul.mubr.bf16.gmra.mrb[0].mxu0 %v1173
    %v1977 = vpop.f32.mrb[0].mxu0
    %v1978 = vadd.f32 0.0, %v1977
    %v1979 = vpop.f32.mrb[0].mxu0
    %v1980 = vpop.f32.mrb[0].mxu0
    %v1981 = vadd.f32 0.0, %v1980
    %v1982 = vpop.f32.mrb[0].mxu0
    %1983 = vmatprep.mubr.bf16.mxu0 0
    %1984 = vmatmul.mubr.bf16.gmra.mrb[0].mxu0 %v1176
    %v1985 = vpop.f32.mrb[0].mxu0
    %v1986 = vadd.f32 0.0, %v1985
    %v1987 = vpop.f32.mrb[0].mxu0
    %v1988 = vpop.f32.mrb[0].mxu0
    %v1989 = vadd.f32 0.0, %v1988
    %v1990 = vpop.f32.mrb[0].mxu0
    %1991 = vmatprep.mubr.bf16.mxu0 0
    %1992 = vmatmul.mubr.bf16.gmra.mrb[0].mxu0 %v1179
    %v1993 = vpop.f32.mrb[0].mxu0
    %v1994 = vadd.f32 0.0, %v1993
    %v1995 = vpop.f32.mrb[0].mxu0
    %v1996 = vpop.f32.mrb[0].mxu0
    %v1997 = vadd.f32 0.0, %v1996
    %v1998 = vpop.f32.mrb[0].mxu0
    %1999 = vmatprep.mubr.bf16.mxu0 0
    %2000 = vmatmul.mubr.bf16.gmra.mrb[0].mxu0 %v1182
    %v2001 = vpop.f32.mrb[0].mxu0
    %v2002 = vadd.f32 0.0, %v2001
    %v2003 = vpop.f32.mrb[0].mxu0
    %v2004 = vpop.f32.mrb[0].mxu0
    %v2005 = vadd.f32 0.0, %v2004
    %v2006 = vpop.f32.mrb[0].mxu0
    %2007 = vmatprep.mubr.bf16.mxu0 0
    %2008 = vmatmul.mubr.bf16.gmra.mrb[0].mxu0 %v1185
    %v2009 = vpop.f32.mrb[0].mxu0
    %v2010 = vadd.f32 0.0, %v2009
    %v2011 = vpop.f32.mrb[0].mxu0
    %v2012 = vpop.f32.mrb[0].mxu0
    %v2013 = vadd.f32 0.0, %v2012
    %v2014 = vpop.f32.mrb[0].mxu0
    %2015 = vmatprep.mubr.bf16.mxu0 0
    %2016 = vmatmul.mubr.bf16.gmra.mrb[0].mxu0 %v1188
    %v2017 = vpop.f32.mrb[0].mxu0
    %v2018 = vadd.f32 0.0, %v2017
    %v2019 = vpop.f32.mrb[0].mxu0
    %v2020 = vpop.f32.mrb[0].mxu0
    %v2021 = vadd.f32 0.0, %v2020
    %v2022 = vpop.f32.mrb[0].mxu0
    %2023 = vmatprep.mubr.bf16.mxu0 0
    %2024 = vmatmul.mubr.bf16.gmra.mrb[0].mxu0 %v1191
    %v2025 = vpop.f32.mrb[0].mxu0
    %v2026 = vadd.f32 0.0, %v2025
    %v2027 = vpop.f32.mrb[0].mxu0
    %v2028 = vpop.f32.mrb[0].mxu0
    %v2029 = vadd.f32 0.0, %v2028
    %v2030 = vpop.f32.mrb[0].mxu0
    %2031 = vmatprep.mubr.bf16.mxu0 0
    %2032 = vmatmul.mubr.bf16.gmra.mrb[0].mxu0 %v1194
    %v2033 = vpop.f32.mrb[0].mxu0
    %v2034 = vadd.f32 0.0, %v2033
    %v2035 = vpop.f32.mrb[0].mxu0
    %v2036 = vpop.f32.mrb[0].mxu0
    %v2037 = vadd.f32 0.0, %v2036
    %v2038 = vpop.f32.mrb[0].mxu0
    %2039 = vmatprep.mubr.bf16.mxu0 0
    %2040 = vmatmul.mubr.bf16.gmra.mrb[0].mxu0 %v1197
    %v2041 = vpop.f32.mrb[0].mxu0
    %v2042 = vadd.f32 0.0, %v2041
    %v2043 = vpop.f32.mrb[0].mxu0
    %v2044 = vpop.f32.mrb[0].mxu0
    %v2045 = vadd.f32 0.0, %v2044
    %v2046 = vpop.f32.mrb[0].mxu0
    %2047 = vmatprep.mubr.bf16.mxu0 0
    %2048 = vmatmul.mubr.bf16.gmra.mrb[0].mxu0 %v1200
    %v2049 = vpop.f32.mrb[0].mxu0
    %v2050 = vadd.f32 0.0, %v2049
    %v2051 = vpop.f32.mrb[0].mxu0
    %v2052 = vpop.f32.mrb[0].mxu0
    %v2053 = vadd.f32 0.0, %v2052
    %v2054 = vpop.f32.mrb[0].mxu0
    %2055 = vmatprep.mubr.bf16.mxu0 0
    %2056 = vmatmul.mubr.bf16.gmra.mrb[0].mxu0 %v1203
    %v2057 = vpop.f32.mrb[0].mxu0
    %v2058 = vadd.f32 0.0, %v2057
    %v2059 = vpop.f32.mrb[0].mxu0
    %v2060 = vpop.f32.mrb[0].mxu0
    %v2061 = vadd.f32 0.0, %v2060
    %v2062 = vpop.f32.mrb[0].mxu0
    %2063 = vmatprep.mubr.bf16.mxu0 0
    %2064 = vmatmul.mubr.bf16.gmra.mrb[0].mxu0 %v1206
    %v2065 = vpop.f32.mrb[0].mxu0
    %v2066 = vadd.f32 0.0, %v2065
    %v2067 = vpop.f32.mrb[0].mxu0
    %v2068 = vpop.f32.mrb[0].mxu0
    %v2069 = vadd.f32 0.0, %v2068
    %v2070 = vpop.f32.mrb[0].mxu0
    %2071 = vmatprep.mubr.bf16.mxu0 0
    %2072 = vmatmul.mubr.bf16.gmra.mrb[0].mxu0 %v1209
    %v2073 = vpop.f32.mrb[0].mxu0
    %v2074 = vadd.f32 0.0, %v2073
    %v2075 = vpop.f32.mrb[0].mxu0
    %v2076 = vpop.f32.mrb[0].mxu0
    %v2077 = vadd.f32 0.0, %v2076
    %v2078 = vpop.f32.mrb[0].mxu0
    %2079 = vmatprep.mubr.bf16.mxu0 0
    %2080 = vmatmul.mubr.bf16.gmra.mrb[0].mxu0 %v1212
    %v2081 = vpop.f32.mrb[0].mxu0
    %v2082 = vadd.f32 0.0, %v2081
    %v2083 = vpop.f32.mrb[0].mxu0
    %v2084 = vpop.f32.mrb[0].mxu0
    %v2085 = vadd.f32 0.0, %v2084
    %v2086 = vpop.f32.mrb[0].mxu0
    %2087 = vmatprep.mubr.bf16.mxu0 0
    %2088 = vmatmul.mubr.bf16.gmra.mrb[0].mxu0 %v1215
    %v2089 = vpop.f32.mrb[0].mxu0
    %v2090 = vadd.f32 0.0, %v2089
    %v2091 = vpop.f32.mrb[0].mxu0
    %v2092 = vpop.f32.mrb[0].mxu0
    %v2093 = vadd.f32 0.0, %v2092
    %v2094 = vpop.f32.mrb[0].mxu0
    %2095 = vmatprep.mubr.bf16.mxu0 0
    %2096 = vmatmul.mubr.bf16.gmra.mrb[0].mxu0 %v1218
    %v2097 = vpop.f32.mrb[0].mxu0
    %v2098 = vadd.f32 0.0, %v2097
    %v2099 = vpop.f32.mrb[0].mxu0
    %v2100 = vpop.f32.mrb[0].mxu0
    %v2101 = vadd.f32 0.0, %v2100
    %v2102 = vpop.f32.mrb[0].mxu0
    %2103 = vmatprep.mubr.bf16.mxu0 0
    %2104 = vmatmul.mubr.bf16.gmra.mrb[0].mxu0 %v1221
    %v2105 = vpop.f32.mrb[0].mxu0
    %v2106 = vadd.f32 0.0, %v2105
    %v2107 = vpop.f32.mrb[0].mxu0
    %v2108 = vpop.f32.mrb[0].mxu0
    %v2109 = vadd.f32 0.0, %v2108
    %v2110 = vpop.f32.mrb[0].mxu0
    %2111 = vmatprep.mubr.bf16.mxu0 0
    %2112 = vmatmul.mubr.bf16.gmra.mrb[0].mxu0 %v1224
    %v2113 = vpop.f32.mrb[0].mxu0
    %v2114 = vadd.f32 0.0, %v2113
    %v2115 = vpop.f32.mrb[0].mxu0
    %v2116 = vpop.f32.mrb[0].mxu0
    %v2117 = vadd.f32 0.0, %v2116
    %v2118 = vpop.f32.mrb[0].mxu0
    %2119 = vmatprep.mubr.bf16.mxu0 0
    %2120 = vmatmul.mubr.bf16.gmra.mrb[0].mxu0 %v1227
    %v2121 = vpop.f32.mrb[0].mxu0
    %v2122 = vadd.f32 0.0, %v2121
    %v2123 = vpop.f32.mrb[0].mxu0
    %v2124 = vpop.f32.mrb[0].mxu0
    %v2125 = vadd.f32 0.0, %v2124
    %v2126 = vpop.f32.mrb[0].mxu0
    %2127 = vmatprep.mubr.bf16.mxu0 0
    %2128 = vmatmul.mubr.bf16.gmra.mrb[0].mxu0 %v1230
    %v2129 = vpop.f32.mrb[0].mxu0
    %v2130 = vadd.f32 0.0, %v2129
    %v2131 = vpop.f32.mrb[0].mxu0
    %v2132 = vpop.f32.mrb[0].mxu0
    %v2133 = vadd.f32 0.0, %v2132
    %v2134 = vpop.f32.mrb[0].mxu0
    %2135 = vmatprep.mubr.bf16.mxu0 0
    %2136 = vmatmul.mubr.bf16.gmra.mrb[0].mxu0 %v1233
    %v2137 = vpop.f32.mrb[0].mxu0
    %v2138 = vadd.f32 0.0, %v2137
    %v2139 = vpop.f32.mrb[0].mxu0
    %v2140 = vpop.f32.mrb[0].mxu0
    %v2141 = vadd.f32 0.0, %v2140
    %v2142 = vpop.f32.mrb[0].mxu0
    %2143 = vmatprep.mubr.bf16.mxu0 0
    %2144 = vmatmul.mubr.bf16.gmra.mrb[0].mxu0 %v1236
    %v2145 = vpop.f32.mrb[0].mxu0
    %v2146 = vadd.f32 0.0, %v2145
    %v2147 = vpop.f32.mrb[0].mxu0
    %v2148 = vpop.f32.mrb[0].mxu0
    %v2149 = vadd.f32 0.0, %v2148
    %v2150 = vpop.f32.mrb[0].mxu0
    %2151 = vmatprep.mubr.bf16.mxu0 0
    %2152 = vmatmul.mubr.bf16.gmra.mrb[0].mxu0 %v1239
    %v2153 = vpop.f32.mrb[0].mxu0
    %v2154 = vadd.f32 0.0, %v2153
    %v2155 = vpop.f32.mrb[0].mxu0
    %v2156 = vpop.f32.mrb[0].mxu0
    %v2157 = vadd.f32 0.0, %v2156
    %v2158 = vpop.f32.mrb[0].mxu0
    %2159 = vmatprep.mubr.bf16.mxu0 0
    %2160 = vmatmul.mubr.bf16.gmra.mrb[0].mxu0 %v1242
    %v2161 = vpop.f32.mrb[0].mxu0
    %v2162 = vadd.f32 0.0, %v2161
    %v2163 = vpop.f32.mrb[0].mxu0
    %v2164 = vpop.f32.mrb[0].mxu0
    %v2165 = vadd.f32 0.0, %v2164
    %v2166 = vpop.f32.mrb[0].mxu0
    %2167 = vmatprep.mubr.bf16.mxu0 0
    %2168 = vmatmul.mubr.bf16.gmra.mrb[0].mxu0 %v1245
    %v2169 = vpop.f32.mrb[0].mxu0
    %v2170 = vadd.f32 0.0, %v2169
    %v2171 = vpop.f32.mrb[0].mxu0
    %v2172 = vpop.f32.mrb[0].mxu0
    %v2173 = vadd.f32 0.0, %v2172
    %v2174 = vpop.f32.mrb[0].mxu0
    %2175 = vmatprep.mubr.bf16.mxu0 0
    %2176 = vmatmul.mubr.bf16.gmra.mrb[0].mxu0 %v1248
    %v2177 = vpop.f32.mrb[0].mxu0
    %v2178 = vadd.f32 0.0, %v2177
    %v2179 = vpop.f32.mrb[0].mxu0
    %v2180 = vpop.f32.mrb[0].mxu0
    %v2181 = vadd.f32 0.0, %v2180
    %v2182 = vpop.f32.mrb[0].mxu0
    %2183 = vmatprep.mubr.bf16.mxu0 0
    %2184 = vmatmul.mubr.bf16.gmra.mrb[0].mxu0 %v1251
    %v2185 = vpop.f32.mrb[0].mxu0
    %v2186 = vadd.f32 0.0, %v2185
    %v2187 = vpop.f32.mrb[0].mxu0
    %v2188 = vpop.f32.mrb[0].mxu0
    %v2189 = vadd.f32 0.0, %v2188
    %v2190 = vpop.f32.mrb[0].mxu0
    %2191 = vmatprep.mubr.bf16.mxu0 0
    %2192 = vmatmul.mubr.bf16.gmra.mrb[0].mxu0 %v1254
    %v2193 = vpop.f32.mrb[0].mxu0
    %v2194 = vadd.f32 0.0, %v2193
    %v2195 = vpop.f32.mrb[0].mxu0
    %v2196 = vpop.f32.mrb[0].mxu0
    %v2197 = vadd.f32 0.0, %v2196
    %v2198 = vpop.f32.mrb[0].mxu0
    %2199 = vmatprep.mubr.bf16.mxu0 0
    %2200 = vmatmul.mubr.bf16.gmra.mrb[0].mxu0 %v1257
    %v2201 = vpop.f32.mrb[0].mxu0
    %v2202 = vadd.f32 0.0, %v2201
    %v2203 = vpop.f32.mrb[0].mxu0
    %v2204 = vpop.f32.mrb[0].mxu0
    %v2205 = vadd.f32 0.0, %v2204
    %v2206 = vpop.f32.mrb[0].mxu0
    %2207 = vmatprep.mubr.bf16.mxu0 0
    %2208 = vmatmul.mubr.bf16.gmra.mrb[0].mxu0 %v1260
    %v2209 = vpop.f32.mrb[0].mxu0
    %v2210 = vadd.f32 0.0, %v2209
    %v2211 = vpop.f32.mrb[0].mxu0
    %v2212 = vpop.f32.mrb[0].mxu0
    %v2213 = vadd.f32 0.0, %v2212
    %v2214 = vpop.f32.mrb[0].mxu0
    %2215 = vmatprep.mubr.bf16.mxu0 0
    %2216 = vmatmul.mubr.bf16.gmra.mrb[0].mxu0 %v1263
    %v2217 = vpop.f32.mrb[0].mxu0
    %v2218 = vadd.f32 0.0, %v2217
    %v2219 = vpop.f32.mrb[0].mxu0
    %v2220 = vpop.f32.mrb[0].mxu0
    %v2221 = vadd.f32 0.0, %v2220
    %v2222 = vpop.f32.mrb[0].mxu0
    %2223 = vmatprep.mubr.bf16.mxu0 0
    %2224 = vmatmul.mubr.bf16.gmra.mrb[0].mxu0 %v1266
    %v2225 = vpop.f32.mrb[0].mxu0
    %v2226 = vadd.f32 0.0, %v2225
    %v2227 = vpop.f32.mrb[0].mxu0
    %v2228 = vpop.f32.mrb[0].mxu0
    %v2229 = vadd.f32 0.0, %v2228
    %v2230 = vpop.f32.mrb[0].mxu0
    %2231 = vmatprep.mubr.bf16.mxu0 0
    %2232 = vmatmul.mubr.bf16.gmra.mrb[0].mxu0 %v1269
    %v2233 = vpop.f32.mrb[0].mxu0
    %v2234 = vadd.f32 0.0, %v2233
    %v2235 = vpop.f32.mrb[0].mxu0
    %v2236 = vpop.f32.mrb[0].mxu0
    %v2237 = vadd.f32 0.0, %v2236
    %v2238 = vpop.f32.mrb[0].mxu0
    %2239 = vmatprep.mubr.bf16.mxu0 0
    %2240 = vmatmul.mubr.bf16.gmra.mrb[0].mxu0 %v1272
    %v2241 = vpop.f32.mrb[0].mxu0
    %v2242 = vadd.f32 0.0, %v2241
    %v2243 = vpop.f32.mrb[0].mxu0
    %v2244 = vpop.f32.mrb[0].mxu0
    %v2245 = vadd.f32 0.0, %v2244
    %v2246 = vpop.f32.mrb[0].mxu0
    %2247 = vmatprep.mubr.bf16.mxu0 0
    %2248 = vmatmul.mubr.bf16.gmra.mrb[0].mxu0 %v1275
    %v2249 = vpop.f32.mrb[0].mxu0
    %v2250 = vadd.f32 0.0, %v2249
    %v2251 = vpop.f32.mrb[0].mxu0
    %v2252 = vpop.f32.mrb[0].mxu0
    %v2253 = vadd.f32 0.0, %v2252
    %v2254 = vpop.f32.mrb[0].mxu0
    %2255 = vmatprep.mubr.bf16.mxu0 0
    %2256 = vmatmul.mubr.bf16.gmra.mrb[0].mxu0 %v1278
    %v2257 = vpop.f32.mrb[0].mxu0
    %v2258 = vadd.f32 0.0, %v2257
    %v2259 = vpop.f32.mrb[0].mxu0
    %v2260 = vpop.f32.mrb[0].mxu0
    %v2261 = vadd.f32 0.0, %v2260
    %v2262 = vpop.f32.mrb[0].mxu0
    %2263 = vmatprep.mubr.bf16.mxu0 0
    %2264 = vmatmul.mubr.bf16.gmra.mrb[0].mxu0 %v1281
    %v2265 = vpop.f32.mrb[0].mxu0
    %v2266 = vadd.f32 0.0, %v2265
    %v2267 = vpop.f32.mrb[0].mxu0
    %v2268 = vpop.f32.mrb[0].mxu0
    %v2269 = vadd.f32 0.0, %v2268
    %v2270 = vpop.f32.mrb[0].mxu0
    %2271 = vmatprep.mubr.bf16.mxu0 0
    %2272 = vmatmul.mubr.bf16.gmra.mrb[0].mxu0 %v1284
    %v2273 = vpop.f32.mrb[0].mxu0
    %v2274 = vadd.f32 0.0, %v2273
    %v2275 = vpop.f32.mrb[0].mxu0
    %v2276 = vpop.f32.mrb[0].mxu0
    %v2277 = vadd.f32 0.0, %v2276
    %v2278 = vpop.f32.mrb[0].mxu0
    %2279 = vmatprep.mubr.bf16.mxu0 0
    %2280 = vmatmul.mubr.bf16.gmra.mrb[0].mxu0 %v1287
    %v2281 = vpop.f32.mrb[0].mxu0
    %v2282 = vadd.f32 0.0, %v2281
    %v2283 = vpop.f32.mrb[0].mxu0
    %v2284 = vpop.f32.mrb[0].mxu0
    %v2285 = vadd.f32 0.0, %v2284
    %v2286 = vpop.f32.mrb[0].mxu0
    %2287 = vmatprep.mubr.bf16.mxu0 0
    %2288 = vmatmul.mubr.bf16.gmra.mrb[0].mxu0 %v1290
    %v2289 = vpop.f32.mrb[0].mxu0
    %v2290 = vadd.f32 0.0, %v2289
    %v2291 = vpop.f32.mrb[0].mxu0
    %v2292 = vpop.f32.mrb[0].mxu0
    %v2293 = vadd.f32 0.0, %v2292
    %v2294 = vpop.f32.mrb[0].mxu0
    %2295 = vmatprep.mubr.bf16.mxu0 0
    %2296 = vmatmul.mubr.bf16.gmra.mrb[0].mxu0 %v1293
    %v2297 = vpop.f32.mrb[0].mxu0
    %v2298 = vadd.f32 0.0, %v2297
    %v2299 = vpop.f32.mrb[0].mxu0
    %v2300 = vpop.f32.mrb[0].mxu0
    %v2301 = vadd.f32 0.0, %v2300
    %v2302 = vpop.f32.mrb[0].mxu0
    %2303 = vmatprep.mubr.bf16.mxu0 0
    %2304 = vmatmul.mubr.bf16.gmra.mrb[0].mxu0 %v1296
    %v2305 = vpop.f32.mrb[0].mxu0
    %v2306 = vadd.f32 0.0, %v2305
    %v2307 = vpop.f32.mrb[0].mxu0
    %v2308 = vpop.f32.mrb[0].mxu0
    %v2309 = vadd.f32 0.0, %v2308
    %v2310 = vpop.f32.mrb[0].mxu0
    %2311 = vmatprep.mubr.bf16.mxu0 0
    %2312 = vmatmul.mubr.bf16.gmra.mrb[0].mxu0 %v1299
    %v2313 = vpop.f32.mrb[0].mxu0
    %v2314 = vadd.f32 0.0, %v2313
    %v2315 = vpop.f32.mrb[0].mxu0
    %v2316 = vpop.f32.mrb[0].mxu0
    %v2317 = vadd.f32 0.0, %v2316
    %v2318 = vpop.f32.mrb[0].mxu0
    %2319 = vmatprep.mubr.bf16.mxu0 0
    %2320 = vmatmul.mubr.bf16.gmra.mrb[0].mxu0 %v1302
    %v2321 = vpop.f32.mrb[0].mxu0
    %v2322 = vadd.f32 0.0, %v2321
    %v2323 = vpop.f32.mrb[0].mxu0
    %v2324 = vpop.f32.mrb[0].mxu0
    %v2325 = vadd.f32 0.0, %v2324
    %v2326 = vpop.f32.mrb[0].mxu0
    %2327 = vmatprep.mubr.bf16.mxu0 0
    %2328 = vmatmul.mubr.bf16.gmra.mrb[0].mxu0 %v1305
    %v2329 = vpop.f32.mrb[0].mxu0
    %v2330 = vadd.f32 0.0, %v2329
    %v2331 = vpop.f32.mrb[0].mxu0
    %v2332 = vpop.f32.mrb[0].mxu0
    %v2333 = vadd.f32 0.0, %v2332
    %v2334 = vpop.f32.mrb[0].mxu0
    %2335 = vmatprep.mubr.bf16.mxu0 0
    %2336 = vmatmul.mubr.bf16.gmra.mrb[0].mxu0 %v1308
    %v2337 = vpop.f32.mrb[0].mxu0
    %v2338 = vadd.f32 0.0, %v2337
    %v2339 = vpop.f32.mrb[0].mxu0
    %v2340 = vpop.f32.mrb[0].mxu0
    %v2341 = vadd.f32 0.0, %v2340
    %v2342 = vpop.f32.mrb[0].mxu0
    %2343 = vmatprep.mubr.bf16.mxu0 0
    %2344 = vmatmul.mubr.bf16.gmra.mrb[0].mxu0 %v1311
    %v2345 = vpop.f32.mrb[0].mxu0
    %v2346 = vadd.f32 0.0, %v2345
    %v2347 = vpop.f32.mrb[0].mxu0
    %v2348 = vpop.f32.mrb[0].mxu0
    %v2349 = vadd.f32 0.0, %v2348
    %v2350 = vpop.f32.mrb[0].mxu0
    %2351 = vmatprep.mubr.bf16.mxu0 0
    %2352 = vmatmul.mubr.bf16.gmra.mrb[0].mxu0 %v1314
    %v2353 = vpop.f32.mrb[0].mxu0
    %v2354 = vadd.f32 0.0, %v2353
    %v2355 = vpop.f32.mrb[0].mxu0
    %v2356 = vpop.f32.mrb[0].mxu0
    %v2357 = vadd.f32 0.0, %v2356
    %v2358 = vpop.f32.mrb[0].mxu0
    %2359 = vmatprep.mubr.bf16.mxu0 0
    %2360 = vmatmul.mubr.bf16.gmra.mrb[0].mxu0 %v1317
    %v2361 = vpop.f32.mrb[0].mxu0
    %v2362 = vadd.f32 0.0, %v2361
    %v2363 = vpop.f32.mrb[0].mxu0
    %v2364 = vpop.f32.mrb[0].mxu0
    %v2365 = vadd.f32 0.0, %v2364
    %v2366 = vpop.f32.mrb[0].mxu0
    %2367 = vmatprep.mubr.bf16.mxu0 0
    %2368 = vmatmul.mubr.bf16.gmra.mrb[0].mxu0 %v1320
    %v2369 = vpop.f32.mrb[0].mxu0
    %v2370 = vadd.f32 0.0, %v2369
    %v2371 = vpop.f32.mrb[0].mxu0
    %v2372 = vpop.f32.mrb[0].mxu0
    %v2373 = vadd.f32 0.0, %v2372
    %v2374 = vpop.f32.mrb[0].mxu0
    %2375 = vmatprep.mubr.bf16.mxu0 0
    %2376 = vmatmul.mubr.bf16.gmra.mrb[0].mxu0 %v1323
    %v2377 = vpop.f32.mrb[0].mxu0
    %v2378 = vadd.f32 0.0, %v2377
    %v2379 = vpop.f32.mrb[0].mxu0
    %v2380 = vpop.f32.mrb[0].mxu0
    %v2381 = vadd.f32 0.0, %v2380
    %v2382 = vpop.f32.mrb[0].mxu0
    %2383 = vmatprep.mubr.bf16.mxu0 0
    %2384 = vmatmul.mubr.bf16.gmra.mrb[0].mxu0 %v1326
    %v2385 = vpop.f32.mrb[0].mxu0
    %v2386 = vadd.f32 0.0, %v2385
    %v2387 = vpop.f32.mrb[0].mxu0
    %v2388 = vpop.f32.mrb[0].mxu0
    %v2389 = vadd.f32 0.0, %v2388
    %v2390 = vpop.f32.mrb[0].mxu0
    %2391 = vdwg.mxu0
    %v2392 = vld [vmem:[%s2] sm:$0x1]
    %v2394 = vlaneseq
    %v2395 = vshrl.u32 %v2394, 7
    %v2396 = vsub.s32 0, %v2395
    %v2397 = vrot.slane %v2392, %v2396
    %v2399 = vmul.f32 %v1370, %v2397
    %v2400 = vmul.f32 %v1373, %v2397
    %v2401 = vmul.f32 %v1378, %v2397
    %v2402 = vmul.f32 %v1381, %v2397
    %v2403 = vmul.f32 %v1386, %v2397
    %v2404 = vmul.f32 %v1389, %v2397
    %v2405 = vmul.f32 %v1394, %v2397
    %v2406 = vmul.f32 %v1397, %v2397
    %v2407 = vmul.f32 %v1402, %v2397
    %v2408 = vmul.f32 %v1405, %v2397
    %v2409 = vmul.f32 %v1410, %v2397
    %v2410 = vmul.f32 %v1413, %v2397
    %v2411 = vmul.f32 %v1418, %v2397
    %v2412 = vmul.f32 %v1421, %v2397
    %v2413 = vmul.f32 %v1426, %v2397
    %v2414 = vmul.f32 %v1429, %v2397
    %v2415 = vmul.f32 %v1434, %v2397
    %v2416 = vmul.f32 %v1437, %v2397
    %v2417 = vmul.f32 %v1442, %v2397
    %v2418 = vmul.f32 %v1445, %v2397
    %v2419 = vmul.f32 %v1450, %v2397
    %v2420 = vmul.f32 %v1453, %v2397
    %v2421 = vmul.f32 %v1458, %v2397
    %v2422 = vmul.f32 %v1461, %v2397
    %v2423 = vmul.f32 %v1466, %v2397
    %v2424 = vmul.f32 %v1469, %v2397
    %v2425 = vmul.f32 %v1474, %v2397
    %v2426 = vmul.f32 %v1477, %v2397
    %v2427 = vmul.f32 %v1482, %v2397
    %v2428 = vmul.f32 %v1485, %v2397
    %v2429 = vmul.f32 %v1490, %v2397
    %v2430 = vmul.f32 %v1493, %v2397
    %v2431 = vmul.f32 %v1498, %v2397
    %v2432 = vmul.f32 %v1501, %v2397
    %v2433 = vmul.f32 %v1506, %v2397
    %v2434 = vmul.f32 %v1509, %v2397
    %v2435 = vmul.f32 %v1514, %v2397
    %v2436 = vmul.f32 %v1517, %v2397
    %v2437 = vmul.f32 %v1522, %v2397
    %v2438 = vmul.f32 %v1525, %v2397
    %v2439 = vmul.f32 %v1530, %v2397
    %v2440 = vmul.f32 %v1533, %v2397
    %v2441 = vmul.f32 %v1538, %v2397
    %v2442 = vmul.f32 %v1541, %v2397
    %v2443 = vmul.f32 %v1546, %v2397
    %v2444 = vmul.f32 %v1549, %v2397
    %v2445 = vmul.f32 %v1554, %v2397
    %v2446 = vmul.f32 %v1557, %v2397
    %v2447 = vmul.f32 %v1562, %v2397
    %v2448 = vmul.f32 %v1565, %v2397
    %v2449 = vmul.f32 %v1570, %v2397
    %v2450 = vmul.f32 %v1573, %v2397
    %v2451 = vmul.f32 %v1578, %v2397
    %v2452 = vmul.f32 %v1581, %v2397
    %v2453 = vmul.f32 %v1586, %v2397
    %v2454 = vmul.f32 %v1589, %v2397
    %v2455 = vmul.f32 %v1594, %v2397
    %v2456 = vmul.f32 %v1597, %v2397
    %v2457 = vmul.f32 %v1602, %v2397
    %v2458 = vmul.f32 %v1605, %v2397
    %v2459 = vmul.f32 %v1610, %v2397
    %v2460 = vmul.f32 %v1613, %v2397
    %v2461 = vmul.f32 %v1618, %v2397
    %v2462 = vmul.f32 %v1621, %v2397
    %v2463 = vmul.f32 %v1626, %v2397
    %v2464 = vmul.f32 %v1629, %v2397
    %v2465 = vmul.f32 %v1634, %v2397
    %v2466 = vmul.f32 %v1637, %v2397
    %v2467 = vmul.f32 %v1642, %v2397
    %v2468 = vmul.f32 %v1645, %v2397
    %v2469 = vmul.f32 %v1650, %v2397
    %v2470 = vmul.f32 %v1653, %v2397
    %v2471 = vmul.f32 %v1658, %v2397
    %v2472 = vmul.f32 %v1661, %v2397
    %v2473 = vmul.f32 %v1666, %v2397
    %v2474 = vmul.f32 %v1669, %v2397
    %v2475 = vmul.f32 %v1674, %v2397
    %v2476 = vmul.f32 %v1677, %v2397
    %v2477 = vmul.f32 %v1682, %v2397
    %v2478 = vmul.f32 %v1685, %v2397
    %v2479 = vmul.f32 %v1690, %v2397
    %v2480 = vmul.f32 %v1693, %v2397
    %v2481 = vmul.f32 %v1698, %v2397
    %v2482 = vmul.f32 %v1701, %v2397
    %v2483 = vmul.f32 %v1706, %v2397
    %v2484 = vmul.f32 %v1709, %v2397
    %v2485 = vmul.f32 %v1714, %v2397
    %v2486 = vmul.f32 %v1717, %v2397
    %v2487 = vmul.f32 %v1722, %v2397
    %v2488 = vmul.f32 %v1725, %v2397
    %v2489 = vmul.f32 %v1730, %v2397
    %v2490 = vmul.f32 %v1733, %v2397
    %v2491 = vmul.f32 %v1738, %v2397
    %v2492 = vmul.f32 %v1741, %v2397
    %v2493 = vmul.f32 %v1746, %v2397
    %v2494 = vmul.f32 %v1749, %v2397
    %v2495 = vmul.f32 %v1754, %v2397
    %v2496 = vmul.f32 %v1757, %v2397
    %v2497 = vmul.f32 %v1762, %v2397
    %v2498 = vmul.f32 %v1765, %v2397
    %v2499 = vmul.f32 %v1770, %v2397
    %v2500 = vmul.f32 %v1773, %v2397
    %v2501 = vmul.f32 %v1778, %v2397
    %v2502 = vmul.f32 %v1781, %v2397
    %v2503 = vmul.f32 %v1786, %v2397
    %v2504 = vmul.f32 %v1789, %v2397
    %v2505 = vmul.f32 %v1794, %v2397
    %v2506 = vmul.f32 %v1797, %v2397
    %v2507 = vmul.f32 %v1802, %v2397
    %v2508 = vmul.f32 %v1805, %v2397
    %v2509 = vmul.f32 %v1810, %v2397
    %v2510 = vmul.f32 %v1813, %v2397
    %v2511 = vmul.f32 %v1818, %v2397
    %v2512 = vmul.f32 %v1821, %v2397
    %v2513 = vmul.f32 %v1826, %v2397
    %v2514 = vmul.f32 %v1829, %v2397
    %v2515 = vmul.f32 %v1834, %v2397
    %v2516 = vmul.f32 %v1837, %v2397
    %v2517 = vmul.f32 %v1842, %v2397
    %v2518 = vmul.f32 %v1845, %v2397
    %v2519 = vmul.f32 %v1850, %v2397
    %v2520 = vmul.f32 %v1853, %v2397
    %v2521 = vmul.f32 %v1858, %v2397
    %v2522 = vmul.f32 %v1861, %v2397
    %v2523 = vmul.f32 %v1866, %v2397
    %v2524 = vmul.f32 %v1869, %v2397
    %v2525 = vmul.f32 %v1874, %v2397
    %v2526 = vmul.f32 %v1877, %v2397
    %v2527 = vmul.f32 %v1882, %v2397
    %v2528 = vmul.f32 %v1885, %v2397
    %v2529 = vmul.f32 %v1890, %v2397
    %v2530 = vmul.f32 %v1893, %v2397
    %v2531 = vmul.f32 %v1898, %v2397
    %v2532 = vmul.f32 %v1901, %v2397
    %v2533 = vmul.f32 %v1906, %v2397
    %v2534 = vmul.f32 %v1909, %v2397
    %v2535 = vmul.f32 %v1914, %v2397
    %v2536 = vmul.f32 %v1917, %v2397
    %v2537 = vmul.f32 %v1922, %v2397
    %v2538 = vmul.f32 %v1925, %v2397
    %v2539 = vmul.f32 %v1930, %v2397
    %v2540 = vmul.f32 %v1933, %v2397
    %v2541 = vmul.f32 %v1938, %v2397
    %v2542 = vmul.f32 %v1941, %v2397
    %v2543 = vmul.f32 %v1946, %v2397
    %v2544 = vmul.f32 %v1949, %v2397
    %v2545 = vmul.f32 %v1954, %v2397
    %v2546 = vmul.f32 %v1957, %v2397
    %v2547 = vmul.f32 %v1962, %v2397
    %v2548 = vmul.f32 %v1965, %v2397
    %v2549 = vmul.f32 %v1970, %v2397
    %v2550 = vmul.f32 %v1973, %v2397
    %v2551 = vmul.f32 %v1978, %v2397
    %v2552 = vmul.f32 %v1981, %v2397
    %v2553 = vmul.f32 %v1986, %v2397
    %v2554 = vmul.f32 %v1989, %v2397
    %v2555 = vmul.f32 %v1994, %v2397
    %v2556 = vmul.f32 %v1997, %v2397
    %v2557 = vmul.f32 %v2002, %v2397
    %v2558 = vmul.f32 %v2005, %v2397
    %v2559 = vmul.f32 %v2010, %v2397
    %v2560 = vmul.f32 %v2013, %v2397
    %v2561 = vmul.f32 %v2018, %v2397
    %v2562 = vmul.f32 %v2021, %v2397
    %v2563 = vmul.f32 %v2026, %v2397
    %v2564 = vmul.f32 %v2029, %v2397
    %v2565 = vmul.f32 %v2034, %v2397
    %v2566 = vmul.f32 %v2037, %v2397
    %v2567 = vmul.f32 %v2042, %v2397
    %v2568 = vmul.f32 %v2045, %v2397
    %v2569 = vmul.f32 %v2050, %v2397
    %v2570 = vmul.f32 %v2053, %v2397
    %v2571 = vmul.f32 %v2058, %v2397
    %v2572 = vmul.f32 %v2061, %v2397
    %v2573 = vmul.f32 %v2066, %v2397
    %v2574 = vmul.f32 %v2069, %v2397
    %v2575 = vmul.f32 %v2074, %v2397
    %v2576 = vmul.f32 %v2077, %v2397
    %v2577 = vmul.f32 %v2082, %v2397
    %v2578 = vmul.f32 %v2085, %v2397
    %v2579 = vmul.f32 %v2090, %v2397
    %v2580 = vmul.f32 %v2093, %v2397
    %v2581 = vmul.f32 %v2098, %v2397
    %v2582 = vmul.f32 %v2101, %v2397
    %v2583 = vmul.f32 %v2106, %v2397
    %v2584 = vmul.f32 %v2109, %v2397
    %v2585 = vmul.f32 %v2114, %v2397
    %v2586 = vmul.f32 %v2117, %v2397
    %v2587 = vmul.f32 %v2122, %v2397
    %v2588 = vmul.f32 %v2125, %v2397
    %v2589 = vmul.f32 %v2130, %v2397
    %v2590 = vmul.f32 %v2133, %v2397
    %v2591 = vmul.f32 %v2138, %v2397
    %v2592 = vmul.f32 %v2141, %v2397
    %v2593 = vmul.f32 %v2146, %v2397
    %v2594 = vmul.f32 %v2149, %v2397
    %v2595 = vmul.f32 %v2154, %v2397
    %v2596 = vmul.f32 %v2157, %v2397
    %v2597 = vmul.f32 %v2162, %v2397
    %v2598 = vmul.f32 %v2165, %v2397
    %v2599 = vmul.f32 %v2170, %v2397
    %v2600 = vmul.f32 %v2173, %v2397
    %v2601 = vmul.f32 %v2178, %v2397
    %v2602 = vmul.f32 %v2181, %v2397
    %v2603 = vmul.f32 %v2186, %v2397
    %v2604 = vmul.f32 %v2189, %v2397
    %v2605 = vmul.f32 %v2194, %v2397
    %v2606 = vmul.f32 %v2197, %v2397
    %v2607 = vmul.f32 %v2202, %v2397
    %v2608 = vmul.f32 %v2205, %v2397
    %v2609 = vmul.f32 %v2210, %v2397
    %v2610 = vmul.f32 %v2213, %v2397
    %v2611 = vmul.f32 %v2218, %v2397
    %v2612 = vmul.f32 %v2221, %v2397
    %v2613 = vmul.f32 %v2226, %v2397
    %v2614 = vmul.f32 %v2229, %v2397
    %v2615 = vmul.f32 %v2234, %v2397
    %v2616 = vmul.f32 %v2237, %v2397
    %v2617 = vmul.f32 %v2242, %v2397
    %v2618 = vmul.f32 %v2245, %v2397
    %v2619 = vmul.f32 %v2250, %v2397
    %v2620 = vmul.f32 %v2253, %v2397
    %v2621 = vmul.f32 %v2258, %v2397
    %v2622 = vmul.f32 %v2261, %v2397
    %v2623 = vmul.f32 %v2266, %v2397
    %v2624 = vmul.f32 %v2269, %v2397
    %v2625 = vmul.f32 %v2274, %v2397
    %v2626 = vmul.f32 %v2277, %v2397
    %v2627 = vmul.f32 %v2282, %v2397
    %v2628 = vmul.f32 %v2285, %v2397
    %v2629 = vmul.f32 %v2290, %v2397
    %v2630 = vmul.f32 %v2293, %v2397
    %v2631 = vmul.f32 %v2298, %v2397
    %v2632 = vmul.f32 %v2301, %v2397
    %v2633 = vmul.f32 %v2306, %v2397
    %v2634 = vmul.f32 %v2309, %v2397
    %v2635 = vmul.f32 %v2314, %v2397
    %v2636 = vmul.f32 %v2317, %v2397
    %v2637 = vmul.f32 %v2322, %v2397
    %v2638 = vmul.f32 %v2325, %v2397
    %v2639 = vmul.f32 %v2330, %v2397
    %v2640 = vmul.f32 %v2333, %v2397
    %v2641 = vmul.f32 %v2338, %v2397
    %v2642 = vmul.f32 %v2341, %v2397
    %v2643 = vmul.f32 %v2346, %v2397
    %v2644 = vmul.f32 %v2349, %v2397
    %v2645 = vmul.f32 %v2354, %v2397
    %v2646 = vmul.f32 %v2357, %v2397
    %v2647 = vmul.f32 %v2362, %v2397
    %v2648 = vmul.f32 %v2365, %v2397
    %v2649 = vmul.f32 %v2370, %v2397
    %v2650 = vmul.f32 %v2373, %v2397
    %v2651 = vmul.f32 %v2378, %v2397
    %v2652 = vmul.f32 %v2381, %v2397
    %v2653 = vmul.f32 %v2386, %v2397
    %v2654 = vmul.f32 %v2389, %v2397
    %v2655 = vld [vmem:[%s3] sm:$0x1]
    %v2657 = vlaneseq
    %v2658 = vshrl.u32 %v2657, 7
    %v2659 = vsub.s32 0, %v2658
    %v2660 = vrot.slane %v2655, %v2659
    %v2662 = vadd.f32 %v2399, %v2660
    %v2663 = vadd.f32 %v2400, %v2660
    %v2664 = vadd.f32 %v2401, %v2660
    %v2665 = vadd.f32 %v2402, %v2660
    %v2666 = vadd.f32 %v2403, %v2660
    %v2667 = vadd.f32 %v2404, %v2660
    %v2668 = vadd.f32 %v2405, %v2660
    %v2669 = vadd.f32 %v2406, %v2660
    %v2670 = vadd.f32 %v2407, %v2660
    %v2671 = vadd.f32 %v2408, %v2660
    %v2672 = vadd.f32 %v2409, %v2660
    %v2673 = vadd.f32 %v2410, %v2660
    %v2674 = vadd.f32 %v2411, %v2660
    %v2675 = vadd.f32 %v2412, %v2660
    %v2676 = vadd.f32 %v2413, %v2660
    %v2677 = vadd.f32 %v2414, %v2660
    %v2678 = vadd.f32 %v2415, %v2660
    %v2679 = vadd.f32 %v2416, %v2660
    %v2680 = vadd.f32 %v2417, %v2660
    %v2681 = vadd.f32 %v2418, %v2660
    %v2682 = vadd.f32 %v2419, %v2660
    %v2683 = vadd.f32 %v2420, %v2660
    %v2684 = vadd.f32 %v2421, %v2660
    %v2685 = vadd.f32 %v2422, %v2660
    %v2686 = vadd.f32 %v2423, %v2660
    %v2687 = vadd.f32 %v2424, %v2660
    %v2688 = vadd.f32 %v2425, %v2660
    %v2689 = vadd.f32 %v2426, %v2660
    %v2690 = vadd.f32 %v2427, %v2660
    %v2691 = vadd.f32 %v2428, %v2660
    %v2692 = vadd.f32 %v2429, %v2660
    %v2693 = vadd.f32 %v2430, %v2660
    %v2694 = vadd.f32 %v2431, %v2660
    %v2695 = vadd.f32 %v2432, %v2660
    %v2696 = vadd.f32 %v2433, %v2660
    %v2697 = vadd.f32 %v2434, %v2660
    %v2698 = vadd.f32 %v2435, %v2660
    %v2699 = vadd.f32 %v2436, %v2660
    %v2700 = vadd.f32 %v2437, %v2660
    %v2701 = vadd.f32 %v2438, %v2660
    %v2702 = vadd.f32 %v2439, %v2660
    %v2703 = vadd.f32 %v2440, %v2660
    %v2704 = vadd.f32 %v2441, %v2660
    %v2705 = vadd.f32 %v2442, %v2660
    %v2706 = vadd.f32 %v2443, %v2660
    %v2707 = vadd.f32 %v2444, %v2660
    %v2708 = vadd.f32 %v2445, %v2660
    %v2709 = vadd.f32 %v2446, %v2660
    %v2710 = vadd.f32 %v2447, %v2660
    %v2711 = vadd.f32 %v2448, %v2660
    %v2712 = vadd.f32 %v2449, %v2660
    %v2713 = vadd.f32 %v2450, %v2660
    %v2714 = vadd.f32 %v2451, %v2660
    %v2715 = vadd.f32 %v2452, %v2660
    %v2716 = vadd.f32 %v2453, %v2660
    %v2717 = vadd.f32 %v2454, %v2660
    %v2718 = vadd.f32 %v2455, %v2660
    %v2719 = vadd.f32 %v2456, %v2660
    %v2720 = vadd.f32 %v2457, %v2660
    %v2721 = vadd.f32 %v2458, %v2660
    %v2722 = vadd.f32 %v2459, %v2660
    %v2723 = vadd.f32 %v2460, %v2660
    %v2724 = vadd.f32 %v2461, %v2660
    %v2725 = vadd.f32 %v2462, %v2660
    %v2726 = vadd.f32 %v2463, %v2660
    %v2727 = vadd.f32 %v2464, %v2660
    %v2728 = vadd.f32 %v2465, %v2660
    %v2729 = vadd.f32 %v2466, %v2660
    %v2730 = vadd.f32 %v2467, %v2660
    %v2731 = vadd.f32 %v2468, %v2660
    %v2732 = vadd.f32 %v2469, %v2660
    %v2733 = vadd.f32 %v2470, %v2660
    %v2734 = vadd.f32 %v2471, %v2660
    %v2735 = vadd.f32 %v2472, %v2660
    %v2736 = vadd.f32 %v2473, %v2660
    %v2737 = vadd.f32 %v2474, %v2660
    %v2738 = vadd.f32 %v2475, %v2660
    %v2739 = vadd.f32 %v2476, %v2660
    %v2740 = vadd.f32 %v2477, %v2660
    %v2741 = vadd.f32 %v2478, %v2660
    %v2742 = vadd.f32 %v2479, %v2660
    %v2743 = vadd.f32 %v2480, %v2660
    %v2744 = vadd.f32 %v2481, %v2660
    %v2745 = vadd.f32 %v2482, %v2660
    %v2746 = vadd.f32 %v2483, %v2660
    %v2747 = vadd.f32 %v2484, %v2660
    %v2748 = vadd.f32 %v2485, %v2660
    %v2749 = vadd.f32 %v2486, %v2660
    %v2750 = vadd.f32 %v2487, %v2660
    %v2751 = vadd.f32 %v2488, %v2660
    %v2752 = vadd.f32 %v2489, %v2660
    %v2753 = vadd.f32 %v2490, %v2660
    %v2754 = vadd.f32 %v2491, %v2660
    %v2755 = vadd.f32 %v2492, %v2660
    %v2756 = vadd.f32 %v2493, %v2660
    %v2757 = vadd.f32 %v2494, %v2660
    %v2758 = vadd.f32 %v2495, %v2660
    %v2759 = vadd.f32 %v2496, %v2660
    %v2760 = vadd.f32 %v2497, %v2660
    %v2761 = vadd.f32 %v2498, %v2660
    %v2762 = vadd.f32 %v2499, %v2660
    %v2763 = vadd.f32 %v2500, %v2660
    %v2764 = vadd.f32 %v2501, %v2660
    %v2765 = vadd.f32 %v2502, %v2660
    %v2766 = vadd.f32 %v2503, %v2660
    %v2767 = vadd.f32 %v2504, %v2660
    %v2768 = vadd.f32 %v2505, %v2660
    %v2769 = vadd.f32 %v2506, %v2660
    %v2770 = vadd.f32 %v2507, %v2660
    %v2771 = vadd.f32 %v2508, %v2660
    %v2772 = vadd.f32 %v2509, %v2660
    %v2773 = vadd.f32 %v2510, %v2660
    %v2774 = vadd.f32 %v2511, %v2660
    %v2775 = vadd.f32 %v2512, %v2660
    %v2776 = vadd.f32 %v2513, %v2660
    %v2777 = vadd.f32 %v2514, %v2660
    %v2778 = vadd.f32 %v2515, %v2660
    %v2779 = vadd.f32 %v2516, %v2660
    %v2780 = vadd.f32 %v2517, %v2660
    %v2781 = vadd.f32 %v2518, %v2660
    %v2782 = vadd.f32 %v2519, %v2660
    %v2783 = vadd.f32 %v2520, %v2660
    %v2784 = vadd.f32 %v2521, %v2660
    %v2785 = vadd.f32 %v2522, %v2660
    %v2786 = vadd.f32 %v2523, %v2660
    %v2787 = vadd.f32 %v2524, %v2660
    %v2788 = vadd.f32 %v2525, %v2660
    %v2789 = vadd.f32 %v2526, %v2660
    %v2790 = vadd.f32 %v2527, %v2660
    %v2791 = vadd.f32 %v2528, %v2660
    %v2792 = vadd.f32 %v2529, %v2660
    %v2793 = vadd.f32 %v2530, %v2660
    %v2794 = vadd.f32 %v2531, %v2660
    %v2795 = vadd.f32 %v2532, %v2660
    %v2796 = vadd.f32 %v2533, %v2660
    %v2797 = vadd.f32 %v2534, %v2660
    %v2798 = vadd.f32 %v2535, %v2660
    %v2799 = vadd.f32 %v2536, %v2660
    %v2800 = vadd.f32 %v2537, %v2660
    %v2801 = vadd.f32 %v2538, %v2660
    %v2802 = vadd.f32 %v2539, %v2660
    %v2803 = vadd.f32 %v2540, %v2660
    %v2804 = vadd.f32 %v2541, %v2660
    %v2805 = vadd.f32 %v2542, %v2660
    %v2806 = vadd.f32 %v2543, %v2660
    %v2807 = vadd.f32 %v2544, %v2660
    %v2808 = vadd.f32 %v2545, %v2660
    %v2809 = vadd.f32 %v2546, %v2660
    %v2810 = vadd.f32 %v2547, %v2660
    %v2811 = vadd.f32 %v2548, %v2660
    %v2812 = vadd.f32 %v2549, %v2660
    %v2813 = vadd.f32 %v2550, %v2660
    %v2814 = vadd.f32 %v2551, %v2660
    %v2815 = vadd.f32 %v2552, %v2660
    %v2816 = vadd.f32 %v2553, %v2660
    %v2817 = vadd.f32 %v2554, %v2660
    %v2818 = vadd.f32 %v2555, %v2660
    %v2819 = vadd.f32 %v2556, %v2660
    %v2820 = vadd.f32 %v2557, %v2660
    %v2821 = vadd.f32 %v2558, %v2660
    %v2822 = vadd.f32 %v2559, %v2660
    %v2823 = vadd.f32 %v2560, %v2660
    %v2824 = vadd.f32 %v2561, %v2660
    %v2825 = vadd.f32 %v2562, %v2660
    %v2826 = vadd.f32 %v2563, %v2660
    %v2827 = vadd.f32 %v2564, %v2660
    %v2828 = vadd.f32 %v2565, %v2660
    %v2829 = vadd.f32 %v2566, %v2660
    %v2830 = vadd.f32 %v2567, %v2660
    %v2831 = vadd.f32 %v2568, %v2660
    %v2832 = vadd.f32 %v2569, %v2660
    %v2833 = vadd.f32 %v2570, %v2660
    %v2834 = vadd.f32 %v2571, %v2660
    %v2835 = vadd.f32 %v2572, %v2660
    %v2836 = vadd.f32 %v2573, %v2660
    %v2837 = vadd.f32 %v2574, %v2660
    %v2838 = vadd.f32 %v2575, %v2660
    %v2839 = vadd.f32 %v2576, %v2660
    %v2840 = vadd.f32 %v2577, %v2660
    %v2841 = vadd.f32 %v2578, %v2660
    %v2842 = vadd.f32 %v2579, %v2660
    %v2843 = vadd.f32 %v2580, %v2660
    %v2844 = vadd.f32 %v2581, %v2660
    %v2845 = vadd.f32 %v2582, %v2660
    %v2846 = vadd.f32 %v2583, %v2660
    %v2847 = vadd.f32 %v2584, %v2660
    %v2848 = vadd.f32 %v2585, %v2660
    %v2849 = vadd.f32 %v2586, %v2660
    %v2850 = vadd.f32 %v2587, %v2660
    %v2851 = vadd.f32 %v2588, %v2660
    %v2852 = vadd.f32 %v2589, %v2660
    %v2853 = vadd.f32 %v2590, %v2660
    %v2854 = vadd.f32 %v2591, %v2660
    %v2855 = vadd.f32 %v2592, %v2660
    %v2856 = vadd.f32 %v2593, %v2660
    %v2857 = vadd.f32 %v2594, %v2660
    %v2858 = vadd.f32 %v2595, %v2660
    %v2859 = vadd.f32 %v2596, %v2660
    %v2860 = vadd.f32 %v2597, %v2660
    %v2861 = vadd.f32 %v2598, %v2660
    %v2862 = vadd.f32 %v2599, %v2660
    %v2863 = vadd.f32 %v2600, %v2660
    %v2864 = vadd.f32 %v2601, %v2660
    %v2865 = vadd.f32 %v2602, %v2660
    %v2866 = vadd.f32 %v2603, %v2660
    %v2867 = vadd.f32 %v2604, %v2660
    %v2868 = vadd.f32 %v2605, %v2660
    %v2869 = vadd.f32 %v2606, %v2660
    %v2870 = vadd.f32 %v2607, %v2660
    %v2871 = vadd.f32 %v2608, %v2660
    %v2872 = vadd.f32 %v2609, %v2660
    %v2873 = vadd.f32 %v2610, %v2660
    %v2874 = vadd.f32 %v2611, %v2660
    %v2875 = vadd.f32 %v2612, %v2660
    %v2876 = vadd.f32 %v2613, %v2660
    %v2877 = vadd.f32 %v2614, %v2660
    %v2878 = vadd.f32 %v2615, %v2660
    %v2879 = vadd.f32 %v2616, %v2660
    %v2880 = vadd.f32 %v2617, %v2660
    %v2881 = vadd.f32 %v2618, %v2660
    %v2882 = vadd.f32 %v2619, %v2660
    %v2883 = vadd.f32 %v2620, %v2660
    %v2884 = vadd.f32 %v2621, %v2660
    %v2885 = vadd.f32 %v2622, %v2660
    %v2886 = vadd.f32 %v2623, %v2660
    %v2887 = vadd.f32 %v2624, %v2660
    %v2888 = vadd.f32 %v2625, %v2660
    %v2889 = vadd.f32 %v2626, %v2660
    %v2890 = vadd.f32 %v2627, %v2660
    %v2891 = vadd.f32 %v2628, %v2660
    %v2892 = vadd.f32 %v2629, %v2660
    %v2893 = vadd.f32 %v2630, %v2660
    %v2894 = vadd.f32 %v2631, %v2660
    %v2895 = vadd.f32 %v2632, %v2660
    %v2896 = vadd.f32 %v2633, %v2660
    %v2897 = vadd.f32 %v2634, %v2660
    %v2898 = vadd.f32 %v2635, %v2660
    %v2899 = vadd.f32 %v2636, %v2660
    %v2900 = vadd.f32 %v2637, %v2660
    %v2901 = vadd.f32 %v2638, %v2660
    %v2902 = vadd.f32 %v2639, %v2660
    %v2903 = vadd.f32 %v2640, %v2660
    %v2904 = vadd.f32 %v2641, %v2660
    %v2905 = vadd.f32 %v2642, %v2660
    %v2906 = vadd.f32 %v2643, %v2660
    %v2907 = vadd.f32 %v2644, %v2660
    %v2908 = vadd.f32 %v2645, %v2660
    %v2909 = vadd.f32 %v2646, %v2660
    %v2910 = vadd.f32 %v2647, %v2660
    %v2911 = vadd.f32 %v2648, %v2660
    %v2912 = vadd.f32 %v2649, %v2660
    %v2913 = vadd.f32 %v2650, %v2660
    %v2914 = vadd.f32 %v2651, %v2660
    %v2915 = vadd.f32 %v2652, %v2660
    %v2916 = vadd.f32 %v2653, %v2660
    %v2917 = vadd.f32 %v2654, %v2660
    %v2918 = vmax.f32 %v2662, 0.0
    %v2919 = vmax.f32 %v2663, 0.0
    %v2920 = vmax.f32 %v2664, 0.0
    %v2921 = vmax.f32 %v2665, 0.0
    %v2922 = vmax.f32 %v2666, 0.0
    %v2923 = vmax.f32 %v2667, 0.0
    %v2924 = vmax.f32 %v2668, 0.0
    %v2925 = vmax.f32 %v2669, 0.0
    %v2926 = vmax.f32 %v2670, 0.0
    %v2927 = vmax.f32 %v2671, 0.0
    %v2928 = vmax.f32 %v2672, 0.0
    %v2929 = vmax.f32 %v2673, 0.0
    %v2930 = vmax.f32 %v2674, 0.0
    %v2931 = vmax.f32 %v2675, 0.0
    %v2932 = vmax.f32 %v2676, 0.0
    %v2933 = vmax.f32 %v2677, 0.0
    %v2934 = vmax.f32 %v2678, 0.0
    %v2935 = vmax.f32 %v2679, 0.0
    %v2936 = vmax.f32 %v2680, 0.0
    %v2937 = vmax.f32 %v2681, 0.0
    %v2938 = vmax.f32 %v2682, 0.0
    %v2939 = vmax.f32 %v2683, 0.0
    %v2940 = vmax.f32 %v2684, 0.0
    %v2941 = vmax.f32 %v2685, 0.0
    %v2942 = vmax.f32 %v2686, 0.0
    %v2943 = vmax.f32 %v2687, 0.0
    %v2944 = vmax.f32 %v2688, 0.0
    %v2945 = vmax.f32 %v2689, 0.0
    %v2946 = vmax.f32 %v2690, 0.0
    %v2947 = vmax.f32 %v2691, 0.0
    %v2948 = vmax.f32 %v2692, 0.0
    %v2949 = vmax.f32 %v2693, 0.0
    %v2950 = vmax.f32 %v2694, 0.0
    %v2951 = vmax.f32 %v2695, 0.0
    %v2952 = vmax.f32 %v2696, 0.0
    %v2953 = vmax.f32 %v2697, 0.0
    %v2954 = vmax.f32 %v2698, 0.0
    %v2955 = vmax.f32 %v2699, 0.0
    %v2956 = vmax.f32 %v2700, 0.0
    %v2957 = vmax.f32 %v2701, 0.0
    %v2958 = vmax.f32 %v2702, 0.0
    %v2959 = vmax.f32 %v2703, 0.0
    %v2960 = vmax.f32 %v2704, 0.0
    %v2961 = vmax.f32 %v2705, 0.0
    %v2962 = vmax.f32 %v2706, 0.0
    %v2963 = vmax.f32 %v2707, 0.0
    %v2964 = vmax.f32 %v2708, 0.0
    %v2965 = vmax.f32 %v2709, 0.0
    %v2966 = vmax.f32 %v2710, 0.0
    %v2967 = vmax.f32 %v2711, 0.0
    %v2968 = vmax.f32 %v2712, 0.0
    %v2969 = vmax.f32 %v2713, 0.0
    %v2970 = vmax.f32 %v2714, 0.0
    %v2971 = vmax.f32 %v2715, 0.0
    %v2972 = vmax.f32 %v2716, 0.0
    %v2973 = vmax.f32 %v2717, 0.0
    %v2974 = vmax.f32 %v2718, 0.0
    %v2975 = vmax.f32 %v2719, 0.0
    %v2976 = vmax.f32 %v2720, 0.0
    %v2977 = vmax.f32 %v2721, 0.0
    %v2978 = vmax.f32 %v2722, 0.0
    %v2979 = vmax.f32 %v2723, 0.0
    %v2980 = vmax.f32 %v2724, 0.0
    %v2981 = vmax.f32 %v2725, 0.0
    %v2982 = vmax.f32 %v2726, 0.0
    %v2983 = vmax.f32 %v2727, 0.0
    %v2984 = vmax.f32 %v2728, 0.0
    %v2985 = vmax.f32 %v2729, 0.0
    %v2986 = vmax.f32 %v2730, 0.0
    %v2987 = vmax.f32 %v2731, 0.0
    %v2988 = vmax.f32 %v2732, 0.0
    %v2989 = vmax.f32 %v2733, 0.0
    %v2990 = vmax.f32 %v2734, 0.0
    %v2991 = vmax.f32 %v2735, 0.0
    %v2992 = vmax.f32 %v2736, 0.0
    %v2993 = vmax.f32 %v2737, 0.0
    %v2994 = vmax.f32 %v2738, 0.0
    %v2995 = vmax.f32 %v2739, 0.0
    %v2996 = vmax.f32 %v2740, 0.0
    %v2997 = vmax.f32 %v2741, 0.0
    %v2998 = vmax.f32 %v2742, 0.0
    %v2999 = vmax.f32 %v2743, 0.0
    %v3000 = vmax.f32 %v2744, 0.0
    %v3001 = vmax.f32 %v2745, 0.0
    %v3002 = vmax.f32 %v2746, 0.0
    %v3003 = vmax.f32 %v2747, 0.0
    %v3004 = vmax.f32 %v2748, 0.0
    %v3005 = vmax.f32 %v2749, 0.0
    %v3006 = vmax.f32 %v2750, 0.0
    %v3007 = vmax.f32 %v2751, 0.0
    %v3008 = vmax.f32 %v2752, 0.0
    %v3009 = vmax.f32 %v2753, 0.0
    %v3010 = vmax.f32 %v2754, 0.0
    %v3011 = vmax.f32 %v2755, 0.0
    %v3012 = vmax.f32 %v2756, 0.0
    %v3013 = vmax.f32 %v2757, 0.0
    %v3014 = vmax.f32 %v2758, 0.0
    %v3015 = vmax.f32 %v2759, 0.0
    %v3016 = vmax.f32 %v2760, 0.0
    %v3017 = vmax.f32 %v2761, 0.0
    %v3018 = vmax.f32 %v2762, 0.0
    %v3019 = vmax.f32 %v2763, 0.0
    %v3020 = vmax.f32 %v2764, 0.0
    %v3021 = vmax.f32 %v2765, 0.0
    %v3022 = vmax.f32 %v2766, 0.0
    %v3023 = vmax.f32 %v2767, 0.0
    %v3024 = vmax.f32 %v2768, 0.0
    %v3025 = vmax.f32 %v2769, 0.0
    %v3026 = vmax.f32 %v2770, 0.0
    %v3027 = vmax.f32 %v2771, 0.0
    %v3028 = vmax.f32 %v2772, 0.0
    %v3029 = vmax.f32 %v2773, 0.0
    %v3030 = vmax.f32 %v2774, 0.0
    %v3031 = vmax.f32 %v2775, 0.0
    %v3032 = vmax.f32 %v2776, 0.0
    %v3033 = vmax.f32 %v2777, 0.0
    %v3034 = vmax.f32 %v2778, 0.0
    %v3035 = vmax.f32 %v2779, 0.0
    %v3036 = vmax.f32 %v2780, 0.0
    %v3037 = vmax.f32 %v2781, 0.0
    %v3038 = vmax.f32 %v2782, 0.0
    %v3039 = vmax.f32 %v2783, 0.0
    %v3040 = vmax.f32 %v2784, 0.0
    %v3041 = vmax.f32 %v2785, 0.0
    %v3042 = vmax.f32 %v2786, 0.0
    %v3043 = vmax.f32 %v2787, 0.0
    %v3044 = vmax.f32 %v2788, 0.0
    %v3045 = vmax.f32 %v2789, 0.0
    %v3046 = vmax.f32 %v2790, 0.0
    %v3047 = vmax.f32 %v2791, 0.0
    %v3048 = vmax.f32 %v2792, 0.0
    %v3049 = vmax.f32 %v2793, 0.0
    %v3050 = vmax.f32 %v2794, 0.0
    %v3051 = vmax.f32 %v2795, 0.0
    %v3052 = vmax.f32 %v2796, 0.0
    %v3053 = vmax.f32 %v2797, 0.0
    %v3054 = vmax.f32 %v2798, 0.0
    %v3055 = vmax.f32 %v2799, 0.0
    %v3056 = vmax.f32 %v2800, 0.0
    %v3057 = vmax.f32 %v2801, 0.0
    %v3058 = vmax.f32 %v2802, 0.0
    %v3059 = vmax.f32 %v2803, 0.0
    %v3060 = vmax.f32 %v2804, 0.0
    %v3061 = vmax.f32 %v2805, 0.0
    %v3062 = vmax.f32 %v2806, 0.0
    %v3063 = vmax.f32 %v2807, 0.0
    %v3064 = vmax.f32 %v2808, 0.0
    %v3065 = vmax.f32 %v2809, 0.0
    %v3066 = vmax.f32 %v2810, 0.0
    %v3067 = vmax.f32 %v2811, 0.0
    %v3068 = vmax.f32 %v2812, 0.0
    %v3069 = vmax.f32 %v2813, 0.0
    %v3070 = vmax.f32 %v2814, 0.0
    %v3071 = vmax.f32 %v2815, 0.0
    %v3072 = vmax.f32 %v2816, 0.0
    %v3073 = vmax.f32 %v2817, 0.0
    %v3074 = vmax.f32 %v2818, 0.0
    %v3075 = vmax.f32 %v2819, 0.0
    %v3076 = vmax.f32 %v2820, 0.0
    %v3077 = vmax.f32 %v2821, 0.0
    %v3078 = vmax.f32 %v2822, 0.0
    %v3079 = vmax.f32 %v2823, 0.0
    %v3080 = vmax.f32 %v2824, 0.0
    %v3081 = vmax.f32 %v2825, 0.0
    %v3082 = vmax.f32 %v2826, 0.0
    %v3083 = vmax.f32 %v2827, 0.0
    %v3084 = vmax.f32 %v2828, 0.0
    %v3085 = vmax.f32 %v2829, 0.0
    %v3086 = vmax.f32 %v2830, 0.0
    %v3087 = vmax.f32 %v2831, 0.0
    %v3088 = vmax.f32 %v2832, 0.0
    %v3089 = vmax.f32 %v2833, 0.0
    %v3090 = vmax.f32 %v2834, 0.0
    %v3091 = vmax.f32 %v2835, 0.0
    %v3092 = vmax.f32 %v2836, 0.0
    %v3093 = vmax.f32 %v2837, 0.0
    %v3094 = vmax.f32 %v2838, 0.0
    %v3095 = vmax.f32 %v2839, 0.0
    %v3096 = vmax.f32 %v2840, 0.0
    %v3097 = vmax.f32 %v2841, 0.0
    %v3098 = vmax.f32 %v2842, 0.0
    %v3099 = vmax.f32 %v2843, 0.0
    %v3100 = vmax.f32 %v2844, 0.0
    %v3101 = vmax.f32 %v2845, 0.0
    %v3102 = vmax.f32 %v2846, 0.0
    %v3103 = vmax.f32 %v2847, 0.0
    %v3104 = vmax.f32 %v2848, 0.0
    %v3105 = vmax.f32 %v2849, 0.0
    %v3106 = vmax.f32 %v2850, 0.0
    %v3107 = vmax.f32 %v2851, 0.0
    %v3108 = vmax.f32 %v2852, 0.0
    %v3109 = vmax.f32 %v2853, 0.0
    %v3110 = vmax.f32 %v2854, 0.0
    %v3111 = vmax.f32 %v2855, 0.0
    %v3112 = vmax.f32 %v2856, 0.0
    %v3113 = vmax.f32 %v2857, 0.0
    %v3114 = vmax.f32 %v2858, 0.0
    %v3115 = vmax.f32 %v2859, 0.0
    %v3116 = vmax.f32 %v2860, 0.0
    %v3117 = vmax.f32 %v2861, 0.0
    %v3118 = vmax.f32 %v2862, 0.0
    %v3119 = vmax.f32 %v2863, 0.0
    %v3120 = vmax.f32 %v2864, 0.0
    %v3121 = vmax.f32 %v2865, 0.0
    %v3122 = vmax.f32 %v2866, 0.0
    %v3123 = vmax.f32 %v2867, 0.0
    %v3124 = vmax.f32 %v2868, 0.0
    %v3125 = vmax.f32 %v2869, 0.0
    %v3126 = vmax.f32 %v2870, 0.0
    %v3127 = vmax.f32 %v2871, 0.0
    %v3128 = vmax.f32 %v2872, 0.0
    %v3129 = vmax.f32 %v2873, 0.0
    %v3130 = vmax.f32 %v2874, 0.0
    %v3131 = vmax.f32 %v2875, 0.0
    %v3132 = vmax.f32 %v2876, 0.0
    %v3133 = vmax.f32 %v2877, 0.0
    %v3134 = vmax.f32 %v2878, 0.0
    %v3135 = vmax.f32 %v2879, 0.0
    %v3136 = vmax.f32 %v2880, 0.0
    %v3137 = vmax.f32 %v2881, 0.0
    %v3138 = vmax.f32 %v2882, 0.0
    %v3139 = vmax.f32 %v2883, 0.0
    %v3140 = vmax.f32 %v2884, 0.0
    %v3141 = vmax.f32 %v2885, 0.0
    %v3142 = vmax.f32 %v2886, 0.0
    %v3143 = vmax.f32 %v2887, 0.0
    %v3144 = vmax.f32 %v2888, 0.0
    %v3145 = vmax.f32 %v2889, 0.0
    %v3146 = vmax.f32 %v2890, 0.0
    %v3147 = vmax.f32 %v2891, 0.0
    %v3148 = vmax.f32 %v2892, 0.0
    %v3149 = vmax.f32 %v2893, 0.0
    %v3150 = vmax.f32 %v2894, 0.0
    %v3151 = vmax.f32 %v2895, 0.0
    %v3152 = vmax.f32 %v2896, 0.0
    %v3153 = vmax.f32 %v2897, 0.0
    %v3154 = vmax.f32 %v2898, 0.0
    %v3155 = vmax.f32 %v2899, 0.0
    %v3156 = vmax.f32 %v2900, 0.0
    %v3157 = vmax.f32 %v2901, 0.0
    %v3158 = vmax.f32 %v2902, 0.0
    %v3159 = vmax.f32 %v2903, 0.0
    %v3160 = vmax.f32 %v2904, 0.0
    %v3161 = vmax.f32 %v2905, 0.0
    %v3162 = vmax.f32 %v2906, 0.0
    %v3163 = vmax.f32 %v2907, 0.0
    %v3164 = vmax.f32 %v2908, 0.0
    %v3165 = vmax.f32 %v2909, 0.0
    %v3166 = vmax.f32 %v2910, 0.0
    %v3167 = vmax.f32 %v2911, 0.0
    %v3168 = vmax.f32 %v2912, 0.0
    %v3169 = vmax.f32 %v2913, 0.0
    %v3170 = vmax.f32 %v2914, 0.0
    %v3171 = vmax.f32 %v2915, 0.0
    %v3172 = vmax.f32 %v2916, 0.0
    %v3173 = vmax.f32 %v2917, 0.0
    %v3174 = vpack.c.bf16 %v2919, %v2918
    %v3175 = vpack.c.bf16 %v2921, %v2920
    %v3176 = vpack.c.bf16 %v2923, %v2922
    %v3177 = vpack.c.bf16 %v2925, %v2924
    %v3178 = vpack.c.bf16 %v2927, %v2926
    %v3179 = vpack.c.bf16 %v2929, %v2928
    %v3180 = vpack.c.bf16 %v2931, %v2930
    %v3181 = vpack.c.bf16 %v2933, %v2932
    %v3182 = vpack.c.bf16 %v2935, %v2934
    %v3183 = vpack.c.bf16 %v2937, %v2936
    %v3184 = vpack.c.bf16 %v2939, %v2938
    %v3185 = vpack.c.bf16 %v2941, %v2940
    %v3186 = vpack.c.bf16 %v2943, %v2942
    %v3187 = vpack.c.bf16 %v2945, %v2944
    %v3188 = vpack.c.bf16 %v2947, %v2946
    %v3189 = vpack.c.bf16 %v2949, %v2948
    %v3190 = vpack.c.bf16 %v2951, %v2950
    %v3191 = vpack.c.bf16 %v2953, %v2952
    %v3192 = vpack.c.bf16 %v2955, %v2954
    %v3193 = vpack.c.bf16 %v2957, %v2956
    %v3194 = vpack.c.bf16 %v2959, %v2958
    %v3195 = vpack.c.bf16 %v2961, %v2960
    %v3196 = vpack.c.bf16 %v2963, %v2962
    %v3197 = vpack.c.bf16 %v2965, %v2964
    %v3198 = vpack.c.bf16 %v2967, %v2966
    %v3199 = vpack.c.bf16 %v2969, %v2968
    %v3200 = vpack.c.bf16 %v2971, %v2970
    %v3201 = vpack.c.bf16 %v2973, %v2972
    %v3202 = vpack.c.bf16 %v2975, %v2974
    %v3203 = vpack.c.bf16 %v2977, %v2976
    %v3204 = vpack.c.bf16 %v2979, %v2978
    %v3205 = vpack.c.bf16 %v2981, %v2980
    %v3206 = vpack.c.bf16 %v2983, %v2982
    %v3207 = vpack.c.bf16 %v2985, %v2984
    %v3208 = vpack.c.bf16 %v2987, %v2986
    %v3209 = vpack.c.bf16 %v2989, %v2988
    %v3210 = vpack.c.bf16 %v2991, %v2990
    %v3211 = vpack.c.bf16 %v2993, %v2992
    %v3212 = vpack.c.bf16 %v2995, %v2994
    %v3213 = vpack.c.bf16 %v2997, %v2996
    %v3214 = vpack.c.bf16 %v2999, %v2998
    %v3215 = vpack.c.bf16 %v3001, %v3000
    %v3216 = vpack.c.bf16 %v3003, %v3002
    %v3217 = vpack.c.bf16 %v3005, %v3004
    %v3218 = vpack.c.bf16 %v3007, %v3006
    %v3219 = vpack.c.bf16 %v3009, %v3008
    %v3220 = vpack.c.bf16 %v3011, %v3010
    %v3221 = vpack.c.bf16 %v3013, %v3012
    %v3222 = vpack.c.bf16 %v3015, %v3014
    %v3223 = vpack.c.bf16 %v3017, %v3016
    %v3224 = vpack.c.bf16 %v3019, %v3018
    %v3225 = vpack.c.bf16 %v3021, %v3020
    %v3226 = vpack.c.bf16 %v3023, %v3022
    %v3227 = vpack.c.bf16 %v3025, %v3024
    %v3228 = vpack.c.bf16 %v3027, %v3026
    %v3229 = vpack.c.bf16 %v3029, %v3028
    %v3230 = vpack.c.bf16 %v3031, %v3030
    %v3231 = vpack.c.bf16 %v3033, %v3032
    %v3232 = vpack.c.bf16 %v3035, %v3034
    %v3233 = vpack.c.bf16 %v3037, %v3036
    %v3234 = vpack.c.bf16 %v3039, %v3038
    %v3235 = vpack.c.bf16 %v3041, %v3040
    %v3236 = vpack.c.bf16 %v3043, %v3042
    %v3237 = vpack.c.bf16 %v3045, %v3044
    %v3238 = vpack.c.bf16 %v3047, %v3046
    %v3239 = vpack.c.bf16 %v3049, %v3048
    %v3240 = vpack.c.bf16 %v3051, %v3050
    %v3241 = vpack.c.bf16 %v3053, %v3052
    %v3242 = vpack.c.bf16 %v3055, %v3054
    %v3243 = vpack.c.bf16 %v3057, %v3056
    %v3244 = vpack.c.bf16 %v3059, %v3058
    %v3245 = vpack.c.bf16 %v3061, %v3060
    %v3246 = vpack.c.bf16 %v3063, %v3062
    %v3247 = vpack.c.bf16 %v3065, %v3064
    %v3248 = vpack.c.bf16 %v3067, %v3066
    %v3249 = vpack.c.bf16 %v3069, %v3068
    %v3250 = vpack.c.bf16 %v3071, %v3070
    %v3251 = vpack.c.bf16 %v3073, %v3072
    %v3252 = vpack.c.bf16 %v3075, %v3074
    %v3253 = vpack.c.bf16 %v3077, %v3076
    %v3254 = vpack.c.bf16 %v3079, %v3078
    %v3255 = vpack.c.bf16 %v3081, %v3080
    %v3256 = vpack.c.bf16 %v3083, %v3082
    %v3257 = vpack.c.bf16 %v3085, %v3084
    %v3258 = vpack.c.bf16 %v3087, %v3086
    %v3259 = vpack.c.bf16 %v3089, %v3088
    %v3260 = vpack.c.bf16 %v3091, %v3090
    %v3261 = vpack.c.bf16 %v3093, %v3092
    %v3262 = vpack.c.bf16 %v3095, %v3094
    %v3263 = vpack.c.bf16 %v3097, %v3096
    %v3264 = vpack.c.bf16 %v3099, %v3098
    %v3265 = vpack.c.bf16 %v3101, %v3100
    %v3266 = vpack.c.bf16 %v3103, %v3102
    %v3267 = vpack.c.bf16 %v3105, %v3104
    %v3268 = vpack.c.bf16 %v3107, %v3106
    %v3269 = vpack.c.bf16 %v3109, %v3108
    %v3270 = vpack.c.bf16 %v3111, %v3110
    %v3271 = vpack.c.bf16 %v3113, %v3112
    %v3272 = vpack.c.bf16 %v3115, %v3114
    %v3273 = vpack.c.bf16 %v3117, %v3116
    %v3274 = vpack.c.bf16 %v3119, %v3118
    %v3275 = vpack.c.bf16 %v3121, %v3120
    %v3276 = vpack.c.bf16 %v3123, %v3122
    %v3277 = vpack.c.bf16 %v3125, %v3124
    %v3278 = vpack.c.bf16 %v3127, %v3126
    %v3279 = vpack.c.bf16 %v3129, %v3128
    %v3280 = vpack.c.bf16 %v3131, %v3130
    %v3281 = vpack.c.bf16 %v3133, %v3132
    %v3282 = vpack.c.bf16 %v3135, %v3134
    %v3283 = vpack.c.bf16 %v3137, %v3136
    %v3284 = vpack.c.bf16 %v3139, %v3138
    %v3285 = vpack.c.bf16 %v3141, %v3140
    %v3286 = vpack.c.bf16 %v3143, %v3142
    %v3287 = vpack.c.bf16 %v3145, %v3144
    %v3288 = vpack.c.bf16 %v3147, %v3146
    %v3289 = vpack.c.bf16 %v3149, %v3148
    %v3290 = vpack.c.bf16 %v3151, %v3150
    %v3291 = vpack.c.bf16 %v3153, %v3152
    %v3292 = vpack.c.bf16 %v3155, %v3154
    %v3293 = vpack.c.bf16 %v3157, %v3156
    %v3294 = vpack.c.bf16 %v3159, %v3158
    %v3295 = vpack.c.bf16 %v3161, %v3160
    %v3296 = vpack.c.bf16 %v3163, %v3162
    %v3297 = vpack.c.bf16 %v3165, %v3164
    %v3298 = vpack.c.bf16 %v3167, %v3166
    %v3299 = vpack.c.bf16 %v3169, %v3168
    %v3300 = vpack.c.bf16 %v3171, %v3170
    %v3301 = vpack.c.bf16 %v3173, %v3172
    %v3430 = vunpack.c.l.b16 %v3174
    %v3431 = vunpack.c.h.b16 %v3174
    %v3432 = vunpack.c.l.b16 %v3175
    %v3433 = vunpack.c.h.b16 %v3175
    %v3434 = vunpack.c.l.b16 %v3176
    %v3435 = vunpack.c.h.b16 %v3176
    %v3436 = vunpack.c.l.b16 %v3177
    %v3437 = vunpack.c.h.b16 %v3177
    %v3438 = vunpack.c.l.b16 %v3178
    %v3439 = vunpack.c.h.b16 %v3178
    %v3440 = vunpack.c.l.b16 %v3179
    %v3441 = vunpack.c.h.b16 %v3179
    %v3442 = vunpack.c.l.b16 %v3180
    %v3443 = vunpack.c.h.b16 %v3180
    %v3444 = vunpack.c.l.b16 %v3181
    %v3445 = vunpack.c.h.b16 %v3181
    %v3446 = vunpack.c.l.b16 %v3182
    %v3447 = vunpack.c.h.b16 %v3182
    %v3448 = vunpack.c.l.b16 %v3183
    %v3449 = vunpack.c.h.b16 %v3183
    %v3450 = vunpack.c.l.b16 %v3184
    %v3451 = vunpack.c.h.b16 %v3184
    %v3452 = vunpack.c.l.b16 %v3185
    %v3453 = vunpack.c.h.b16 %v3185
    %v3454 = vunpack.c.l.b16 %v3186
    %v3455 = vunpack.c.h.b16 %v3186
    %v3456 = vunpack.c.l.b16 %v3187
    %v3457 = vunpack.c.h.b16 %v3187
    %v3458 = vunpack.c.l.b16 %v3188
    %v3459 = vunpack.c.h.b16 %v3188
    %v3460 = vunpack.c.l.b16 %v3189
    %v3461 = vunpack.c.h.b16 %v3189
    %v3462 = vunpack.c.l.b16 %v3190
    %v3463 = vunpack.c.h.b16 %v3190
    %v3464 = vunpack.c.l.b16 %v3191
    %v3465 = vunpack.c.h.b16 %v3191
    %v3466 = vunpack.c.l.b16 %v3192
    %v3467 = vunpack.c.h.b16 %v3192
    %v3468 = vunpack.c.l.b16 %v3193
    %v3469 = vunpack.c.h.b16 %v3193
    %v3470 = vunpack.c.l.b16 %v3194
    %v3471 = vunpack.c.h.b16 %v3194
    %v3472 = vunpack.c.l.b16 %v3195
    %v3473 = vunpack.c.h.b16 %v3195
    %v3474 = vunpack.c.l.b16 %v3196
    %v3475 = vunpack.c.h.b16 %v3196
    %v3476 = vunpack.c.l.b16 %v3197
    %v3477 = vunpack.c.h.b16 %v3197
    %v3478 = vunpack.c.l.b16 %v3198
    %v3479 = vunpack.c.h.b16 %v3198
    %v3480 = vunpack.c.l.b16 %v3199
    %v3481 = vunpack.c.h.b16 %v3199
    %v3482 = vunpack.c.l.b16 %v3200
    %v3483 = vunpack.c.h.b16 %v3200
    %v3484 = vunpack.c.l.b16 %v3201
    %v3485 = vunpack.c.h.b16 %v3201
    %v3486 = vunpack.c.l.b16 %v3202
    %v3487 = vunpack.c.h.b16 %v3202
    %v3488 = vunpack.c.l.b16 %v3203
    %v3489 = vunpack.c.h.b16 %v3203
    %v3490 = vunpack.c.l.b16 %v3204
    %v3491 = vunpack.c.h.b16 %v3204
    %v3492 = vunpack.c.l.b16 %v3205
    %v3493 = vunpack.c.h.b16 %v3205
    %v3494 = vunpack.c.l.b16 %v3206
    %v3495 = vunpack.c.h.b16 %v3206
    %v3496 = vunpack.c.l.b16 %v3207
    %v3497 = vunpack.c.h.b16 %v3207
    %v3498 = vunpack.c.l.b16 %v3208
    %v3499 = vunpack.c.h.b16 %v3208
    %v3500 = vunpack.c.l.b16 %v3209
    %v3501 = vunpack.c.h.b16 %v3209
    %v3502 = vunpack.c.l.b16 %v3210
    %v3503 = vunpack.c.h.b16 %v3210
    %v3504 = vunpack.c.l.b16 %v3211
    %v3505 = vunpack.c.h.b16 %v3211
    %v3506 = vunpack.c.l.b16 %v3212
    %v3507 = vunpack.c.h.b16 %v3212
    %v3508 = vunpack.c.l.b16 %v3213
    %v3509 = vunpack.c.h.b16 %v3213
    %v3510 = vunpack.c.l.b16 %v3214
    %v3511 = vunpack.c.h.b16 %v3214
    %v3512 = vunpack.c.l.b16 %v3215
    %v3513 = vunpack.c.h.b16 %v3215
    %v3514 = vunpack.c.l.b16 %v3216
    %v3515 = vunpack.c.h.b16 %v3216
    %v3516 = vunpack.c.l.b16 %v3217
    %v3517 = vunpack.c.h.b16 %v3217
    %v3518 = vunpack.c.l.b16 %v3218
    %v3519 = vunpack.c.h.b16 %v3218
    %v3520 = vunpack.c.l.b16 %v3219
    %v3521 = vunpack.c.h.b16 %v3219
    %v3522 = vunpack.c.l.b16 %v3220
    %v3523 = vunpack.c.h.b16 %v3220
    %v3524 = vunpack.c.l.b16 %v3221
    %v3525 = vunpack.c.h.b16 %v3221
    %v3526 = vunpack.c.l.b16 %v3222
    %v3527 = vunpack.c.h.b16 %v3222
    %v3528 = vunpack.c.l.b16 %v3223
    %v3529 = vunpack.c.h.b16 %v3223
    %v3530 = vunpack.c.l.b16 %v3224
    %v3531 = vunpack.c.h.b16 %v3224
    %v3532 = vunpack.c.l.b16 %v3225
    %v3533 = vunpack.c.h.b16 %v3225
    %v3534 = vunpack.c.l.b16 %v3226
    %v3535 = vunpack.c.h.b16 %v3226
    %v3536 = vunpack.c.l.b16 %v3227
    %v3537 = vunpack.c.h.b16 %v3227
    %v3538 = vunpack.c.l.b16 %v3228
    %v3539 = vunpack.c.h.b16 %v3228
    %v3540 = vunpack.c.l.b16 %v3229
    %v3541 = vunpack.c.h.b16 %v3229
    %v3542 = vunpack.c.l.b16 %v3230
    %v3543 = vunpack.c.h.b16 %v3230
    %v3544 = vunpack.c.l.b16 %v3231
    %v3545 = vunpack.c.h.b16 %v3231
    %v3546 = vunpack.c.l.b16 %v3232
    %v3547 = vunpack.c.h.b16 %v3232
    %v3548 = vunpack.c.l.b16 %v3233
    %v3549 = vunpack.c.h.b16 %v3233
    %v3550 = vunpack.c.l.b16 %v3234
    %v3551 = vunpack.c.h.b16 %v3234
    %v3552 = vunpack.c.l.b16 %v3235
    %v3553 = vunpack.c.h.b16 %v3235
    %v3554 = vunpack.c.l.b16 %v3236
    %v3555 = vunpack.c.h.b16 %v3236
    %v3556 = vunpack.c.l.b16 %v3237
    %v3557 = vunpack.c.h.b16 %v3237
    %v3558 = vunpack.c.l.b16 %v3238
    %v3559 = vunpack.c.h.b16 %v3238
    %v3560 = vunpack.c.l.b16 %v3239
    %v3561 = vunpack.c.h.b16 %v3239
    %v3562 = vunpack.c.l.b16 %v3240
    %v3563 = vunpack.c.h.b16 %v3240
    %v3564 = vunpack.c.l.b16 %v3241
    %v3565 = vunpack.c.h.b16 %v3241
    %v3566 = vunpack.c.l.b16 %v3242
    %v3567 = vunpack.c.h.b16 %v3242
    %v3568 = vunpack.c.l.b16 %v3243
    %v3569 = vunpack.c.h.b16 %v3243
    %v3570 = vunpack.c.l.b16 %v3244
    %v3571 = vunpack.c.h.b16 %v3244
    %v3572 = vunpack.c.l.b16 %v3245
    %v3573 = vunpack.c.h.b16 %v3245
    %v3574 = vunpack.c.l.b16 %v3246
    %v3575 = vunpack.c.h.b16 %v3246
    %v3576 = vunpack.c.l.b16 %v3247
    %v3577 = vunpack.c.h.b16 %v3247
    %v3578 = vunpack.c.l.b16 %v3248
    %v3579 = vunpack.c.h.b16 %v3248
    %v3580 = vunpack.c.l.b16 %v3249
    %v3581 = vunpack.c.h.b16 %v3249
    %v3582 = vunpack.c.l.b16 %v3250
    %v3583 = vunpack.c.h.b16 %v3250
    %v3584 = vunpack.c.l.b16 %v3251
    %v3585 = vunpack.c.h.b16 %v3251
    %v3586 = vunpack.c.l.b16 %v3252
    %v3587 = vunpack.c.h.b16 %v3252
    %v3588 = vunpack.c.l.b16 %v3253
    %v3589 = vunpack.c.h.b16 %v3253
    %v3590 = vunpack.c.l.b16 %v3254
    %v3591 = vunpack.c.h.b16 %v3254
    %v3592 = vunpack.c.l.b16 %v3255
    %v3593 = vunpack.c.h.b16 %v3255
    %v3594 = vunpack.c.l.b16 %v3256
    %v3595 = vunpack.c.h.b16 %v3256
    %v3596 = vunpack.c.l.b16 %v3257
    %v3597 = vunpack.c.h.b16 %v3257
    %v3598 = vunpack.c.l.b16 %v3258
    %v3599 = vunpack.c.h.b16 %v3258
    %v3600 = vunpack.c.l.b16 %v3259
    %v3601 = vunpack.c.h.b16 %v3259
    %v3602 = vunpack.c.l.b16 %v3260
    %v3603 = vunpack.c.h.b16 %v3260
    %v3604 = vunpack.c.l.b16 %v3261
    %v3605 = vunpack.c.h.b16 %v3261
    %v3606 = vunpack.c.l.b16 %v3262
    %v3607 = vunpack.c.h.b16 %v3262
    %v3608 = vunpack.c.l.b16 %v3263
    %v3609 = vunpack.c.h.b16 %v3263
    %v3610 = vunpack.c.l.b16 %v3264
    %v3611 = vunpack.c.h.b16 %v3264
    %v3612 = vunpack.c.l.b16 %v3265
    %v3613 = vunpack.c.h.b16 %v3265
    %v3614 = vunpack.c.l.b16 %v3266
    %v3615 = vunpack.c.h.b16 %v3266
    %v3616 = vunpack.c.l.b16 %v3267
    %v3617 = vunpack.c.h.b16 %v3267
    %v3618 = vunpack.c.l.b16 %v3268
    %v3619 = vunpack.c.h.b16 %v3268
    %v3620 = vunpack.c.l.b16 %v3269
    %v3621 = vunpack.c.h.b16 %v3269
    %v3622 = vunpack.c.l.b16 %v3270
    %v3623 = vunpack.c.h.b16 %v3270
    %v3624 = vunpack.c.l.b16 %v3271
    %v3625 = vunpack.c.h.b16 %v3271
    %v3626 = vunpack.c.l.b16 %v3272
    %v3627 = vunpack.c.h.b16 %v3272
    %v3628 = vunpack.c.l.b16 %v3273
    %v3629 = vunpack.c.h.b16 %v3273
    %v3630 = vunpack.c.l.b16 %v3274
    %v3631 = vunpack.c.h.b16 %v3274
    %v3632 = vunpack.c.l.b16 %v3275
    %v3633 = vunpack.c.h.b16 %v3275
    %v3634 = vunpack.c.l.b16 %v3276
    %v3635 = vunpack.c.h.b16 %v3276
    %v3636 = vunpack.c.l.b16 %v3277
    %v3637 = vunpack.c.h.b16 %v3277
    %v3638 = vunpack.c.l.b16 %v3278
    %v3639 = vunpack.c.h.b16 %v3278
    %v3640 = vunpack.c.l.b16 %v3279
    %v3641 = vunpack.c.h.b16 %v3279
    %v3642 = vunpack.c.l.b16 %v3280
    %v3643 = vunpack.c.h.b16 %v3280
    %v3644 = vunpack.c.l.b16 %v3281
    %v3645 = vunpack.c.h.b16 %v3281
    %v3646 = vunpack.c.l.b16 %v3282
    %v3647 = vunpack.c.h.b16 %v3282
    %v3648 = vunpack.c.l.b16 %v3283
    %v3649 = vunpack.c.h.b16 %v3283
    %v3650 = vunpack.c.l.b16 %v3284
    %v3651 = vunpack.c.h.b16 %v3284
    %v3652 = vunpack.c.l.b16 %v3285
    %v3653 = vunpack.c.h.b16 %v3285
    %v3654 = vunpack.c.l.b16 %v3286
    %v3655 = vunpack.c.h.b16 %v3286
    %v3656 = vunpack.c.l.b16 %v3287
    %v3657 = vunpack.c.h.b16 %v3287
    %v3658 = vunpack.c.l.b16 %v3288
    %v3659 = vunpack.c.h.b16 %v3288
    %v3660 = vunpack.c.l.b16 %v3289
    %v3661 = vunpack.c.h.b16 %v3289
    %v3662 = vunpack.c.l.b16 %v3290
    %v3663 = vunpack.c.h.b16 %v3290
    %v3664 = vunpack.c.l.b16 %v3291
    %v3665 = vunpack.c.h.b16 %v3291
    %v3666 = vunpack.c.l.b16 %v3292
    %v3667 = vunpack.c.h.b16 %v3292
    %v3668 = vunpack.c.l.b16 %v3293
    %v3669 = vunpack.c.h.b16 %v3293
    %v3670 = vunpack.c.l.b16 %v3294
    %v3671 = vunpack.c.h.b16 %v3294
    %v3672 = vunpack.c.l.b16 %v3295
    %v3673 = vunpack.c.h.b16 %v3295
    %v3674 = vunpack.c.l.b16 %v3296
    %v3675 = vunpack.c.h.b16 %v3296
    %v3676 = vunpack.c.l.b16 %v3297
    %v3677 = vunpack.c.h.b16 %v3297
    %v3678 = vunpack.c.l.b16 %v3298
    %v3679 = vunpack.c.h.b16 %v3298
    %v3680 = vunpack.c.l.b16 %v3299
    %v3681 = vunpack.c.h.b16 %v3299
    %v3682 = vunpack.c.l.b16 %v3300
    %v3683 = vunpack.c.h.b16 %v3300
    %v3684 = vunpack.c.l.b16 %v3301
    %v3685 = vunpack.c.h.b16 %v3301
    %v3686 = vpack.c.b16 %v3430, %v3430
    %v3687 = vpack.c.b16 %v3431, %v3431
    %v3688 = vpack.c.b16 %v3432, %v3432
    %v3689 = vpack.c.b16 %v3433, %v3433
    %v3690 = vpack.c.b16 %v3434, %v3434
    %v3691 = vpack.c.b16 %v3435, %v3435
    %v3692 = vpack.c.b16 %v3436, %v3436
    %v3693 = vpack.c.b16 %v3437, %v3437
    %v3694 = vpack.c.b16 %v3438, %v3438
    %v3695 = vpack.c.b16 %v3439, %v3439
    %v3696 = vpack.c.b16 %v3440, %v3440
    %v3697 = vpack.c.b16 %v3441, %v3441
    %v3698 = vpack.c.b16 %v3442, %v3442
    %v3699 = vpack.c.b16 %v3443, %v3443
    %v3700 = vpack.c.b16 %v3444, %v3444
    %v3701 = vpack.c.b16 %v3445, %v3445
    %v3702 = vpack.c.b16 %v3446, %v3446
    %v3703 = vpack.c.b16 %v3447, %v3447
    %v3704 = vpack.c.b16 %v3448, %v3448
    %v3705 = vpack.c.b16 %v3449, %v3449
    %v3706 = vpack.c.b16 %v3450, %v3450
    %v3707 = vpack.c.b16 %v3451, %v3451
    %v3708 = vpack.c.b16 %v3452, %v3452
    %v3709 = vpack.c.b16 %v3453, %v3453
    %v3710 = vpack.c.b16 %v3454, %v3454
    %v3711 = vpack.c.b16 %v3455, %v3455
    %v3712 = vpack.c.b16 %v3456, %v3456
    %v3713 = vpack.c.b16 %v3457, %v3457
    %v3714 = vpack.c.b16 %v3458, %v3458
    %v3715 = vpack.c.b16 %v3459, %v3459
    %v3716 = vpack.c.b16 %v3460, %v3460
    %v3717 = vpack.c.b16 %v3461, %v3461
    %v3718 = vpack.c.b16 %v3462, %v3462
    %v3719 = vpack.c.b16 %v3463, %v3463
    %v3720 = vpack.c.b16 %v3464, %v3464
    %v3721 = vpack.c.b16 %v3465, %v3465
    %v3722 = vpack.c.b16 %v3466, %v3466
    %v3723 = vpack.c.b16 %v3467, %v3467
    %v3724 = vpack.c.b16 %v3468, %v3468
    %v3725 = vpack.c.b16 %v3469, %v3469
    %v3726 = vpack.c.b16 %v3470, %v3470
    %v3727 = vpack.c.b16 %v3471, %v3471
    %v3728 = vpack.c.b16 %v3472, %v3472
    %v3729 = vpack.c.b16 %v3473, %v3473
    %v3730 = vpack.c.b16 %v3474, %v3474
    %v3731 = vpack.c.b16 %v3475, %v3475
    %v3732 = vpack.c.b16 %v3476, %v3476
    %v3733 = vpack.c.b16 %v3477, %v3477
    %v3734 = vpack.c.b16 %v3478, %v3478
    %v3735 = vpack.c.b16 %v3479, %v3479
    %v3736 = vpack.c.b16 %v3480, %v3480
    %v3737 = vpack.c.b16 %v3481, %v3481
    %v3738 = vpack.c.b16 %v3482, %v3482
    %v3739 = vpack.c.b16 %v3483, %v3483
    %v3740 = vpack.c.b16 %v3484, %v3484
    %v3741 = vpack.c.b16 %v3485, %v3485
    %v3742 = vpack.c.b16 %v3486, %v3486
    %v3743 = vpack.c.b16 %v3487, %v3487
    %v3744 = vpack.c.b16 %v3488, %v3488
    %v3745 = vpack.c.b16 %v3489, %v3489
    %v3746 = vpack.c.b16 %v3490, %v3490
    %v3747 = vpack.c.b16 %v3491, %v3491
    %v3748 = vpack.c.b16 %v3492, %v3492
    %v3749 = vpack.c.b16 %v3493, %v3493
    %v3750 = vpack.c.b16 %v3494, %v3494
    %v3751 = vpack.c.b16 %v3495, %v3495
    %v3752 = vpack.c.b16 %v3496, %v3496
    %v3753 = vpack.c.b16 %v3497, %v3497
    %v3754 = vpack.c.b16 %v3498, %v3498
    %v3755 = vpack.c.b16 %v3499, %v3499
    %v3756 = vpack.c.b16 %v3500, %v3500
    %v3757 = vpack.c.b16 %v3501, %v3501
    %v3758 = vpack.c.b16 %v3502, %v3502
    %v3759 = vpack.c.b16 %v3503, %v3503
    %v3760 = vpack.c.b16 %v3504, %v3504
    %v3761 = vpack.c.b16 %v3505, %v3505
    %v3762 = vpack.c.b16 %v3506, %v3506
    %v3763 = vpack.c.b16 %v3507, %v3507
    %v3764 = vpack.c.b16 %v3508, %v3508
    %v3765 = vpack.c.b16 %v3509, %v3509
    %v3766 = vpack.c.b16 %v3510, %v3510
    %v3767 = vpack.c.b16 %v3511, %v3511
    %v3768 = vpack.c.b16 %v3512, %v3512
    %v3769 = vpack.c.b16 %v3513, %v3513
    %v3770 = vpack.c.b16 %v3514, %v3514
    %v3771 = vpack.c.b16 %v3515, %v3515
    %v3772 = vpack.c.b16 %v3516, %v3516
    %v3773 = vpack.c.b16 %v3517, %v3517
    %v3774 = vpack.c.b16 %v3518, %v3518
    %v3775 = vpack.c.b16 %v3519, %v3519
    %v3776 = vpack.c.b16 %v3520, %v3520
    %v3777 = vpack.c.b16 %v3521, %v3521
    %v3778 = vpack.c.b16 %v3522, %v3522
    %v3779 = vpack.c.b16 %v3523, %v3523
    %v3780 = vpack.c.b16 %v3524, %v3524
    %v3781 = vpack.c.b16 %v3525, %v3525
    %v3782 = vpack.c.b16 %v3526, %v3526
    %v3783 = vpack.c.b16 %v3527, %v3527
    %v3784 = vpack.c.b16 %v3528, %v3528
    %v3785 = vpack.c.b16 %v3529, %v3529
    %v3786 = vpack.c.b16 %v3530, %v3530
    %v3787 = vpack.c.b16 %v3531, %v3531
    %v3788 = vpack.c.b16 %v3532, %v3532
    %v3789 = vpack.c.b16 %v3533, %v3533
    %v3790 = vpack.c.b16 %v3534, %v3534
    %v3791 = vpack.c.b16 %v3535, %v3535
    %v3792 = vpack.c.b16 %v3536, %v3536
    %v3793 = vpack.c.b16 %v3537, %v3537
    %v3794 = vpack.c.b16 %v3538, %v3538
    %v3795 = vpack.c.b16 %v3539, %v3539
    %v3796 = vpack.c.b16 %v3540, %v3540
    %v3797 = vpack.c.b16 %v3541, %v3541
    %v3798 = vpack.c.b16 %v3542, %v3542
    %v3799 = vpack.c.b16 %v3543, %v3543
    %v3800 = vpack.c.b16 %v3544, %v3544
    %v3801 = vpack.c.b16 %v3545, %v3545
    %v3802 = vpack.c.b16 %v3546, %v3546
    %v3803 = vpack.c.b16 %v3547, %v3547
    %v3804 = vpack.c.b16 %v3548, %v3548
    %v3805 = vpack.c.b16 %v3549, %v3549
    %v3806 = vpack.c.b16 %v3550, %v3550
    %v3807 = vpack.c.b16 %v3551, %v3551
    %v3808 = vpack.c.b16 %v3552, %v3552
    %v3809 = vpack.c.b16 %v3553, %v3553
    %v3810 = vpack.c.b16 %v3554, %v3554
    %v3811 = vpack.c.b16 %v3555, %v3555
    %v3812 = vpack.c.b16 %v3556, %v3556
    %v3813 = vpack.c.b16 %v3557, %v3557
    %v3814 = vpack.c.b16 %v3558, %v3558
    %v3815 = vpack.c.b16 %v3559, %v3559
    %v3816 = vpack.c.b16 %v3560, %v3560
    %v3817 = vpack.c.b16 %v3561, %v3561
    %v3818 = vpack.c.b16 %v3562, %v3562
    %v3819 = vpack.c.b16 %v3563, %v3563
    %v3820 = vpack.c.b16 %v3564, %v3564
    %v3821 = vpack.c.b16 %v3565, %v3565
    %v3822 = vpack.c.b16 %v3566, %v3566
    %v3823 = vpack.c.b16 %v3567, %v3567
    %v3824 = vpack.c.b16 %v3568, %v3568
    %v3825 = vpack.c.b16 %v3569, %v3569
    %v3826 = vpack.c.b16 %v3570, %v3570
    %v3827 = vpack.c.b16 %v3571, %v3571
    %v3828 = vpack.c.b16 %v3572, %v3572
    %v3829 = vpack.c.b16 %v3573, %v3573
    %v3830 = vpack.c.b16 %v3574, %v3574
    %v3831 = vpack.c.b16 %v3575, %v3575
    %v3832 = vpack.c.b16 %v3576, %v3576
    %v3833 = vpack.c.b16 %v3577, %v3577
    %v3834 = vpack.c.b16 %v3578, %v3578
    %v3835 = vpack.c.b16 %v3579, %v3579
    %v3836 = vpack.c.b16 %v3580, %v3580
    %v3837 = vpack.c.b16 %v3581, %v3581
    %v3838 = vpack.c.b16 %v3582, %v3582
    %v3839 = vpack.c.b16 %v3583, %v3583
    %v3840 = vpack.c.b16 %v3584, %v3584
    %v3841 = vpack.c.b16 %v3585, %v3585
    %v3842 = vpack.c.b16 %v3586, %v3586
    %v3843 = vpack.c.b16 %v3587, %v3587
    %v3844 = vpack.c.b16 %v3588, %v3588
    %v3845 = vpack.c.b16 %v3589, %v3589
    %v3846 = vpack.c.b16 %v3590, %v3590
    %v3847 = vpack.c.b16 %v3591, %v3591
    %v3848 = vpack.c.b16 %v3592, %v3592
    %v3849 = vpack.c.b16 %v3593, %v3593
    %v3850 = vpack.c.b16 %v3594, %v3594
    %v3851 = vpack.c.b16 %v3595, %v3595
    %v3852 = vpack.c.b16 %v3596, %v3596
    %v3853 = vpack.c.b16 %v3597, %v3597
    %v3854 = vpack.c.b16 %v3598, %v3598
    %v3855 = vpack.c.b16 %v3599, %v3599
    %v3856 = vpack.c.b16 %v3600, %v3600
    %v3857 = vpack.c.b16 %v3601, %v3601
    %v3858 = vpack.c.b16 %v3602, %v3602
    %v3859 = vpack.c.b16 %v3603, %v3603
    %v3860 = vpack.c.b16 %v3604, %v3604
    %v3861 = vpack.c.b16 %v3605, %v3605
    %v3862 = vpack.c.b16 %v3606, %v3606
    %v3863 = vpack.c.b16 %v3607, %v3607
    %v3864 = vpack.c.b16 %v3608, %v3608
    %v3865 = vpack.c.b16 %v3609, %v3609
    %v3866 = vpack.c.b16 %v3610, %v3610
    %v3867 = vpack.c.b16 %v3611, %v3611
    %v3868 = vpack.c.b16 %v3612, %v3612
    %v3869 = vpack.c.b16 %v3613, %v3613
    %v3870 = vpack.c.b16 %v3614, %v3614
    %v3871 = vpack.c.b16 %v3615, %v3615
    %v3872 = vpack.c.b16 %v3616, %v3616
    %v3873 = vpack.c.b16 %v3617, %v3617
    %v3874 = vpack.c.b16 %v3618, %v3618
    %v3875 = vpack.c.b16 %v3619, %v3619
    %v3876 = vpack.c.b16 %v3620, %v3620
    %v3877 = vpack.c.b16 %v3621, %v3621
    %v3878 = vpack.c.b16 %v3622, %v3622
    %v3879 = vpack.c.b16 %v3623, %v3623
    %v3880 = vpack.c.b16 %v3624, %v3624
    %v3881 = vpack.c.b16 %v3625, %v3625
    %v3882 = vpack.c.b16 %v3626, %v3626
    %v3883 = vpack.c.b16 %v3627, %v3627
    %v3884 = vpack.c.b16 %v3628, %v3628
    %v3885 = vpack.c.b16 %v3629, %v3629
    %v3886 = vpack.c.b16 %v3630, %v3630
    %v3887 = vpack.c.b16 %v3631, %v3631
    %v3888 = vpack.c.b16 %v3632, %v3632
    %v3889 = vpack.c.b16 %v3633, %v3633
    %v3890 = vpack.c.b16 %v3634, %v3634
    %v3891 = vpack.c.b16 %v3635, %v3635
    %v3892 = vpack.c.b16 %v3636, %v3636
    %v3893 = vpack.c.b16 %v3637, %v3637
    %v3894 = vpack.c.b16 %v3638, %v3638
    %v3895 = vpack.c.b16 %v3639, %v3639
    %v3896 = vpack.c.b16 %v3640, %v3640
    %v3897 = vpack.c.b16 %v3641, %v3641
    %v3898 = vpack.c.b16 %v3642, %v3642
    %v3899 = vpack.c.b16 %v3643, %v3643
    %v3900 = vpack.c.b16 %v3644, %v3644
    %v3901 = vpack.c.b16 %v3645, %v3645
    %v3902 = vpack.c.b16 %v3646, %v3646
    %v3903 = vpack.c.b16 %v3647, %v3647
    %v3904 = vpack.c.b16 %v3648, %v3648
    %v3905 = vpack.c.b16 %v3649, %v3649
    %v3906 = vpack.c.b16 %v3650, %v3650
    %v3907 = vpack.c.b16 %v3651, %v3651
    %v3908 = vpack.c.b16 %v3652, %v3652
    %v3909 = vpack.c.b16 %v3653, %v3653
    %v3910 = vpack.c.b16 %v3654, %v3654
    %v3911 = vpack.c.b16 %v3655, %v3655
    %v3912 = vpack.c.b16 %v3656, %v3656
    %v3913 = vpack.c.b16 %v3657, %v3657
    %v3914 = vpack.c.b16 %v3658, %v3658
    %v3915 = vpack.c.b16 %v3659, %v3659
    %v3916 = vpack.c.b16 %v3660, %v3660
    %v3917 = vpack.c.b16 %v3661, %v3661
    %v3918 = vpack.c.b16 %v3662, %v3662
    %v3919 = vpack.c.b16 %v3663, %v3663
    %v3920 = vpack.c.b16 %v3664, %v3664
    %v3921 = vpack.c.b16 %v3665, %v3665
    %v3922 = vpack.c.b16 %v3666, %v3666
    %v3923 = vpack.c.b16 %v3667, %v3667
    %v3924 = vpack.c.b16 %v3668, %v3668
    %v3925 = vpack.c.b16 %v3669, %v3669
    %v3926 = vpack.c.b16 %v3670, %v3670
    %v3927 = vpack.c.b16 %v3671, %v3671
    %v3928 = vpack.c.b16 %v3672, %v3672
    %v3929 = vpack.c.b16 %v3673, %v3673
    %v3930 = vpack.c.b16 %v3674, %v3674
    %v3931 = vpack.c.b16 %v3675, %v3675
    %v3932 = vpack.c.b16 %v3676, %v3676
    %v3933 = vpack.c.b16 %v3677, %v3677
    %v3934 = vpack.c.b16 %v3678, %v3678
    %v3935 = vpack.c.b16 %v3679, %v3679
    %v3936 = vpack.c.b16 %v3680, %v3680
    %v3937 = vpack.c.b16 %v3681, %v3681
    %v3938 = vpack.c.b16 %v3682, %v3682
    %v3939 = vpack.c.b16 %v3683, %v3683
    %v3940 = vpack.c.b16 %v3684, %v3684
    %v3941 = vpack.c.b16 %v3685, %v3685
    %vm4198 = vcmask 257024
    %4199 = vst.msk [vmem:[%s4] sm:$0xf] %vm4198, %v3686
    %4200 = vst.msk [vmem:[%s4 + $0x4] sm:$0xf] %vm4198, %v3687
    %4201 = vst.msk [vmem:[%s4 + $0x8] sm:$0xf] %vm4198, %v3688
    %4202 = vst.msk [vmem:[%s4 + $0xc] sm:$0xf] %vm4198, %v3689
    %4203 = vst.msk [vmem:[%s4 + $0x10] sm:$0xf] %vm4198, %v3690
    %4204 = vst.msk [vmem:[%s4 + $0x14] sm:$0xf] %vm4198, %v3691
    %4205 = vst.msk [vmem:[%s4 + $0x18] sm:$0xf] %vm4198, %v3692
    %4206 = vst.msk [vmem:[%s4 + $0x1c] sm:$0xf] %vm4198, %v3693
    %4207 = vst.msk [vmem:[%s4 + $0x20] sm:$0xf] %vm4198, %v3694
    %4208 = vst.msk [vmem:[%s4 + $0x24] sm:$0xf] %vm4198, %v3695
    %4209 = vst.msk [vmem:[%s4 + $0x28] sm:$0xf] %vm4198, %v3696
    %4210 = vst.msk [vmem:[%s4 + $0x2c] sm:$0xf] %vm4198, %v3697
    %4211 = vst.msk [vmem:[%s4 + $0x30] sm:$0xf] %vm4198, %v3698
    %4212 = vst.msk [vmem:[%s4 + $0x34] sm:$0xf] %vm4198, %v3699
    %4213 = vst.msk [vmem:[%s4 + $0x38] sm:$0xf] %vm4198, %v3700
    %4214 = vst.msk [vmem:[%s4 + $0x3c] sm:$0xf] %vm4198, %v3701
    %4215 = vst.msk [vmem:[%s4 + $0x40] sm:$0xf] %vm4198, %v3702
    %4216 = vst.msk [vmem:[%s4 + $0x44] sm:$0xf] %vm4198, %v3703
    %4217 = vst.msk [vmem:[%s4 + $0x48] sm:$0xf] %vm4198, %v3704
    %4218 = vst.msk [vmem:[%s4 + $0x4c] sm:$0xf] %vm4198, %v3705
    %4219 = vst.msk [vmem:[%s4 + $0x50] sm:$0xf] %vm4198, %v3706
    %4220 = vst.msk [vmem:[%s4 + $0x54] sm:$0xf] %vm4198, %v3707
    %4221 = vst.msk [vmem:[%s4 + $0x58] sm:$0xf] %vm4198, %v3708
    %4222 = vst.msk [vmem:[%s4 + $0x5c] sm:$0xf] %vm4198, %v3709
    %4223 = vst.msk [vmem:[%s4 + $0x60] sm:$0xf] %vm4198, %v3710
    %4224 = vst.msk [vmem:[%s4 + $0x64] sm:$0xf] %vm4198, %v3711
    %4225 = vst.msk [vmem:[%s4 + $0x68] sm:$0xf] %vm4198, %v3712
    %4226 = vst.msk [vmem:[%s4 + $0x6c] sm:$0xf] %vm4198, %v3713
    %4227 = vst.msk [vmem:[%s4 + $0x70] sm:$0xf] %vm4198, %v3714
    %4228 = vst.msk [vmem:[%s4 + $0x74] sm:$0xf] %vm4198, %v3715
    %4229 = vst.msk [vmem:[%s4 + $0x78] sm:$0xf] %vm4198, %v3716
    %4230 = vst.msk [vmem:[%s4 + $0x7c] sm:$0xf] %vm4198, %v3717
    %4231 = vst.msk [vmem:[%s4 + $0x80] sm:$0xf] %vm4198, %v3718
    %4232 = vst.msk [vmem:[%s4 + $0x84] sm:$0xf] %vm4198, %v3719
    %4233 = vst.msk [vmem:[%s4 + $0x88] sm:$0xf] %vm4198, %v3720
    %4234 = vst.msk [vmem:[%s4 + $0x8c] sm:$0xf] %vm4198, %v3721
    %4235 = vst.msk [vmem:[%s4 + $0x90] sm:$0xf] %vm4198, %v3722
    %4236 = vst.msk [vmem:[%s4 + $0x94] sm:$0xf] %vm4198, %v3723
    %4237 = vst.msk [vmem:[%s4 + $0x98] sm:$0xf] %vm4198, %v3724
    %4238 = vst.msk [vmem:[%s4 + $0x9c] sm:$0xf] %vm4198, %v3725
    %4239 = vst.msk [vmem:[%s4 + $0xa0] sm:$0xf] %vm4198, %v3726
    %4240 = vst.msk [vmem:[%s4 + $0xa4] sm:$0xf] %vm4198, %v3727
    %4241 = vst.msk [vmem:[%s4 + $0xa8] sm:$0xf] %vm4198, %v3728
    %4242 = vst.msk [vmem:[%s4 + $0xac] sm:$0xf] %vm4198, %v3729
    %4243 = vst.msk [vmem:[%s4 + $0xb0] sm:$0xf] %vm4198, %v3730
    %4244 = vst.msk [vmem:[%s4 + $0xb4] sm:$0xf] %vm4198, %v3731
    %4245 = vst.msk [vmem:[%s4 + $0xb8] sm:$0xf] %vm4198, %v3732
    %4246 = vst.msk [vmem:[%s4 + $0xbc] sm:$0xf] %vm4198, %v3733
    %4247 = vst.msk [vmem:[%s4 + $0xc0] sm:$0xf] %vm4198, %v3734
    %4248 = vst.msk [vmem:[%s4 + $0xc4] sm:$0xf] %vm4198, %v3735
    %4249 = vst.msk [vmem:[%s4 + $0xc8] sm:$0xf] %vm4198, %v3736
    %4250 = vst.msk [vmem:[%s4 + $0xcc] sm:$0xf] %vm4198, %v3737
    %4251 = vst.msk [vmem:[%s4 + $0xd0] sm:$0xf] %vm4198, %v3738
    %4252 = vst.msk [vmem:[%s4 + $0xd4] sm:$0xf] %vm4198, %v3739
    %4253 = vst.msk [vmem:[%s4 + $0xd8] sm:$0xf] %vm4198, %v3740
    %4254 = vst.msk [vmem:[%s4 + $0xdc] sm:$0xf] %vm4198, %v3741
    %4255 = vst.msk [vmem:[%s4 + $0xe0] sm:$0xf] %vm4198, %v3742
    %4256 = vst.msk [vmem:[%s4 + $0xe4] sm:$0xf] %vm4198, %v3743
    %4257 = vst.msk [vmem:[%s4 + $0xe8] sm:$0xf] %vm4198, %v3744
    %4258 = vst.msk [vmem:[%s4 + $0xec] sm:$0xf] %vm4198, %v3745
    %4259 = vst.msk [vmem:[%s4 + $0xf0] sm:$0xf] %vm4198, %v3746
    %4260 = vst.msk [vmem:[%s4 + $0xf4] sm:$0xf] %vm4198, %v3747
    %4261 = vst.msk [vmem:[%s4 + $0xf8] sm:$0xf] %vm4198, %v3748
    %4262 = vst.msk [vmem:[%s4 + $0xfc] sm:$0xf] %vm4198, %v3749
    %4263 = vst.msk [vmem:[%s4 + $0x100] sm:$0xf] %vm4198, %v3750
    %4264 = vst.msk [vmem:[%s4 + $0x104] sm:$0xf] %vm4198, %v3751
    %4265 = vst.msk [vmem:[%s4 + $0x108] sm:$0xf] %vm4198, %v3752
    %4266 = vst.msk [vmem:[%s4 + $0x10c] sm:$0xf] %vm4198, %v3753
    %4267 = vst.msk [vmem:[%s4 + $0x110] sm:$0xf] %vm4198, %v3754
    %4268 = vst.msk [vmem:[%s4 + $0x114] sm:$0xf] %vm4198, %v3755
    %4269 = vst.msk [vmem:[%s4 + $0x118] sm:$0xf] %vm4198, %v3756
    %4270 = vst.msk [vmem:[%s4 + $0x11c] sm:$0xf] %vm4198, %v3757
    %4271 = vst.msk [vmem:[%s4 + $0x120] sm:$0xf] %vm4198, %v3758
    %4272 = vst.msk [vmem:[%s4 + $0x124] sm:$0xf] %vm4198, %v3759
    %4273 = vst.msk [vmem:[%s4 + $0x128] sm:$0xf] %vm4198, %v3760
    %4274 = vst.msk [vmem:[%s4 + $0x12c] sm:$0xf] %vm4198, %v3761
    %4275 = vst.msk [vmem:[%s4 + $0x130] sm:$0xf] %vm4198, %v3762
    %4276 = vst.msk [vmem:[%s4 + $0x134] sm:$0xf] %vm4198, %v3763
    %4277 = vst.msk [vmem:[%s4 + $0x138] sm:$0xf] %vm4198, %v3764
    %4278 = vst.msk [vmem:[%s4 + $0x13c] sm:$0xf] %vm4198, %v3765
    %4279 = vst.msk [vmem:[%s4 + $0x140] sm:$0xf] %vm4198, %v3766
    %4280 = vst.msk [vmem:[%s4 + $0x144] sm:$0xf] %vm4198, %v3767
    %4281 = vst.msk [vmem:[%s4 + $0x148] sm:$0xf] %vm4198, %v3768
    %4282 = vst.msk [vmem:[%s4 + $0x14c] sm:$0xf] %vm4198, %v3769
    %4283 = vst.msk [vmem:[%s4 + $0x150] sm:$0xf] %vm4198, %v3770
    %4284 = vst.msk [vmem:[%s4 + $0x154] sm:$0xf] %vm4198, %v3771
    %4285 = vst.msk [vmem:[%s4 + $0x158] sm:$0xf] %vm4198, %v3772
    %4286 = vst.msk [vmem:[%s4 + $0x15c] sm:$0xf] %vm4198, %v3773
    %4287 = vst.msk [vmem:[%s4 + $0x160] sm:$0xf] %vm4198, %v3774
    %4288 = vst.msk [vmem:[%s4 + $0x164] sm:$0xf] %vm4198, %v3775
    %4289 = vst.msk [vmem:[%s4 + $0x168] sm:$0xf] %vm4198, %v3776
    %4290 = vst.msk [vmem:[%s4 + $0x16c] sm:$0xf] %vm4198, %v3777
    %4291 = vst.msk [vmem:[%s4 + $0x170] sm:$0xf] %vm4198, %v3778
    %4292 = vst.msk [vmem:[%s4 + $0x174] sm:$0xf] %vm4198, %v3779
    %4293 = vst.msk [vmem:[%s4 + $0x178] sm:$0xf] %vm4198, %v3780
    %4294 = vst.msk [vmem:[%s4 + $0x17c] sm:$0xf] %vm4198, %v3781
    %4295 = vst.msk [vmem:[%s4 + $0x180] sm:$0xf] %vm4198, %v3782
    %4296 = vst.msk [vmem:[%s4 + $0x184] sm:$0xf] %vm4198, %v3783
    %4297 = vst.msk [vmem:[%s4 + $0x188] sm:$0xf] %vm4198, %v3784
    %4298 = vst.msk [vmem:[%s4 + $0x18c] sm:$0xf] %vm4198, %v3785
    %4299 = vst.msk [vmem:[%s4 + $0x190] sm:$0xf] %vm4198, %v3786
    %4300 = vst.msk [vmem:[%s4 + $0x194] sm:$0xf] %vm4198, %v3787
    %4301 = vst.msk [vmem:[%s4 + $0x198] sm:$0xf] %vm4198, %v3788
    %4302 = vst.msk [vmem:[%s4 + $0x19c] sm:$0xf] %vm4198, %v3789
    %4303 = vst.msk [vmem:[%s4 + $0x1a0] sm:$0xf] %vm4198, %v3790
    %4304 = vst.msk [vmem:[%s4 + $0x1a4] sm:$0xf] %vm4198, %v3791
    %4305 = vst.msk [vmem:[%s4 + $0x1a8] sm:$0xf] %vm4198, %v3792
    %4306 = vst.msk [vmem:[%s4 + $0x1ac] sm:$0xf] %vm4198, %v3793
    %4307 = vst.msk [vmem:[%s4 + $0x1b0] sm:$0xf] %vm4198, %v3794
    %4308 = vst.msk [vmem:[%s4 + $0x1b4] sm:$0xf] %vm4198, %v3795
    %4309 = vst.msk [vmem:[%s4 + $0x1b8] sm:$0xf] %vm4198, %v3796
    %4310 = vst.msk [vmem:[%s4 + $0x1bc] sm:$0xf] %vm4198, %v3797
    %4311 = vst.msk [vmem:[%s4 + $0x1c0] sm:$0xf] %vm4198, %v3798
    %4312 = vst.msk [vmem:[%s4 + $0x1c4] sm:$0xf] %vm4198, %v3799
    %4313 = vst.msk [vmem:[%s4 + $0x1c8] sm:$0xf] %vm4198, %v3800
    %4314 = vst.msk [vmem:[%s4 + $0x1cc] sm:$0xf] %vm4198, %v3801
    %4315 = vst.msk [vmem:[%s4 + $0x1d0] sm:$0xf] %vm4198, %v3802
    %4316 = vst.msk [vmem:[%s4 + $0x1d4] sm:$0xf] %vm4198, %v3803
    %4317 = vst.msk [vmem:[%s4 + $0x1d8] sm:$0xf] %vm4198, %v3804
    %4318 = vst.msk [vmem:[%s4 + $0x1dc] sm:$0xf] %vm4198, %v3805
    %4319 = vst.msk [vmem:[%s4 + $0x1e0] sm:$0xf] %vm4198, %v3806
    %4320 = vst.msk [vmem:[%s4 + $0x1e4] sm:$0xf] %vm4198, %v3807
    %4321 = vst.msk [vmem:[%s4 + $0x1e8] sm:$0xf] %vm4198, %v3808
    %4322 = vst.msk [vmem:[%s4 + $0x1ec] sm:$0xf] %vm4198, %v3809
    %4323 = vst.msk [vmem:[%s4 + $0x1f0] sm:$0xf] %vm4198, %v3810
    %4324 = vst.msk [vmem:[%s4 + $0x1f4] sm:$0xf] %vm4198, %v3811
    %4325 = vst.msk [vmem:[%s4 + $0x1f8] sm:$0xf] %vm4198, %v3812
    %4326 = vst.msk [vmem:[%s4 + $0x1fc] sm:$0xf] %vm4198, %v3813
    %4327 = vst.msk [vmem:[%s4 + $0x200] sm:$0xf] %vm4198, %v3814
    %4328 = vst.msk [vmem:[%s4 + $0x204] sm:$0xf] %vm4198, %v3815
    %4329 = vst.msk [vmem:[%s4 + $0x208] sm:$0xf] %vm4198, %v3816
    %4330 = vst.msk [vmem:[%s4 + $0x20c] sm:$0xf] %vm4198, %v3817
    %4331 = vst.msk [vmem:[%s4 + $0x210] sm:$0xf] %vm4198, %v3818
    %4332 = vst.msk [vmem:[%s4 + $0x214] sm:$0xf] %vm4198, %v3819
    %4333 = vst.msk [vmem:[%s4 + $0x218] sm:$0xf] %vm4198, %v3820
    %4334 = vst.msk [vmem:[%s4 + $0x21c] sm:$0xf] %vm4198, %v3821
    %4335 = vst.msk [vmem:[%s4 + $0x220] sm:$0xf] %vm4198, %v3822
    %4336 = vst.msk [vmem:[%s4 + $0x224] sm:$0xf] %vm4198, %v3823
    %4337 = vst.msk [vmem:[%s4 + $0x228] sm:$0xf] %vm4198, %v3824
    %4338 = vst.msk [vmem:[%s4 + $0x22c] sm:$0xf] %vm4198, %v3825
    %4339 = vst.msk [vmem:[%s4 + $0x230] sm:$0xf] %vm4198, %v3826
    %4340 = vst.msk [vmem:[%s4 + $0x234] sm:$0xf] %vm4198, %v3827
    %4341 = vst.msk [vmem:[%s4 + $0x238] sm:$0xf] %vm4198, %v3828
    %4342 = vst.msk [vmem:[%s4 + $0x23c] sm:$0xf] %vm4198, %v3829
    %4343 = vst.msk [vmem:[%s4 + $0x240] sm:$0xf] %vm4198, %v3830
    %4344 = vst.msk [vmem:[%s4 + $0x244] sm:$0xf] %vm4198, %v3831
    %4345 = vst.msk [vmem:[%s4 + $0x248] sm:$0xf] %vm4198, %v3832
    %4346 = vst.msk [vmem:[%s4 + $0x24c] sm:$0xf] %vm4198, %v3833
    %4347 = vst.msk [vmem:[%s4 + $0x250] sm:$0xf] %vm4198, %v3834
    %4348 = vst.msk [vmem:[%s4 + $0x254] sm:$0xf] %vm4198, %v3835
    %4349 = vst.msk [vmem:[%s4 + $0x258] sm:$0xf] %vm4198, %v3836
    %4350 = vst.msk [vmem:[%s4 + $0x25c] sm:$0xf] %vm4198, %v3837
    %4351 = vst.msk [vmem:[%s4 + $0x260] sm:$0xf] %vm4198, %v3838
    %4352 = vst.msk [vmem:[%s4 + $0x264] sm:$0xf] %vm4198, %v3839
    %4353 = vst.msk [vmem:[%s4 + $0x268] sm:$0xf] %vm4198, %v3840
    %4354 = vst.msk [vmem:[%s4 + $0x26c] sm:$0xf] %vm4198, %v3841
    %4355 = vst.msk [vmem:[%s4 + $0x270] sm:$0xf] %vm4198, %v3842
    %4356 = vst.msk [vmem:[%s4 + $0x274] sm:$0xf] %vm4198, %v3843
    %4357 = vst.msk [vmem:[%s4 + $0x278] sm:$0xf] %vm4198, %v3844
    %4358 = vst.msk [vmem:[%s4 + $0x27c] sm:$0xf] %vm4198, %v3845
    %4359 = vst.msk [vmem:[%s4 + $0x280] sm:$0xf] %vm4198, %v3846
    %4360 = vst.msk [vmem:[%s4 + $0x284] sm:$0xf] %vm4198, %v3847
    %4361 = vst.msk [vmem:[%s4 + $0x288] sm:$0xf] %vm4198, %v3848
    %4362 = vst.msk [vmem:[%s4 + $0x28c] sm:$0xf] %vm4198, %v3849
    %4363 = vst.msk [vmem:[%s4 + $0x290] sm:$0xf] %vm4198, %v3850
    %4364 = vst.msk [vmem:[%s4 + $0x294] sm:$0xf] %vm4198, %v3851
    %4365 = vst.msk [vmem:[%s4 + $0x298] sm:$0xf] %vm4198, %v3852
    %4366 = vst.msk [vmem:[%s4 + $0x29c] sm:$0xf] %vm4198, %v3853
    %4367 = vst.msk [vmem:[%s4 + $0x2a0] sm:$0xf] %vm4198, %v3854
    %4368 = vst.msk [vmem:[%s4 + $0x2a4] sm:$0xf] %vm4198, %v3855
    %4369 = vst.msk [vmem:[%s4 + $0x2a8] sm:$0xf] %vm4198, %v3856
    %4370 = vst.msk [vmem:[%s4 + $0x2ac] sm:$0xf] %vm4198, %v3857
    %4371 = vst.msk [vmem:[%s4 + $0x2b0] sm:$0xf] %vm4198, %v3858
    %4372 = vst.msk [vmem:[%s4 + $0x2b4] sm:$0xf] %vm4198, %v3859
    %4373 = vst.msk [vmem:[%s4 + $0x2b8] sm:$0xf] %vm4198, %v3860
    %4374 = vst.msk [vmem:[%s4 + $0x2bc] sm:$0xf] %vm4198, %v3861
    %4375 = vst.msk [vmem:[%s4 + $0x2c0] sm:$0xf] %vm4198, %v3862
    %4376 = vst.msk [vmem:[%s4 + $0x2c4] sm:$0xf] %vm4198, %v3863
    %4377 = vst.msk [vmem:[%s4 + $0x2c8] sm:$0xf] %vm4198, %v3864
    %4378 = vst.msk [vmem:[%s4 + $0x2cc] sm:$0xf] %vm4198, %v3865
    %4379 = vst.msk [vmem:[%s4 + $0x2d0] sm:$0xf] %vm4198, %v3866
    %4380 = vst.msk [vmem:[%s4 + $0x2d4] sm:$0xf] %vm4198, %v3867
    %4381 = vst.msk [vmem:[%s4 + $0x2d8] sm:$0xf] %vm4198, %v3868
    %4382 = vst.msk [vmem:[%s4 + $0x2dc] sm:$0xf] %vm4198, %v3869
    %4383 = vst.msk [vmem:[%s4 + $0x2e0] sm:$0xf] %vm4198, %v3870
    %4384 = vst.msk [vmem:[%s4 + $0x2e4] sm:$0xf] %vm4198, %v3871
    %4385 = vst.msk [vmem:[%s4 + $0x2e8] sm:$0xf] %vm4198, %v3872
    %4386 = vst.msk [vmem:[%s4 + $0x2ec] sm:$0xf] %vm4198, %v3873
    %4387 = vst.msk [vmem:[%s4 + $0x2f0] sm:$0xf] %vm4198, %v3874
    %4388 = vst.msk [vmem:[%s4 + $0x2f4] sm:$0xf] %vm4198, %v3875
    %4389 = vst.msk [vmem:[%s4 + $0x2f8] sm:$0xf] %vm4198, %v3876
    %4390 = vst.msk [vmem:[%s4 + $0x2fc] sm:$0xf] %vm4198, %v3877
    %4391 = vst.msk [vmem:[%s4 + $0x300] sm:$0xf] %vm4198, %v3878
    %4392 = vst.msk [vmem:[%s4 + $0x304] sm:$0xf] %vm4198, %v3879
    %4393 = vst.msk [vmem:[%s4 + $0x308] sm:$0xf] %vm4198, %v3880
    %4394 = vst.msk [vmem:[%s4 + $0x30c] sm:$0xf] %vm4198, %v3881
    %4395 = vst.msk [vmem:[%s4 + $0x310] sm:$0xf] %vm4198, %v3882
    %4396 = vst.msk [vmem:[%s4 + $0x314] sm:$0xf] %vm4198, %v3883
    %4397 = vst.msk [vmem:[%s4 + $0x318] sm:$0xf] %vm4198, %v3884
    %4398 = vst.msk [vmem:[%s4 + $0x31c] sm:$0xf] %vm4198, %v3885
    %4399 = vst.msk [vmem:[%s4 + $0x320] sm:$0xf] %vm4198, %v3886
    %4400 = vst.msk [vmem:[%s4 + $0x324] sm:$0xf] %vm4198, %v3887
    %4401 = vst.msk [vmem:[%s4 + $0x328] sm:$0xf] %vm4198, %v3888
    %4402 = vst.msk [vmem:[%s4 + $0x32c] sm:$0xf] %vm4198, %v3889
    %4403 = vst.msk [vmem:[%s4 + $0x330] sm:$0xf] %vm4198, %v3890
    %4404 = vst.msk [vmem:[%s4 + $0x334] sm:$0xf] %vm4198, %v3891
    %4405 = vst.msk [vmem:[%s4 + $0x338] sm:$0xf] %vm4198, %v3892
    %4406 = vst.msk [vmem:[%s4 + $0x33c] sm:$0xf] %vm4198, %v3893
    %4407 = vst.msk [vmem:[%s4 + $0x340] sm:$0xf] %vm4198, %v3894
    %4408 = vst.msk [vmem:[%s4 + $0x344] sm:$0xf] %vm4198, %v3895
    %4409 = vst.msk [vmem:[%s4 + $0x348] sm:$0xf] %vm4198, %v3896
    %4410 = vst.msk [vmem:[%s4 + $0x34c] sm:$0xf] %vm4198, %v3897
    %4411 = vst.msk [vmem:[%s4 + $0x350] sm:$0xf] %vm4198, %v3898
    %4412 = vst.msk [vmem:[%s4 + $0x354] sm:$0xf] %vm4198, %v3899
    %4413 = vst.msk [vmem:[%s4 + $0x358] sm:$0xf] %vm4198, %v3900
    %4414 = vst.msk [vmem:[%s4 + $0x35c] sm:$0xf] %vm4198, %v3901
    %4415 = vst.msk [vmem:[%s4 + $0x360] sm:$0xf] %vm4198, %v3902
    %4416 = vst.msk [vmem:[%s4 + $0x364] sm:$0xf] %vm4198, %v3903
    %4417 = vst.msk [vmem:[%s4 + $0x368] sm:$0xf] %vm4198, %v3904
    %4418 = vst.msk [vmem:[%s4 + $0x36c] sm:$0xf] %vm4198, %v3905
    %4419 = vst.msk [vmem:[%s4 + $0x370] sm:$0xf] %vm4198, %v3906
    %4420 = vst.msk [vmem:[%s4 + $0x374] sm:$0xf] %vm4198, %v3907
    %4421 = vst.msk [vmem:[%s4 + $0x378] sm:$0xf] %vm4198, %v3908
    %4422 = vst.msk [vmem:[%s4 + $0x37c] sm:$0xf] %vm4198, %v3909
    %4423 = vst.msk [vmem:[%s4 + $0x380] sm:$0xf] %vm4198, %v3910
    %4424 = vst.msk [vmem:[%s4 + $0x384] sm:$0xf] %vm4198, %v3911
    %4425 = vst.msk [vmem:[%s4 + $0x388] sm:$0xf] %vm4198, %v3912
    %4426 = vst.msk [vmem:[%s4 + $0x38c] sm:$0xf] %vm4198, %v3913
    %4427 = vst.msk [vmem:[%s4 + $0x390] sm:$0xf] %vm4198, %v3914
    %4428 = vst.msk [vmem:[%s4 + $0x394] sm:$0xf] %vm4198, %v3915
    %4429 = vst.msk [vmem:[%s4 + $0x398] sm:$0xf] %vm4198, %v3916
    %4430 = vst.msk [vmem:[%s4 + $0x39c] sm:$0xf] %vm4198, %v3917
    %4431 = vst.msk [vmem:[%s4 + $0x3a0] sm:$0xf] %vm4198, %v3918
    %4432 = vst.msk [vmem:[%s4 + $0x3a4] sm:$0xf] %vm4198, %v3919
    %4433 = vst.msk [vmem:[%s4 + $0x3a8] sm:$0xf] %vm4198, %v3920
    %4434 = vst.msk [vmem:[%s4 + $0x3ac] sm:$0xf] %vm4198, %v3921
    %4435 = vst.msk [vmem:[%s4 + $0x3b0] sm:$0xf] %vm4198, %v3922
    %4436 = vst.msk [vmem:[%s4 + $0x3b4] sm:$0xf] %vm4198, %v3923
    %4437 = vst.msk [vmem:[%s4 + $0x3b8] sm:$0xf] %vm4198, %v3924
    %4438 = vst.msk [vmem:[%s4 + $0x3bc] sm:$0xf] %vm4198, %v3925
    %4439 = vst.msk [vmem:[%s4 + $0x3c0] sm:$0xf] %vm4198, %v3926
    %4440 = vst.msk [vmem:[%s4 + $0x3c4] sm:$0xf] %vm4198, %v3927
    %4441 = vst.msk [vmem:[%s4 + $0x3c8] sm:$0xf] %vm4198, %v3928
    %4442 = vst.msk [vmem:[%s4 + $0x3cc] sm:$0xf] %vm4198, %v3929
    %4443 = vst.msk [vmem:[%s4 + $0x3d0] sm:$0xf] %vm4198, %v3930
    %4444 = vst.msk [vmem:[%s4 + $0x3d4] sm:$0xf] %vm4198, %v3931
    %4445 = vst.msk [vmem:[%s4 + $0x3d8] sm:$0xf] %vm4198, %v3932
    %4446 = vst.msk [vmem:[%s4 + $0x3dc] sm:$0xf] %vm4198, %v3933
    %4447 = vst.msk [vmem:[%s4 + $0x3e0] sm:$0xf] %vm4198, %v3934
    %4448 = vst.msk [vmem:[%s4 + $0x3e4] sm:$0xf] %vm4198, %v3935
    %4449 = vst.msk [vmem:[%s4 + $0x3e8] sm:$0xf] %vm4198, %v3936
    %4450 = vst.msk [vmem:[%s4 + $0x3ec] sm:$0xf] %vm4198, %v3937
    %4451 = vst.msk [vmem:[%s4 + $0x3f0] sm:$0xf] %vm4198, %v3938
    %4452 = vst.msk [vmem:[%s4 + $0x3f4] sm:$0xf] %vm4198, %v3939
    %4453 = vst.msk [vmem:[%s4 + $0x3f8] sm:$0xf] %vm4198, %v3940
    %4454 = vst.msk [vmem:[%s4 + $0x3fc] sm:$0xf] %vm4198, %v3941
    // Predicated region
    $region22: #{simple_cnn_forward.7} parent=1 // pred_check
      _
    $region23: #{simple_cnn_forward.7} parent=1 // pred_check_branch
      %4456 = sbr.rel (0) target = $region25
    $region24: #{simple_cnn_forward.7} parent=1 // pred_region
      _
    $region25: #{simple_cnn_forward.7} parent=1 // pred_fallthru
      _
    // Predicated region
    $region26: #{simple_cnn_forward.7} parent=1 // pred_check
      _
    $region27: #{simple_cnn_forward.7} parent=1 // pred_check_branch
      %4458 = sbr.rel (0) target = $region29
    $region28: #{simple_cnn_forward.7} parent=1 // pred_region
      _
    $region29: #{simple_cnn_forward.7} parent=1 // pred_fallthru
      _
    %4459 = vsyncpa [#allocation3], 1

// kernel: simple_cnn_forward.10
$region0: #{simple_cnn_forward.10}
  #allocation0 [shape = 'u32[]', space=smem, size = 0x4, offset = 0x4, fixed_abs, tag = 'smem constant byte address 0x4 - core index']
  #allocation1 [shape = 'u32[144,128]{1,0:T(1,128)}', space=vmem, size = 0x12000, scoped, tag = 'internal scratch']
  %s0 = inlined_call_operand.vmem [shape: bf16[16,2,8,128], index: 0, kind: input, shape index: {}]
  %s1 = inlined_call_operand.vmem [shape: bf16[16,8,64], index: 1, kind: output, shape index: {}]
  %s2 = sld [smem:[#allocation0]]
  $region37: #{simple_cnn_forward.10} parent=0
    _
  %s4 = ssub.s32 1, %s2
  %s5 = scalar_select 0, %s4, %s2
  loop: start=0, step=1, limit=4
  $region2: #{simple_cnn_forward.10} parent=0 // loop_pre_header
    _
  $region3: #{simple_cnn_forward.10} parent=0 // loop_header
    %s7 = sphi 0, %s11
    %p8 = scmp.ge.s32.totalorder %s7, 4
    %s17 = sphi 0, %s19
    %s20 = sphi 0, %s17
    %s21 = sphi 0, %s20
    %s37 = sphi 0, %s21
    %s43 = sphi 0, %s45
    %s46 = sphi 0, %s43
    %s47 = sphi 0, %s46
    %s63 = sphi 0, %s47
  $region4: #{simple_cnn_forward.10} parent=0 // loop_header_branch
    %10 = sbr.rel (%p8) target = $region8
  $region5: #{simple_cnn_forward.10} parent=0 // loop_body
    %s12 = ssub.s32 %s7, 1
    %s13 = ssub.s32 %s7, 2
    %s14 = sadd.s32 %s7, 1
    %s15 = ssub.s32 %s7, %s14
    %p16 = scmp.eq.s32.totalorder %s15, 0
    %s18 = sadd.s32 %s17, 1
    %s19 = scalar_select %p16, %s17, %s18
    %p22 = pneg %p16
    %p23 = scmp.eq.s32.totalorder %s7, 1
    %p24 = por %p22, %p23
    %p25 = scmp.ne.s32.totalorder %s17, %s20
    %p26 = scmp.eq.s32.totalorder %s7, 0
    %p27 = por %p25, %p26
    %p28 = scmp.ne.s32.totalorder %s17, %s20
    %p29 = scmp.eq.s32.totalorder %s12, 1
    %p30 = por %p28, %p29
    %p31 = scmp.ne.s32.totalorder %s20, %s21
    %p32 = scmp.eq.s32.totalorder %s12, 0
    %p33 = por %p31, %p32
    %p34 = scmp.ne.s32.totalorder %s20, %s21
    %p35 = scmp.eq.s32.totalorder %s13, 1
    %p36 = por %p34, %p35
    %p38 = scmp.ne.s32.totalorder %s21, %s37
    %p39 = scmp.eq.s32.totalorder %s13, 0
    %p40 = por %p38, %p39
    %s41 = ssub.s32 %s7, %s14
    %p42 = scmp.eq.s32.totalorder %s41, 0
    %s44 = sadd.s32 %s43, 1
    %s45 = scalar_select %p42, %s43, %s44
    %p48 = pneg %p42
    %p49 = scmp.eq.s32.totalorder %s7, 1
    %p50 = por %p48, %p49
    %p51 = scmp.ne.s32.totalorder %s43, %s46
    %p52 = scmp.eq.s32.totalorder %s7, 0
    %p53 = por %p51, %p52
    %p54 = scmp.ne.s32.totalorder %s43, %s46
    %p55 = scmp.eq.s32.totalorder %s12, 1
    %p56 = por %p54, %p55
    %p57 = scmp.ne.s32.totalorder %s46, %s47
    %p58 = scmp.eq.s32.totalorder %s12, 0
    %p59 = por %p57, %p58
    %p60 = scmp.ne.s32.totalorder %s46, %s47
    %p61 = scmp.eq.s32.totalorder %s13, 1
    %p62 = por %p60, %p61
    %p64 = scmp.ne.s32.totalorder %s47, %s63
    %p65 = scmp.eq.s32.totalorder %s13, 0
    %p66 = por %p64, %p65
    %p67 = scmp.le.s32.totalorder 1, %s7
    %p68 = scmp.lt.s32.totalorder %s7, 3
    %p69 = pnand %p67, %p68
    %p70 = pneg %p69
    // Predicated region
    $region9: #{simple_cnn_forward.10} parent=5 // pred_check
      _
    $region10: #{simple_cnn_forward.10} parent=5 // pred_check_branch
      %72 = sbr.rel (%p69) target = $region12
    $region11: #{simple_cnn_forward.10} parent=5 // pred_region
      %s73 = ssub.s32 %s7, 1
    $region12: #{simple_cnn_forward.10} parent=5 // pred_fallthru
      _
    %p74 = scmp.lt.s32.totalorder %s7, 2
    // Predicated region
    $region13: #{simple_cnn_forward.10} parent=5 // pred_check
      %p75 = pneg %p74
    $region14: #{simple_cnn_forward.10} parent=5 // pred_check_branch
      %77 = sbr.rel (%p75) target = $region16
    $region15: #{simple_cnn_forward.10} parent=5 // pred_region
      // Predicated region
      $region17: #{simple_cnn_forward.10} parent=15 // pred_check
        %p78 = pneg %p27
      $region18: #{simple_cnn_forward.10} parent=15 // pred_check_branch
        %80 = sbr.rel (%p78) target = $region20
      $region19: #{simple_cnn_forward.10} parent=15 // pred_region
        %s81 = smul.u32 8, %s7
        %p82 = scmp.lt.s32.totalorder %s81, 15
        %s83 = scalar_select %p82, %s81, 15
        %s84 = smul.addr %s83, 2
        %s85 = smul.addr %s84, 4
        %s86 = scalar_lea.vmem %s0, %s85
        %s87 = smul.u32 8, %s7
      $region20: #{simple_cnn_forward.10} parent=15 // pred_fallthru
        _
    $region16: #{simple_cnn_forward.10} parent=5 // pred_fallthru
      _
    %p88 = scmp.le.s32.totalorder 1, %s7
    %p89 = scmp.lt.s32.totalorder %s7, 3
    %p90 = pnand %p88, %p89
    %p91 = pneg %p90
    // Predicated region
    $region21: #{simple_cnn_forward.10} parent=5 // pred_check
      _
    $region22: #{simple_cnn_forward.10} parent=5 // pred_check_branch
      %93 = sbr.rel (%p90) target = $region24
    $region23: #{simple_cnn_forward.10} parent=5 // pred_region
      %s94 = ssub.s32 %s7, 1
      %s95 = smul.u32 8, %s12
      %p96 = scmp.lt.s32.totalorder %s95, 15
      %s97 = scalar_select %p96, %s95, 15
      %s98 = smul.addr %s97, 2
      %s99 = smul.addr %s98, 4
      %s100 = scalar_lea.vmem %s0, %s99
      %p101 = pneg %p33
      %p102 = pneg %p30
      %p103 = pneg %p59
      %p104 = pneg %p56
      %s105 = smul.u32 8, %s12
      %p106 = scmp.lt.s32.totalorder %s105, 15
      %s107 = scalar_select %p106, %s105, 15
      %s108 = smul.addr %s107, 4
      %s109 = scalar_lea.vmem %s1, %s108
      %s110 = smul.u32 8, %s12
      %p111 = scmp.lt.s32.totalorder %s110, 15
      %s112 = scalar_select %p111, %s110, 15
      %s113 = smul.addr %s112, 2
      %s114 = smul.addr %s113, 4
      %s115 = scalar_lea.vmem %s0, %s114
      %s116 = smul.u32 8, %s12
      %s117 = smul.u32 8, %s12
      %p118 = scmp.lt.s32.totalorder %s117, 15
      %s119 = scalar_select %p118, %s117, 15
      %s120 = smul.addr %s119, 4
      %s121 = scalar_lea.vmem %s1, %s120
      %s122 = smul.u32 8, %s12
      %v123 = vld [vmem:[%s115] sm:$0xf]
      %v124 = vld [vmem:[%s115 + $0x4] sm:$0xf]
      %v125 = vld [vmem:[%s115 + $0x8] sm:$0xf]
      %v126 = vld [vmem:[%s115 + $0xc] sm:$0xf]
      %v127 = vld [vmem:[%s115 + $0x10] sm:$0xf]
      %v128 = vld [vmem:[%s115 + $0x14] sm:$0xf]
      %v129 = vld [vmem:[%s115 + $0x18] sm:$0xf]
      %v130 = vld [vmem:[%s115 + $0x1c] sm:$0xf]
      %v131 = vld [vmem:[%s115 + $0x20] sm:$0xf]
      %v132 = vld [vmem:[%s115 + $0x24] sm:$0xf]
      %v133 = vld [vmem:[%s115 + $0x28] sm:$0xf]
      %v134 = vld [vmem:[%s115 + $0x2c] sm:$0xf]
      %v135 = vld [vmem:[%s115 + $0x30] sm:$0xf]
      %v136 = vld [vmem:[%s115 + $0x34] sm:$0xf]
      %v137 = vld [vmem:[%s115 + $0x38] sm:$0xf]
      %v138 = vld [vmem:[%s115 + $0x3c] sm:$0xf]
      %v139 = vmax.bf16 %v123, %v124
      %v140 = vmax.bf16 %v125, %v126
      %v141 = vmax.bf16 %v127, %v128
      %v142 = vmax.bf16 %v129, %v130
      %v143 = vmax.bf16 %v131, %v132
      %v144 = vmax.bf16 %v133, %v134
      %v145 = vmax.bf16 %v135, %v136
      %v146 = vmax.bf16 %v137, %v138
      %155 = vrot.lane.b32.xlu0 %v139, 64
      %v156 = vpop.permute.xlu0 %155
      %157 = vrot.lane.b32.xlu0 %v140, 64
      %v158 = vpop.permute.xlu0 %157
      %159 = vrot.lane.b32.xlu0 %v141, 64
      %v160 = vpop.permute.xlu0 %159
      %161 = vrot.lane.b32.xlu0 %v142, 64
      %v162 = vpop.permute.xlu0 %161
      %163 = vrot.lane.b32.xlu0 %v143, 64
      %v164 = vpop.permute.xlu0 %163
      %165 = vrot.lane.b32.xlu0 %v144, 64
      %v166 = vpop.permute.xlu0 %165
      %167 = vrot.lane.b32.xlu0 %v145, 64
      %v168 = vpop.permute.xlu0 %167
      %169 = vrot.lane.b32.xlu0 %v146, 64
      %v170 = vpop.permute.xlu0 %169
      %v179 = vmax.bf16 %v139, %v156
      %v180 = vmax.bf16 %v140, %v158
      %v181 = vmax.bf16 %v141, %v160
      %v182 = vmax.bf16 %v142, %v162
      %v183 = vmax.bf16 %v143, %v164
      %v184 = vmax.bf16 %v144, %v166
      %v185 = vmax.bf16 %v145, %v168
      %v186 = vmax.bf16 %v146, %v170
      %vm187 = vcmask 519168
      %188 = vst.msk [vmem:[%s121] sm:$0xf] %vm187, %v179
      %189 = vst.msk [vmem:[%s121 + $0x4] sm:$0xf] %vm187, %v180
      %190 = vst.msk [vmem:[%s121 + $0x8] sm:$0xf] %vm187, %v181
      %191 = vst.msk [vmem:[%s121 + $0xc] sm:$0xf] %vm187, %v182
      %192 = vst.msk [vmem:[%s121 + $0x10] sm:$0xf] %vm187, %v183
      %193 = vst.msk [vmem:[%s121 + $0x14] sm:$0xf] %vm187, %v184
      %194 = vst.msk [vmem:[%s121 + $0x18] sm:$0xf] %vm187, %v185
      %195 = vst.msk [vmem:[%s121 + $0x1c] sm:$0xf] %vm187, %v186
      %s196 = smul.u32 8, %s12
      %p197 = scmp.lt.s32.totalorder %s196, 15
      %s198 = scalar_select %p197, %s196, 15
      %s199 = smul.addr %s198, 4
      %s200 = scalar_lea.vmem %s1, %s199
      // Predicated region
      $region25: #{simple_cnn_forward.10} parent=23 // pred_check
        %p201 = pneg %p56
      $region26: #{simple_cnn_forward.10} parent=23 // pred_check_branch
        %203 = sbr.rel (%p201) target = $region28
      $region27: #{simple_cnn_forward.10} parent=23 // pred_region
        %s204 = smul.u32 8, %s12
      $region28: #{simple_cnn_forward.10} parent=23 // pred_fallthru
        _
    $region24: #{simple_cnn_forward.10} parent=5 // pred_fallthru
      _
    %p205 = scmp.le.s32.totalorder 2, %s7
    // Predicated region
    $region29: #{simple_cnn_forward.10} parent=5 // pred_check
      %p206 = pneg %p205
    $region30: #{simple_cnn_forward.10} parent=5 // pred_check_branch
      %208 = sbr.rel (%p206) target = $region32
    $region31: #{simple_cnn_forward.10} parent=5 // pred_region
      %s209 = ssub.s32 %s7, 2
      // Predicated region
      $region33: #{simple_cnn_forward.10} parent=31 // pred_check
        %p210 = pneg %p62
      $region34: #{simple_cnn_forward.10} parent=31 // pred_check_branch
        %212 = sbr.rel (%p210) target = $region36
      $region35: #{simple_cnn_forward.10} parent=31 // pred_region
        %s213 = smul.u32 8, %s13
        %p214 = scmp.lt.s32.totalorder %s213, 15
        %s215 = scalar_select %p214, %s213, 15
        %s216 = smul.addr %s215, 4
        %s217 = scalar_lea.vmem %s1, %s216
      $region36: #{simple_cnn_forward.10} parent=31 // pred_fallthru
        _
    $region32: #{simple_cnn_forward.10} parent=5 // pred_fallthru
      _
  $region6: #{simple_cnn_forward.10} parent=0 // loop_footer
    %s11 = sadd.s32 1, %s7
  $region7: #{simple_cnn_forward.10} parent=0 // loop_footer_branch
    %6 = sbr.rel target = $region3
  $region8: #{simple_cnn_forward.10} parent=0 // loop_exit
    _

// kernel: simple_cnn_forward.9
$region0: #{simple_cnn_forward.9}
  #allocation0 [shape = 'u32[]', space=smem, size = 0x4, offset = 0x4, fixed_abs, tag = 'smem constant byte address 0x4 - core index']
  #allocation1 [shape = 'u32[144,128]{1,0:T(1,128)}', space=vmem, size = 0x12000, scoped, tag = 'internal scratch']
  %s0 = inlined_call_operand.vmem [shape: bf16[512,288], index: 0, kind: input, shape index: {}]
  %s1 = inlined_call_operand.vmem [shape: bf16[288,64], index: 1, kind: input, shape index: {}]
  %s2 = inlined_call_operand.vmem [shape: f32[1,64], index: 2, kind: input, shape index: {}]
  %s3 = inlined_call_operand.vmem [shape: f32[1,64], index: 3, kind: input, shape index: {}]
  %s4 = inlined_call_operand.vmem [shape: bf16[512,64], index: 4, kind: output, shape index: {}]
  %s5 = sld [smem:[#allocation0]]
  $region26: #{simple_cnn_forward.9} parent=0
    _
  %s7 = ssub.s32 1, %s5
  %s8 = scalar_select 0, %s7, %s5
  // Predicated region
  $region2: #{simple_cnn_forward.9} parent=0 // pred_check
    _
  $region3: #{simple_cnn_forward.9} parent=0 // pred_check_branch
    %10 = sbr.rel (0) target = $region5
  $region4: #{simple_cnn_forward.9} parent=0 // pred_region
    _
  $region5: #{simple_cnn_forward.9} parent=0 // pred_fallthru
    _
  // Predicated region
  $region6: #{simple_cnn_forward.9} parent=0 // pred_check
    _
  $region7: #{simple_cnn_forward.9} parent=0 // pred_check_branch
    %12 = sbr.rel (0) target = $region9
  $region8: #{simple_cnn_forward.9} parent=0 // pred_region
    _
  $region9: #{simple_cnn_forward.9} parent=0 // pred_fallthru
    _
  // Predicated region
  $region10: #{simple_cnn_forward.9} parent=0 // pred_check
    _
  $region11: #{simple_cnn_forward.9} parent=0 // pred_check_branch
    %14 = sbr.rel (0) target = $region13
  $region12: #{simple_cnn_forward.9} parent=0 // pred_region
    _
  $region13: #{simple_cnn_forward.9} parent=0 // pred_fallthru
    _
  // Predicated region
  $region14: #{simple_cnn_forward.9} parent=0 // pred_check
    _
  $region15: #{simple_cnn_forward.9} parent=0 // pred_check_branch
    %16 = sbr.rel (0) target = $region17
  $region16: #{simple_cnn_forward.9} parent=0 // pred_region
    _
  $region17: #{simple_cnn_forward.9} parent=0 // pred_fallthru
    _
  %v18 = vld [vmem:[%s0] sm:$0xff]
  %v19 = vld [vmem:[%s0 + $0x8] sm:$0xf]
  %v20 = vld [vmem:[%s0 + $0xc] sm:$0xff]
  %v21 = vld [vmem:[%s0 + $0x14] sm:$0xf]
  %v22 = vld [vmem:[%s0 + $0x18] sm:$0xff]
  %v23 = vld [vmem:[%s0 + $0x20] sm:$0xf]
  %v24 = vld [vmem:[%s0 + $0x24] sm:$0xff]
  %v25 = vld [vmem:[%s0 + $0x2c] sm:$0xf]
  %v26 = vld [vmem:[%s0 + $0x30] sm:$0xff]
  %v27 = vld [vmem:[%s0 + $0x38] sm:$0xf]
  %v28 = vld [vmem:[%s0 + $0x3c] sm:$0xff]
  %v29 = vld [vmem:[%s0 + $0x44] sm:$0xf]
  %v30 = vld [vmem:[%s0 + $0x48] sm:$0xff]
  %v31 = vld [vmem:[%s0 + $0x50] sm:$0xf]
  %v32 = vld [vmem:[%s0 + $0x54] sm:$0xff]
  %v33 = vld [vmem:[%s0 + $0x5c] sm:$0xf]
  %v34 = vld [vmem:[%s0 + $0x60] sm:$0xff]
  %v35 = vld [vmem:[%s0 + $0x68] sm:$0xf]
  %v36 = vld [vmem:[%s0 + $0x6c] sm:$0xff]
  %v37 = vld [vmem:[%s0 + $0x74] sm:$0xf]
  %v38 = vld [vmem:[%s0 + $0x78] sm:$0xff]
  %v39 = vld [vmem:[%s0 + $0x80] sm:$0xf]
  %v40 = vld [vmem:[%s0 + $0x84] sm:$0xff]
  %v41 = vld [vmem:[%s0 + $0x8c] sm:$0xf]
  %v42 = vld [vmem:[%s0 + $0x90] sm:$0xff]
  %v43 = vld [vmem:[%s0 + $0x98] sm:$0xf]
  %v44 = vld [vmem:[%s0 + $0x9c] sm:$0xff]
  %v45 = vld [vmem:[%s0 + $0xa4] sm:$0xf]
  %v46 = vld [vmem:[%s0 + $0xa8] sm:$0xff]
  %v47 = vld [vmem:[%s0 + $0xb0] sm:$0xf]
  %v48 = vld [vmem:[%s0 + $0xb4] sm:$0xff]
  %v49 = vld [vmem:[%s0 + $0xbc] sm:$0xf]
  %v50 = vld [vmem:[%s0 + $0xc0] sm:$0xff]
  %v51 = vld [vmem:[%s0 + $0xc8] sm:$0xf]
  %v52 = vld [vmem:[%s0 + $0xcc] sm:$0xff]
  %v53 = vld [vmem:[%s0 + $0xd4] sm:$0xf]
  %v54 = vld [vmem:[%s0 + $0xd8] sm:$0xff]
  %v55 = vld [vmem:[%s0 + $0xe0] sm:$0xf]
  %v56 = vld [vmem:[%s0 + $0xe4] sm:$0xff]
  %v57 = vld [vmem:[%s0 + $0xec] sm:$0xf]
  %v58 = vld [vmem:[%s0 + $0xf0] sm:$0xff]
  %v59 = vld [vmem:[%s0 + $0xf8] sm:$0xf]
  %v60 = vld [vmem:[%s0 + $0xfc] sm:$0xff]
  %v61 = vld [vmem:[%s0 + $0x104] sm:$0xf]
  %v62 = vld [vmem:[%s0 + $0x108] sm:$0xff]
  %v63 = vld [vmem:[%s0 + $0x110] sm:$0xf]
  %v64 = vld [vmem:[%s0 + $0x114] sm:$0xff]
  %v65 = vld [vmem:[%s0 + $0x11c] sm:$0xf]
  %v66 = vld [vmem:[%s0 + $0x120] sm:$0xff]
  %v67 = vld [vmem:[%s0 + $0x128] sm:$0xf]
  %v68 = vld [vmem:[%s0 + $0x12c] sm:$0xff]
  %v69 = vld [vmem:[%s0 + $0x134] sm:$0xf]
  %v70 = vld [vmem:[%s0 + $0x138] sm:$0xff]
  %v71 = vld [vmem:[%s0 + $0x140] sm:$0xf]
  %v72 = vld [vmem:[%s0 + $0x144] sm:$0xff]
  %v73 = vld [vmem:[%s0 + $0x14c] sm:$0xf]
  %v74 = vld [vmem:[%s0 + $0x150] sm:$0xff]
  %v75 = vld [vmem:[%s0 + $0x158] sm:$0xf]
  %v76 = vld [vmem:[%s0 + $0x15c] sm:$0xff]
  %v77 = vld [vmem:[%s0 + $0x164] sm:$0xf]
  %v78 = vld [vmem:[%s0 + $0x168] sm:$0xff]
  %v79 = vld [vmem:[%s0 + $0x170] sm:$0xf]
  %v80 = vld [vmem:[%s0 + $0x174] sm:$0xff]
  %v81 = vld [vmem:[%s0 + $0x17c] sm:$0xf]
  %v82 = vld [vmem:[%s0 + $0x180] sm:$0xff]
  %v83 = vld [vmem:[%s0 + $0x188] sm:$0xf]
  %v84 = vld [vmem:[%s0 + $0x18c] sm:$0xff]
  %v85 = vld [vmem:[%s0 + $0x194] sm:$0xf]
  %v86 = vld [vmem:[%s0 + $0x198] sm:$0xff]
  %v87 = vld [vmem:[%s0 + $0x1a0] sm:$0xf]
  %v88 = vld [vmem:[%s0 + $0x1a4] sm:$0xff]
  %v89 = vld [vmem:[%s0 + $0x1ac] sm:$0xf]
  %v90 = vld [vmem:[%s0 + $0x1b0] sm:$0xff]
  %v91 = vld [vmem:[%s0 + $0x1b8] sm:$0xf]
  %v92 = vld [vmem:[%s0 + $0x1bc] sm:$0xff]
  %v93 = vld [vmem:[%s0 + $0x1c4] sm:$0xf]
  %v94 = vld [vmem:[%s0 + $0x1c8] sm:$0xff]
  %v95 = vld [vmem:[%s0 + $0x1d0] sm:$0xf]
  %v96 = vld [vmem:[%s0 + $0x1d4] sm:$0xff]
  %v97 = vld [vmem:[%s0 + $0x1dc] sm:$0xf]
  %v98 = vld [vmem:[%s0 + $0x1e0] sm:$0xff]
  %v99 = vld [vmem:[%s0 + $0x1e8] sm:$0xf]
  %v100 = vld [vmem:[%s0 + $0x1ec] sm:$0xff]
  %v101 = vld [vmem:[%s0 + $0x1f4] sm:$0xf]
  %v102 = vld [vmem:[%s0 + $0x1f8] sm:$0xff]
  %v103 = vld [vmem:[%s0 + $0x200] sm:$0xf]
  %v104 = vld [vmem:[%s0 + $0x204] sm:$0xff]
  %v105 = vld [vmem:[%s0 + $0x20c] sm:$0xf]
  %v106 = vld [vmem:[%s0 + $0x210] sm:$0xff]
  %v107 = vld [vmem:[%s0 + $0x218] sm:$0xf]
  %v108 = vld [vmem:[%s0 + $0x21c] sm:$0xff]
  %v109 = vld [vmem:[%s0 + $0x224] sm:$0xf]
  %v110 = vld [vmem:[%s0 + $0x228] sm:$0xff]
  %v111 = vld [vmem:[%s0 + $0x230] sm:$0xf]
  %v112 = vld [vmem:[%s0 + $0x234] sm:$0xff]
  %v113 = vld [vmem:[%s0 + $0x23c] sm:$0xf]
  %v114 = vld [vmem:[%s0 + $0x240] sm:$0xff]
  %v115 = vld [vmem:[%s0 + $0x248] sm:$0xf]
  %v116 = vld [vmem:[%s0 + $0x24c] sm:$0xff]
  %v117 = vld [vmem:[%s0 + $0x254] sm:$0xf]
  %v118 = vld [vmem:[%s0 + $0x258] sm:$0xff]
  %v119 = vld [vmem:[%s0 + $0x260] sm:$0xf]
  %v120 = vld [vmem:[%s0 + $0x264] sm:$0xff]
  %v121 = vld [vmem:[%s0 + $0x26c] sm:$0xf]
  %v122 = vld [vmem:[%s0 + $0x270] sm:$0xff]
  %v123 = vld [vmem:[%s0 + $0x278] sm:$0xf]
  %v124 = vld [vmem:[%s0 + $0x27c] sm:$0xff]
  %v125 = vld [vmem:[%s0 + $0x284] sm:$0xf]
  %v126 = vld [vmem:[%s0 + $0x288] sm:$0xff]
  %v127 = vld [vmem:[%s0 + $0x290] sm:$0xf]
  %v128 = vld [vmem:[%s0 + $0x294] sm:$0xff]
  %v129 = vld [vmem:[%s0 + $0x29c] sm:$0xf]
  %v130 = vld [vmem:[%s0 + $0x2a0] sm:$0xff]
  %v131 = vld [vmem:[%s0 + $0x2a8] sm:$0xf]
  %v132 = vld [vmem:[%s0 + $0x2ac] sm:$0xff]
  %v133 = vld [vmem:[%s0 + $0x2b4] sm:$0xf]
  %v134 = vld [vmem:[%s0 + $0x2b8] sm:$0xff]
  %v135 = vld [vmem:[%s0 + $0x2c0] sm:$0xf]
  %v136 = vld [vmem:[%s0 + $0x2c4] sm:$0xff]
  %v137 = vld [vmem:[%s0 + $0x2cc] sm:$0xf]
  %v138 = vld [vmem:[%s0 + $0x2d0] sm:$0xff]
  %v139 = vld [vmem:[%s0 + $0x2d8] sm:$0xf]
  %v140 = vld [vmem:[%s0 + $0x2dc] sm:$0xff]
  %v141 = vld [vmem:[%s0 + $0x2e4] sm:$0xf]
  %v142 = vld [vmem:[%s0 + $0x2e8] sm:$0xff]
  %v143 = vld [vmem:[%s0 + $0x2f0] sm:$0xf]
  %v144 = vld [vmem:[%s0 + $0x2f4] sm:$0xff]
  %v145 = vld [vmem:[%s0 + $0x2fc] sm:$0xf]
  %v146 = vld [vmem:[%s1] sm:$0xf]
  %v147 = vld [vmem:[%s1 + $0x4] sm:$0xf]
  %v148 = vld [vmem:[%s1 + $0x8] sm:$0xf]
  %v149 = vld [vmem:[%s1 + $0xc] sm:$0xf]
  %v150 = vld [vmem:[%s1 + $0x10] sm:$0xf]
  %v151 = vld [vmem:[%s1 + $0x14] sm:$0xf]
  %v152 = vld [vmem:[%s1 + $0x18] sm:$0xf]
  %v153 = vld [vmem:[%s1 + $0x1c] sm:$0xf]
  %v154 = vld [vmem:[%s1 + $0x20] sm:$0xf]
  %v155 = vld [vmem:[%s1 + $0x24] sm:$0xf]
  %v156 = vld [vmem:[%s1 + $0x28] sm:$0xf]
  %v157 = vld [vmem:[%s1 + $0x2c] sm:$0xf]
  %v158 = vld [vmem:[%s1 + $0x30] sm:$0xf]
  %v159 = vld [vmem:[%s1 + $0x34] sm:$0xf]
  %v160 = vld [vmem:[%s1 + $0x38] sm:$0xf]
  %v161 = vld [vmem:[%s1 + $0x3c] sm:$0xf]
  %v162 = vld [vmem:[%s1 + $0x40] sm:$0xf]
  %v163 = vld [vmem:[%s1 + $0x44] sm:$0xf]
  %v164 = vld [vmem:[%s1 + $0x48] sm:$0xf]
  %v165 = vld [vmem:[%s1 + $0x4c] sm:$0xf]
  %v166 = vld [vmem:[%s1 + $0x50] sm:$0xf]
  %v167 = vld [vmem:[%s1 + $0x54] sm:$0xf]
  %v168 = vld [vmem:[%s1 + $0x58] sm:$0xf]
  %v169 = vld [vmem:[%s1 + $0x5c] sm:$0xf]
  %v170 = vld [vmem:[%s1 + $0x60] sm:$0xf]
  %v171 = vld [vmem:[%s1 + $0x64] sm:$0xf]
  %v172 = vld [vmem:[%s1 + $0x68] sm:$0xf]
  %v173 = vld [vmem:[%s1 + $0x6c] sm:$0xf]
  %v174 = vld [vmem:[%s1 + $0x70] sm:$0xf]
  %v175 = vld [vmem:[%s1 + $0x74] sm:$0xf]
  %v176 = vld [vmem:[%s1 + $0x78] sm:$0xf]
  %v177 = vld [vmem:[%s1 + $0x7c] sm:$0xf]
  %v178 = vld [vmem:[%s1 + $0x80] sm:$0xf]
  %v179 = vld [vmem:[%s1 + $0x84] sm:$0xf]
  %v180 = vld [vmem:[%s1 + $0x88] sm:$0xf]
  %v181 = vld [vmem:[%s1 + $0x8c] sm:$0xf]
  %v310 = vunpack.c.l.b16 %v18
  %v311 = vunpack.c.h.b16 %v18
  %v312 = vunpack.c.l.b16 %v19
  %v313 = vunpack.c.l.b16 %v20
  %v314 = vunpack.c.h.b16 %v20
  %v315 = vunpack.c.l.b16 %v21
  %v316 = vunpack.c.l.b16 %v22
  %v317 = vunpack.c.h.b16 %v22
  %v318 = vunpack.c.l.b16 %v23
  %v319 = vunpack.c.l.b16 %v24
  %v320 = vunpack.c.h.b16 %v24
  %v321 = vunpack.c.l.b16 %v25
  %v322 = vunpack.c.l.b16 %v26
  %v323 = vunpack.c.h.b16 %v26
  %v324 = vunpack.c.l.b16 %v27
  %v325 = vunpack.c.l.b16 %v28
  %v326 = vunpack.c.h.b16 %v28
  %v327 = vunpack.c.l.b16 %v29
  %v328 = vunpack.c.l.b16 %v30
  %v329 = vunpack.c.h.b16 %v30
  %v330 = vunpack.c.l.b16 %v31
  %v331 = vunpack.c.l.b16 %v32
  %v332 = vunpack.c.h.b16 %v32
  %v333 = vunpack.c.l.b16 %v33
  %v334 = vunpack.c.l.b16 %v34
  %v335 = vunpack.c.h.b16 %v34
  %v336 = vunpack.c.l.b16 %v35
  %v337 = vunpack.c.l.b16 %v36
  %v338 = vunpack.c.h.b16 %v36
  %v339 = vunpack.c.l.b16 %v37
  %v340 = vunpack.c.l.b16 %v38
  %v341 = vunpack.c.h.b16 %v38
  %v342 = vunpack.c.l.b16 %v39
  %v343 = vunpack.c.l.b16 %v40
  %v344 = vunpack.c.h.b16 %v40
  %v345 = vunpack.c.l.b16 %v41
  %v346 = vunpack.c.l.b16 %v42
  %v347 = vunpack.c.h.b16 %v42
  %v348 = vunpack.c.l.b16 %v43
  %v349 = vunpack.c.l.b16 %v44
  %v350 = vunpack.c.h.b16 %v44
  %v351 = vunpack.c.l.b16 %v45
  %v352 = vunpack.c.l.b16 %v46
  %v353 = vunpack.c.h.b16 %v46
  %v354 = vunpack.c.l.b16 %v47
  %v355 = vunpack.c.l.b16 %v48
  %v356 = vunpack.c.h.b16 %v48
  %v357 = vunpack.c.l.b16 %v49
  %v358 = vunpack.c.l.b16 %v50
  %v359 = vunpack.c.h.b16 %v50
  %v360 = vunpack.c.l.b16 %v51
  %v361 = vunpack.c.l.b16 %v52
  %v362 = vunpack.c.h.b16 %v52
  %v363 = vunpack.c.l.b16 %v53
  %v364 = vunpack.c.l.b16 %v54
  %v365 = vunpack.c.h.b16 %v54
  %v366 = vunpack.c.l.b16 %v55
  %v367 = vunpack.c.l.b16 %v56
  %v368 = vunpack.c.h.b16 %v56
  %v369 = vunpack.c.l.b16 %v57
  %v370 = vunpack.c.l.b16 %v58
  %v371 = vunpack.c.h.b16 %v58
  %v372 = vunpack.c.l.b16 %v59
  %v373 = vunpack.c.l.b16 %v60
  %v374 = vunpack.c.h.b16 %v60
  %v375 = vunpack.c.l.b16 %v61
  %v376 = vunpack.c.l.b16 %v62
  %v377 = vunpack.c.h.b16 %v62
  %v378 = vunpack.c.l.b16 %v63
  %v379 = vunpack.c.l.b16 %v64
  %v380 = vunpack.c.h.b16 %v64
  %v381 = vunpack.c.l.b16 %v65
  %v382 = vunpack.c.l.b16 %v66
  %v383 = vunpack.c.h.b16 %v66
  %v384 = vunpack.c.l.b16 %v67
  %v385 = vunpack.c.l.b16 %v68
  %v386 = vunpack.c.h.b16 %v68
  %v387 = vunpack.c.l.b16 %v69
  %v388 = vunpack.c.l.b16 %v70
  %v389 = vunpack.c.h.b16 %v70
  %v390 = vunpack.c.l.b16 %v71
  %v391 = vunpack.c.l.b16 %v72
  %v392 = vunpack.c.h.b16 %v72
  %v393 = vunpack.c.l.b16 %v73
  %v394 = vunpack.c.l.b16 %v74
  %v395 = vunpack.c.h.b16 %v74
  %v396 = vunpack.c.l.b16 %v75
  %v397 = vunpack.c.l.b16 %v76
  %v398 = vunpack.c.h.b16 %v76
  %v399 = vunpack.c.l.b16 %v77
  %v400 = vunpack.c.l.b16 %v78
  %v401 = vunpack.c.h.b16 %v78
  %v402 = vunpack.c.l.b16 %v79
  %v403 = vunpack.c.l.b16 %v80
  %v404 = vunpack.c.h.b16 %v80
  %v405 = vunpack.c.l.b16 %v81
  %v406 = vunpack.c.l.b16 %v82
  %v407 = vunpack.c.h.b16 %v82
  %v408 = vunpack.c.l.b16 %v83
  %v409 = vunpack.c.l.b16 %v84
  %v410 = vunpack.c.h.b16 %v84
  %v411 = vunpack.c.l.b16 %v85
  %v412 = vunpack.c.l.b16 %v86
  %v413 = vunpack.c.h.b16 %v86
  %v414 = vunpack.c.l.b16 %v87
  %v415 = vunpack.c.l.b16 %v88
  %v416 = vunpack.c.h.b16 %v88
  %v417 = vunpack.c.l.b16 %v89
  %v418 = vunpack.c.l.b16 %v90
  %v419 = vunpack.c.h.b16 %v90
  %v420 = vunpack.c.l.b16 %v91
  %v421 = vunpack.c.l.b16 %v92
  %v422 = vunpack.c.h.b16 %v92
  %v423 = vunpack.c.l.b16 %v93
  %v424 = vunpack.c.l.b16 %v94
  %v425 = vunpack.c.h.b16 %v94
  %v426 = vunpack.c.l.b16 %v95
  %v427 = vunpack.c.l.b16 %v96
  %v428 = vunpack.c.h.b16 %v96
  %v429 = vunpack.c.l.b16 %v97
  %v430 = vunpack.c.l.b16 %v98
  %v431 = vunpack.c.h.b16 %v98
  %v432 = vunpack.c.l.b16 %v99
  %v433 = vunpack.c.l.b16 %v100
  %v434 = vunpack.c.h.b16 %v100
  %v435 = vunpack.c.l.b16 %v101
  %v436 = vunpack.c.l.b16 %v102
  %v437 = vunpack.c.h.b16 %v102
  %v438 = vunpack.c.l.b16 %v103
  %v439 = vunpack.c.l.b16 %v104
  %v440 = vunpack.c.h.b16 %v104
  %v441 = vunpack.c.l.b16 %v105
  %v442 = vunpack.c.l.b16 %v106
  %v443 = vunpack.c.h.b16 %v106
  %v444 = vunpack.c.l.b16 %v107
  %v445 = vunpack.c.l.b16 %v108
  %v446 = vunpack.c.h.b16 %v108
  %v447 = vunpack.c.l.b16 %v109
  %v448 = vunpack.c.l.b16 %v110
  %v449 = vunpack.c.h.b16 %v110
  %v450 = vunpack.c.l.b16 %v111
  %v451 = vunpack.c.l.b16 %v112
  %v452 = vunpack.c.h.b16 %v112
  %v453 = vunpack.c.l.b16 %v113
  %v454 = vunpack.c.l.b16 %v114
  %v455 = vunpack.c.h.b16 %v114
  %v456 = vunpack.c.l.b16 %v115
  %v457 = vunpack.c.l.b16 %v116
  %v458 = vunpack.c.h.b16 %v116
  %v459 = vunpack.c.l.b16 %v117
  %v460 = vunpack.c.l.b16 %v118
  %v461 = vunpack.c.h.b16 %v118
  %v462 = vunpack.c.l.b16 %v119
  %v463 = vunpack.c.l.b16 %v120
  %v464 = vunpack.c.h.b16 %v120
  %v465 = vunpack.c.l.b16 %v121
  %v466 = vunpack.c.l.b16 %v122
  %v467 = vunpack.c.h.b16 %v122
  %v468 = vunpack.c.l.b16 %v123
  %v469 = vunpack.c.l.b16 %v124
  %v470 = vunpack.c.h.b16 %v124
  %v471 = vunpack.c.l.b16 %v125
  %v472 = vunpack.c.l.b16 %v126
  %v473 = vunpack.c.h.b16 %v126
  %v474 = vunpack.c.l.b16 %v127
  %v475 = vunpack.c.l.b16 %v128
  %v476 = vunpack.c.h.b16 %v128
  %v477 = vunpack.c.l.b16 %v129
  %v478 = vunpack.c.l.b16 %v130
  %v479 = vunpack.c.h.b16 %v130
  %v480 = vunpack.c.l.b16 %v131
  %v481 = vunpack.c.l.b16 %v132
  %v482 = vunpack.c.h.b16 %v132
  %v483 = vunpack.c.l.b16 %v133
  %v484 = vunpack.c.l.b16 %v134
  %v485 = vunpack.c.h.b16 %v134
  %v486 = vunpack.c.l.b16 %v135
  %v487 = vunpack.c.l.b16 %v136
  %v488 = vunpack.c.h.b16 %v136
  %v489 = vunpack.c.l.b16 %v137
  %v490 = vunpack.c.l.b16 %v138
  %v491 = vunpack.c.h.b16 %v138
  %v492 = vunpack.c.l.b16 %v139
  %v493 = vunpack.c.l.b16 %v140
  %v494 = vunpack.c.h.b16 %v140
  %v495 = vunpack.c.l.b16 %v141
  %v496 = vunpack.c.l.b16 %v142
  %v497 = vunpack.c.h.b16 %v142
  %v498 = vunpack.c.l.b16 %v143
  %v499 = vunpack.c.l.b16 %v144
  %v500 = vunpack.c.h.b16 %v144
  %v501 = vunpack.c.l.b16 %v145
  %v502 = vpack.c.b16 %v313, %v310
  %v503 = vpack.c.b16 %v314, %v311
  %v504 = vpack.c.b16 %v315, %v312
  %v505 = vpack.c.b16 %v319, %v316
  %v506 = vpack.c.b16 %v320, %v317
  %v507 = vpack.c.b16 %v321, %v318
  %v508 = vpack.c.b16 %v325, %v322
  %v509 = vpack.c.b16 %v326, %v323
  %v510 = vpack.c.b16 %v327, %v324
  %v511 = vpack.c.b16 %v331, %v328
  %v512 = vpack.c.b16 %v332, %v329
  %v513 = vpack.c.b16 %v333, %v330
  %v514 = vpack.c.b16 %v337, %v334
  %v515 = vpack.c.b16 %v338, %v335
  %v516 = vpack.c.b16 %v339, %v336
  %v517 = vpack.c.b16 %v343, %v340
  %v518 = vpack.c.b16 %v344, %v341
  %v519 = vpack.c.b16 %v345, %v342
  %v520 = vpack.c.b16 %v349, %v346
  %v521 = vpack.c.b16 %v350, %v347
  %v522 = vpack.c.b16 %v351, %v348
  %v523 = vpack.c.b16 %v355, %v352
  %v524 = vpack.c.b16 %v356, %v353
  %v525 = vpack.c.b16 %v357, %v354
  %v526 = vpack.c.b16 %v361, %v358
  %v527 = vpack.c.b16 %v362, %v359
  %v528 = vpack.c.b16 %v363, %v360
  %v529 = vpack.c.b16 %v367, %v364
  %v530 = vpack.c.b16 %v368, %v365
  %v531 = vpack.c.b16 %v369, %v366
  %v532 = vpack.c.b16 %v373, %v370
  %v533 = vpack.c.b16 %v374, %v371
  %v534 = vpack.c.b16 %v375, %v372
  %v535 = vpack.c.b16 %v379, %v376
  %v536 = vpack.c.b16 %v380, %v377
  %v537 = vpack.c.b16 %v381, %v378
  %v538 = vpack.c.b16 %v385, %v382
  %v539 = vpack.c.b16 %v386, %v383
  %v540 = vpack.c.b16 %v387, %v384
  %v541 = vpack.c.b16 %v391, %v388
  %v542 = vpack.c.b16 %v392, %v389
  %v543 = vpack.c.b16 %v393, %v390
  %v544 = vpack.c.b16 %v397, %v394
  %v545 = vpack.c.b16 %v398, %v395
  %v546 = vpack.c.b16 %v399, %v396
  %v547 = vpack.c.b16 %v403, %v400
  %v548 = vpack.c.b16 %v404, %v401
  %v549 = vpack.c.b16 %v405, %v402
  %v550 = vpack.c.b16 %v409, %v406
  %v551 = vpack.c.b16 %v410, %v407
  %v552 = vpack.c.b16 %v411, %v408
  %v553 = vpack.c.b16 %v415, %v412
  %v554 = vpack.c.b16 %v416, %v413
  %v555 = vpack.c.b16 %v417, %v414
  %v556 = vpack.c.b16 %v421, %v418
  %v557 = vpack.c.b16 %v422, %v419
  %v558 = vpack.c.b16 %v423, %v420
  %v559 = vpack.c.b16 %v427, %v424
  %v560 = vpack.c.b16 %v428, %v425
  %v561 = vpack.c.b16 %v429, %v426
  %v562 = vpack.c.b16 %v433, %v430
  %v563 = vpack.c.b16 %v434, %v431
  %v564 = vpack.c.b16 %v435, %v432
  %v565 = vpack.c.b16 %v439, %v436
  %v566 = vpack.c.b16 %v440, %v437
  %v567 = vpack.c.b16 %v441, %v438
  %v568 = vpack.c.b16 %v445, %v442
  %v569 = vpack.c.b16 %v446, %v443
  %v570 = vpack.c.b16 %v447, %v444
  %v571 = vpack.c.b16 %v451, %v448
  %v572 = vpack.c.b16 %v452, %v449
  %v573 = vpack.c.b16 %v453, %v450
  %v574 = vpack.c.b16 %v457, %v454
  %v575 = vpack.c.b16 %v458, %v455
  %v576 = vpack.c.b16 %v459, %v456
  %v577 = vpack.c.b16 %v463, %v460
  %v578 = vpack.c.b16 %v464, %v461
  %v579 = vpack.c.b16 %v465, %v462
  %v580 = vpack.c.b16 %v469, %v466
  %v581 = vpack.c.b16 %v470, %v467
  %v582 = vpack.c.b16 %v471, %v468
  %v583 = vpack.c.b16 %v475, %v472
  %v584 = vpack.c.b16 %v476, %v473
  %v585 = vpack.c.b16 %v477, %v474
  %v586 = vpack.c.b16 %v481, %v478
  %v587 = vpack.c.b16 %v482, %v479
  %v588 = vpack.c.b16 %v483, %v480
  %v589 = vpack.c.b16 %v487, %v484
  %v590 = vpack.c.b16 %v488, %v485
  %v591 = vpack.c.b16 %v489, %v486
  %v592 = vpack.c.b16 %v493, %v490
  %v593 = vpack.c.b16 %v494, %v491
  %v594 = vpack.c.b16 %v495, %v492
  %v595 = vpack.c.b16 %v499, %v496
  %v596 = vpack.c.b16 %v500, %v497
  %v597 = vpack.c.b16 %v501, %v498
  %v698 = vunpack.c.l.b16 %v146
  %v699 = vunpack.c.l.b16 %v147
  %v700 = vunpack.c.l.b16 %v148
  %v701 = vunpack.c.l.b16 %v149
  %v702 = vunpack.c.l.b16 %v150
  %v703 = vunpack.c.l.b16 %v151
  %v704 = vunpack.c.l.b16 %v152
  %v705 = vunpack.c.l.b16 %v153
  %v706 = vunpack.c.l.b16 %v154
  %v707 = vunpack.c.l.b16 %v155
  %v708 = vunpack.c.l.b16 %v156
  %v709 = vunpack.c.l.b16 %v157
  %v710 = vunpack.c.l.b16 %v158
  %v711 = vunpack.c.l.b16 %v159
  %v712 = vunpack.c.l.b16 %v160
  %v713 = vunpack.c.l.b16 %v161
  %v714 = vunpack.c.l.b16 %v162
  %v715 = vunpack.c.l.b16 %v163
  %v716 = vunpack.c.l.b16 %v164
  %v717 = vunpack.c.l.b16 %v165
  %v718 = vunpack.c.l.b16 %v166
  %v719 = vunpack.c.l.b16 %v167
  %v720 = vunpack.c.l.b16 %v168
  %v721 = vunpack.c.l.b16 %v169
  %v722 = vunpack.c.l.b16 %v170
  %v723 = vunpack.c.l.b16 %v171
  %v724 = vunpack.c.l.b16 %v172
  %v725 = vunpack.c.l.b16 %v173
  %v726 = vunpack.c.l.b16 %v174
  %v727 = vunpack.c.l.b16 %v175
  %v728 = vunpack.c.l.b16 %v176
  %v729 = vunpack.c.l.b16 %v177
  %v730 = vunpack.c.l.b16 %v178
  %v731 = vunpack.c.l.b16 %v179
  %v732 = vunpack.c.l.b16 %v180
  %v733 = vunpack.c.l.b16 %v181
  %v734 = vpack.c.b16 %v699, %v698
  %v735 = vpack.c.b16 %v701, %v700
  %v736 = vpack.c.b16 %v703, %v702
  %v737 = vpack.c.b16 %v705, %v704
  %v738 = vpack.c.b16 %v707, %v706
  %v739 = vpack.c.b16 %v709, %v708
  %v740 = vpack.c.b16 %v711, %v710
  %v741 = vpack.c.b16 %v713, %v712
  %v742 = vpack.c.b16 %v715, %v714
  %v743 = vpack.c.b16 %v717, %v716
  %v744 = vpack.c.b16 %v719, %v718
  %v745 = vpack.c.b16 %v721, %v720
  %v746 = vpack.c.b16 %v723, %v722
  %v747 = vpack.c.b16 %v725, %v724
  %v748 = vpack.c.b16 %v727, %v726
  %v749 = vpack.c.b16 %v729, %v728
  %v750 = vpack.c.b16 %v731, %v730
  %v751 = vpack.c.b16 %v733, %v732
  %vm770 = vcmask 261120
  %v772 = vsel %vm770, %v504, 0
  %v775 = vsel %vm770, %v507, 0
  %v778 = vsel %vm770, %v510, 0
  %v781 = vsel %vm770, %v513, 0
  %v784 = vsel %vm770, %v516, 0
  %v787 = vsel %vm770, %v519, 0
  %v790 = vsel %vm770, %v522, 0
  %v793 = vsel %vm770, %v525, 0
  %v796 = vsel %vm770, %v528, 0
  %v799 = vsel %vm770, %v531, 0
  %v802 = vsel %vm770, %v534, 0
  %v805 = vsel %vm770, %v537, 0
  %v808 = vsel %vm770, %v540, 0
  %v811 = vsel %vm770, %v543, 0
  %v814 = vsel %vm770, %v546, 0
  %v817 = vsel %vm770, %v549, 0
  %v820 = vsel %vm770, %v552, 0
  %v823 = vsel %vm770, %v555, 0
  %v826 = vsel %vm770, %v558, 0
  %v829 = vsel %vm770, %v561, 0
  %v832 = vsel %vm770, %v564, 0
  %v835 = vsel %vm770, %v567, 0
  %v838 = vsel %vm770, %v570, 0
  %v841 = vsel %vm770, %v573, 0
  %v844 = vsel %vm770, %v576, 0
  %v847 = vsel %vm770, %v579, 0
  %v850 = vsel %vm770, %v582, 0
  %v853 = vsel %vm770, %v585, 0
  %v856 = vsel %vm770, %v588, 0
  %v859 = vsel %vm770, %v591, 0
  %v862 = vsel %vm770, %v594, 0
  %v865 = vsel %vm770, %v597, 0
  %867 = vmatprep.subr.bf16.mxu0 0
  %868 = vmatpush1.bf16.msra.mxu0 %v734
  %869 = vmatprep.subr.bf16.mxu0 0
  %870 = vmatpush1.bf16.msra.mxu0 %v735
  %871 = vmatprep.subr.bf16.mxu0 0
  %872 = vmatpush1.bf16.msra.mxu0 %v736
  %873 = vmatprep.subr.bf16.mxu0 0
  %874 = vmatpush1.bf16.msra.mxu0 %v737
  %875 = vmatprep.subr.bf16.mxu0 0
  %876 = vmatpush1.bf16.msra.mxu0 %v738
  %877 = vmatprep.subr.bf16.mxu0 0
  %878 = vmatpush1.bf16.msra.mxu0 %v739
  %879 = vmatprep.subr.bf16.mxu0 0
  %880 = vmatpush1.bf16.msra.mxu0 %v740
  %881 = vmatprep.subr.bf16.mxu0 0
  %882 = vmatpush1.bf16.msra.mxu0 %v741
  %883 = vmatprep.subr.bf16.mxu0 0
  %884 = vmatpush1.bf16.msra.mxu0 %v742
  %885 = vmatprep.subr.bf16.mxu0 0
  %886 = vmatpush1.bf16.msra.mxu0 %v743
  %887 = vmatprep.subr.bf16.mxu0 0
  %888 = vmatpush1.bf16.msra.mxu0 %v744
  %889 = vmatprep.subr.bf16.mxu0 0
  %890 = vmatpush1.bf16.msra.mxu0 %v745
  %891 = vmatprep.subr.bf16.mxu0 0
  %892 = vmatpush1.bf16.msra.mxu0 %v746
  %893 = vmatprep.subr.bf16.mxu0 0
  %894 = vmatpush1.bf16.msra.mxu0 %v747
  %895 = vmatprep.subr.bf16.mxu0 0
  %896 = vmatpush1.bf16.msra.mxu0 %v748
  %897 = vmatprep.subr.bf16.mxu0 0
  %898 = vmatpush1.bf16.msra.mxu0 %v749
  %899 = vmatprep.mubr.bf16.mxu0 %v503
  %900 = vmatmul.mubr.bf16.gmra.mrb[0].mxu0 %v502
  %v901 = vpop.f32.mrb[0].mxu0
  %v902 = vadd.f32 0.0, %v901
  %v903 = vpop.f32.mrb[0].mxu0
  %v904 = vpop.f32.mrb[0].mxu0
  %v905 = vadd.f32 0.0, %v904
  %v906 = vpop.f32.mrb[0].mxu0
  %907 = vmatprep.mubr.bf16.mxu0 %v506
  %908 = vmatmul.mubr.bf16.gmra.mrb[0].mxu0 %v505
  %v909 = vpop.f32.mrb[0].mxu0
  %v910 = vadd.f32 0.0, %v909
  %v911 = vpop.f32.mrb[0].mxu0
  %v912 = vpop.f32.mrb[0].mxu0
  %v913 = vadd.f32 0.0, %v912
  %v914 = vpop.f32.mrb[0].mxu0
  %915 = vmatprep.mubr.bf16.mxu0 %v509
  %916 = vmatmul.mubr.bf16.gmra.mrb[0].mxu0 %v508
  %v917 = vpop.f32.mrb[0].mxu0
  %v918 = vadd.f32 0.0, %v917
  %v919 = vpop.f32.mrb[0].mxu0
  %v920 = vpop.f32.mrb[0].mxu0
  %v921 = vadd.f32 0.0, %v920
  %v922 = vpop.f32.mrb[0].mxu0
  %923 = vmatprep.mubr.bf16.mxu0 %v512
  %924 = vmatmul.mubr.bf16.gmra.mrb[0].mxu0 %v511
  %v925 = vpop.f32.mrb[0].mxu0
  %v926 = vadd.f32 0.0, %v925
  %v927 = vpop.f32.mrb[0].mxu0
  %v928 = vpop.f32.mrb[0].mxu0
  %v929 = vadd.f32 0.0, %v928
  %v930 = vpop.f32.mrb[0].mxu0
  %931 = vmatprep.mubr.bf16.mxu0 %v515
  %932 = vmatmul.mubr.bf16.gmra.mrb[0].mxu0 %v514
  %v933 = vpop.f32.mrb[0].mxu0
  %v934 = vadd.f32 0.0, %v933
  %v935 = vpop.f32.mrb[0].mxu0
  %v936 = vpop.f32.mrb[0].mxu0
  %v937 = vadd.f32 0.0, %v936
  %v938 = vpop.f32.mrb[0].mxu0
  %939 = vmatprep.mubr.bf16.mxu0 %v518
  %940 = vmatmul.mubr.bf16.gmra.mrb[0].mxu0 %v517
  %v941 = vpop.f32.mrb[0].mxu0
  %v942 = vadd.f32 0.0, %v941
  %v943 = vpop.f32.mrb[0].mxu0
  %v944 = vpop.f32.mrb[0].mxu0
  %v945 = vadd.f32 0.0, %v944
  %v946 = vpop.f32.mrb[0].mxu0
  %947 = vmatprep.mubr.bf16.mxu0 %v521
  %948 = vmatmul.mubr.bf16.gmra.mrb[0].mxu0 %v520
  %v949 = vpop.f32.mrb[0].mxu0
  %v950 = vadd.f32 0.0, %v949
  %v951 = vpop.f32.mrb[0].mxu0
  %v952 = vpop.f32.mrb[0].mxu0
  %v953 = vadd.f32 0.0, %v952
  %v954 = vpop.f32.mrb[0].mxu0
  %955 = vmatprep.mubr.bf16.mxu0 %v524
  %956 = vmatmul.mubr.bf16.gmra.mrb[0].mxu0 %v523
  %v957 = vpop.f32.mrb[0].mxu0
  %v958 = vadd.f32 0.0, %v957
  %v959 = vpop.f32.mrb[0].mxu0
  %v960 = vpop.f32.mrb[0].mxu0
  %v961 = vadd.f32 0.0, %v960
  %v962 = vpop.f32.mrb[0].mxu0
  %963 = vmatprep.mubr.bf16.mxu0 %v527
  %964 = vmatmul.mubr.bf16.gmra.mrb[0].mxu0 %v526
  %v965 = vpop.f32.mrb[0].mxu0
  %v966 = vadd.f32 0.0, %v965
  %v967 = vpop.f32.mrb[0].mxu0
  %v968 = vpop.f32.mrb[0].mxu0
  %v969 = vadd.f32 0.0, %v968
  %v970 = vpop.f32.mrb[0].mxu0
  %971 = vmatprep.mubr.bf16.mxu0 %v530
  %972 = vmatmul.mubr.bf16.gmra.mrb[0].mxu0 %v529
  %v973 = vpop.f32.mrb[0].mxu0
  %v974 = vadd.f32 0.0, %v973
  %v975 = vpop.f32.mrb[0].mxu0
  %v976 = vpop.f32.mrb[0].mxu0
  %v977 = vadd.f32 0.0, %v976
  %v978 = vpop.f32.mrb[0].mxu0
  %979 = vmatprep.mubr.bf16.mxu0 %v533
  %980 = vmatmul.mubr.bf16.gmra.mrb[0].mxu0 %v532
  %v981 = vpop.f32.mrb[0].mxu0
  %v982 = vadd.f32 0.0, %v981
  %v983 = vpop.f32.mrb[0].mxu0
  %v984 = vpop.f32.mrb[0].mxu0
  %v985 = vadd.f32 0.0, %v984
  %v986 = vpop.f32.mrb[0].mxu0
  %987 = vmatprep.mubr.bf16.mxu0 %v536
  %988 = vmatmul.mubr.bf16.gmra.mrb[0].mxu0 %v535
  %v989 = vpop.f32.mrb[0].mxu0
  %v990 = vadd.f32 0.0, %v989
  %v991 = vpop.f32.mrb[0].mxu0
  %v992 = vpop.f32.mrb[0].mxu0
  %v993 = vadd.f32 0.0, %v992
  %v994 = vpop.f32.mrb[0].mxu0
  %995 = vmatprep.mubr.bf16.mxu0 %v539
  %996 = vmatmul.mubr.bf16.gmra.mrb[0].mxu0 %v538
  %v997 = vpop.f32.mrb[0].mxu0
  %v998 = vadd.f32 0.0, %v997
  %v999 = vpop.f32.mrb[0].mxu0
  %v1000 = vpop.f32.mrb[0].mxu0
  %v1001 = vadd.f32 0.0, %v1000
  %v1002 = vpop.f32.mrb[0].mxu0
  %1003 = vmatprep.mubr.bf16.mxu0 %v542
  %1004 = vmatmul.mubr.bf16.gmra.mrb[0].mxu0 %v541
  %v1005 = vpop.f32.mrb[0].mxu0
  %v1006 = vadd.f32 0.0, %v1005
  %v1007 = vpop.f32.mrb[0].mxu0
  %v1008 = vpop.f32.mrb[0].mxu0
  %v1009 = vadd.f32 0.0, %v1008
  %v1010 = vpop.f32.mrb[0].mxu0
  %1011 = vmatprep.mubr.bf16.mxu0 %v545
  %1012 = vmatmul.mubr.bf16.gmra.mrb[0].mxu0 %v544
  %v1013 = vpop.f32.mrb[0].mxu0
  %v1014 = vadd.f32 0.0, %v1013
  %v1015 = vpop.f32.mrb[0].mxu0
  %v1016 = vpop.f32.mrb[0].mxu0
  %v1017 = vadd.f32 0.0, %v1016
  %v1018 = vpop.f32.mrb[0].mxu0
  %1019 = vmatprep.mubr.bf16.mxu0 %v548
  %1020 = vmatmul.mubr.bf16.gmra.mrb[0].mxu0 %v547
  %v1021 = vpop.f32.mrb[0].mxu0
  %v1022 = vadd.f32 0.0, %v1021
  %v1023 = vpop.f32.mrb[0].mxu0
  %v1024 = vpop.f32.mrb[0].mxu0
  %v1025 = vadd.f32 0.0, %v1024
  %v1026 = vpop.f32.mrb[0].mxu0
  %1027 = vmatprep.mubr.bf16.mxu0 %v551
  %1028 = vmatmul.mubr.bf16.gmra.mrb[0].mxu0 %v550
  %v1029 = vpop.f32.mrb[0].mxu0
  %v1030 = vadd.f32 0.0, %v1029
  %v1031 = vpop.f32.mrb[0].mxu0
  %v1032 = vpop.f32.mrb[0].mxu0
  %v1033 = vadd.f32 0.0, %v1032
  %v1034 = vpop.f32.mrb[0].mxu0
  %1035 = vmatprep.mubr.bf16.mxu0 %v554
  %1036 = vmatmul.mubr.bf16.gmra.mrb[0].mxu0 %v553
  %v1037 = vpop.f32.mrb[0].mxu0
  %v1038 = vadd.f32 0.0, %v1037
  %v1039 = vpop.f32.mrb[0].mxu0
  %v1040 = vpop.f32.mrb[0].mxu0
  %v1041 = vadd.f32 0.0, %v1040
  %v1042 = vpop.f32.mrb[0].mxu0
  %1043 = vmatprep.mubr.bf16.mxu0 %v557
  %1044 = vmatmul.mubr.bf16.gmra.mrb[0].mxu0 %v556
  %v1045 = vpop.f32.mrb[0].mxu0
  %v1046 = vadd.f32 0.0, %v1045
  %v1047 = vpop.f32.mrb[0].mxu0
  %v1048 = vpop.f32.mrb[0].mxu0
  %v1049 = vadd.f32 0.0, %v1048
  %v1050 = vpop.f32.mrb[0].mxu0
  %1051 = vmatprep.mubr.bf16.mxu0 %v560
  %1052 = vmatmul.mubr.bf16.gmra.mrb[0].mxu0 %v559
  %v1053 = vpop.f32.mrb[0].mxu0
  %v1054 = vadd.f32 0.0, %v1053
  %v1055 = vpop.f32.mrb[0].mxu0
  %v1056 = vpop.f32.mrb[0].mxu0
  %v1057 = vadd.f32 0.0, %v1056
  %v1058 = vpop.f32.mrb[0].mxu0
  %1059 = vmatprep.mubr.bf16.mxu0 %v563
  %1060 = vmatmul.mubr.bf16.gmra.mrb[0].mxu0 %v562
  %v1061 = vpop.f32.mrb[0].mxu0
  %v1062 = vadd.f32 0.0, %v1061
  %v1063 = vpop.f32.mrb[0].mxu0
  %v1064 = vpop.f32.mrb[0].mxu0
  %v1065 = vadd.f32 0.0, %v1064
  %v1066 = vpop.f32.mrb[0].mxu0
  %1067 = vmatprep.mubr.bf16.mxu0 %v566
  %1068 = vmatmul.mubr.bf16.gmra.mrb[0].mxu0 %v565
  %v1069 = vpop.f32.mrb[0].mxu0
  %v1070 = vadd.f32 0.0, %v1069
  %v1071 = vpop.f32.mrb[0].mxu0
  %v1072 = vpop.f32.mrb[0].mxu0
  %v1073 = vadd.f32 0.0, %v1072
  %v1074 = vpop.f32.mrb[0].mxu0
  %1075 = vmatprep.mubr.bf16.mxu0 %v569
  %1076 = vmatmul.mubr.bf16.gmra.mrb[0].mxu0 %v568
  %v1077 = vpop.f32.mrb[0].mxu0
  %v1078 = vadd.f32 0.0, %v1077
  %v1079 = vpop.f32.mrb[0].mxu0
  %v1080 = vpop.f32.mrb[0].mxu0
  %v1081 = vadd.f32 0.0, %v1080
  %v1082 = vpop.f32.mrb[0].mxu0
  %1083 = vmatprep.mubr.bf16.mxu0 %v572
  %1084 = vmatmul.mubr.bf16.gmra.mrb[0].mxu0 %v571
  %v1085 = vpop.f32.mrb[0].mxu0
  %v1086 = vadd.f32 0.0, %v1085
  %v1087 = vpop.f32.mrb[0].mxu0
  %v1088 = vpop.f32.mrb[0].mxu0
  %v1089 = vadd.f32 0.0, %v1088
  %v1090 = vpop.f32.mrb[0].mxu0
  %1091 = vmatprep.mubr.bf16.mxu0 %v575
  %1092 = vmatmul.mubr.bf16.gmra.mrb[0].mxu0 %v574
  %v1093 = vpop.f32.mrb[0].mxu0
  %v1094 = vadd.f32 0.0, %v1093
  %v1095 = vpop.f32.mrb[0].mxu0
  %v1096 = vpop.f32.mrb[0].mxu0
  %v1097 = vadd.f32 0.0, %v1096
  %v1098 = vpop.f32.mrb[0].mxu0
  %1099 = vmatprep.mubr.bf16.mxu0 %v578
  %1100 = vmatmul.mubr.bf16.gmra.mrb[0].mxu0 %v577
  %v1101 = vpop.f32.mrb[0].mxu0
  %v1102 = vadd.f32 0.0, %v1101
  %v1103 = vpop.f32.mrb[0].mxu0
  %v1104 = vpop.f32.mrb[0].mxu0
  %v1105 = vadd.f32 0.0, %v1104
  %v1106 = vpop.f32.mrb[0].mxu0
  %1107 = vmatprep.mubr.bf16.mxu0 %v581
  %1108 = vmatmul.mubr.bf16.gmra.mrb[0].mxu0 %v580
  %v1109 = vpop.f32.mrb[0].mxu0
  %v1110 = vadd.f32 0.0, %v1109
  %v1111 = vpop.f32.mrb[0].mxu0
  %v1112 = vpop.f32.mrb[0].mxu0
  %v1113 = vadd.f32 0.0, %v1112
  %v1114 = vpop.f32.mrb[0].mxu0
  %1115 = vmatprep.mubr.bf16.mxu0 %v584
  %1116 = vmatmul.mubr.bf16.gmra.mrb[0].mxu0 %v583
  %v1117 = vpop.f32.mrb[0].mxu0
  %v1118 = vadd.f32 0.0, %v1117
  %v1119 = vpop.f32.mrb[0].mxu0
  %v1120 = vpop.f32.mrb[0].mxu0
  %v1121 = vadd.f32 0.0, %v1120
  %v1122 = vpop.f32.mrb[0].mxu0
  %1123 = vmatprep.mubr.bf16.mxu0 %v587
  %1124 = vmatmul.mubr.bf16.gmra.mrb[0].mxu0 %v586
  %v1125 = vpop.f32.mrb[0].mxu0
  %v1126 = vadd.f32 0.0, %v1125
  %v1127 = vpop.f32.mrb[0].mxu0
  %v1128 = vpop.f32.mrb[0].mxu0
  %v1129 = vadd.f32 0.0, %v1128
  %v1130 = vpop.f32.mrb[0].mxu0
  %1131 = vmatprep.mubr.bf16.mxu0 %v590
  %1132 = vmatmul.mubr.bf16.gmra.mrb[0].mxu0 %v589
  %v1133 = vpop.f32.mrb[0].mxu0
  %v1134 = vadd.f32 0.0, %v1133
  %v1135 = vpop.f32.mrb[0].mxu0
  %v1136 = vpop.f32.mrb[0].mxu0
  %v1137 = vadd.f32 0.0, %v1136
  %v1138 = vpop.f32.mrb[0].mxu0
  %1139 = vmatprep.mubr.bf16.mxu0 %v593
  %1140 = vmatmul.mubr.bf16.gmra.mrb[0].mxu0 %v592
  %v1141 = vpop.f32.mrb[0].mxu0
  %v1142 = vadd.f32 0.0, %v1141
  %v1143 = vpop.f32.mrb[0].mxu0
  %v1144 = vpop.f32.mrb[0].mxu0
  %v1145 = vadd.f32 0.0, %v1144
  %v1146 = vpop.f32.mrb[0].mxu0
  %1147 = vmatprep.mubr.bf16.mxu0 %v596
  %1148 = vmatmul.mubr.bf16.gmra.mrb[0].mxu0 %v595
  %v1149 = vpop.f32.mrb[0].mxu0
  %v1150 = vadd.f32 0.0, %v1149
  %v1151 = vpop.f32.mrb[0].mxu0
  %v1152 = vpop.f32.mrb[0].mxu0
  %v1153 = vadd.f32 0.0, %v1152
  %v1154 = vpop.f32.mrb[0].mxu0
  %1155 = vdwg.mxu0
  %1156 = vmatprep.subr.bf16.mxu0 0
  %1157 = vmatpush1.bf16.msra.mxu0 %v750
  %1158 = vmatprep.subr.bf16.mxu0 0
  %1159 = vmatpush1.bf16.msra.mxu0 %v751
  %1160 = vmatprep.subr.bf16.mxu0 0
  %1161 = vmatpush1.bf16.msra.mxu0 0
  %1162 = vmatprep.subr.bf16.mxu0 0
  %1163 = vmatpush1.bf16.msra.mxu0 0
  %1164 = vmatprep.subr.bf16.mxu0 0
  %1165 = vmatpush1.bf16.msra.mxu0 0
  %1166 = vmatprep.subr.bf16.mxu0 0
  %1167 = vmatpush1.bf16.msra.mxu0 0
  %1168 = vmatprep.subr.bf16.mxu0 0
  %1169 = vmatpush1.bf16.msra.mxu0 0
  %1170 = vmatprep.subr.bf16.mxu0 0
  %1171 = vmatpush1.bf16.msra.mxu0 0
  %1172 = vmatprep.subr.bf16.mxu0 0
  %1173 = vmatpush1.bf16.msra.mxu0 0
  %1174 = vmatprep.subr.bf16.mxu0 0
  %1175 = vmatpush1.bf16.msra.mxu0 0
  %1176 = vmatprep.subr.bf16.mxu0 0
  %1177 = vmatpush1.bf16.msra.mxu0 0
  %1178 = vmatprep.subr.bf16.mxu0 0
  %1179 = vmatpush1.bf16.msra.mxu0 0
  %1180 = vmatprep.subr.bf16.mxu0 0
  %1181 = vmatpush1.bf16.msra.mxu0 0
  %1182 = vmatprep.subr.bf16.mxu0 0
  %1183 = vmatpush1.bf16.msra.mxu0 0
  %1184 = vmatprep.subr.bf16.mxu0 0
  %1185 = vmatpush1.bf16.msra.mxu0 0
  %1186 = vmatprep.subr.bf16.mxu0 0
  %1187 = vmatpush1.bf16.msra.mxu0 0
  %1188 = vmatprep.mubr.bf16.mxu0 0
  %1189 = vmatmul.mubr.bf16.gmra.mrb[0].mxu0 %v772
  %v1190 = vpop.f32.mrb[0].mxu0
  %v1191 = vadd.f32 %v902, %v1190
  %v1192 = vpop.f32.mrb[0].mxu0
  %v1193 = vpop.f32.mrb[0].mxu0
  %v1194 = vadd.f32 %v905, %v1193
  %v1195 = vpop.f32.mrb[0].mxu0
  %1196 = vmatprep.mubr.bf16.mxu0 0
  %1197 = vmatmul.mubr.bf16.gmra.mrb[0].mxu0 %v775
  %v1198 = vpop.f32.mrb[0].mxu0
  %v1199 = vadd.f32 %v910, %v1198
  %v1200 = vpop.f32.mrb[0].mxu0
  %v1201 = vpop.f32.mrb[0].mxu0
  %v1202 = vadd.f32 %v913, %v1201
  %v1203 = vpop.f32.mrb[0].mxu0
  %1204 = vmatprep.mubr.bf16.mxu0 0
  %1205 = vmatmul.mubr.bf16.gmra.mrb[0].mxu0 %v778
  %v1206 = vpop.f32.mrb[0].mxu0
  %v1207 = vadd.f32 %v918, %v1206
  %v1208 = vpop.f32.mrb[0].mxu0
  %v1209 = vpop.f32.mrb[0].mxu0
  %v1210 = vadd.f32 %v921, %v1209
  %v1211 = vpop.f32.mrb[0].mxu0
  %1212 = vmatprep.mubr.bf16.mxu0 0
  %1213 = vmatmul.mubr.bf16.gmra.mrb[0].mxu0 %v781
  %v1214 = vpop.f32.mrb[0].mxu0
  %v1215 = vadd.f32 %v926, %v1214
  %v1216 = vpop.f32.mrb[0].mxu0
  %v1217 = vpop.f32.mrb[0].mxu0
  %v1218 = vadd.f32 %v929, %v1217
  %v1219 = vpop.f32.mrb[0].mxu0
  %1220 = vmatprep.mubr.bf16.mxu0 0
  %1221 = vmatmul.mubr.bf16.gmra.mrb[0].mxu0 %v784
  %v1222 = vpop.f32.mrb[0].mxu0
  %v1223 = vadd.f32 %v934, %v1222
  %v1224 = vpop.f32.mrb[0].mxu0
  %v1225 = vpop.f32.mrb[0].mxu0
  %v1226 = vadd.f32 %v937, %v1225
  %v1227 = vpop.f32.mrb[0].mxu0
  %1228 = vmatprep.mubr.bf16.mxu0 0
  %1229 = vmatmul.mubr.bf16.gmra.mrb[0].mxu0 %v787
  %v1230 = vpop.f32.mrb[0].mxu0
  %v1231 = vadd.f32 %v942, %v1230
  %v1232 = vpop.f32.mrb[0].mxu0
  %v1233 = vpop.f32.mrb[0].mxu0
  %v1234 = vadd.f32 %v945, %v1233
  %v1235 = vpop.f32.mrb[0].mxu0
  %1236 = vmatprep.mubr.bf16.mxu0 0
  %1237 = vmatmul.mubr.bf16.gmra.mrb[0].mxu0 %v790
  %v1238 = vpop.f32.mrb[0].mxu0
  %v1239 = vadd.f32 %v950, %v1238
  %v1240 = vpop.f32.mrb[0].mxu0
  %v1241 = vpop.f32.mrb[0].mxu0
  %v1242 = vadd.f32 %v953, %v1241
  %v1243 = vpop.f32.mrb[0].mxu0
  %1244 = vmatprep.mubr.bf16.mxu0 0
  %1245 = vmatmul.mubr.bf16.gmra.mrb[0].mxu0 %v793
  %v1246 = vpop.f32.mrb[0].mxu0
  %v1247 = vadd.f32 %v958, %v1246
  %v1248 = vpop.f32.mrb[0].mxu0
  %v1249 = vpop.f32.mrb[0].mxu0
  %v1250 = vadd.f32 %v961, %v1249
  %v1251 = vpop.f32.mrb[0].mxu0
  %1252 = vmatprep.mubr.bf16.mxu0 0
  %1253 = vmatmul.mubr.bf16.gmra.mrb[0].mxu0 %v796
  %v1254 = vpop.f32.mrb[0].mxu0
  %v1255 = vadd.f32 %v966, %v1254
  %v1256 = vpop.f32.mrb[0].mxu0
  %v1257 = vpop.f32.mrb[0].mxu0
  %v1258 = vadd.f32 %v969, %v1257
  %v1259 = vpop.f32.mrb[0].mxu0
  %1260 = vmatprep.mubr.bf16.mxu0 0
  %1261 = vmatmul.mubr.bf16.gmra.mrb[0].mxu0 %v799
  %v1262 = vpop.f32.mrb[0].mxu0
  %v1263 = vadd.f32 %v974, %v1262
  %v1264 = vpop.f32.mrb[0].mxu0
  %v1265 = vpop.f32.mrb[0].mxu0
  %v1266 = vadd.f32 %v977, %v1265
  %v1267 = vpop.f32.mrb[0].mxu0
  %1268 = vmatprep.mubr.bf16.mxu0 0
  %1269 = vmatmul.mubr.bf16.gmra.mrb[0].mxu0 %v802
  %v1270 = vpop.f32.mrb[0].mxu0
  %v1271 = vadd.f32 %v982, %v1270
  %v1272 = vpop.f32.mrb[0].mxu0
  %v1273 = vpop.f32.mrb[0].mxu0
  %v1274 = vadd.f32 %v985, %v1273
  %v1275 = vpop.f32.mrb[0].mxu0
  %1276 = vmatprep.mubr.bf16.mxu0 0
  %1277 = vmatmul.mubr.bf16.gmra.mrb[0].mxu0 %v805
  %v1278 = vpop.f32.mrb[0].mxu0
  %v1279 = vadd.f32 %v990, %v1278
  %v1280 = vpop.f32.mrb[0].mxu0
  %v1281 = vpop.f32.mrb[0].mxu0
  %v1282 = vadd.f32 %v993, %v1281
  %v1283 = vpop.f32.mrb[0].mxu0
  %1284 = vmatprep.mubr.bf16.mxu0 0
  %1285 = vmatmul.mubr.bf16.gmra.mrb[0].mxu0 %v808
  %v1286 = vpop.f32.mrb[0].mxu0
  %v1287 = vadd.f32 %v998, %v1286
  %v1288 = vpop.f32.mrb[0].mxu0
  %v1289 = vpop.f32.mrb[0].mxu0
  %v1290 = vadd.f32 %v1001, %v1289
  %v1291 = vpop.f32.mrb[0].mxu0
  %1292 = vmatprep.mubr.bf16.mxu0 0
  %1293 = vmatmul.mubr.bf16.gmra.mrb[0].mxu0 %v811
  %v1294 = vpop.f32.mrb[0].mxu0
  %v1295 = vadd.f32 %v1006, %v1294
  %v1296 = vpop.f32.mrb[0].mxu0
  %v1297 = vpop.f32.mrb[0].mxu0
  %v1298 = vadd.f32 %v1009, %v1297
  %v1299 = vpop.f32.mrb[0].mxu0
  %1300 = vmatprep.mubr.bf16.mxu0 0
  %1301 = vmatmul.mubr.bf16.gmra.mrb[0].mxu0 %v814
  %v1302 = vpop.f32.mrb[0].mxu0
  %v1303 = vadd.f32 %v1014, %v1302
  %v1304 = vpop.f32.mrb[0].mxu0
  %v1305 = vpop.f32.mrb[0].mxu0
  %v1306 = vadd.f32 %v1017, %v1305
  %v1307 = vpop.f32.mrb[0].mxu0
  %1308 = vmatprep.mubr.bf16.mxu0 0
  %1309 = vmatmul.mubr.bf16.gmra.mrb[0].mxu0 %v817
  %v1310 = vpop.f32.mrb[0].mxu0
  %v1311 = vadd.f32 %v1022, %v1310
  %v1312 = vpop.f32.mrb[0].mxu0
  %v1313 = vpop.f32.mrb[0].mxu0
  %v1314 = vadd.f32 %v1025, %v1313
  %v1315 = vpop.f32.mrb[0].mxu0
  %1316 = vmatprep.mubr.bf16.mxu0 0
  %1317 = vmatmul.mubr.bf16.gmra.mrb[0].mxu0 %v820
  %v1318 = vpop.f32.mrb[0].mxu0
  %v1319 = vadd.f32 %v1030, %v1318
  %v1320 = vpop.f32.mrb[0].mxu0
  %v1321 = vpop.f32.mrb[0].mxu0
  %v1322 = vadd.f32 %v1033, %v1321
  %v1323 = vpop.f32.mrb[0].mxu0
  %1324 = vmatprep.mubr.bf16.mxu0 0
  %1325 = vmatmul.mubr.bf16.gmra.mrb[0].mxu0 %v823
  %v1326 = vpop.f32.mrb[0].mxu0
  %v1327 = vadd.f32 %v1038, %v1326
  %v1328 = vpop.f32.mrb[0].mxu0
  %v1329 = vpop.f32.mrb[0].mxu0
  %v1330 = vadd.f32 %v1041, %v1329
  %v1331 = vpop.f32.mrb[0].mxu0
  %1332 = vmatprep.mubr.bf16.mxu0 0
  %1333 = vmatmul.mubr.bf16.gmra.mrb[0].mxu0 %v826
  %v1334 = vpop.f32.mrb[0].mxu0
  %v1335 = vadd.f32 %v1046, %v1334
  %v1336 = vpop.f32.mrb[0].mxu0
  %v1337 = vpop.f32.mrb[0].mxu0
  %v1338 = vadd.f32 %v1049, %v1337
  %v1339 = vpop.f32.mrb[0].mxu0
  %1340 = vmatprep.mubr.bf16.mxu0 0
  %1341 = vmatmul.mubr.bf16.gmra.mrb[0].mxu0 %v829
  %v1342 = vpop.f32.mrb[0].mxu0
  %v1343 = vadd.f32 %v1054, %v1342
  %v1344 = vpop.f32.mrb[0].mxu0
  %v1345 = vpop.f32.mrb[0].mxu0
  %v1346 = vadd.f32 %v1057, %v1345
  %v1347 = vpop.f32.mrb[0].mxu0
  %1348 = vmatprep.mubr.bf16.mxu0 0
  %1349 = vmatmul.mubr.bf16.gmra.mrb[0].mxu0 %v832
  %v1350 = vpop.f32.mrb[0].mxu0
  %v1351 = vadd.f32 %v1062, %v1350
  %v1352 = vpop.f32.mrb[0].mxu0
  %v1353 = vpop.f32.mrb[0].mxu0
  %v1354 = vadd.f32 %v1065, %v1353
  %v1355 = vpop.f32.mrb[0].mxu0
  %1356 = vmatprep.mubr.bf16.mxu0 0
  %1357 = vmatmul.mubr.bf16.gmra.mrb[0].mxu0 %v835
  %v1358 = vpop.f32.mrb[0].mxu0
  %v1359 = vadd.f32 %v1070, %v1358
  %v1360 = vpop.f32.mrb[0].mxu0
  %v1361 = vpop.f32.mrb[0].mxu0
  %v1362 = vadd.f32 %v1073, %v1361
  %v1363 = vpop.f32.mrb[0].mxu0
  %1364 = vmatprep.mubr.bf16.mxu0 0
  %1365 = vmatmul.mubr.bf16.gmra.mrb[0].mxu0 %v838
  %v1366 = vpop.f32.mrb[0].mxu0
  %v1367 = vadd.f32 %v1078, %v1366
  %v1368 = vpop.f32.mrb[0].mxu0
  %v1369 = vpop.f32.mrb[0].mxu0
  %v1370 = vadd.f32 %v1081, %v1369
  %v1371 = vpop.f32.mrb[0].mxu0
  %1372 = vmatprep.mubr.bf16.mxu0 0
  %1373 = vmatmul.mubr.bf16.gmra.mrb[0].mxu0 %v841
  %v1374 = vpop.f32.mrb[0].mxu0
  %v1375 = vadd.f32 %v1086, %v1374
  %v1376 = vpop.f32.mrb[0].mxu0
  %v1377 = vpop.f32.mrb[0].mxu0
  %v1378 = vadd.f32 %v1089, %v1377
  %v1379 = vpop.f32.mrb[0].mxu0
  %1380 = vmatprep.mubr.bf16.mxu0 0
  %1381 = vmatmul.mubr.bf16.gmra.mrb[0].mxu0 %v844
  %v1382 = vpop.f32.mrb[0].mxu0
  %v1383 = vadd.f32 %v1094, %v1382
  %v1384 = vpop.f32.mrb[0].mxu0
  %v1385 = vpop.f32.mrb[0].mxu0
  %v1386 = vadd.f32 %v1097, %v1385
  %v1387 = vpop.f32.mrb[0].mxu0
  %1388 = vmatprep.mubr.bf16.mxu0 0
  %1389 = vmatmul.mubr.bf16.gmra.mrb[0].mxu0 %v847
  %v1390 = vpop.f32.mrb[0].mxu0
  %v1391 = vadd.f32 %v1102, %v1390
  %v1392 = vpop.f32.mrb[0].mxu0
  %v1393 = vpop.f32.mrb[0].mxu0
  %v1394 = vadd.f32 %v1105, %v1393
  %v1395 = vpop.f32.mrb[0].mxu0
  %1396 = vmatprep.mubr.bf16.mxu0 0
  %1397 = vmatmul.mubr.bf16.gmra.mrb[0].mxu0 %v850
  %v1398 = vpop.f32.mrb[0].mxu0
  %v1399 = vadd.f32 %v1110, %v1398
  %v1400 = vpop.f32.mrb[0].mxu0
  %v1401 = vpop.f32.mrb[0].mxu0
  %v1402 = vadd.f32 %v1113, %v1401
  %v1403 = vpop.f32.mrb[0].mxu0
  %1404 = vmatprep.mubr.bf16.mxu0 0
  %1405 = vmatmul.mubr.bf16.gmra.mrb[0].mxu0 %v853
  %v1406 = vpop.f32.mrb[0].mxu0
  %v1407 = vadd.f32 %v1118, %v1406
  %v1408 = vpop.f32.mrb[0].mxu0
  %v1409 = vpop.f32.mrb[0].mxu0
  %v1410 = vadd.f32 %v1121, %v1409
  %v1411 = vpop.f32.mrb[0].mxu0
  %1412 = vmatprep.mubr.bf16.mxu0 0
  %1413 = vmatmul.mubr.bf16.gmra.mrb[0].mxu0 %v856
  %v1414 = vpop.f32.mrb[0].mxu0
  %v1415 = vadd.f32 %v1126, %v1414
  %v1416 = vpop.f32.mrb[0].mxu0
  %v1417 = vpop.f32.mrb[0].mxu0
  %v1418 = vadd.f32 %v1129, %v1417
  %v1419 = vpop.f32.mrb[0].mxu0
  %1420 = vmatprep.mubr.bf16.mxu0 0
  %1421 = vmatmul.mubr.bf16.gmra.mrb[0].mxu0 %v859
  %v1422 = vpop.f32.mrb[0].mxu0
  %v1423 = vadd.f32 %v1134, %v1422
  %v1424 = vpop.f32.mrb[0].mxu0
  %v1425 = vpop.f32.mrb[0].mxu0
  %v1426 = vadd.f32 %v1137, %v1425
  %v1427 = vpop.f32.mrb[0].mxu0
  %1428 = vmatprep.mubr.bf16.mxu0 0
  %1429 = vmatmul.mubr.bf16.gmra.mrb[0].mxu0 %v862
  %v1430 = vpop.f32.mrb[0].mxu0
  %v1431 = vadd.f32 %v1142, %v1430
  %v1432 = vpop.f32.mrb[0].mxu0
  %v1433 = vpop.f32.mrb[0].mxu0
  %v1434 = vadd.f32 %v1145, %v1433
  %v1435 = vpop.f32.mrb[0].mxu0
  %1436 = vmatprep.mubr.bf16.mxu0 0
  %1437 = vmatmul.mubr.bf16.gmra.mrb[0].mxu0 %v865
  %v1438 = vpop.f32.mrb[0].mxu0
  %v1439 = vadd.f32 %v1150, %v1438
  %v1440 = vpop.f32.mrb[0].mxu0
  %v1441 = vpop.f32.mrb[0].mxu0
  %v1442 = vadd.f32 %v1153, %v1441
  %v1443 = vpop.f32.mrb[0].mxu0
  %1444 = vdwg.mxu0
  %v1445 = vld [vmem:[%s2] sm:$0x1]
  %v1447 = vlaneseq
  %v1448 = vshrl.u32 %v1447, 7
  %v1449 = vsub.s32 0, %v1448
  %v1450 = vrot.slane %v1445, %v1449
  %v1452 = vmul.f32 %v1191, %v1450
  %v1453 = vmul.f32 %v1194, %v1450
  %v1454 = vmul.f32 %v1199, %v1450
  %v1455 = vmul.f32 %v1202, %v1450
  %v1456 = vmul.f32 %v1207, %v1450
  %v1457 = vmul.f32 %v1210, %v1450
  %v1458 = vmul.f32 %v1215, %v1450
  %v1459 = vmul.f32 %v1218, %v1450
  %v1460 = vmul.f32 %v1223, %v1450
  %v1461 = vmul.f32 %v1226, %v1450
  %v1462 = vmul.f32 %v1231, %v1450
  %v1463 = vmul.f32 %v1234, %v1450
  %v1464 = vmul.f32 %v1239, %v1450
  %v1465 = vmul.f32 %v1242, %v1450
  %v1466 = vmul.f32 %v1247, %v1450
  %v1467 = vmul.f32 %v1250, %v1450
  %v1468 = vmul.f32 %v1255, %v1450
  %v1469 = vmul.f32 %v1258, %v1450
  %v1470 = vmul.f32 %v1263, %v1450
  %v1471 = vmul.f32 %v1266, %v1450
  %v1472 = vmul.f32 %v1271, %v1450
  %v1473 = vmul.f32 %v1274, %v1450
  %v1474 = vmul.f32 %v1279, %v1450
  %v1475 = vmul.f32 %v1282, %v1450
  %v1476 = vmul.f32 %v1287, %v1450
  %v1477 = vmul.f32 %v1290, %v1450
  %v1478 = vmul.f32 %v1295, %v1450
  %v1479 = vmul.f32 %v1298, %v1450
  %v1480 = vmul.f32 %v1303, %v1450
  %v1481 = vmul.f32 %v1306, %v1450
  %v1482 = vmul.f32 %v1311, %v1450
  %v1483 = vmul.f32 %v1314, %v1450
  %v1484 = vmul.f32 %v1319, %v1450
  %v1485 = vmul.f32 %v1322, %v1450
  %v1486 = vmul.f32 %v1327, %v1450
  %v1487 = vmul.f32 %v1330, %v1450
  %v1488 = vmul.f32 %v1335, %v1450
  %v1489 = vmul.f32 %v1338, %v1450
  %v1490 = vmul.f32 %v1343, %v1450
  %v1491 = vmul.f32 %v1346, %v1450
  %v1492 = vmul.f32 %v1351, %v1450
  %v1493 = vmul.f32 %v1354, %v1450
  %v1494 = vmul.f32 %v1359, %v1450
  %v1495 = vmul.f32 %v1362, %v1450
  %v1496 = vmul.f32 %v1367, %v1450
  %v1497 = vmul.f32 %v1370, %v1450
  %v1498 = vmul.f32 %v1375, %v1450
  %v1499 = vmul.f32 %v1378, %v1450
  %v1500 = vmul.f32 %v1383, %v1450
  %v1501 = vmul.f32 %v1386, %v1450
  %v1502 = vmul.f32 %v1391, %v1450
  %v1503 = vmul.f32 %v1394, %v1450
  %v1504 = vmul.f32 %v1399, %v1450
  %v1505 = vmul.f32 %v1402, %v1450
  %v1506 = vmul.f32 %v1407, %v1450
  %v1507 = vmul.f32 %v1410, %v1450
  %v1508 = vmul.f32 %v1415, %v1450
  %v1509 = vmul.f32 %v1418, %v1450
  %v1510 = vmul.f32 %v1423, %v1450
  %v1511 = vmul.f32 %v1426, %v1450
  %v1512 = vmul.f32 %v1431, %v1450
  %v1513 = vmul.f32 %v1434, %v1450
  %v1514 = vmul.f32 %v1439, %v1450
  %v1515 = vmul.f32 %v1442, %v1450
  %v1516 = vld [vmem:[%s3] sm:$0x1]
  %v1518 = vlaneseq
  %v1519 = vshrl.u32 %v1518, 7
  %v1520 = vsub.s32 0, %v1519
  %v1521 = vrot.slane %v1516, %v1520
  %v1523 = vadd.f32 %v1452, %v1521
  %v1524 = vadd.f32 %v1453, %v1521
  %v1525 = vadd.f32 %v1454, %v1521
  %v1526 = vadd.f32 %v1455, %v1521
  %v1527 = vadd.f32 %v1456, %v1521
  %v1528 = vadd.f32 %v1457, %v1521
  %v1529 = vadd.f32 %v1458, %v1521
  %v1530 = vadd.f32 %v1459, %v1521
  %v1531 = vadd.f32 %v1460, %v1521
  %v1532 = vadd.f32 %v1461, %v1521
  %v1533 = vadd.f32 %v1462, %v1521
  %v1534 = vadd.f32 %v1463, %v1521
  %v1535 = vadd.f32 %v1464, %v1521
  %v1536 = vadd.f32 %v1465, %v1521
  %v1537 = vadd.f32 %v1466, %v1521
  %v1538 = vadd.f32 %v1467, %v1521
  %v1539 = vadd.f32 %v1468, %v1521
  %v1540 = vadd.f32 %v1469, %v1521
  %v1541 = vadd.f32 %v1470, %v1521
  %v1542 = vadd.f32 %v1471, %v1521
  %v1543 = vadd.f32 %v1472, %v1521
  %v1544 = vadd.f32 %v1473, %v1521
  %v1545 = vadd.f32 %v1474, %v1521
  %v1546 = vadd.f32 %v1475, %v1521
  %v1547 = vadd.f32 %v1476, %v1521
  %v1548 = vadd.f32 %v1477, %v1521
  %v1549 = vadd.f32 %v1478, %v1521
  %v1550 = vadd.f32 %v1479, %v1521
  %v1551 = vadd.f32 %v1480, %v1521
  %v1552 = vadd.f32 %v1481, %v1521
  %v1553 = vadd.f32 %v1482, %v1521
  %v1554 = vadd.f32 %v1483, %v1521
  %v1555 = vadd.f32 %v1484, %v1521
  %v1556 = vadd.f32 %v1485, %v1521
  %v1557 = vadd.f32 %v1486, %v1521
  %v1558 = vadd.f32 %v1487, %v1521
  %v1559 = vadd.f32 %v1488, %v1521
  %v1560 = vadd.f32 %v1489, %v1521
  %v1561 = vadd.f32 %v1490, %v1521
  %v1562 = vadd.f32 %v1491, %v1521
  %v1563 = vadd.f32 %v1492, %v1521
  %v1564 = vadd.f32 %v1493, %v1521
  %v1565 = vadd.f32 %v1494, %v1521
  %v1566 = vadd.f32 %v1495, %v1521
  %v1567 = vadd.f32 %v1496, %v1521
  %v1568 = vadd.f32 %v1497, %v1521
  %v1569 = vadd.f32 %v1498, %v1521
  %v1570 = vadd.f32 %v1499, %v1521
  %v1571 = vadd.f32 %v1500, %v1521
  %v1572 = vadd.f32 %v1501, %v1521
  %v1573 = vadd.f32 %v1502, %v1521
  %v1574 = vadd.f32 %v1503, %v1521
  %v1575 = vadd.f32 %v1504, %v1521
  %v1576 = vadd.f32 %v1505, %v1521
  %v1577 = vadd.f32 %v1506, %v1521
  %v1578 = vadd.f32 %v1507, %v1521
  %v1579 = vadd.f32 %v1508, %v1521
  %v1580 = vadd.f32 %v1509, %v1521
  %v1581 = vadd.f32 %v1510, %v1521
  %v1582 = vadd.f32 %v1511, %v1521
  %v1583 = vadd.f32 %v1512, %v1521
  %v1584 = vadd.f32 %v1513, %v1521
  %v1585 = vadd.f32 %v1514, %v1521
  %v1586 = vadd.f32 %v1515, %v1521
  %v1587 = vmax.f32 %v1523, 0.0
  %v1588 = vmax.f32 %v1524, 0.0
  %v1589 = vmax.f32 %v1525, 0.0
  %v1590 = vmax.f32 %v1526, 0.0
  %v1591 = vmax.f32 %v1527, 0.0
  %v1592 = vmax.f32 %v1528, 0.0
  %v1593 = vmax.f32 %v1529, 0.0
  %v1594 = vmax.f32 %v1530, 0.0
  %v1595 = vmax.f32 %v1531, 0.0
  %v1596 = vmax.f32 %v1532, 0.0
  %v1597 = vmax.f32 %v1533, 0.0
  %v1598 = vmax.f32 %v1534, 0.0
  %v1599 = vmax.f32 %v1535, 0.0
  %v1600 = vmax.f32 %v1536, 0.0
  %v1601 = vmax.f32 %v1537, 0.0
  %v1602 = vmax.f32 %v1538, 0.0
  %v1603 = vmax.f32 %v1539, 0.0
  %v1604 = vmax.f32 %v1540, 0.0
  %v1605 = vmax.f32 %v1541, 0.0
  %v1606 = vmax.f32 %v1542, 0.0
  %v1607 = vmax.f32 %v1543, 0.0
  %v1608 = vmax.f32 %v1544, 0.0
  %v1609 = vmax.f32 %v1545, 0.0
  %v1610 = vmax.f32 %v1546, 0.0
  %v1611 = vmax.f32 %v1547, 0.0
  %v1612 = vmax.f32 %v1548, 0.0
  %v1613 = vmax.f32 %v1549, 0.0
  %v1614 = vmax.f32 %v1550, 0.0
  %v1615 = vmax.f32 %v1551, 0.0
  %v1616 = vmax.f32 %v1552, 0.0
  %v1617 = vmax.f32 %v1553, 0.0
  %v1618 = vmax.f32 %v1554, 0.0
  %v1619 = vmax.f32 %v1555, 0.0
  %v1620 = vmax.f32 %v1556, 0.0
  %v1621 = vmax.f32 %v1557, 0.0
  %v1622 = vmax.f32 %v1558, 0.0
  %v1623 = vmax.f32 %v1559, 0.0
  %v1624 = vmax.f32 %v1560, 0.0
  %v1625 = vmax.f32 %v1561, 0.0
  %v1626 = vmax.f32 %v1562, 0.0
  %v1627 = vmax.f32 %v1563, 0.0
  %v1628 = vmax.f32 %v1564, 0.0
  %v1629 = vmax.f32 %v1565, 0.0
  %v1630 = vmax.f32 %v1566, 0.0
  %v1631 = vmax.f32 %v1567, 0.0
  %v1632 = vmax.f32 %v1568, 0.0
  %v1633 = vmax.f32 %v1569, 0.0
  %v1634 = vmax.f32 %v1570, 0.0
  %v1635 = vmax.f32 %v1571, 0.0
  %v1636 = vmax.f32 %v1572, 0.0
  %v1637 = vmax.f32 %v1573, 0.0
  %v1638 = vmax.f32 %v1574, 0.0
  %v1639 = vmax.f32 %v1575, 0.0
  %v1640 = vmax.f32 %v1576, 0.0
  %v1641 = vmax.f32 %v1577, 0.0
  %v1642 = vmax.f32 %v1578, 0.0
  %v1643 = vmax.f32 %v1579, 0.0
  %v1644 = vmax.f32 %v1580, 0.0
  %v1645 = vmax.f32 %v1581, 0.0
  %v1646 = vmax.f32 %v1582, 0.0
  %v1647 = vmax.f32 %v1583, 0.0
  %v1648 = vmax.f32 %v1584, 0.0
  %v1649 = vmax.f32 %v1585, 0.0
  %v1650 = vmax.f32 %v1586, 0.0
  %v1651 = vpack.c.bf16 %v1588, %v1587
  %v1652 = vpack.c.bf16 %v1590, %v1589
  %v1653 = vpack.c.bf16 %v1592, %v1591
  %v1654 = vpack.c.bf16 %v1594, %v1593
  %v1655 = vpack.c.bf16 %v1596, %v1595
  %v1656 = vpack.c.bf16 %v1598, %v1597
  %v1657 = vpack.c.bf16 %v1600, %v1599
  %v1658 = vpack.c.bf16 %v1602, %v1601
  %v1659 = vpack.c.bf16 %v1604, %v1603
  %v1660 = vpack.c.bf16 %v1606, %v1605
  %v1661 = vpack.c.bf16 %v1608, %v1607
  %v1662 = vpack.c.bf16 %v1610, %v1609
  %v1663 = vpack.c.bf16 %v1612, %v1611
  %v1664 = vpack.c.bf16 %v1614, %v1613
  %v1665 = vpack.c.bf16 %v1616, %v1615
  %v1666 = vpack.c.bf16 %v1618, %v1617
  %v1667 = vpack.c.bf16 %v1620, %v1619
  %v1668 = vpack.c.bf16 %v1622, %v1621
  %v1669 = vpack.c.bf16 %v1624, %v1623
  %v1670 = vpack.c.bf16 %v1626, %v1625
  %v1671 = vpack.c.bf16 %v1628, %v1627
  %v1672 = vpack.c.bf16 %v1630, %v1629
  %v1673 = vpack.c.bf16 %v1632, %v1631
  %v1674 = vpack.c.bf16 %v1634, %v1633
  %v1675 = vpack.c.bf16 %v1636, %v1635
  %v1676 = vpack.c.bf16 %v1638, %v1637
  %v1677 = vpack.c.bf16 %v1640, %v1639
  %v1678 = vpack.c.bf16 %v1642, %v1641
  %v1679 = vpack.c.bf16 %v1644, %v1643
  %v1680 = vpack.c.bf16 %v1646, %v1645
  %v1681 = vpack.c.bf16 %v1648, %v1647
  %v1682 = vpack.c.bf16 %v1650, %v1649
  %v1715 = vunpack.c.l.b16 %v1651
  %v1716 = vunpack.c.h.b16 %v1651
  %v1717 = vunpack.c.l.b16 %v1652
  %v1718 = vunpack.c.h.b16 %v1652
  %v1719 = vunpack.c.l.b16 %v1653
  %v1720 = vunpack.c.h.b16 %v1653
  %v1721 = vunpack.c.l.b16 %v1654
  %v1722 = vunpack.c.h.b16 %v1654
  %v1723 = vunpack.c.l.b16 %v1655
  %v1724 = vunpack.c.h.b16 %v1655
  %v1725 = vunpack.c.l.b16 %v1656
  %v1726 = vunpack.c.h.b16 %v1656
  %v1727 = vunpack.c.l.b16 %v1657
  %v1728 = vunpack.c.h.b16 %v1657
  %v1729 = vunpack.c.l.b16 %v1658
  %v1730 = vunpack.c.h.b16 %v1658
  %v1731 = vunpack.c.l.b16 %v1659
  %v1732 = vunpack.c.h.b16 %v1659
  %v1733 = vunpack.c.l.b16 %v1660
  %v1734 = vunpack.c.h.b16 %v1660
  %v1735 = vunpack.c.l.b16 %v1661
  %v1736 = vunpack.c.h.b16 %v1661
  %v1737 = vunpack.c.l.b16 %v1662
  %v1738 = vunpack.c.h.b16 %v1662
  %v1739 = vunpack.c.l.b16 %v1663
  %v1740 = vunpack.c.h.b16 %v1663
  %v1741 = vunpack.c.l.b16 %v1664
  %v1742 = vunpack.c.h.b16 %v1664
  %v1743 = vunpack.c.l.b16 %v1665
  %v1744 = vunpack.c.h.b16 %v1665
  %v1745 = vunpack.c.l.b16 %v1666
  %v1746 = vunpack.c.h.b16 %v1666
  %v1747 = vunpack.c.l.b16 %v1667
  %v1748 = vunpack.c.h.b16 %v1667
  %v1749 = vunpack.c.l.b16 %v1668
  %v1750 = vunpack.c.h.b16 %v1668
  %v1751 = vunpack.c.l.b16 %v1669
  %v1752 = vunpack.c.h.b16 %v1669
  %v1753 = vunpack.c.l.b16 %v1670
  %v1754 = vunpack.c.h.b16 %v1670
  %v1755 = vunpack.c.l.b16 %v1671
  %v1756 = vunpack.c.h.b16 %v1671
  %v1757 = vunpack.c.l.b16 %v1672
  %v1758 = vunpack.c.h.b16 %v1672
  %v1759 = vunpack.c.l.b16 %v1673
  %v1760 = vunpack.c.h.b16 %v1673
  %v1761 = vunpack.c.l.b16 %v1674
  %v1762 = vunpack.c.h.b16 %v1674
  %v1763 = vunpack.c.l.b16 %v1675
  %v1764 = vunpack.c.h.b16 %v1675
  %v1765 = vunpack.c.l.b16 %v1676
  %v1766 = vunpack.c.h.b16 %v1676
  %v1767 = vunpack.c.l.b16 %v1677
  %v1768 = vunpack.c.h.b16 %v1677
  %v1769 = vunpack.c.l.b16 %v1678
  %v1770 = vunpack.c.h.b16 %v1678
  %v1771 = vunpack.c.l.b16 %v1679
  %v1772 = vunpack.c.h.b16 %v1679
  %v1773 = vunpack.c.l.b16 %v1680
  %v1774 = vunpack.c.h.b16 %v1680
  %v1775 = vunpack.c.l.b16 %v1681
  %v1776 = vunpack.c.h.b16 %v1681
  %v1777 = vunpack.c.l.b16 %v1682
  %v1778 = vunpack.c.h.b16 %v1682
  %v1779 = vpack.c.b16 %v1715, %v1715
  %v1780 = vpack.c.b16 %v1716, %v1716
  %v1781 = vpack.c.b16 %v1717, %v1717
  %v1782 = vpack.c.b16 %v1718, %v1718
  %v1783 = vpack.c.b16 %v1719, %v1719
  %v1784 = vpack.c.b16 %v1720, %v1720
  %v1785 = vpack.c.b16 %v1721, %v1721
  %v1786 = vpack.c.b16 %v1722, %v1722
  %v1787 = vpack.c.b16 %v1723, %v1723
  %v1788 = vpack.c.b16 %v1724, %v1724
  %v1789 = vpack.c.b16 %v1725, %v1725
  %v1790 = vpack.c.b16 %v1726, %v1726
  %v1791 = vpack.c.b16 %v1727, %v1727
  %v1792 = vpack.c.b16 %v1728, %v1728
  %v1793 = vpack.c.b16 %v1729, %v1729
  %v1794 = vpack.c.b16 %v1730, %v1730
  %v1795 = vpack.c.b16 %v1731, %v1731
  %v1796 = vpack.c.b16 %v1732, %v1732
  %v1797 = vpack.c.b16 %v1733, %v1733
  %v1798 = vpack.c.b16 %v1734, %v1734
  %v1799 = vpack.c.b16 %v1735, %v1735
  %v1800 = vpack.c.b16 %v1736, %v1736
  %v1801 = vpack.c.b16 %v1737, %v1737
  %v1802 = vpack.c.b16 %v1738, %v1738
  %v1803 = vpack.c.b16 %v1739, %v1739
  %v1804 = vpack.c.b16 %v1740, %v1740
  %v1805 = vpack.c.b16 %v1741, %v1741
  %v1806 = vpack.c.b16 %v1742, %v1742
  %v1807 = vpack.c.b16 %v1743, %v1743
  %v1808 = vpack.c.b16 %v1744, %v1744
  %v1809 = vpack.c.b16 %v1745, %v1745
  %v1810 = vpack.c.b16 %v1746, %v1746
  %v1811 = vpack.c.b16 %v1747, %v1747
  %v1812 = vpack.c.b16 %v1748, %v1748
  %v1813 = vpack.c.b16 %v1749, %v1749
  %v1814 = vpack.c.b16 %v1750, %v1750
  %v1815 = vpack.c.b16 %v1751, %v1751
  %v1816 = vpack.c.b16 %v1752, %v1752
  %v1817 = vpack.c.b16 %v1753, %v1753
  %v1818 = vpack.c.b16 %v1754, %v1754
  %v1819 = vpack.c.b16 %v1755, %v1755
  %v1820 = vpack.c.b16 %v1756, %v1756
  %v1821 = vpack.c.b16 %v1757, %v1757
  %v1822 = vpack.c.b16 %v1758, %v1758
  %v1823 = vpack.c.b16 %v1759, %v1759
  %v1824 = vpack.c.b16 %v1760, %v1760
  %v1825 = vpack.c.b16 %v1761, %v1761
  %v1826 = vpack.c.b16 %v1762, %v1762
  %v1827 = vpack.c.b16 %v1763, %v1763
  %v1828 = vpack.c.b16 %v1764, %v1764
  %v1829 = vpack.c.b16 %v1765, %v1765
  %v1830 = vpack.c.b16 %v1766, %v1766
  %v1831 = vpack.c.b16 %v1767, %v1767
  %v1832 = vpack.c.b16 %v1768, %v1768
  %v1833 = vpack.c.b16 %v1769, %v1769
  %v1834 = vpack.c.b16 %v1770, %v1770
  %v1835 = vpack.c.b16 %v1771, %v1771
  %v1836 = vpack.c.b16 %v1772, %v1772
  %v1837 = vpack.c.b16 %v1773, %v1773
  %v1838 = vpack.c.b16 %v1774, %v1774
  %v1839 = vpack.c.b16 %v1775, %v1775
  %v1840 = vpack.c.b16 %v1776, %v1776
  %v1841 = vpack.c.b16 %v1777, %v1777
  %v1842 = vpack.c.b16 %v1778, %v1778
  %vm1907 = vcmask 519168
  %1908 = vst.msk [vmem:[%s4] sm:$0xf] %vm1907, %v1779
  %1909 = vst.msk [vmem:[%s4 + $0x4] sm:$0xf] %vm1907, %v1780
  %1910 = vst.msk [vmem:[%s4 + $0x8] sm:$0xf] %vm1907, %v1781
  %1911 = vst.msk [vmem:[%s4 + $0xc] sm:$0xf] %vm1907, %v1782
  %1912 = vst.msk [vmem:[%s4 + $0x10] sm:$0xf] %vm1907, %v1783
  %1913 = vst.msk [vmem:[%s4 + $0x14] sm:$0xf] %vm1907, %v1784
  %1914 = vst.msk [vmem:[%s4 + $0x18] sm:$0xf] %vm1907, %v1785
  %1915 = vst.msk [vmem:[%s4 + $0x1c] sm:$0xf] %vm1907, %v1786
  %1916 = vst.msk [vmem:[%s4 + $0x20] sm:$0xf] %vm1907, %v1787
  %1917 = vst.msk [vmem:[%s4 + $0x24] sm:$0xf] %vm1907, %v1788
  %1918 = vst.msk [vmem:[%s4 + $0x28] sm:$0xf] %vm1907, %v1789
  %1919 = vst.msk [vmem:[%s4 + $0x2c] sm:$0xf] %vm1907, %v1790
  %1920 = vst.msk [vmem:[%s4 + $0x30] sm:$0xf] %vm1907, %v1791
  %1921 = vst.msk [vmem:[%s4 + $0x34] sm:$0xf] %vm1907, %v1792
  %1922 = vst.msk [vmem:[%s4 + $0x38] sm:$0xf] %vm1907, %v1793
  %1923 = vst.msk [vmem:[%s4 + $0x3c] sm:$0xf] %vm1907, %v1794
  %1924 = vst.msk [vmem:[%s4 + $0x40] sm:$0xf] %vm1907, %v1795
  %1925 = vst.msk [vmem:[%s4 + $0x44] sm:$0xf] %vm1907, %v1796
  %1926 = vst.msk [vmem:[%s4 + $0x48] sm:$0xf] %vm1907, %v1797
  %1927 = vst.msk [vmem:[%s4 + $0x4c] sm:$0xf] %vm1907, %v1798
  %1928 = vst.msk [vmem:[%s4 + $0x50] sm:$0xf] %vm1907, %v1799
  %1929 = vst.msk [vmem:[%s4 + $0x54] sm:$0xf] %vm1907, %v1800
  %1930 = vst.msk [vmem:[%s4 + $0x58] sm:$0xf] %vm1907, %v1801
  %1931 = vst.msk [vmem:[%s4 + $0x5c] sm:$0xf] %vm1907, %v1802
  %1932 = vst.msk [vmem:[%s4 + $0x60] sm:$0xf] %vm1907, %v1803
  %1933 = vst.msk [vmem:[%s4 + $0x64] sm:$0xf] %vm1907, %v1804
  %1934 = vst.msk [vmem:[%s4 + $0x68] sm:$0xf] %vm1907, %v1805
  %1935 = vst.msk [vmem:[%s4 + $0x6c] sm:$0xf] %vm1907, %v1806
  %1936 = vst.msk [vmem:[%s4 + $0x70] sm:$0xf] %vm1907, %v1807
  %1937 = vst.msk [vmem:[%s4 + $0x74] sm:$0xf] %vm1907, %v1808
  %1938 = vst.msk [vmem:[%s4 + $0x78] sm:$0xf] %vm1907, %v1809
  %1939 = vst.msk [vmem:[%s4 + $0x7c] sm:$0xf] %vm1907, %v1810
  %1940 = vst.msk [vmem:[%s4 + $0x80] sm:$0xf] %vm1907, %v1811
  %1941 = vst.msk [vmem:[%s4 + $0x84] sm:$0xf] %vm1907, %v1812
  %1942 = vst.msk [vmem:[%s4 + $0x88] sm:$0xf] %vm1907, %v1813
  %1943 = vst.msk [vmem:[%s4 + $0x8c] sm:$0xf] %vm1907, %v1814
  %1944 = vst.msk [vmem:[%s4 + $0x90] sm:$0xf] %vm1907, %v1815
  %1945 = vst.msk [vmem:[%s4 + $0x94] sm:$0xf] %vm1907, %v1816
  %1946 = vst.msk [vmem:[%s4 + $0x98] sm:$0xf] %vm1907, %v1817
  %1947 = vst.msk [vmem:[%s4 + $0x9c] sm:$0xf] %vm1907, %v1818
  %1948 = vst.msk [vmem:[%s4 + $0xa0] sm:$0xf] %vm1907, %v1819
  %1949 = vst.msk [vmem:[%s4 + $0xa4] sm:$0xf] %vm1907, %v1820
  %1950 = vst.msk [vmem:[%s4 + $0xa8] sm:$0xf] %vm1907, %v1821
  %1951 = vst.msk [vmem:[%s4 + $0xac] sm:$0xf] %vm1907, %v1822
  %1952 = vst.msk [vmem:[%s4 + $0xb0] sm:$0xf] %vm1907, %v1823
  %1953 = vst.msk [vmem:[%s4 + $0xb4] sm:$0xf] %vm1907, %v1824
  %1954 = vst.msk [vmem:[%s4 + $0xb8] sm:$0xf] %vm1907, %v1825
  %1955 = vst.msk [vmem:[%s4 + $0xbc] sm:$0xf] %vm1907, %v1826
  %1956 = vst.msk [vmem:[%s4 + $0xc0] sm:$0xf] %vm1907, %v1827
  %1957 = vst.msk [vmem:[%s4 + $0xc4] sm:$0xf] %vm1907, %v1828
  %1958 = vst.msk [vmem:[%s4 + $0xc8] sm:$0xf] %vm1907, %v1829
  %1959 = vst.msk [vmem:[%s4 + $0xcc] sm:$0xf] %vm1907, %v1830
  %1960 = vst.msk [vmem:[%s4 + $0xd0] sm:$0xf] %vm1907, %v1831
  %1961 = vst.msk [vmem:[%s4 + $0xd4] sm:$0xf] %vm1907, %v1832
  %1962 = vst.msk [vmem:[%s4 + $0xd8] sm:$0xf] %vm1907, %v1833
  %1963 = vst.msk [vmem:[%s4 + $0xdc] sm:$0xf] %vm1907, %v1834
  %1964 = vst.msk [vmem:[%s4 + $0xe0] sm:$0xf] %vm1907, %v1835
  %1965 = vst.msk [vmem:[%s4 + $0xe4] sm:$0xf] %vm1907, %v1836
  %1966 = vst.msk [vmem:[%s4 + $0xe8] sm:$0xf] %vm1907, %v1837
  %1967 = vst.msk [vmem:[%s4 + $0xec] sm:$0xf] %vm1907, %v1838
  %1968 = vst.msk [vmem:[%s4 + $0xf0] sm:$0xf] %vm1907, %v1839
  %1969 = vst.msk [vmem:[%s4 + $0xf4] sm:$0xf] %vm1907, %v1840
  %1970 = vst.msk [vmem:[%s4 + $0xf8] sm:$0xf] %vm1907, %v1841
  %1971 = vst.msk [vmem:[%s4 + $0xfc] sm:$0xf] %vm1907, %v1842
  // Predicated region
  $region18: #{simple_cnn_forward.9} parent=0 // pred_check
    _
  $region19: #{simple_cnn_forward.9} parent=0 // pred_check_branch
    %1973 = sbr.rel (0) target = $region21
  $region20: #{simple_cnn_forward.9} parent=0 // pred_region
    _
  $region21: #{simple_cnn_forward.9} parent=0 // pred_fallthru
    _
  // Predicated region
  $region22: #{simple_cnn_forward.9} parent=0 // pred_check
    _
  $region23: #{simple_cnn_forward.9} parent=0 // pred_check_branch
    %1975 = sbr.rel (0) target = $region25
  $region24: #{simple_cnn_forward.9} parent=0 // pred_region
    _
  $region25: #{simple_cnn_forward.9} parent=0 // pred_fallthru
    _

// kernel: simple_cnn_forward.12
$region0: #{simple_cnn_forward.12}
  #allocation0 [shape = 'u32[]', space=smem, size = 0x4, offset = 0x4, fixed_abs, tag = 'smem constant byte address 0x4 - core index']
  #allocation1 [shape = 'u32[144,128]{1,0:T(1,128)}', space=vmem, size = 0x12000, scoped, tag = 'internal scratch']
  %s0 = inlined_call_operand.vmem [shape: bf16[8,2,4,256], index: 0, kind: input, shape index: {}]
  %s1 = inlined_call_operand.vmem [shape: bf16[8,4,128], index: 1, kind: output, shape index: {}]
  %s2 = sld [smem:[#allocation0]]
  $region37: #{simple_cnn_forward.12} parent=0
    _
  %s4 = ssub.s32 1, %s2
  %s5 = scalar_select 0, %s4, %s2
  loop: start=0, step=1, limit=4
  $region2: #{simple_cnn_forward.12} parent=0 // loop_pre_header
    _
  $region3: #{simple_cnn_forward.12} parent=0 // loop_header
    %s7 = sphi 0, %s11
    %p8 = scmp.ge.s32.totalorder %s7, 4
    %s17 = sphi 0, %s19
    %s20 = sphi 0, %s17
    %s21 = sphi 0, %s20
    %s37 = sphi 0, %s21
    %s43 = sphi 0, %s45
    %s46 = sphi 0, %s43
    %s47 = sphi 0, %s46
    %s63 = sphi 0, %s47
  $region4: #{simple_cnn_forward.12} parent=0 // loop_header_branch
    %10 = sbr.rel (%p8) target = $region8
  $region5: #{simple_cnn_forward.12} parent=0 // loop_body
    %s12 = ssub.s32 %s7, 1
    %s13 = ssub.s32 %s7, 2
    %s14 = sadd.s32 %s7, 1
    %s15 = ssub.s32 %s7, %s14
    %p16 = scmp.eq.s32.totalorder %s15, 0
    %s18 = sadd.s32 %s17, 1
    %s19 = scalar_select %p16, %s17, %s18
    %p22 = pneg %p16
    %p23 = scmp.eq.s32.totalorder %s7, 1
    %p24 = por %p22, %p23
    %p25 = scmp.ne.s32.totalorder %s17, %s20
    %p26 = scmp.eq.s32.totalorder %s7, 0
    %p27 = por %p25, %p26
    %p28 = scmp.ne.s32.totalorder %s17, %s20
    %p29 = scmp.eq.s32.totalorder %s12, 1
    %p30 = por %p28, %p29
    %p31 = scmp.ne.s32.totalorder %s20, %s21
    %p32 = scmp.eq.s32.totalorder %s12, 0
    %p33 = por %p31, %p32
    %p34 = scmp.ne.s32.totalorder %s20, %s21
    %p35 = scmp.eq.s32.totalorder %s13, 1
    %p36 = por %p34, %p35
    %p38 = scmp.ne.s32.totalorder %s21, %s37
    %p39 = scmp.eq.s32.totalorder %s13, 0
    %p40 = por %p38, %p39
    %s41 = ssub.s32 %s7, %s14
    %p42 = scmp.eq.s32.totalorder %s41, 0
    %s44 = sadd.s32 %s43, 1
    %s45 = scalar_select %p42, %s43, %s44
    %p48 = pneg %p42
    %p49 = scmp.eq.s32.totalorder %s7, 1
    %p50 = por %p48, %p49
    %p51 = scmp.ne.s32.totalorder %s43, %s46
    %p52 = scmp.eq.s32.totalorder %s7, 0
    %p53 = por %p51, %p52
    %p54 = scmp.ne.s32.totalorder %s43, %s46
    %p55 = scmp.eq.s32.totalorder %s12, 1
    %p56 = por %p54, %p55
    %p57 = scmp.ne.s32.totalorder %s46, %s47
    %p58 = scmp.eq.s32.totalorder %s12, 0
    %p59 = por %p57, %p58
    %p60 = scmp.ne.s32.totalorder %s46, %s47
    %p61 = scmp.eq.s32.totalorder %s13, 1
    %p62 = por %p60, %p61
    %p64 = scmp.ne.s32.totalorder %s47, %s63
    %p65 = scmp.eq.s32.totalorder %s13, 0
    %p66 = por %p64, %p65
    %p67 = scmp.le.s32.totalorder 1, %s7
    %p68 = scmp.lt.s32.totalorder %s7, 3
    %p69 = pnand %p67, %p68
    %p70 = pneg %p69
    // Predicated region
    $region9: #{simple_cnn_forward.12} parent=5 // pred_check
      _
    $region10: #{simple_cnn_forward.12} parent=5 // pred_check_branch
      %72 = sbr.rel (%p69) target = $region12
    $region11: #{simple_cnn_forward.12} parent=5 // pred_region
      %s73 = ssub.s32 %s7, 1
    $region12: #{simple_cnn_forward.12} parent=5 // pred_fallthru
      _
    %p74 = scmp.lt.s32.totalorder %s7, 2
    // Predicated region
    $region13: #{simple_cnn_forward.12} parent=5 // pred_check
      %p75 = pneg %p74
    $region14: #{simple_cnn_forward.12} parent=5 // pred_check_branch
      %77 = sbr.rel (%p75) target = $region16
    $region15: #{simple_cnn_forward.12} parent=5 // pred_region
      // Predicated region
      $region17: #{simple_cnn_forward.12} parent=15 // pred_check
        %p78 = pneg %p27
      $region18: #{simple_cnn_forward.12} parent=15 // pred_check_branch
        %80 = sbr.rel (%p78) target = $region20
      $region19: #{simple_cnn_forward.12} parent=15 // pred_region
        %s81 = smul.u32 4, %s7
        %p82 = scmp.lt.s32.totalorder %s81, 7
        %s83 = scalar_select %p82, %s81, 7
        %s84 = smul.addr %s83, 4
        %s85 = smul.addr %s84, 2
        %s86 = scalar_lea.vmem %s0, %s85
        %s87 = smul.u32 4, %s7
      $region20: #{simple_cnn_forward.12} parent=15 // pred_fallthru
        _
    $region16: #{simple_cnn_forward.12} parent=5 // pred_fallthru
      _
    %p88 = scmp.le.s32.totalorder 1, %s7
    %p89 = scmp.lt.s32.totalorder %s7, 3
    %p90 = pnand %p88, %p89
    %p91 = pneg %p90
    // Predicated region
    $region21: #{simple_cnn_forward.12} parent=5 // pred_check
      _
    $region22: #{simple_cnn_forward.12} parent=5 // pred_check_branch
      %93 = sbr.rel (%p90) target = $region24
    $region23: #{simple_cnn_forward.12} parent=5 // pred_region
      %s94 = ssub.s32 %s7, 1
      %s95 = smul.u32 4, %s12
      %p96 = scmp.lt.s32.totalorder %s95, 7
      %s97 = scalar_select %p96, %s95, 7
      %s98 = smul.addr %s97, 4
      %s99 = smul.addr %s98, 2
      %s100 = scalar_lea.vmem %s0, %s99
      %p101 = pneg %p33
      %p102 = pneg %p30
      %p103 = pneg %p59
      %p104 = pneg %p56
      %s105 = smul.u32 4, %s12
      %p106 = scmp.lt.s32.totalorder %s105, 7
      %s107 = scalar_select %p106, %s105, 7
      %s108 = smul.addr %s107, 2
      %s109 = scalar_lea.vmem %s1, %s108
      %s110 = smul.u32 4, %s12
      %p111 = scmp.lt.s32.totalorder %s110, 7
      %s112 = scalar_select %p111, %s110, 7
      %s113 = smul.addr %s112, 4
      %s114 = smul.addr %s113, 2
      %s115 = scalar_lea.vmem %s0, %s114
      %s116 = smul.u32 4, %s12
      %s117 = smul.u32 4, %s12
      %p118 = scmp.lt.s32.totalorder %s117, 7
      %s119 = scalar_select %p118, %s117, 7
      %s120 = smul.addr %s119, 2
      %s121 = scalar_lea.vmem %s1, %s120
      %s122 = smul.u32 4, %s12
      %v123 = vld [vmem:[%s115] sm:$0xf]
      %v124 = vld [vmem:[%s115 + $0x4] sm:$0xf]
      %v125 = vld [vmem:[%s115 + $0x8] sm:$0xf]
      %v126 = vld [vmem:[%s115 + $0xc] sm:$0xf]
      %v127 = vld [vmem:[%s115 + $0x10] sm:$0xf]
      %v128 = vld [vmem:[%s115 + $0x14] sm:$0xf]
      %v129 = vld [vmem:[%s115 + $0x18] sm:$0xf]
      %v130 = vld [vmem:[%s115 + $0x1c] sm:$0xf]
      %v131 = vmax.bf16 %v123, %v124
      %v132 = vmax.bf16 %v125, %v126
      %v133 = vmax.bf16 %v127, %v128
      %v134 = vmax.bf16 %v129, %v130
      %v139 = vrot.slane %v131, 2
      %v140 = vrot.slane %v132, 2
      %v141 = vrot.slane %v133, 2
      %v142 = vrot.slane %v134, 2
      %v147 = vmax.bf16 %v131, %v139
      %v148 = vmax.bf16 %v132, %v140
      %v149 = vmax.bf16 %v133, %v141
      %v150 = vmax.bf16 %v134, %v142
      %151 = vst [vmem:[%s121] sm:$0x3] %v147
      %152 = vst [vmem:[%s121 + $0x2] sm:$0x3] %v148
      %153 = vst [vmem:[%s121 + $0x4] sm:$0x3] %v149
      %154 = vst [vmem:[%s121 + $0x6] sm:$0x3] %v150
      %s155 = smul.u32 4, %s12
      %p156 = scmp.lt.s32.totalorder %s155, 7
      %s157 = scalar_select %p156, %s155, 7
      %s158 = smul.addr %s157, 2
      %s159 = scalar_lea.vmem %s1, %s158
      // Predicated region
      $region25: #{simple_cnn_forward.12} parent=23 // pred_check
        %p160 = pneg %p56
      $region26: #{simple_cnn_forward.12} parent=23 // pred_check_branch
        %162 = sbr.rel (%p160) target = $region28
      $region27: #{simple_cnn_forward.12} parent=23 // pred_region
        %s163 = smul.u32 4, %s12
      $region28: #{simple_cnn_forward.12} parent=23 // pred_fallthru
        _
    $region24: #{simple_cnn_forward.12} parent=5 // pred_fallthru
      _
    %p164 = scmp.le.s32.totalorder 2, %s7
    // Predicated region
    $region29: #{simple_cnn_forward.12} parent=5 // pred_check
      %p165 = pneg %p164
    $region30: #{simple_cnn_forward.12} parent=5 // pred_check_branch
      %167 = sbr.rel (%p165) target = $region32
    $region31: #{simple_cnn_forward.12} parent=5 // pred_region
      %s168 = ssub.s32 %s7, 2
      // Predicated region
      $region33: #{simple_cnn_forward.12} parent=31 // pred_check
        %p169 = pneg %p62
      $region34: #{simple_cnn_forward.12} parent=31 // pred_check_branch
        %171 = sbr.rel (%p169) target = $region36
      $region35: #{simple_cnn_forward.12} parent=31 // pred_region
        %s172 = smul.u32 4, %s13
        %p173 = scmp.lt.s32.totalorder %s172, 7
        %s174 = scalar_select %p173, %s172, 7
        %s175 = smul.addr %s174, 2
        %s176 = scalar_lea.vmem %s1, %s175
      $region36: #{simple_cnn_forward.12} parent=31 // pred_fallthru
        _
    $region32: #{simple_cnn_forward.12} parent=5 // pred_fallthru
      _
  $region6: #{simple_cnn_forward.12} parent=0 // loop_footer
    %s11 = sadd.s32 1, %s7
  $region7: #{simple_cnn_forward.12} parent=0 // loop_footer_branch
    %6 = sbr.rel target = $region3
  $region8: #{simple_cnn_forward.12} parent=0 // loop_exit
    _

// kernel: simple_cnn_forward.11
$region0: #{simple_cnn_forward.11}
  #allocation0 [shape = 'u32[]', space=smem, size = 0x4, offset = 0x4, fixed_abs, tag = 'smem constant byte address 0x4 - core index']
  #allocation1 [shape = 'u32[144,128]{1,0:T(1,128)}', space=vmem, size = 0x12000, scoped, tag = 'internal scratch']
  %s0 = inlined_call_operand.vmem [shape: bf16[128,576], index: 0, kind: input, shape index: {}]
  %s1 = inlined_call_operand.vmem [shape: bf16[576,128], index: 1, kind: input, shape index: {}]
  %s2 = inlined_call_operand.vmem [shape: f32[1,128], index: 2, kind: input, shape index: {}]
  %s3 = inlined_call_operand.vmem [shape: f32[1,128], index: 3, kind: input, shape index: {}]
  %s4 = inlined_call_operand.vmem [shape: bf16[128,128], index: 4, kind: output, shape index: {}]
  %s5 = sld [smem:[#allocation0]]
  $region26: #{simple_cnn_forward.11} parent=0
    _
  %s7 = ssub.s32 1, %s5
  %s8 = scalar_select 0, %s7, %s5
  // Predicated region
  $region2: #{simple_cnn_forward.11} parent=0 // pred_check
    _
  $region3: #{simple_cnn_forward.11} parent=0 // pred_check_branch
    %10 = sbr.rel (0) target = $region5
  $region4: #{simple_cnn_forward.11} parent=0 // pred_region
    _
  $region5: #{simple_cnn_forward.11} parent=0 // pred_fallthru
    _
  // Predicated region
  $region6: #{simple_cnn_forward.11} parent=0 // pred_check
    _
  $region7: #{simple_cnn_forward.11} parent=0 // pred_check_branch
    %12 = sbr.rel (0) target = $region9
  $region8: #{simple_cnn_forward.11} parent=0 // pred_region
    _
  $region9: #{simple_cnn_forward.11} parent=0 // pred_fallthru
    _
  // Predicated region
  $region10: #{simple_cnn_forward.11} parent=0 // pred_check
    _
  $region11: #{simple_cnn_forward.11} parent=0 // pred_check_branch
    %14 = sbr.rel (0) target = $region13
  $region12: #{simple_cnn_forward.11} parent=0 // pred_region
    _
  $region13: #{simple_cnn_forward.11} parent=0 // pred_fallthru
    _
  // Predicated region
  $region14: #{simple_cnn_forward.11} parent=0 // pred_check
    _
  $region15: #{simple_cnn_forward.11} parent=0 // pred_check_branch
    %16 = sbr.rel (0) target = $region17
  $region16: #{simple_cnn_forward.11} parent=0 // pred_region
    _
  $region17: #{simple_cnn_forward.11} parent=0 // pred_fallthru
    _
  %v18 = vld [vmem:[%s0] sm:$0xff]
  %v19 = vld [vmem:[%s0 + $0x8] sm:$0xff]
  %v20 = vld [vmem:[%s0 + $0x10] sm:$0xf]
  %v21 = vld [vmem:[%s0 + $0x14] sm:$0xff]
  %v22 = vld [vmem:[%s0 + $0x1c] sm:$0xff]
  %v23 = vld [vmem:[%s0 + $0x24] sm:$0xf]
  %v24 = vld [vmem:[%s0 + $0x28] sm:$0xff]
  %v25 = vld [vmem:[%s0 + $0x30] sm:$0xff]
  %v26 = vld [vmem:[%s0 + $0x38] sm:$0xf]
  %v27 = vld [vmem:[%s0 + $0x3c] sm:$0xff]
  %v28 = vld [vmem:[%s0 + $0x44] sm:$0xff]
  %v29 = vld [vmem:[%s0 + $0x4c] sm:$0xf]
  %v30 = vld [vmem:[%s0 + $0x50] sm:$0xff]
  %v31 = vld [vmem:[%s0 + $0x58] sm:$0xff]
  %v32 = vld [vmem:[%s0 + $0x60] sm:$0xf]
  %v33 = vld [vmem:[%s0 + $0x64] sm:$0xff]
  %v34 = vld [vmem:[%s0 + $0x6c] sm:$0xff]
  %v35 = vld [vmem:[%s0 + $0x74] sm:$0xf]
  %v36 = vld [vmem:[%s0 + $0x78] sm:$0xff]
  %v37 = vld [vmem:[%s0 + $0x80] sm:$0xff]
  %v38 = vld [vmem:[%s0 + $0x88] sm:$0xf]
  %v39 = vld [vmem:[%s0 + $0x8c] sm:$0xff]
  %v40 = vld [vmem:[%s0 + $0x94] sm:$0xff]
  %v41 = vld [vmem:[%s0 + $0x9c] sm:$0xf]
  %v42 = vld [vmem:[%s0 + $0xa0] sm:$0xff]
  %v43 = vld [vmem:[%s0 + $0xa8] sm:$0xff]
  %v44 = vld [vmem:[%s0 + $0xb0] sm:$0xf]
  %v45 = vld [vmem:[%s0 + $0xb4] sm:$0xff]
  %v46 = vld [vmem:[%s0 + $0xbc] sm:$0xff]
  %v47 = vld [vmem:[%s0 + $0xc4] sm:$0xf]
  %v48 = vld [vmem:[%s0 + $0xc8] sm:$0xff]
  %v49 = vld [vmem:[%s0 + $0xd0] sm:$0xff]
  %v50 = vld [vmem:[%s0 + $0xd8] sm:$0xf]
  %v51 = vld [vmem:[%s0 + $0xdc] sm:$0xff]
  %v52 = vld [vmem:[%s0 + $0xe4] sm:$0xff]
  %v53 = vld [vmem:[%s0 + $0xec] sm:$0xf]
  %v54 = vld [vmem:[%s0 + $0xf0] sm:$0xff]
  %v55 = vld [vmem:[%s0 + $0xf8] sm:$0xff]
  %v56 = vld [vmem:[%s0 + $0x100] sm:$0xf]
  %v57 = vld [vmem:[%s0 + $0x104] sm:$0xff]
  %v58 = vld [vmem:[%s0 + $0x10c] sm:$0xff]
  %v59 = vld [vmem:[%s0 + $0x114] sm:$0xf]
  %v60 = vld [vmem:[%s0 + $0x118] sm:$0xff]
  %v61 = vld [vmem:[%s0 + $0x120] sm:$0xff]
  %v62 = vld [vmem:[%s0 + $0x128] sm:$0xf]
  %v63 = vld [vmem:[%s0 + $0x12c] sm:$0xff]
  %v64 = vld [vmem:[%s0 + $0x134] sm:$0xff]
  %v65 = vld [vmem:[%s0 + $0x13c] sm:$0xf]
  %v66 = vld [vmem:[%s1] sm:$0xf]
  %v67 = vld [vmem:[%s1 + $0x4] sm:$0xf]
  %v68 = vld [vmem:[%s1 + $0x8] sm:$0xf]
  %v69 = vld [vmem:[%s1 + $0xc] sm:$0xf]
  %v70 = vld [vmem:[%s1 + $0x10] sm:$0xf]
  %v71 = vld [vmem:[%s1 + $0x14] sm:$0xf]
  %v72 = vld [vmem:[%s1 + $0x18] sm:$0xf]
  %v73 = vld [vmem:[%s1 + $0x1c] sm:$0xf]
  %v74 = vld [vmem:[%s1 + $0x20] sm:$0xf]
  %v75 = vld [vmem:[%s1 + $0x24] sm:$0xf]
  %v76 = vld [vmem:[%s1 + $0x28] sm:$0xf]
  %v77 = vld [vmem:[%s1 + $0x2c] sm:$0xf]
  %v78 = vld [vmem:[%s1 + $0x30] sm:$0xf]
  %v79 = vld [vmem:[%s1 + $0x34] sm:$0xf]
  %v80 = vld [vmem:[%s1 + $0x38] sm:$0xf]
  %v81 = vld [vmem:[%s1 + $0x3c] sm:$0xf]
  %v82 = vld [vmem:[%s1 + $0x40] sm:$0xf]
  %v83 = vld [vmem:[%s1 + $0x44] sm:$0xf]
  %v84 = vld [vmem:[%s1 + $0x48] sm:$0xf]
  %v85 = vld [vmem:[%s1 + $0x4c] sm:$0xf]
  %v86 = vld [vmem:[%s1 + $0x50] sm:$0xf]
  %v87 = vld [vmem:[%s1 + $0x54] sm:$0xf]
  %v88 = vld [vmem:[%s1 + $0x58] sm:$0xf]
  %v89 = vld [vmem:[%s1 + $0x5c] sm:$0xf]
  %v90 = vld [vmem:[%s1 + $0x60] sm:$0xf]
  %v91 = vld [vmem:[%s1 + $0x64] sm:$0xf]
  %v92 = vld [vmem:[%s1 + $0x68] sm:$0xf]
  %v93 = vld [vmem:[%s1 + $0x6c] sm:$0xf]
  %v94 = vld [vmem:[%s1 + $0x70] sm:$0xf]
  %v95 = vld [vmem:[%s1 + $0x74] sm:$0xf]
  %v96 = vld [vmem:[%s1 + $0x78] sm:$0xf]
  %v97 = vld [vmem:[%s1 + $0x7c] sm:$0xf]
  %v98 = vld [vmem:[%s1 + $0x80] sm:$0xf]
  %v99 = vld [vmem:[%s1 + $0x84] sm:$0xf]
  %v100 = vld [vmem:[%s1 + $0x88] sm:$0xf]
  %v101 = vld [vmem:[%s1 + $0x8c] sm:$0xf]
  %v102 = vld [vmem:[%s1 + $0x90] sm:$0xf]
  %v103 = vld [vmem:[%s1 + $0x94] sm:$0xf]
  %v104 = vld [vmem:[%s1 + $0x98] sm:$0xf]
  %v105 = vld [vmem:[%s1 + $0x9c] sm:$0xf]
  %v106 = vld [vmem:[%s1 + $0xa0] sm:$0xf]
  %v107 = vld [vmem:[%s1 + $0xa4] sm:$0xf]
  %v108 = vld [vmem:[%s1 + $0xa8] sm:$0xf]
  %v109 = vld [vmem:[%s1 + $0xac] sm:$0xf]
  %v110 = vld [vmem:[%s1 + $0xb0] sm:$0xf]
  %v111 = vld [vmem:[%s1 + $0xb4] sm:$0xf]
  %v112 = vld [vmem:[%s1 + $0xb8] sm:$0xf]
  %v113 = vld [vmem:[%s1 + $0xbc] sm:$0xf]
  %v114 = vld [vmem:[%s1 + $0xc0] sm:$0xf]
  %v115 = vld [vmem:[%s1 + $0xc4] sm:$0xf]
  %v116 = vld [vmem:[%s1 + $0xc8] sm:$0xf]
  %v117 = vld [vmem:[%s1 + $0xcc] sm:$0xf]
  %v118 = vld [vmem:[%s1 + $0xd0] sm:$0xf]
  %v119 = vld [vmem:[%s1 + $0xd4] sm:$0xf]
  %v120 = vld [vmem:[%s1 + $0xd8] sm:$0xf]
  %v121 = vld [vmem:[%s1 + $0xdc] sm:$0xf]
  %v122 = vld [vmem:[%s1 + $0xe0] sm:$0xf]
  %v123 = vld [vmem:[%s1 + $0xe4] sm:$0xf]
  %v124 = vld [vmem:[%s1 + $0xe8] sm:$0xf]
  %v125 = vld [vmem:[%s1 + $0xec] sm:$0xf]
  %v126 = vld [vmem:[%s1 + $0xf0] sm:$0xf]
  %v127 = vld [vmem:[%s1 + $0xf4] sm:$0xf]
  %v128 = vld [vmem:[%s1 + $0xf8] sm:$0xf]
  %v129 = vld [vmem:[%s1 + $0xfc] sm:$0xf]
  %v130 = vld [vmem:[%s1 + $0x100] sm:$0xf]
  %v131 = vld [vmem:[%s1 + $0x104] sm:$0xf]
  %v132 = vld [vmem:[%s1 + $0x108] sm:$0xf]
  %v133 = vld [vmem:[%s1 + $0x10c] sm:$0xf]
  %v134 = vld [vmem:[%s1 + $0x110] sm:$0xf]
  %v135 = vld [vmem:[%s1 + $0x114] sm:$0xf]
  %v136 = vld [vmem:[%s1 + $0x118] sm:$0xf]
  %v137 = vld [vmem:[%s1 + $0x11c] sm:$0xf]
  %v186 = vunpack.c.l.b16 %v18
  %v187 = vunpack.c.h.b16 %v18
  %v188 = vunpack.c.l.b16 %v19
  %v189 = vunpack.c.h.b16 %v19
  %v190 = vunpack.c.l.b16 %v20
  %v191 = vunpack.c.l.b16 %v21
  %v192 = vunpack.c.h.b16 %v21
  %v193 = vunpack.c.l.b16 %v22
  %v194 = vunpack.c.h.b16 %v22
  %v195 = vunpack.c.l.b16 %v23
  %v196 = vunpack.c.l.b16 %v24
  %v197 = vunpack.c.h.b16 %v24
  %v198 = vunpack.c.l.b16 %v25
  %v199 = vunpack.c.h.b16 %v25
  %v200 = vunpack.c.l.b16 %v26
  %v201 = vunpack.c.l.b16 %v27
  %v202 = vunpack.c.h.b16 %v27
  %v203 = vunpack.c.l.b16 %v28
  %v204 = vunpack.c.h.b16 %v28
  %v205 = vunpack.c.l.b16 %v29
  %v206 = vunpack.c.l.b16 %v30
  %v207 = vunpack.c.h.b16 %v30
  %v208 = vunpack.c.l.b16 %v31
  %v209 = vunpack.c.h.b16 %v31
  %v210 = vunpack.c.l.b16 %v32
  %v211 = vunpack.c.l.b16 %v33
  %v212 = vunpack.c.h.b16 %v33
  %v213 = vunpack.c.l.b16 %v34
  %v214 = vunpack.c.h.b16 %v34
  %v215 = vunpack.c.l.b16 %v35
  %v216 = vunpack.c.l.b16 %v36
  %v217 = vunpack.c.h.b16 %v36
  %v218 = vunpack.c.l.b16 %v37
  %v219 = vunpack.c.h.b16 %v37
  %v220 = vunpack.c.l.b16 %v38
  %v221 = vunpack.c.l.b16 %v39
  %v222 = vunpack.c.h.b16 %v39
  %v223 = vunpack.c.l.b16 %v40
  %v224 = vunpack.c.h.b16 %v40
  %v225 = vunpack.c.l.b16 %v41
  %v226 = vunpack.c.l.b16 %v42
  %v227 = vunpack.c.h.b16 %v42
  %v228 = vunpack.c.l.b16 %v43
  %v229 = vunpack.c.h.b16 %v43
  %v230 = vunpack.c.l.b16 %v44
  %v231 = vunpack.c.l.b16 %v45
  %v232 = vunpack.c.h.b16 %v45
  %v233 = vunpack.c.l.b16 %v46
  %v234 = vunpack.c.h.b16 %v46
  %v235 = vunpack.c.l.b16 %v47
  %v236 = vunpack.c.l.b16 %v48
  %v237 = vunpack.c.h.b16 %v48
  %v238 = vunpack.c.l.b16 %v49
  %v239 = vunpack.c.h.b16 %v49
  %v240 = vunpack.c.l.b16 %v50
  %v241 = vunpack.c.l.b16 %v51
  %v242 = vunpack.c.h.b16 %v51
  %v243 = vunpack.c.l.b16 %v52
  %v244 = vunpack.c.h.b16 %v52
  %v245 = vunpack.c.l.b16 %v53
  %v246 = vunpack.c.l.b16 %v54
  %v247 = vunpack.c.h.b16 %v54
  %v248 = vunpack.c.l.b16 %v55
  %v249 = vunpack.c.h.b16 %v55
  %v250 = vunpack.c.l.b16 %v56
  %v251 = vunpack.c.l.b16 %v57
  %v252 = vunpack.c.h.b16 %v57
  %v253 = vunpack.c.l.b16 %v58
  %v254 = vunpack.c.h.b16 %v58
  %v255 = vunpack.c.l.b16 %v59
  %v256 = vunpack.c.l.b16 %v60
  %v257 = vunpack.c.h.b16 %v60
  %v258 = vunpack.c.l.b16 %v61
  %v259 = vunpack.c.h.b16 %v61
  %v260 = vunpack.c.l.b16 %v62
  %v261 = vunpack.c.l.b16 %v63
  %v262 = vunpack.c.h.b16 %v63
  %v263 = vunpack.c.l.b16 %v64
  %v264 = vunpack.c.h.b16 %v64
  %v265 = vunpack.c.l.b16 %v65
  %v266 = vpack.c.b16 %v191, %v186
  %v267 = vpack.c.b16 %v192, %v187
  %v268 = vpack.c.b16 %v193, %v188
  %v269 = vpack.c.b16 %v194, %v189
  %v270 = vpack.c.b16 %v195, %v190
  %v271 = vpack.c.b16 %v201, %v196
  %v272 = vpack.c.b16 %v202, %v197
  %v273 = vpack.c.b16 %v203, %v198
  %v274 = vpack.c.b16 %v204, %v199
  %v275 = vpack.c.b16 %v205, %v200
  %v276 = vpack.c.b16 %v211, %v206
  %v277 = vpack.c.b16 %v212, %v207
  %v278 = vpack.c.b16 %v213, %v208
  %v279 = vpack.c.b16 %v214, %v209
  %v280 = vpack.c.b16 %v215, %v210
  %v281 = vpack.c.b16 %v221, %v216
  %v282 = vpack.c.b16 %v222, %v217
  %v283 = vpack.c.b16 %v223, %v218
  %v284 = vpack.c.b16 %v224, %v219
  %v285 = vpack.c.b16 %v225, %v220
  %v286 = vpack.c.b16 %v231, %v226
  %v287 = vpack.c.b16 %v232, %v227
  %v288 = vpack.c.b16 %v233, %v228
  %v289 = vpack.c.b16 %v234, %v229
  %v290 = vpack.c.b16 %v235, %v230
  %v291 = vpack.c.b16 %v241, %v236
  %v292 = vpack.c.b16 %v242, %v237
  %v293 = vpack.c.b16 %v243, %v238
  %v294 = vpack.c.b16 %v244, %v239
  %v295 = vpack.c.b16 %v245, %v240
  %v296 = vpack.c.b16 %v251, %v246
  %v297 = vpack.c.b16 %v252, %v247
  %v298 = vpack.c.b16 %v253, %v248
  %v299 = vpack.c.b16 %v254, %v249
  %v300 = vpack.c.b16 %v255, %v250
  %v301 = vpack.c.b16 %v261, %v256
  %v302 = vpack.c.b16 %v262, %v257
  %v303 = vpack.c.b16 %v263, %v258
  %v304 = vpack.c.b16 %v264, %v259
  %v305 = vpack.c.b16 %v265, %v260
  %v410 = vunpack.c.l.b16 %v66
  %v411 = vunpack.c.l.b16 %v67
  %v412 = vunpack.c.l.b16 %v68
  %v413 = vunpack.c.l.b16 %v69
  %v414 = vunpack.c.l.b16 %v70
  %v415 = vunpack.c.l.b16 %v71
  %v416 = vunpack.c.l.b16 %v72
  %v417 = vunpack.c.l.b16 %v73
  %v418 = vunpack.c.l.b16 %v74
  %v419 = vunpack.c.l.b16 %v75
  %v420 = vunpack.c.l.b16 %v76
  %v421 = vunpack.c.l.b16 %v77
  %v422 = vunpack.c.l.b16 %v78
  %v423 = vunpack.c.l.b16 %v79
  %v424 = vunpack.c.l.b16 %v80
  %v425 = vunpack.c.l.b16 %v81
  %v426 = vunpack.c.l.b16 %v82
  %v427 = vunpack.c.l.b16 %v83
  %v428 = vunpack.c.l.b16 %v84
  %v429 = vunpack.c.l.b16 %v85
  %v430 = vunpack.c.l.b16 %v86
  %v431 = vunpack.c.l.b16 %v87
  %v432 = vunpack.c.l.b16 %v88
  %v433 = vunpack.c.l.b16 %v89
  %v434 = vunpack.c.l.b16 %v90
  %v435 = vunpack.c.l.b16 %v91
  %v436 = vunpack.c.l.b16 %v92
  %v437 = vunpack.c.l.b16 %v93
  %v438 = vunpack.c.l.b16 %v94
  %v439 = vunpack.c.l.b16 %v95
  %v440 = vunpack.c.l.b16 %v96
  %v441 = vunpack.c.l.b16 %v97
  %v442 = vunpack.c.l.b16 %v98
  %v443 = vunpack.c.l.b16 %v99
  %v444 = vunpack.c.l.b16 %v100
  %v445 = vunpack.c.l.b16 %v101
  %v446 = vunpack.c.l.b16 %v102
  %v447 = vunpack.c.l.b16 %v103
  %v448 = vunpack.c.l.b16 %v104
  %v449 = vunpack.c.l.b16 %v105
  %v450 = vunpack.c.l.b16 %v106
  %v451 = vunpack.c.l.b16 %v107
  %v452 = vunpack.c.l.b16 %v108
  %v453 = vunpack.c.l.b16 %v109
  %v454 = vunpack.c.l.b16 %v110
  %v455 = vunpack.c.l.b16 %v111
  %v456 = vunpack.c.l.b16 %v112
  %v457 = vunpack.c.l.b16 %v113
  %v458 = vunpack.c.l.b16 %v114
  %v459 = vunpack.c.l.b16 %v115
  %v460 = vunpack.c.l.b16 %v116
  %v461 = vunpack.c.l.b16 %v117
  %v462 = vunpack.c.l.b16 %v118
  %v463 = vunpack.c.l.b16 %v119
  %v464 = vunpack.c.l.b16 %v120
  %v465 = vunpack.c.l.b16 %v121
  %v466 = vunpack.c.l.b16 %v122
  %v467 = vunpack.c.l.b16 %v123
  %v468 = vunpack.c.l.b16 %v124
  %v469 = vunpack.c.l.b16 %v125
  %v470 = vunpack.c.l.b16 %v126
  %v471 = vunpack.c.l.b16 %v127
  %v472 = vunpack.c.l.b16 %v128
  %v473 = vunpack.c.l.b16 %v129
  %v474 = vunpack.c.l.b16 %v130
  %v475 = vunpack.c.l.b16 %v131
  %v476 = vunpack.c.l.b16 %v132
  %v477 = vunpack.c.l.b16 %v133
  %v478 = vunpack.c.l.b16 %v134
  %v479 = vunpack.c.l.b16 %v135
  %v480 = vunpack.c.l.b16 %v136
  %v481 = vunpack.c.l.b16 %v137
  %v482 = vpack.c.b16 %v411, %v410
  %v483 = vpack.c.b16 %v413, %v412
  %v484 = vpack.c.b16 %v415, %v414
  %v485 = vpack.c.b16 %v417, %v416
  %v486 = vpack.c.b16 %v419, %v418
  %v487 = vpack.c.b16 %v421, %v420
  %v488 = vpack.c.b16 %v423, %v422
  %v489 = vpack.c.b16 %v425, %v424
  %v490 = vpack.c.b16 %v427, %v426
  %v491 = vpack.c.b16 %v429, %v428
  %v492 = vpack.c.b16 %v431, %v430
  %v493 = vpack.c.b16 %v433, %v432
  %v494 = vpack.c.b16 %v435, %v434
  %v495 = vpack.c.b16 %v437, %v436
  %v496 = vpack.c.b16 %v439, %v438
  %v497 = vpack.c.b16 %v441, %v440
  %v498 = vpack.c.b16 %v443, %v442
  %v499 = vpack.c.b16 %v445, %v444
  %v500 = vpack.c.b16 %v447, %v446
  %v501 = vpack.c.b16 %v449, %v448
  %v502 = vpack.c.b16 %v451, %v450
  %v503 = vpack.c.b16 %v453, %v452
  %v504 = vpack.c.b16 %v455, %v454
  %v505 = vpack.c.b16 %v457, %v456
  %v506 = vpack.c.b16 %v459, %v458
  %v507 = vpack.c.b16 %v461, %v460
  %v508 = vpack.c.b16 %v463, %v462
  %v509 = vpack.c.b16 %v465, %v464
  %v510 = vpack.c.b16 %v467, %v466
  %v511 = vpack.c.b16 %v469, %v468
  %v512 = vpack.c.b16 %v471, %v470
  %v513 = vpack.c.b16 %v473, %v472
  %v514 = vpack.c.b16 %v475, %v474
  %v515 = vpack.c.b16 %v477, %v476
  %v516 = vpack.c.b16 %v479, %v478
  %v517 = vpack.c.b16 %v481, %v480
  %vm554 = vcmask 523264
  %v556 = vsel %vm554, %v270, 0
  %v559 = vsel %vm554, %v275, 0
  %v562 = vsel %vm554, %v280, 0
  %v565 = vsel %vm554, %v285, 0
  %v568 = vsel %vm554, %v290, 0
  %v571 = vsel %vm554, %v295, 0
  %v574 = vsel %vm554, %v300, 0
  %v577 = vsel %vm554, %v305, 0
  %579 = vmatprep.subr.bf16.mxu0 0
  %580 = vmatpush1.bf16.msra.mxu0 %v482
  %581 = vmatprep.subr.bf16.mxu0 0
  %582 = vmatpush1.bf16.msra.mxu0 %v483
  %583 = vmatprep.subr.bf16.mxu0 0
  %584 = vmatpush1.bf16.msra.mxu0 %v484
  %585 = vmatprep.subr.bf16.mxu0 0
  %586 = vmatpush1.bf16.msra.mxu0 %v485
  %587 = vmatprep.subr.bf16.mxu0 0
  %588 = vmatpush1.bf16.msra.mxu0 %v486
  %589 = vmatprep.subr.bf16.mxu0 0
  %590 = vmatpush1.bf16.msra.mxu0 %v487
  %591 = vmatprep.subr.bf16.mxu0 0
  %592 = vmatpush1.bf16.msra.mxu0 %v488
  %593 = vmatprep.subr.bf16.mxu0 0
  %594 = vmatpush1.bf16.msra.mxu0 %v489
  %595 = vmatprep.subr.bf16.mxu0 0
  %596 = vmatpush1.bf16.msra.mxu0 %v490
  %597 = vmatprep.subr.bf16.mxu0 0
  %598 = vmatpush1.bf16.msra.mxu0 %v491
  %599 = vmatprep.subr.bf16.mxu0 0
  %600 = vmatpush1.bf16.msra.mxu0 %v492
  %601 = vmatprep.subr.bf16.mxu0 0
  %602 = vmatpush1.bf16.msra.mxu0 %v493
  %603 = vmatprep.subr.bf16.mxu0 0
  %604 = vmatpush1.bf16.msra.mxu0 %v494
  %605 = vmatprep.subr.bf16.mxu0 0
  %606 = vmatpush1.bf16.msra.mxu0 %v495
  %607 = vmatprep.subr.bf16.mxu0 0
  %608 = vmatpush1.bf16.msra.mxu0 %v496
  %609 = vmatprep.subr.bf16.mxu0 0
  %610 = vmatpush1.bf16.msra.mxu0 %v497
  %611 = vmatprep.mubr.bf16.mxu0 %v267
  %612 = vmatmul.mubr.bf16.gmra.mrb[0].mxu0 %v266
  %v613 = vpop.f32.mrb[0].mxu0
  %v614 = vadd.f32 0.0, %v613
  %v615 = vpop.f32.mrb[0].mxu0
  %v616 = vpop.f32.mrb[0].mxu0
  %v617 = vadd.f32 0.0, %v616
  %v618 = vpop.f32.mrb[0].mxu0
  %619 = vmatprep.mubr.bf16.mxu0 %v272
  %620 = vmatmul.mubr.bf16.gmra.mrb[0].mxu0 %v271
  %v621 = vpop.f32.mrb[0].mxu0
  %v622 = vadd.f32 0.0, %v621
  %v623 = vpop.f32.mrb[0].mxu0
  %v624 = vpop.f32.mrb[0].mxu0
  %v625 = vadd.f32 0.0, %v624
  %v626 = vpop.f32.mrb[0].mxu0
  %627 = vmatprep.mubr.bf16.mxu0 %v277
  %628 = vmatmul.mubr.bf16.gmra.mrb[0].mxu0 %v276
  %v629 = vpop.f32.mrb[0].mxu0
  %v630 = vadd.f32 0.0, %v629
  %v631 = vpop.f32.mrb[0].mxu0
  %v632 = vpop.f32.mrb[0].mxu0
  %v633 = vadd.f32 0.0, %v632
  %v634 = vpop.f32.mrb[0].mxu0
  %635 = vmatprep.mubr.bf16.mxu0 %v282
  %636 = vmatmul.mubr.bf16.gmra.mrb[0].mxu0 %v281
  %v637 = vpop.f32.mrb[0].mxu0
  %v638 = vadd.f32 0.0, %v637
  %v639 = vpop.f32.mrb[0].mxu0
  %v640 = vpop.f32.mrb[0].mxu0
  %v641 = vadd.f32 0.0, %v640
  %v642 = vpop.f32.mrb[0].mxu0
  %643 = vmatprep.mubr.bf16.mxu0 %v287
  %644 = vmatmul.mubr.bf16.gmra.mrb[0].mxu0 %v286
  %v645 = vpop.f32.mrb[0].mxu0
  %v646 = vadd.f32 0.0, %v645
  %v647 = vpop.f32.mrb[0].mxu0
  %v648 = vpop.f32.mrb[0].mxu0
  %v649 = vadd.f32 0.0, %v648
  %v650 = vpop.f32.mrb[0].mxu0
  %651 = vmatprep.mubr.bf16.mxu0 %v292
  %652 = vmatmul.mubr.bf16.gmra.mrb[0].mxu0 %v291
  %v653 = vpop.f32.mrb[0].mxu0
  %v654 = vadd.f32 0.0, %v653
  %v655 = vpop.f32.mrb[0].mxu0
  %v656 = vpop.f32.mrb[0].mxu0
  %v657 = vadd.f32 0.0, %v656
  %v658 = vpop.f32.mrb[0].mxu0
  %659 = vmatprep.mubr.bf16.mxu0 %v297
  %660 = vmatmul.mubr.bf16.gmra.mrb[0].mxu0 %v296
  %v661 = vpop.f32.mrb[0].mxu0
  %v662 = vadd.f32 0.0, %v661
  %v663 = vpop.f32.mrb[0].mxu0
  %v664 = vpop.f32.mrb[0].mxu0
  %v665 = vadd.f32 0.0, %v664
  %v666 = vpop.f32.mrb[0].mxu0
  %667 = vmatprep.mubr.bf16.mxu0 %v302
  %668 = vmatmul.mubr.bf16.gmra.mrb[0].mxu0 %v301
  %v669 = vpop.f32.mrb[0].mxu0
  %v670 = vadd.f32 0.0, %v669
  %v671 = vpop.f32.mrb[0].mxu0
  %v672 = vpop.f32.mrb[0].mxu0
  %v673 = vadd.f32 0.0, %v672
  %v674 = vpop.f32.mrb[0].mxu0
  %675 = vdwg.mxu0
  %676 = vmatprep.subr.bf16.mxu0 0
  %677 = vmatpush1.bf16.msra.mxu0 %v498
  %678 = vmatprep.subr.bf16.mxu0 0
  %679 = vmatpush1.bf16.msra.mxu0 %v499
  %680 = vmatprep.subr.bf16.mxu0 0
  %681 = vmatpush1.bf16.msra.mxu0 %v500
  %682 = vmatprep.subr.bf16.mxu0 0
  %683 = vmatpush1.bf16.msra.mxu0 %v501
  %684 = vmatprep.subr.bf16.mxu0 0
  %685 = vmatpush1.bf16.msra.mxu0 %v502
  %686 = vmatprep.subr.bf16.mxu0 0
  %687 = vmatpush1.bf16.msra.mxu0 %v503
  %688 = vmatprep.subr.bf16.mxu0 0
  %689 = vmatpush1.bf16.msra.mxu0 %v504
  %690 = vmatprep.subr.bf16.mxu0 0
  %691 = vmatpush1.bf16.msra.mxu0 %v505
  %692 = vmatprep.subr.bf16.mxu0 0
  %693 = vmatpush1.bf16.msra.mxu0 %v506
  %694 = vmatprep.subr.bf16.mxu0 0
  %695 = vmatpush1.bf16.msra.mxu0 %v507
  %696 = vmatprep.subr.bf16.mxu0 0
  %697 = vmatpush1.bf16.msra.mxu0 %v508
  %698 = vmatprep.subr.bf16.mxu0 0
  %699 = vmatpush1.bf16.msra.mxu0 %v509
  %700 = vmatprep.subr.bf16.mxu0 0
  %701 = vmatpush1.bf16.msra.mxu0 %v510
  %702 = vmatprep.subr.bf16.mxu0 0
  %703 = vmatpush1.bf16.msra.mxu0 %v511
  %704 = vmatprep.subr.bf16.mxu0 0
  %705 = vmatpush1.bf16.msra.mxu0 %v512
  %706 = vmatprep.subr.bf16.mxu0 0
  %707 = vmatpush1.bf16.msra.mxu0 %v513
  %708 = vmatprep.mubr.bf16.mxu0 %v269
  %709 = vmatmul.mubr.bf16.gmra.mrb[0].mxu0 %v268
  %v710 = vpop.f32.mrb[0].mxu0
  %v711 = vadd.f32 %v614, %v710
  %v712 = vpop.f32.mrb[0].mxu0
  %v713 = vpop.f32.mrb[0].mxu0
  %v714 = vadd.f32 %v617, %v713
  %v715 = vpop.f32.mrb[0].mxu0
  %716 = vmatprep.mubr.bf16.mxu0 %v274
  %717 = vmatmul.mubr.bf16.gmra.mrb[0].mxu0 %v273
  %v718 = vpop.f32.mrb[0].mxu0
  %v719 = vadd.f32 %v622, %v718
  %v720 = vpop.f32.mrb[0].mxu0
  %v721 = vpop.f32.mrb[0].mxu0
  %v722 = vadd.f32 %v625, %v721
  %v723 = vpop.f32.mrb[0].mxu0
  %724 = vmatprep.mubr.bf16.mxu0 %v279
  %725 = vmatmul.mubr.bf16.gmra.mrb[0].mxu0 %v278
  %v726 = vpop.f32.mrb[0].mxu0
  %v727 = vadd.f32 %v630, %v726
  %v728 = vpop.f32.mrb[0].mxu0
  %v729 = vpop.f32.mrb[0].mxu0
  %v730 = vadd.f32 %v633, %v729
  %v731 = vpop.f32.mrb[0].mxu0
  %732 = vmatprep.mubr.bf16.mxu0 %v284
  %733 = vmatmul.mubr.bf16.gmra.mrb[0].mxu0 %v283
  %v734 = vpop.f32.mrb[0].mxu0
  %v735 = vadd.f32 %v638, %v734
  %v736 = vpop.f32.mrb[0].mxu0
  %v737 = vpop.f32.mrb[0].mxu0
  %v738 = vadd.f32 %v641, %v737
  %v739 = vpop.f32.mrb[0].mxu0
  %740 = vmatprep.mubr.bf16.mxu0 %v289
  %741 = vmatmul.mubr.bf16.gmra.mrb[0].mxu0 %v288
  %v742 = vpop.f32.mrb[0].mxu0
  %v743 = vadd.f32 %v646, %v742
  %v744 = vpop.f32.mrb[0].mxu0
  %v745 = vpop.f32.mrb[0].mxu0
  %v746 = vadd.f32 %v649, %v745
  %v747 = vpop.f32.mrb[0].mxu0
  %748 = vmatprep.mubr.bf16.mxu0 %v294
  %749 = vmatmul.mubr.bf16.gmra.mrb[0].mxu0 %v293
  %v750 = vpop.f32.mrb[0].mxu0
  %v751 = vadd.f32 %v654, %v750
  %v752 = vpop.f32.mrb[0].mxu0
  %v753 = vpop.f32.mrb[0].mxu0
  %v754 = vadd.f32 %v657, %v753
  %v755 = vpop.f32.mrb[0].mxu0
  %756 = vmatprep.mubr.bf16.mxu0 %v299
  %757 = vmatmul.mubr.bf16.gmra.mrb[0].mxu0 %v298
  %v758 = vpop.f32.mrb[0].mxu0
  %v759 = vadd.f32 %v662, %v758
  %v760 = vpop.f32.mrb[0].mxu0
  %v761 = vpop.f32.mrb[0].mxu0
  %v762 = vadd.f32 %v665, %v761
  %v763 = vpop.f32.mrb[0].mxu0
  %764 = vmatprep.mubr.bf16.mxu0 %v304
  %765 = vmatmul.mubr.bf16.gmra.mrb[0].mxu0 %v303
  %v766 = vpop.f32.mrb[0].mxu0
  %v767 = vadd.f32 %v670, %v766
  %v768 = vpop.f32.mrb[0].mxu0
  %v769 = vpop.f32.mrb[0].mxu0
  %v770 = vadd.f32 %v673, %v769
  %v771 = vpop.f32.mrb[0].mxu0
  %772 = vdwg.mxu0
  %773 = vmatprep.subr.bf16.mxu0 0
  %774 = vmatpush1.bf16.msra.mxu0 %v514
  %775 = vmatprep.subr.bf16.mxu0 0
  %776 = vmatpush1.bf16.msra.mxu0 %v515
  %777 = vmatprep.subr.bf16.mxu0 0
  %778 = vmatpush1.bf16.msra.mxu0 %v516
  %779 = vmatprep.subr.bf16.mxu0 0
  %780 = vmatpush1.bf16.msra.mxu0 %v517
  %781 = vmatprep.subr.bf16.mxu0 0
  %782 = vmatpush1.bf16.msra.mxu0 0
  %783 = vmatprep.subr.bf16.mxu0 0
  %784 = vmatpush1.bf16.msra.mxu0 0
  %785 = vmatprep.subr.bf16.mxu0 0
  %786 = vmatpush1.bf16.msra.mxu0 0
  %787 = vmatprep.subr.bf16.mxu0 0
  %788 = vmatpush1.bf16.msra.mxu0 0
  %789 = vmatprep.subr.bf16.mxu0 0
  %790 = vmatpush1.bf16.msra.mxu0 0
  %791 = vmatprep.subr.bf16.mxu0 0
  %792 = vmatpush1.bf16.msra.mxu0 0
  %793 = vmatprep.subr.bf16.mxu0 0
  %794 = vmatpush1.bf16.msra.mxu0 0
  %795 = vmatprep.subr.bf16.mxu0 0
  %796 = vmatpush1.bf16.msra.mxu0 0
  %797 = vmatprep.subr.bf16.mxu0 0
  %798 = vmatpush1.bf16.msra.mxu0 0
  %799 = vmatprep.subr.bf16.mxu0 0
  %800 = vmatpush1.bf16.msra.mxu0 0
  %801 = vmatprep.subr.bf16.mxu0 0
  %802 = vmatpush1.bf16.msra.mxu0 0
  %803 = vmatprep.subr.bf16.mxu0 0
  %804 = vmatpush1.bf16.msra.mxu0 0
  %805 = vmatprep.mubr.bf16.mxu0 0
  %806 = vmatmul.mubr.bf16.gmra.mrb[0].mxu0 %v556
  %v807 = vpop.f32.mrb[0].mxu0
  %v808 = vadd.f32 %v711, %v807
  %v809 = vpop.f32.mrb[0].mxu0
  %v810 = vpop.f32.mrb[0].mxu0
  %v811 = vadd.f32 %v714, %v810
  %v812 = vpop.f32.mrb[0].mxu0
  %813 = vmatprep.mubr.bf16.mxu0 0
  %814 = vmatmul.mubr.bf16.gmra.mrb[0].mxu0 %v559
  %v815 = vpop.f32.mrb[0].mxu0
  %v816 = vadd.f32 %v719, %v815
  %v817 = vpop.f32.mrb[0].mxu0
  %v818 = vpop.f32.mrb[0].mxu0
  %v819 = vadd.f32 %v722, %v818
  %v820 = vpop.f32.mrb[0].mxu0
  %821 = vmatprep.mubr.bf16.mxu0 0
  %822 = vmatmul.mubr.bf16.gmra.mrb[0].mxu0 %v562
  %v823 = vpop.f32.mrb[0].mxu0
  %v824 = vadd.f32 %v727, %v823
  %v825 = vpop.f32.mrb[0].mxu0
  %v826 = vpop.f32.mrb[0].mxu0
  %v827 = vadd.f32 %v730, %v826
  %v828 = vpop.f32.mrb[0].mxu0
  %829 = vmatprep.mubr.bf16.mxu0 0
  %830 = vmatmul.mubr.bf16.gmra.mrb[0].mxu0 %v565
  %v831 = vpop.f32.mrb[0].mxu0
  %v832 = vadd.f32 %v735, %v831
  %v833 = vpop.f32.mrb[0].mxu0
  %v834 = vpop.f32.mrb[0].mxu0
  %v835 = vadd.f32 %v738, %v834
  %v836 = vpop.f32.mrb[0].mxu0
  %837 = vmatprep.mubr.bf16.mxu0 0
  %838 = vmatmul.mubr.bf16.gmra.mrb[0].mxu0 %v568
  %v839 = vpop.f32.mrb[0].mxu0
  %v840 = vadd.f32 %v743, %v839
  %v841 = vpop.f32.mrb[0].mxu0
  %v842 = vpop.f32.mrb[0].mxu0
  %v843 = vadd.f32 %v746, %v842
  %v844 = vpop.f32.mrb[0].mxu0
  %845 = vmatprep.mubr.bf16.mxu0 0
  %846 = vmatmul.mubr.bf16.gmra.mrb[0].mxu0 %v571
  %v847 = vpop.f32.mrb[0].mxu0
  %v848 = vadd.f32 %v751, %v847
  %v849 = vpop.f32.mrb[0].mxu0
  %v850 = vpop.f32.mrb[0].mxu0
  %v851 = vadd.f32 %v754, %v850
  %v852 = vpop.f32.mrb[0].mxu0
  %853 = vmatprep.mubr.bf16.mxu0 0
  %854 = vmatmul.mubr.bf16.gmra.mrb[0].mxu0 %v574
  %v855 = vpop.f32.mrb[0].mxu0
  %v856 = vadd.f32 %v759, %v855
  %v857 = vpop.f32.mrb[0].mxu0
  %v858 = vpop.f32.mrb[0].mxu0
  %v859 = vadd.f32 %v762, %v858
  %v860 = vpop.f32.mrb[0].mxu0
  %861 = vmatprep.mubr.bf16.mxu0 0
  %862 = vmatmul.mubr.bf16.gmra.mrb[0].mxu0 %v577
  %v863 = vpop.f32.mrb[0].mxu0
  %v864 = vadd.f32 %v767, %v863
  %v865 = vpop.f32.mrb[0].mxu0
  %v866 = vpop.f32.mrb[0].mxu0
  %v867 = vadd.f32 %v770, %v866
  %v868 = vpop.f32.mrb[0].mxu0
  %869 = vdwg.mxu0
  %v870 = vld [vmem:[%s2] sm:$0x1]
  %v872 = vlaneseq
  %v873 = vshrl.u32 %v872, 7
  %v874 = vsub.s32 0, %v873
  %v875 = vrot.slane %v870, %v874
  %v877 = vmul.f32 %v808, %v875
  %v878 = vmul.f32 %v811, %v875
  %v879 = vmul.f32 %v816, %v875
  %v880 = vmul.f32 %v819, %v875
  %v881 = vmul.f32 %v824, %v875
  %v882 = vmul.f32 %v827, %v875
  %v883 = vmul.f32 %v832, %v875
  %v884 = vmul.f32 %v835, %v875
  %v885 = vmul.f32 %v840, %v875
  %v886 = vmul.f32 %v843, %v875
  %v887 = vmul.f32 %v848, %v875
  %v888 = vmul.f32 %v851, %v875
  %v889 = vmul.f32 %v856, %v875
  %v890 = vmul.f32 %v859, %v875
  %v891 = vmul.f32 %v864, %v875
  %v892 = vmul.f32 %v867, %v875
  %v893 = vld [vmem:[%s3] sm:$0x1]
  %v895 = vlaneseq
  %v896 = vshrl.u32 %v895, 7
  %v897 = vsub.s32 0, %v896
  %v898 = vrot.slane %v893, %v897
  %v900 = vadd.f32 %v877, %v898
  %v901 = vadd.f32 %v878, %v898
  %v902 = vadd.f32 %v879, %v898
  %v903 = vadd.f32 %v880, %v898
  %v904 = vadd.f32 %v881, %v898
  %v905 = vadd.f32 %v882, %v898
  %v906 = vadd.f32 %v883, %v898
  %v907 = vadd.f32 %v884, %v898
  %v908 = vadd.f32 %v885, %v898
  %v909 = vadd.f32 %v886, %v898
  %v910 = vadd.f32 %v887, %v898
  %v911 = vadd.f32 %v888, %v898
  %v912 = vadd.f32 %v889, %v898
  %v913 = vadd.f32 %v890, %v898
  %v914 = vadd.f32 %v891, %v898
  %v915 = vadd.f32 %v892, %v898
  %v916 = vmax.f32 %v900, 0.0
  %v917 = vmax.f32 %v901, 0.0
  %v918 = vmax.f32 %v902, 0.0
  %v919 = vmax.f32 %v903, 0.0
  %v920 = vmax.f32 %v904, 0.0
  %v921 = vmax.f32 %v905, 0.0
  %v922 = vmax.f32 %v906, 0.0
  %v923 = vmax.f32 %v907, 0.0
  %v924 = vmax.f32 %v908, 0.0
  %v925 = vmax.f32 %v909, 0.0
  %v926 = vmax.f32 %v910, 0.0
  %v927 = vmax.f32 %v911, 0.0
  %v928 = vmax.f32 %v912, 0.0
  %v929 = vmax.f32 %v913, 0.0
  %v930 = vmax.f32 %v914, 0.0
  %v931 = vmax.f32 %v915, 0.0
  %v932 = vpack.c.bf16 %v917, %v916
  %v933 = vpack.c.bf16 %v919, %v918
  %v934 = vpack.c.bf16 %v921, %v920
  %v935 = vpack.c.bf16 %v923, %v922
  %v936 = vpack.c.bf16 %v925, %v924
  %v937 = vpack.c.bf16 %v927, %v926
  %v938 = vpack.c.bf16 %v929, %v928
  %v939 = vpack.c.bf16 %v931, %v930
  %v948 = vunpack.c.l.b16 %v932
  %v949 = vunpack.c.h.b16 %v932
  %v950 = vunpack.c.l.b16 %v933
  %v951 = vunpack.c.h.b16 %v933
  %v952 = vunpack.c.l.b16 %v934
  %v953 = vunpack.c.h.b16 %v934
  %v954 = vunpack.c.l.b16 %v935
  %v955 = vunpack.c.h.b16 %v935
  %v956 = vunpack.c.l.b16 %v936
  %v957 = vunpack.c.h.b16 %v936
  %v958 = vunpack.c.l.b16 %v937
  %v959 = vunpack.c.h.b16 %v937
  %v960 = vunpack.c.l.b16 %v938
  %v961 = vunpack.c.h.b16 %v938
  %v962 = vunpack.c.l.b16 %v939
  %v963 = vunpack.c.h.b16 %v939
  %v964 = vpack.c.b16 %v948, %v948
  %v965 = vpack.c.b16 %v949, %v949
  %v966 = vpack.c.b16 %v950, %v950
  %v967 = vpack.c.b16 %v951, %v951
  %v968 = vpack.c.b16 %v952, %v952
  %v969 = vpack.c.b16 %v953, %v953
  %v970 = vpack.c.b16 %v954, %v954
  %v971 = vpack.c.b16 %v955, %v955
  %v972 = vpack.c.b16 %v956, %v956
  %v973 = vpack.c.b16 %v957, %v957
  %v974 = vpack.c.b16 %v958, %v958
  %v975 = vpack.c.b16 %v959, %v959
  %v976 = vpack.c.b16 %v960, %v960
  %v977 = vpack.c.b16 %v961, %v961
  %v978 = vpack.c.b16 %v962, %v962
  %v979 = vpack.c.b16 %v963, %v963
  %996 = vst [vmem:[%s4] sm:$0xf] %v964
  %997 = vst [vmem:[%s4 + $0x4] sm:$0xf] %v965
  %998 = vst [vmem:[%s4 + $0x8] sm:$0xf] %v966
  %999 = vst [vmem:[%s4 + $0xc] sm:$0xf] %v967
  %1000 = vst [vmem:[%s4 + $0x10] sm:$0xf] %v968
  %1001 = vst [vmem:[%s4 + $0x14] sm:$0xf] %v969
  %1002 = vst [vmem:[%s4 + $0x18] sm:$0xf] %v970
  %1003 = vst [vmem:[%s4 + $0x1c] sm:$0xf] %v971
  %1004 = vst [vmem:[%s4 + $0x20] sm:$0xf] %v972
  %1005 = vst [vmem:[%s4 + $0x24] sm:$0xf] %v973
  %1006 = vst [vmem:[%s4 + $0x28] sm:$0xf] %v974
  %1007 = vst [vmem:[%s4 + $0x2c] sm:$0xf] %v975
  %1008 = vst [vmem:[%s4 + $0x30] sm:$0xf] %v976
  %1009 = vst [vmem:[%s4 + $0x34] sm:$0xf] %v977
  %1010 = vst [vmem:[%s4 + $0x38] sm:$0xf] %v978
  %1011 = vst [vmem:[%s4 + $0x3c] sm:$0xf] %v979
  // Predicated region
  $region18: #{simple_cnn_forward.11} parent=0 // pred_check
    _
  $region19: #{simple_cnn_forward.11} parent=0 // pred_check_branch
    %1013 = sbr.rel (0) target = $region21
  $region20: #{simple_cnn_forward.11} parent=0 // pred_region
    _
  $region21: #{simple_cnn_forward.11} parent=0 // pred_fallthru
    _
  // Predicated region
  $region22: #{simple_cnn_forward.11} parent=0 // pred_check
    _
  $region23: #{simple_cnn_forward.11} parent=0 // pred_check_branch
    %1015 = sbr.rel (0) target = $region25
  $region24: #{simple_cnn_forward.11} parent=0 // pred_region
    _
  $region25: #{simple_cnn_forward.11} parent=0 // pred_fallthru
    _

// kernel: simple_cnn_forward.13
$region0: #{simple_cnn_forward.13}
  #allocation0 [shape = 'u32[]', space=smem, size = 0x4, offset = 0x4, fixed_abs, tag = 'smem constant byte address 0x4 - core index']
  #allocation1 [shape = 'u32[144,128]{1,0:T(1,128)}', space=vmem, size = 0x12000, scoped, tag = 'internal scratch']
  #allocation2 [shape = 'f32[2,512]{1,0:T(2,128)}', space=vmem, size = 0x1000, scoped, tag = 'scratch operand']
  %s0 = inlined_call_operand.vmem [shape: bf16[2,2048], index: 0, kind: input, shape index: {}]
  %s1 = inlined_call_operand.vmem [shape: bf16[2048,512], index: 1, kind: input, shape index: {}]
  %s2 = inlined_call_operand.vmem [shape: f32[1,512], index: 2, kind: input, shape index: {}]
  %s3 = inlined_call_operand.vmem [shape: f32[512,2], index: 3, kind: input, shape index: {}]
  %s4 = inlined_call_operand.vmem [shape: f32[1,2], index: 4, kind: input, shape index: {}]
  %s5 = inlined_call_operand.hbm [shape: f32[2,2], index: 5, kind: output, shape index: {}]
  %s6 = sld [smem:[#allocation0]]
  $region38: #{simple_cnn_forward.13} parent=0
    _
  %s8 = ssub.s32 1, %s6
  %s9 = scalar_select 0, %s8, %s6
  $region1: #{simple_cnn_forward.13} parent=0
    #allocation3 [shape = 'u8[1024]{0}', space=vmem, size = 0x400, scoped, tag = 'output window, operand 0, single buffered']
    #allocation4 [shape = 's32[1]{0}', space=sflag, size = 0x4, scoped, tag = 'scoped memory for simple_cnn_forward.13']
    %10 = vsyncpa [#allocation4], 0
    // Predicated region
    $region2: #{simple_cnn_forward.13} parent=1 // pred_check
      _
    $region3: #{simple_cnn_forward.13} parent=1 // pred_check_branch
      %12 = sbr.rel (0) target = $region5
    $region4: #{simple_cnn_forward.13} parent=1 // pred_region
      _
    $region5: #{simple_cnn_forward.13} parent=1 // pred_fallthru
      _
    // Predicated region
    $region6: #{simple_cnn_forward.13} parent=1 // pred_check
      _
    $region7: #{simple_cnn_forward.13} parent=1 // pred_check_branch
      %14 = sbr.rel (0) target = $region9
    $region8: #{simple_cnn_forward.13} parent=1 // pred_region
      _
    $region9: #{simple_cnn_forward.13} parent=1 // pred_fallthru
      _
    // Predicated region
    $region10: #{simple_cnn_forward.13} parent=1 // pred_check
      _
    $region11: #{simple_cnn_forward.13} parent=1 // pred_check_branch
      %16 = sbr.rel (0) target = $region13
    $region12: #{simple_cnn_forward.13} parent=1 // pred_region
      _
    $region13: #{simple_cnn_forward.13} parent=1 // pred_fallthru
      _
    // Predicated region
    $region14: #{simple_cnn_forward.13} parent=1 // pred_check
      _
    $region15: #{simple_cnn_forward.13} parent=1 // pred_check_branch
      %18 = sbr.rel (0) target = $region17
    $region16: #{simple_cnn_forward.13} parent=1 // pred_region
      _
    $region17: #{simple_cnn_forward.13} parent=1 // pred_fallthru
      _
    // Predicated region
    $region18: #{simple_cnn_forward.13} parent=1 // pred_check
      _
    $region19: #{simple_cnn_forward.13} parent=1 // pred_check_branch
      %20 = sbr.rel (0) target = $region21
    $region20: #{simple_cnn_forward.13} parent=1 // pred_region
      _
    $region21: #{simple_cnn_forward.13} parent=1 // pred_fallthru
      _
    %p21 = scmp.eq.s32.totalorder 0, 0
    // Predicated region
    $region22: #{simple_cnn_forward.13} parent=1 // pred_check
      %p22 = pneg %p21
    $region23: #{simple_cnn_forward.13} parent=1 // pred_check_branch
      %24 = sbr.rel (%p22) target = $region25
    $region24: #{simple_cnn_forward.13} parent=1 // pred_region
      %25 = vst [vmem:[#allocation2] sm:$0xff] 0.0
    $region25: #{simple_cnn_forward.13} parent=1 // pred_fallthru
      _
    %v26 = vld [vmem:[#allocation2] sm:$0xff]
    %v27 = vld [vmem:[%s0] sm:$0xff]
    %v28 = vld [vmem:[%s0 + $0x8] sm:$0xff]
    %v29 = vld [vmem:[%s1] sm:$0xff]
    %v30 = vld [vmem:[%s1 + $0x8] sm:$0xff]
    %v31 = vld [vmem:[%s1 + $0x10] sm:$0xff]
    %v32 = vld [vmem:[%s1 + $0x18] sm:$0xff]
    %v33 = vld [vmem:[%s1 + $0x20] sm:$0xff]
    %v34 = vld [vmem:[%s1 + $0x28] sm:$0xff]
    %v35 = vld [vmem:[%s1 + $0x30] sm:$0xff]
    %v36 = vld [vmem:[%s1 + $0x38] sm:$0xff]
    %v37 = vld [vmem:[%s1 + $0x40] sm:$0xff]
    %v38 = vld [vmem:[%s1 + $0x48] sm:$0xff]
    %v39 = vld [vmem:[%s1 + $0x50] sm:$0xff]
    %v40 = vld [vmem:[%s1 + $0x58] sm:$0xff]
    %v41 = vld [vmem:[%s1 + $0x60] sm:$0xff]
    %v42 = vld [vmem:[%s1 + $0x68] sm:$0xff]
    %v43 = vld [vmem:[%s1 + $0x70] sm:$0xff]
    %v44 = vld [vmem:[%s1 + $0x78] sm:$0xff]
    %v45 = vld [vmem:[%s1 + $0x80] sm:$0xff]
    %v46 = vld [vmem:[%s1 + $0x88] sm:$0xff]
    %v47 = vld [vmem:[%s1 + $0x90] sm:$0xff]
    %v48 = vld [vmem:[%s1 + $0x98] sm:$0xff]
    %v49 = vld [vmem:[%s1 + $0xa0] sm:$0xff]
    %v50 = vld [vmem:[%s1 + $0xa8] sm:$0xff]
    %v51 = vld [vmem:[%s1 + $0xb0] sm:$0xff]
    %v52 = vld [vmem:[%s1 + $0xb8] sm:$0xff]
    %v53 = vld [vmem:[%s1 + $0xc0] sm:$0xff]
    %v54 = vld [vmem:[%s1 + $0xc8] sm:$0xff]
    %v55 = vld [vmem:[%s1 + $0xd0] sm:$0xff]
    %v56 = vld [vmem:[%s1 + $0xd8] sm:$0xff]
    %v57 = vld [vmem:[%s1 + $0xe0] sm:$0xff]
    %v58 = vld [vmem:[%s1 + $0xe8] sm:$0xff]
    %v59 = vld [vmem:[%s1 + $0xf0] sm:$0xff]
    %v60 = vld [vmem:[%s1 + $0xf8] sm:$0xff]
    %v61 = vld [vmem:[%s1 + $0x100] sm:$0xff]
    %v62 = vld [vmem:[%s1 + $0x108] sm:$0xff]
    %v63 = vld [vmem:[%s1 + $0x110] sm:$0xff]
    %v64 = vld [vmem:[%s1 + $0x118] sm:$0xff]
    %v65 = vld [vmem:[%s1 + $0x120] sm:$0xff]
    %v66 = vld [vmem:[%s1 + $0x128] sm:$0xff]
    %v67 = vld [vmem:[%s1 + $0x130] sm:$0xff]
    %v68 = vld [vmem:[%s1 + $0x138] sm:$0xff]
    %v69 = vld [vmem:[%s1 + $0x140] sm:$0xff]
    %v70 = vld [vmem:[%s1 + $0x148] sm:$0xff]
    %v71 = vld [vmem:[%s1 + $0x150] sm:$0xff]
    %v72 = vld [vmem:[%s1 + $0x158] sm:$0xff]
    %v73 = vld [vmem:[%s1 + $0x160] sm:$0xff]
    %v74 = vld [vmem:[%s1 + $0x168] sm:$0xff]
    %v75 = vld [vmem:[%s1 + $0x170] sm:$0xff]
    %v76 = vld [vmem:[%s1 + $0x178] sm:$0xff]
    %v77 = vld [vmem:[%s1 + $0x180] sm:$0xff]
    %v78 = vld [vmem:[%s1 + $0x188] sm:$0xff]
    %v79 = vld [vmem:[%s1 + $0x190] sm:$0xff]
    %v80 = vld [vmem:[%s1 + $0x198] sm:$0xff]
    %v81 = vld [vmem:[%s1 + $0x1a0] sm:$0xff]
    %v82 = vld [vmem:[%s1 + $0x1a8] sm:$0xff]
    %v83 = vld [vmem:[%s1 + $0x1b0] sm:$0xff]
    %v84 = vld [vmem:[%s1 + $0x1b8] sm:$0xff]
    %v85 = vld [vmem:[%s1 + $0x1c0] sm:$0xff]
    %v86 = vld [vmem:[%s1 + $0x1c8] sm:$0xff]
    %v87 = vld [vmem:[%s1 + $0x1d0] sm:$0xff]
    %v88 = vld [vmem:[%s1 + $0x1d8] sm:$0xff]
    %v89 = vld [vmem:[%s1 + $0x1e0] sm:$0xff]
    %v90 = vld [vmem:[%s1 + $0x1e8] sm:$0xff]
    %v91 = vld [vmem:[%s1 + $0x1f0] sm:$0xff]
    %v92 = vld [vmem:[%s1 + $0x1f8] sm:$0xff]
    %v93 = vld [vmem:[%s1 + $0x200] sm:$0xff]
    %v94 = vld [vmem:[%s1 + $0x208] sm:$0xff]
    %v95 = vld [vmem:[%s1 + $0x210] sm:$0xff]
    %v96 = vld [vmem:[%s1 + $0x218] sm:$0xff]
    %v97 = vld [vmem:[%s1 + $0x220] sm:$0xff]
    %v98 = vld [vmem:[%s1 + $0x228] sm:$0xff]
    %v99 = vld [vmem:[%s1 + $0x230] sm:$0xff]
    %v100 = vld [vmem:[%s1 + $0x238] sm:$0xff]
    %v101 = vld [vmem:[%s1 + $0x240] sm:$0xff]
    %v102 = vld [vmem:[%s1 + $0x248] sm:$0xff]
    %v103 = vld [vmem:[%s1 + $0x250] sm:$0xff]
    %v104 = vld [vmem:[%s1 + $0x258] sm:$0xff]
    %v105 = vld [vmem:[%s1 + $0x260] sm:$0xff]
    %v106 = vld [vmem:[%s1 + $0x268] sm:$0xff]
    %v107 = vld [vmem:[%s1 + $0x270] sm:$0xff]
    %v108 = vld [vmem:[%s1 + $0x278] sm:$0xff]
    %v109 = vld [vmem:[%s1 + $0x280] sm:$0xff]
    %v110 = vld [vmem:[%s1 + $0x288] sm:$0xff]
    %v111 = vld [vmem:[%s1 + $0x290] sm:$0xff]
    %v112 = vld [vmem:[%s1 + $0x298] sm:$0xff]
    %v113 = vld [vmem:[%s1 + $0x2a0] sm:$0xff]
    %v114 = vld [vmem:[%s1 + $0x2a8] sm:$0xff]
    %v115 = vld [vmem:[%s1 + $0x2b0] sm:$0xff]
    %v116 = vld [vmem:[%s1 + $0x2b8] sm:$0xff]
    %v117 = vld [vmem:[%s1 + $0x2c0] sm:$0xff]
    %v118 = vld [vmem:[%s1 + $0x2c8] sm:$0xff]
    %v119 = vld [vmem:[%s1 + $0x2d0] sm:$0xff]
    %v120 = vld [vmem:[%s1 + $0x2d8] sm:$0xff]
    %v121 = vld [vmem:[%s1 + $0x2e0] sm:$0xff]
    %v122 = vld [vmem:[%s1 + $0x2e8] sm:$0xff]
    %v123 = vld [vmem:[%s1 + $0x2f0] sm:$0xff]
    %v124 = vld [vmem:[%s1 + $0x2f8] sm:$0xff]
    %v125 = vld [vmem:[%s1 + $0x300] sm:$0xff]
    %v126 = vld [vmem:[%s1 + $0x308] sm:$0xff]
    %v127 = vld [vmem:[%s1 + $0x310] sm:$0xff]
    %v128 = vld [vmem:[%s1 + $0x318] sm:$0xff]
    %v129 = vld [vmem:[%s1 + $0x320] sm:$0xff]
    %v130 = vld [vmem:[%s1 + $0x328] sm:$0xff]
    %v131 = vld [vmem:[%s1 + $0x330] sm:$0xff]
    %v132 = vld [vmem:[%s1 + $0x338] sm:$0xff]
    %v133 = vld [vmem:[%s1 + $0x340] sm:$0xff]
    %v134 = vld [vmem:[%s1 + $0x348] sm:$0xff]
    %v135 = vld [vmem:[%s1 + $0x350] sm:$0xff]
    %v136 = vld [vmem:[%s1 + $0x358] sm:$0xff]
    %v137 = vld [vmem:[%s1 + $0x360] sm:$0xff]
    %v138 = vld [vmem:[%s1 + $0x368] sm:$0xff]
    %v139 = vld [vmem:[%s1 + $0x370] sm:$0xff]
    %v140 = vld [vmem:[%s1 + $0x378] sm:$0xff]
    %v141 = vld [vmem:[%s1 + $0x380] sm:$0xff]
    %v142 = vld [vmem:[%s1 + $0x388] sm:$0xff]
    %v143 = vld [vmem:[%s1 + $0x390] sm:$0xff]
    %v144 = vld [vmem:[%s1 + $0x398] sm:$0xff]
    %v145 = vld [vmem:[%s1 + $0x3a0] sm:$0xff]
    %v146 = vld [vmem:[%s1 + $0x3a8] sm:$0xff]
    %v147 = vld [vmem:[%s1 + $0x3b0] sm:$0xff]
    %v148 = vld [vmem:[%s1 + $0x3b8] sm:$0xff]
    %v149 = vld [vmem:[%s1 + $0x3c0] sm:$0xff]
    %v150 = vld [vmem:[%s1 + $0x3c8] sm:$0xff]
    %v151 = vld [vmem:[%s1 + $0x3d0] sm:$0xff]
    %v152 = vld [vmem:[%s1 + $0x3d8] sm:$0xff]
    %v153 = vld [vmem:[%s1 + $0x3e0] sm:$0xff]
    %v154 = vld [vmem:[%s1 + $0x3e8] sm:$0xff]
    %v155 = vld [vmem:[%s1 + $0x3f0] sm:$0xff]
    %v156 = vld [vmem:[%s1 + $0x3f8] sm:$0xff]
    %v157 = vld [vmem:[%s1 + $0x400] sm:$0xff]
    %v158 = vld [vmem:[%s1 + $0x408] sm:$0xff]
    %v159 = vld [vmem:[%s1 + $0x410] sm:$0xff]
    %v160 = vld [vmem:[%s1 + $0x418] sm:$0xff]
    %v161 = vld [vmem:[%s1 + $0x420] sm:$0xff]
    %v162 = vld [vmem:[%s1 + $0x428] sm:$0xff]
    %v163 = vld [vmem:[%s1 + $0x430] sm:$0xff]
    %v164 = vld [vmem:[%s1 + $0x438] sm:$0xff]
    %v165 = vld [vmem:[%s1 + $0x440] sm:$0xff]
    %v166 = vld [vmem:[%s1 + $0x448] sm:$0xff]
    %v167 = vld [vmem:[%s1 + $0x450] sm:$0xff]
    %v168 = vld [vmem:[%s1 + $0x458] sm:$0xff]
    %v169 = vld [vmem:[%s1 + $0x460] sm:$0xff]
    %v170 = vld [vmem:[%s1 + $0x468] sm:$0xff]
    %v171 = vld [vmem:[%s1 + $0x470] sm:$0xff]
    %v172 = vld [vmem:[%s1 + $0x478] sm:$0xff]
    %v173 = vld [vmem:[%s1 + $0x480] sm:$0xff]
    %v174 = vld [vmem:[%s1 + $0x488] sm:$0xff]
    %v175 = vld [vmem:[%s1 + $0x490] sm:$0xff]
    %v176 = vld [vmem:[%s1 + $0x498] sm:$0xff]
    %v177 = vld [vmem:[%s1 + $0x4a0] sm:$0xff]
    %v178 = vld [vmem:[%s1 + $0x4a8] sm:$0xff]
    %v179 = vld [vmem:[%s1 + $0x4b0] sm:$0xff]
    %v180 = vld [vmem:[%s1 + $0x4b8] sm:$0xff]
    %v181 = vld [vmem:[%s1 + $0x4c0] sm:$0xff]
    %v182 = vld [vmem:[%s1 + $0x4c8] sm:$0xff]
    %v183 = vld [vmem:[%s1 + $0x4d0] sm:$0xff]
    %v184 = vld [vmem:[%s1 + $0x4d8] sm:$0xff]
    %v185 = vld [vmem:[%s1 + $0x4e0] sm:$0xff]
    %v186 = vld [vmem:[%s1 + $0x4e8] sm:$0xff]
    %v187 = vld [vmem:[%s1 + $0x4f0] sm:$0xff]
    %v188 = vld [vmem:[%s1 + $0x4f8] sm:$0xff]
    %v189 = vld [vmem:[%s1 + $0x500] sm:$0xff]
    %v190 = vld [vmem:[%s1 + $0x508] sm:$0xff]
    %v191 = vld [vmem:[%s1 + $0x510] sm:$0xff]
    %v192 = vld [vmem:[%s1 + $0x518] sm:$0xff]
    %v193 = vld [vmem:[%s1 + $0x520] sm:$0xff]
    %v194 = vld [vmem:[%s1 + $0x528] sm:$0xff]
    %v195 = vld [vmem:[%s1 + $0x530] sm:$0xff]
    %v196 = vld [vmem:[%s1 + $0x538] sm:$0xff]
    %v197 = vld [vmem:[%s1 + $0x540] sm:$0xff]
    %v198 = vld [vmem:[%s1 + $0x548] sm:$0xff]
    %v199 = vld [vmem:[%s1 + $0x550] sm:$0xff]
    %v200 = vld [vmem:[%s1 + $0x558] sm:$0xff]
    %v201 = vld [vmem:[%s1 + $0x560] sm:$0xff]
    %v202 = vld [vmem:[%s1 + $0x568] sm:$0xff]
    %v203 = vld [vmem:[%s1 + $0x570] sm:$0xff]
    %v204 = vld [vmem:[%s1 + $0x578] sm:$0xff]
    %v205 = vld [vmem:[%s1 + $0x580] sm:$0xff]
    %v206 = vld [vmem:[%s1 + $0x588] sm:$0xff]
    %v207 = vld [vmem:[%s1 + $0x590] sm:$0xff]
    %v208 = vld [vmem:[%s1 + $0x598] sm:$0xff]
    %v209 = vld [vmem:[%s1 + $0x5a0] sm:$0xff]
    %v210 = vld [vmem:[%s1 + $0x5a8] sm:$0xff]
    %v211 = vld [vmem:[%s1 + $0x5b0] sm:$0xff]
    %v212 = vld [vmem:[%s1 + $0x5b8] sm:$0xff]
    %v213 = vld [vmem:[%s1 + $0x5c0] sm:$0xff]
    %v214 = vld [vmem:[%s1 + $0x5c8] sm:$0xff]
    %v215 = vld [vmem:[%s1 + $0x5d0] sm:$0xff]
    %v216 = vld [vmem:[%s1 + $0x5d8] sm:$0xff]
    %v217 = vld [vmem:[%s1 + $0x5e0] sm:$0xff]
    %v218 = vld [vmem:[%s1 + $0x5e8] sm:$0xff]
    %v219 = vld [vmem:[%s1 + $0x5f0] sm:$0xff]
    %v220 = vld [vmem:[%s1 + $0x5f8] sm:$0xff]
    %v221 = vld [vmem:[%s1 + $0x600] sm:$0xff]
    %v222 = vld [vmem:[%s1 + $0x608] sm:$0xff]
    %v223 = vld [vmem:[%s1 + $0x610] sm:$0xff]
    %v224 = vld [vmem:[%s1 + $0x618] sm:$0xff]
    %v225 = vld [vmem:[%s1 + $0x620] sm:$0xff]
    %v226 = vld [vmem:[%s1 + $0x628] sm:$0xff]
    %v227 = vld [vmem:[%s1 + $0x630] sm:$0xff]
    %v228 = vld [vmem:[%s1 + $0x638] sm:$0xff]
    %v229 = vld [vmem:[%s1 + $0x640] sm:$0xff]
    %v230 = vld [vmem:[%s1 + $0x648] sm:$0xff]
    %v231 = vld [vmem:[%s1 + $0x650] sm:$0xff]
    %v232 = vld [vmem:[%s1 + $0x658] sm:$0xff]
    %v233 = vld [vmem:[%s1 + $0x660] sm:$0xff]
    %v234 = vld [vmem:[%s1 + $0x668] sm:$0xff]
    %v235 = vld [vmem:[%s1 + $0x670] sm:$0xff]
    %v236 = vld [vmem:[%s1 + $0x678] sm:$0xff]
    %v237 = vld [vmem:[%s1 + $0x680] sm:$0xff]
    %v238 = vld [vmem:[%s1 + $0x688] sm:$0xff]
    %v239 = vld [vmem:[%s1 + $0x690] sm:$0xff]
    %v240 = vld [vmem:[%s1 + $0x698] sm:$0xff]
    %v241 = vld [vmem:[%s1 + $0x6a0] sm:$0xff]
    %v242 = vld [vmem:[%s1 + $0x6a8] sm:$0xff]
    %v243 = vld [vmem:[%s1 + $0x6b0] sm:$0xff]
    %v244 = vld [vmem:[%s1 + $0x6b8] sm:$0xff]
    %v245 = vld [vmem:[%s1 + $0x6c0] sm:$0xff]
    %v246 = vld [vmem:[%s1 + $0x6c8] sm:$0xff]
    %v247 = vld [vmem:[%s1 + $0x6d0] sm:$0xff]
    %v248 = vld [vmem:[%s1 + $0x6d8] sm:$0xff]
    %v249 = vld [vmem:[%s1 + $0x6e0] sm:$0xff]
    %v250 = vld [vmem:[%s1 + $0x6e8] sm:$0xff]
    %v251 = vld [vmem:[%s1 + $0x6f0] sm:$0xff]
    %v252 = vld [vmem:[%s1 + $0x6f8] sm:$0xff]
    %v253 = vld [vmem:[%s1 + $0x700] sm:$0xff]
    %v254 = vld [vmem:[%s1 + $0x708] sm:$0xff]
    %v255 = vld [vmem:[%s1 + $0x710] sm:$0xff]
    %v256 = vld [vmem:[%s1 + $0x718] sm:$0xff]
    %v257 = vld [vmem:[%s1 + $0x720] sm:$0xff]
    %v258 = vld [vmem:[%s1 + $0x728] sm:$0xff]
    %v259 = vld [vmem:[%s1 + $0x730] sm:$0xff]
    %v260 = vld [vmem:[%s1 + $0x738] sm:$0xff]
    %v261 = vld [vmem:[%s1 + $0x740] sm:$0xff]
    %v262 = vld [vmem:[%s1 + $0x748] sm:$0xff]
    %v263 = vld [vmem:[%s1 + $0x750] sm:$0xff]
    %v264 = vld [vmem:[%s1 + $0x758] sm:$0xff]
    %v265 = vld [vmem:[%s1 + $0x760] sm:$0xff]
    %v266 = vld [vmem:[%s1 + $0x768] sm:$0xff]
    %v267 = vld [vmem:[%s1 + $0x770] sm:$0xff]
    %v268 = vld [vmem:[%s1 + $0x778] sm:$0xff]
    %v269 = vld [vmem:[%s1 + $0x780] sm:$0xff]
    %v270 = vld [vmem:[%s1 + $0x788] sm:$0xff]
    %v271 = vld [vmem:[%s1 + $0x790] sm:$0xff]
    %v272 = vld [vmem:[%s1 + $0x798] sm:$0xff]
    %v273 = vld [vmem:[%s1 + $0x7a0] sm:$0xff]
    %v274 = vld [vmem:[%s1 + $0x7a8] sm:$0xff]
    %v275 = vld [vmem:[%s1 + $0x7b0] sm:$0xff]
    %v276 = vld [vmem:[%s1 + $0x7b8] sm:$0xff]
    %v277 = vld [vmem:[%s1 + $0x7c0] sm:$0xff]
    %v278 = vld [vmem:[%s1 + $0x7c8] sm:$0xff]
    %v279 = vld [vmem:[%s1 + $0x7d0] sm:$0xff]
    %v280 = vld [vmem:[%s1 + $0x7d8] sm:$0xff]
    %v281 = vld [vmem:[%s1 + $0x7e0] sm:$0xff]
    %v282 = vld [vmem:[%s1 + $0x7e8] sm:$0xff]
    %v283 = vld [vmem:[%s1 + $0x7f0] sm:$0xff]
    %v284 = vld [vmem:[%s1 + $0x7f8] sm:$0xff]
    %v285 = vld [vmem:[%s1 + $0x800] sm:$0xff]
    %v286 = vld [vmem:[%s1 + $0x808] sm:$0xff]
    %v287 = vld [vmem:[%s1 + $0x810] sm:$0xff]
    %v288 = vld [vmem:[%s1 + $0x818] sm:$0xff]
    %v289 = vld [vmem:[%s1 + $0x820] sm:$0xff]
    %v290 = vld [vmem:[%s1 + $0x828] sm:$0xff]
    %v291 = vld [vmem:[%s1 + $0x830] sm:$0xff]
    %v292 = vld [vmem:[%s1 + $0x838] sm:$0xff]
    %v293 = vld [vmem:[%s1 + $0x840] sm:$0xff]
    %v294 = vld [vmem:[%s1 + $0x848] sm:$0xff]
    %v295 = vld [vmem:[%s1 + $0x850] sm:$0xff]
    %v296 = vld [vmem:[%s1 + $0x858] sm:$0xff]
    %v297 = vld [vmem:[%s1 + $0x860] sm:$0xff]
    %v298 = vld [vmem:[%s1 + $0x868] sm:$0xff]
    %v299 = vld [vmem:[%s1 + $0x870] sm:$0xff]
    %v300 = vld [vmem:[%s1 + $0x878] sm:$0xff]
    %v301 = vld [vmem:[%s1 + $0x880] sm:$0xff]
    %v302 = vld [vmem:[%s1 + $0x888] sm:$0xff]
    %v303 = vld [vmem:[%s1 + $0x890] sm:$0xff]
    %v304 = vld [vmem:[%s1 + $0x898] sm:$0xff]
    %v305 = vld [vmem:[%s1 + $0x8a0] sm:$0xff]
    %v306 = vld [vmem:[%s1 + $0x8a8] sm:$0xff]
    %v307 = vld [vmem:[%s1 + $0x8b0] sm:$0xff]
    %v308 = vld [vmem:[%s1 + $0x8b8] sm:$0xff]
    %v309 = vld [vmem:[%s1 + $0x8c0] sm:$0xff]
    %v310 = vld [vmem:[%s1 + $0x8c8] sm:$0xff]
    %v311 = vld [vmem:[%s1 + $0x8d0] sm:$0xff]
    %v312 = vld [vmem:[%s1 + $0x8d8] sm:$0xff]
    %v313 = vld [vmem:[%s1 + $0x8e0] sm:$0xff]
    %v314 = vld [vmem:[%s1 + $0x8e8] sm:$0xff]
    %v315 = vld [vmem:[%s1 + $0x8f0] sm:$0xff]
    %v316 = vld [vmem:[%s1 + $0x8f8] sm:$0xff]
    %v317 = vld [vmem:[%s1 + $0x900] sm:$0xff]
    %v318 = vld [vmem:[%s1 + $0x908] sm:$0xff]
    %v319 = vld [vmem:[%s1 + $0x910] sm:$0xff]
    %v320 = vld [vmem:[%s1 + $0x918] sm:$0xff]
    %v321 = vld [vmem:[%s1 + $0x920] sm:$0xff]
    %v322 = vld [vmem:[%s1 + $0x928] sm:$0xff]
    %v323 = vld [vmem:[%s1 + $0x930] sm:$0xff]
    %v324 = vld [vmem:[%s1 + $0x938] sm:$0xff]
    %v325 = vld [vmem:[%s1 + $0x940] sm:$0xff]
    %v326 = vld [vmem:[%s1 + $0x948] sm:$0xff]
    %v327 = vld [vmem:[%s1 + $0x950] sm:$0xff]
    %v328 = vld [vmem:[%s1 + $0x958] sm:$0xff]
    %v329 = vld [vmem:[%s1 + $0x960] sm:$0xff]
    %v330 = vld [vmem:[%s1 + $0x968] sm:$0xff]
    %v331 = vld [vmem:[%s1 + $0x970] sm:$0xff]
    %v332 = vld [vmem:[%s1 + $0x978] sm:$0xff]
    %v333 = vld [vmem:[%s1 + $0x980] sm:$0xff]
    %v334 = vld [vmem:[%s1 + $0x988] sm:$0xff]
    %v335 = vld [vmem:[%s1 + $0x990] sm:$0xff]
    %v336 = vld [vmem:[%s1 + $0x998] sm:$0xff]
    %v337 = vld [vmem:[%s1 + $0x9a0] sm:$0xff]
    %v338 = vld [vmem:[%s1 + $0x9a8] sm:$0xff]
    %v339 = vld [vmem:[%s1 + $0x9b0] sm:$0xff]
    %v340 = vld [vmem:[%s1 + $0x9b8] sm:$0xff]
    %v341 = vld [vmem:[%s1 + $0x9c0] sm:$0xff]
    %v342 = vld [vmem:[%s1 + $0x9c8] sm:$0xff]
    %v343 = vld [vmem:[%s1 + $0x9d0] sm:$0xff]
    %v344 = vld [vmem:[%s1 + $0x9d8] sm:$0xff]
    %v345 = vld [vmem:[%s1 + $0x9e0] sm:$0xff]
    %v346 = vld [vmem:[%s1 + $0x9e8] sm:$0xff]
    %v347 = vld [vmem:[%s1 + $0x9f0] sm:$0xff]
    %v348 = vld [vmem:[%s1 + $0x9f8] sm:$0xff]
    %v349 = vld [vmem:[%s1 + $0xa00] sm:$0xff]
    %v350 = vld [vmem:[%s1 + $0xa08] sm:$0xff]
    %v351 = vld [vmem:[%s1 + $0xa10] sm:$0xff]
    %v352 = vld [vmem:[%s1 + $0xa18] sm:$0xff]
    %v353 = vld [vmem:[%s1 + $0xa20] sm:$0xff]
    %v354 = vld [vmem:[%s1 + $0xa28] sm:$0xff]
    %v355 = vld [vmem:[%s1 + $0xa30] sm:$0xff]
    %v356 = vld [vmem:[%s1 + $0xa38] sm:$0xff]
    %v357 = vld [vmem:[%s1 + $0xa40] sm:$0xff]
    %v358 = vld [vmem:[%s1 + $0xa48] sm:$0xff]
    %v359 = vld [vmem:[%s1 + $0xa50] sm:$0xff]
    %v360 = vld [vmem:[%s1 + $0xa58] sm:$0xff]
    %v361 = vld [vmem:[%s1 + $0xa60] sm:$0xff]
    %v362 = vld [vmem:[%s1 + $0xa68] sm:$0xff]
    %v363 = vld [vmem:[%s1 + $0xa70] sm:$0xff]
    %v364 = vld [vmem:[%s1 + $0xa78] sm:$0xff]
    %v365 = vld [vmem:[%s1 + $0xa80] sm:$0xff]
    %v366 = vld [vmem:[%s1 + $0xa88] sm:$0xff]
    %v367 = vld [vmem:[%s1 + $0xa90] sm:$0xff]
    %v368 = vld [vmem:[%s1 + $0xa98] sm:$0xff]
    %v369 = vld [vmem:[%s1 + $0xaa0] sm:$0xff]
    %v370 = vld [vmem:[%s1 + $0xaa8] sm:$0xff]
    %v371 = vld [vmem:[%s1 + $0xab0] sm:$0xff]
    %v372 = vld [vmem:[%s1 + $0xab8] sm:$0xff]
    %v373 = vld [vmem:[%s1 + $0xac0] sm:$0xff]
    %v374 = vld [vmem:[%s1 + $0xac8] sm:$0xff]
    %v375 = vld [vmem:[%s1 + $0xad0] sm:$0xff]
    %v376 = vld [vmem:[%s1 + $0xad8] sm:$0xff]
    %v377 = vld [vmem:[%s1 + $0xae0] sm:$0xff]
    %v378 = vld [vmem:[%s1 + $0xae8] sm:$0xff]
    %v379 = vld [vmem:[%s1 + $0xaf0] sm:$0xff]
    %v380 = vld [vmem:[%s1 + $0xaf8] sm:$0xff]
    %v381 = vld [vmem:[%s1 + $0xb00] sm:$0xff]
    %v382 = vld [vmem:[%s1 + $0xb08] sm:$0xff]
    %v383 = vld [vmem:[%s1 + $0xb10] sm:$0xff]
    %v384 = vld [vmem:[%s1 + $0xb18] sm:$0xff]
    %v385 = vld [vmem:[%s1 + $0xb20] sm:$0xff]
    %v386 = vld [vmem:[%s1 + $0xb28] sm:$0xff]
    %v387 = vld [vmem:[%s1 + $0xb30] sm:$0xff]
    %v388 = vld [vmem:[%s1 + $0xb38] sm:$0xff]
    %v389 = vld [vmem:[%s1 + $0xb40] sm:$0xff]
    %v390 = vld [vmem:[%s1 + $0xb48] sm:$0xff]
    %v391 = vld [vmem:[%s1 + $0xb50] sm:$0xff]
    %v392 = vld [vmem:[%s1 + $0xb58] sm:$0xff]
    %v393 = vld [vmem:[%s1 + $0xb60] sm:$0xff]
    %v394 = vld [vmem:[%s1 + $0xb68] sm:$0xff]
    %v395 = vld [vmem:[%s1 + $0xb70] sm:$0xff]
    %v396 = vld [vmem:[%s1 + $0xb78] sm:$0xff]
    %v397 = vld [vmem:[%s1 + $0xb80] sm:$0xff]
    %v398 = vld [vmem:[%s1 + $0xb88] sm:$0xff]
    %v399 = vld [vmem:[%s1 + $0xb90] sm:$0xff]
    %v400 = vld [vmem:[%s1 + $0xb98] sm:$0xff]
    %v401 = vld [vmem:[%s1 + $0xba0] sm:$0xff]
    %v402 = vld [vmem:[%s1 + $0xba8] sm:$0xff]
    %v403 = vld [vmem:[%s1 + $0xbb0] sm:$0xff]
    %v404 = vld [vmem:[%s1 + $0xbb8] sm:$0xff]
    %v405 = vld [vmem:[%s1 + $0xbc0] sm:$0xff]
    %v406 = vld [vmem:[%s1 + $0xbc8] sm:$0xff]
    %v407 = vld [vmem:[%s1 + $0xbd0] sm:$0xff]
    %v408 = vld [vmem:[%s1 + $0xbd8] sm:$0xff]
    %v409 = vld [vmem:[%s1 + $0xbe0] sm:$0xff]
    %v410 = vld [vmem:[%s1 + $0xbe8] sm:$0xff]
    %v411 = vld [vmem:[%s1 + $0xbf0] sm:$0xff]
    %v412 = vld [vmem:[%s1 + $0xbf8] sm:$0xff]
    %v413 = vld [vmem:[%s1 + $0xc00] sm:$0xff]
    %v414 = vld [vmem:[%s1 + $0xc08] sm:$0xff]
    %v415 = vld [vmem:[%s1 + $0xc10] sm:$0xff]
    %v416 = vld [vmem:[%s1 + $0xc18] sm:$0xff]
    %v417 = vld [vmem:[%s1 + $0xc20] sm:$0xff]
    %v418 = vld [vmem:[%s1 + $0xc28] sm:$0xff]
    %v419 = vld [vmem:[%s1 + $0xc30] sm:$0xff]
    %v420 = vld [vmem:[%s1 + $0xc38] sm:$0xff]
    %v421 = vld [vmem:[%s1 + $0xc40] sm:$0xff]
    %v422 = vld [vmem:[%s1 + $0xc48] sm:$0xff]
    %v423 = vld [vmem:[%s1 + $0xc50] sm:$0xff]
    %v424 = vld [vmem:[%s1 + $0xc58] sm:$0xff]
    %v425 = vld [vmem:[%s1 + $0xc60] sm:$0xff]
    %v426 = vld [vmem:[%s1 + $0xc68] sm:$0xff]
    %v427 = vld [vmem:[%s1 + $0xc70] sm:$0xff]
    %v428 = vld [vmem:[%s1 + $0xc78] sm:$0xff]
    %v429 = vld [vmem:[%s1 + $0xc80] sm:$0xff]
    %v430 = vld [vmem:[%s1 + $0xc88] sm:$0xff]
    %v431 = vld [vmem:[%s1 + $0xc90] sm:$0xff]
    %v432 = vld [vmem:[%s1 + $0xc98] sm:$0xff]
    %v433 = vld [vmem:[%s1 + $0xca0] sm:$0xff]
    %v434 = vld [vmem:[%s1 + $0xca8] sm:$0xff]
    %v435 = vld [vmem:[%s1 + $0xcb0] sm:$0xff]
    %v436 = vld [vmem:[%s1 + $0xcb8] sm:$0xff]
    %v437 = vld [vmem:[%s1 + $0xcc0] sm:$0xff]
    %v438 = vld [vmem:[%s1 + $0xcc8] sm:$0xff]
    %v439 = vld [vmem:[%s1 + $0xcd0] sm:$0xff]
    %v440 = vld [vmem:[%s1 + $0xcd8] sm:$0xff]
    %v441 = vld [vmem:[%s1 + $0xce0] sm:$0xff]
    %v442 = vld [vmem:[%s1 + $0xce8] sm:$0xff]
    %v443 = vld [vmem:[%s1 + $0xcf0] sm:$0xff]
    %v444 = vld [vmem:[%s1 + $0xcf8] sm:$0xff]
    %v445 = vld [vmem:[%s1 + $0xd00] sm:$0xff]
    %v446 = vld [vmem:[%s1 + $0xd08] sm:$0xff]
    %v447 = vld [vmem:[%s1 + $0xd10] sm:$0xff]
    %v448 = vld [vmem:[%s1 + $0xd18] sm:$0xff]
    %v449 = vld [vmem:[%s1 + $0xd20] sm:$0xff]
    %v450 = vld [vmem:[%s1 + $0xd28] sm:$0xff]
    %v451 = vld [vmem:[%s1 + $0xd30] sm:$0xff]
    %v452 = vld [vmem:[%s1 + $0xd38] sm:$0xff]
    %v453 = vld [vmem:[%s1 + $0xd40] sm:$0xff]
    %v454 = vld [vmem:[%s1 + $0xd48] sm:$0xff]
    %v455 = vld [vmem:[%s1 + $0xd50] sm:$0xff]
    %v456 = vld [vmem:[%s1 + $0xd58] sm:$0xff]
    %v457 = vld [vmem:[%s1 + $0xd60] sm:$0xff]
    %v458 = vld [vmem:[%s1 + $0xd68] sm:$0xff]
    %v459 = vld [vmem:[%s1 + $0xd70] sm:$0xff]
    %v460 = vld [vmem:[%s1 + $0xd78] sm:$0xff]
    %v461 = vld [vmem:[%s1 + $0xd80] sm:$0xff]
    %v462 = vld [vmem:[%s1 + $0xd88] sm:$0xff]
    %v463 = vld [vmem:[%s1 + $0xd90] sm:$0xff]
    %v464 = vld [vmem:[%s1 + $0xd98] sm:$0xff]
    %v465 = vld [vmem:[%s1 + $0xda0] sm:$0xff]
    %v466 = vld [vmem:[%s1 + $0xda8] sm:$0xff]
    %v467 = vld [vmem:[%s1 + $0xdb0] sm:$0xff]
    %v468 = vld [vmem:[%s1 + $0xdb8] sm:$0xff]
    %v469 = vld [vmem:[%s1 + $0xdc0] sm:$0xff]
    %v470 = vld [vmem:[%s1 + $0xdc8] sm:$0xff]
    %v471 = vld [vmem:[%s1 + $0xdd0] sm:$0xff]
    %v472 = vld [vmem:[%s1 + $0xdd8] sm:$0xff]
    %v473 = vld [vmem:[%s1 + $0xde0] sm:$0xff]
    %v474 = vld [vmem:[%s1 + $0xde8] sm:$0xff]
    %v475 = vld [vmem:[%s1 + $0xdf0] sm:$0xff]
    %v476 = vld [vmem:[%s1 + $0xdf8] sm:$0xff]
    %v477 = vld [vmem:[%s1 + $0xe00] sm:$0xff]
    %v478 = vld [vmem:[%s1 + $0xe08] sm:$0xff]
    %v479 = vld [vmem:[%s1 + $0xe10] sm:$0xff]
    %v480 = vld [vmem:[%s1 + $0xe18] sm:$0xff]
    %v481 = vld [vmem:[%s1 + $0xe20] sm:$0xff]
    %v482 = vld [vmem:[%s1 + $0xe28] sm:$0xff]
    %v483 = vld [vmem:[%s1 + $0xe30] sm:$0xff]
    %v484 = vld [vmem:[%s1 + $0xe38] sm:$0xff]
    %v485 = vld [vmem:[%s1 + $0xe40] sm:$0xff]
    %v486 = vld [vmem:[%s1 + $0xe48] sm:$0xff]
    %v487 = vld [vmem:[%s1 + $0xe50] sm:$0xff]
    %v488 = vld [vmem:[%s1 + $0xe58] sm:$0xff]
    %v489 = vld [vmem:[%s1 + $0xe60] sm:$0xff]
    %v490 = vld [vmem:[%s1 + $0xe68] sm:$0xff]
    %v491 = vld [vmem:[%s1 + $0xe70] sm:$0xff]
    %v492 = vld [vmem:[%s1 + $0xe78] sm:$0xff]
    %v493 = vld [vmem:[%s1 + $0xe80] sm:$0xff]
    %v494 = vld [vmem:[%s1 + $0xe88] sm:$0xff]
    %v495 = vld [vmem:[%s1 + $0xe90] sm:$0xff]
    %v496 = vld [vmem:[%s1 + $0xe98] sm:$0xff]
    %v497 = vld [vmem:[%s1 + $0xea0] sm:$0xff]
    %v498 = vld [vmem:[%s1 + $0xea8] sm:$0xff]
    %v499 = vld [vmem:[%s1 + $0xeb0] sm:$0xff]
    %v500 = vld [vmem:[%s1 + $0xeb8] sm:$0xff]
    %v501 = vld [vmem:[%s1 + $0xec0] sm:$0xff]
    %v502 = vld [vmem:[%s1 + $0xec8] sm:$0xff]
    %v503 = vld [vmem:[%s1 + $0xed0] sm:$0xff]
    %v504 = vld [vmem:[%s1 + $0xed8] sm:$0xff]
    %v505 = vld [vmem:[%s1 + $0xee0] sm:$0xff]
    %v506 = vld [vmem:[%s1 + $0xee8] sm:$0xff]
    %v507 = vld [vmem:[%s1 + $0xef0] sm:$0xff]
    %v508 = vld [vmem:[%s1 + $0xef8] sm:$0xff]
    %v509 = vld [vmem:[%s1 + $0xf00] sm:$0xff]
    %v510 = vld [vmem:[%s1 + $0xf08] sm:$0xff]
    %v511 = vld [vmem:[%s1 + $0xf10] sm:$0xff]
    %v512 = vld [vmem:[%s1 + $0xf18] sm:$0xff]
    %v513 = vld [vmem:[%s1 + $0xf20] sm:$0xff]
    %v514 = vld [vmem:[%s1 + $0xf28] sm:$0xff]
    %v515 = vld [vmem:[%s1 + $0xf30] sm:$0xff]
    %v516 = vld [vmem:[%s1 + $0xf38] sm:$0xff]
    %v517 = vld [vmem:[%s1 + $0xf40] sm:$0xff]
    %v518 = vld [vmem:[%s1 + $0xf48] sm:$0xff]
    %v519 = vld [vmem:[%s1 + $0xf50] sm:$0xff]
    %v520 = vld [vmem:[%s1 + $0xf58] sm:$0xff]
    %v521 = vld [vmem:[%s1 + $0xf60] sm:$0xff]
    %v522 = vld [vmem:[%s1 + $0xf68] sm:$0xff]
    %v523 = vld [vmem:[%s1 + $0xf70] sm:$0xff]
    %v524 = vld [vmem:[%s1 + $0xf78] sm:$0xff]
    %v525 = vld [vmem:[%s1 + $0xf80] sm:$0xff]
    %v526 = vld [vmem:[%s1 + $0xf88] sm:$0xff]
    %v527 = vld [vmem:[%s1 + $0xf90] sm:$0xff]
    %v528 = vld [vmem:[%s1 + $0xf98] sm:$0xff]
    %v529 = vld [vmem:[%s1 + $0xfa0] sm:$0xff]
    %v530 = vld [vmem:[%s1 + $0xfa8] sm:$0xff]
    %v531 = vld [vmem:[%s1 + $0xfb0] sm:$0xff]
    %v532 = vld [vmem:[%s1 + $0xfb8] sm:$0xff]
    %v533 = vld [vmem:[%s1 + $0xfc0] sm:$0xff]
    %v534 = vld [vmem:[%s1 + $0xfc8] sm:$0xff]
    %v535 = vld [vmem:[%s1 + $0xfd0] sm:$0xff]
    %v536 = vld [vmem:[%s1 + $0xfd8] sm:$0xff]
    %v537 = vld [vmem:[%s1 + $0xfe0] sm:$0xff]
    %v538 = vld [vmem:[%s1 + $0xfe8] sm:$0xff]
    %v539 = vld [vmem:[%s1 + $0xff0] sm:$0xff]
    %v540 = vld [vmem:[%s1 + $0xff8] sm:$0xff]
    %v543 = vcombine.high %v27, %v27
    %v545 = vunpack.c.l.s4 1966171168
    %v546 = vunpack.c.0.s8 %v545
    %v547 = vlaneseq
    %v548 = vshrl.u32 %v547, 7
    %v549 = vsub.s32 %v546, %v548
    %v550 = vrot.slane %v27, %v549
    %v552 = vunpack.c.l.s4 1966171168
    %v553 = vunpack.c.0.s8 %v552
    %v554 = vlaneseq
    %v555 = vshrl.u32 %v554, 7
    %v556 = vsub.s32 %v553, %v555
    %v557 = vrot.slane %v543, %v556
    %v558 = vcombine.high %v550, %v550
    %v559 = vcombine.high %v557, %v557
    %v561 = vunpack.c.l.s4 1966171168
    %v562 = vunpack.c.0.s8 %v561
    %v563 = vlaneseq
    %v564 = vshrl.u32 %v563, 7
    %v565 = vsub.s32 %v562, %v564
    %v566 = vrot.slane %v550, %v565
    %v568 = vunpack.c.l.s4 1966171168
    %v569 = vunpack.c.0.s8 %v568
    %v570 = vlaneseq
    %v571 = vshrl.u32 %v570, 7
    %v572 = vsub.s32 %v569, %v571
    %v573 = vrot.slane %v557, %v572
    %v575 = vunpack.c.l.s4 1966171168
    %v576 = vunpack.c.0.s8 %v575
    %v577 = vlaneseq
    %v578 = vshrl.u32 %v577, 7
    %v579 = vsub.s32 %v576, %v578
    %v580 = vrot.slane %v558, %v579
    %v582 = vunpack.c.l.s4 1966171168
    %v583 = vunpack.c.0.s8 %v582
    %v584 = vlaneseq
    %v585 = vshrl.u32 %v584, 7
    %v586 = vsub.s32 %v583, %v585
    %v587 = vrot.slane %v559, %v586
    %v588 = vcombine.high %v566, %v566
    %v589 = vcombine.high %v573, %v573
    %v590 = vcombine.high %v580, %v580
    %v591 = vcombine.high %v587, %v587
    %v592 = vcombine.high %v28, %v28
    %v594 = vunpack.c.l.s4 1966171168
    %v595 = vunpack.c.0.s8 %v594
    %v596 = vlaneseq
    %v597 = vshrl.u32 %v596, 7
    %v598 = vsub.s32 %v595, %v597
    %v599 = vrot.slane %v28, %v598
    %v601 = vunpack.c.l.s4 1966171168
    %v602 = vunpack.c.0.s8 %v601
    %v603 = vlaneseq
    %v604 = vshrl.u32 %v603, 7
    %v605 = vsub.s32 %v602, %v604
    %v606 = vrot.slane %v592, %v605
    %v607 = vcombine.high %v599, %v599
    %v608 = vcombine.high %v606, %v606
    %v610 = vunpack.c.l.s4 1966171168
    %v611 = vunpack.c.0.s8 %v610
    %v612 = vlaneseq
    %v613 = vshrl.u32 %v612, 7
    %v614 = vsub.s32 %v611, %v613
    %v615 = vrot.slane %v599, %v614
    %v617 = vunpack.c.l.s4 1966171168
    %v618 = vunpack.c.0.s8 %v617
    %v619 = vlaneseq
    %v620 = vshrl.u32 %v619, 7
    %v621 = vsub.s32 %v618, %v620
    %v622 = vrot.slane %v606, %v621
    %v624 = vunpack.c.l.s4 1966171168
    %v625 = vunpack.c.0.s8 %v624
    %v626 = vlaneseq
    %v627 = vshrl.u32 %v626, 7
    %v628 = vsub.s32 %v625, %v627
    %v629 = vrot.slane %v607, %v628
    %v631 = vunpack.c.l.s4 1966171168
    %v632 = vunpack.c.0.s8 %v631
    %v633 = vlaneseq
    %v634 = vshrl.u32 %v633, 7
    %v635 = vsub.s32 %v632, %v634
    %v636 = vrot.slane %v608, %v635
    %v637 = vcombine.high %v615, %v615
    %v638 = vcombine.high %v622, %v622
    %v639 = vcombine.high %v629, %v629
    %v640 = vcombine.high %v636, %v636
    %v1169 = vunpack.c.l.b16 %v29
    %v1170 = vunpack.c.h.b16 %v29
    %v1171 = vunpack.c.l.b16 %v30
    %v1172 = vunpack.c.h.b16 %v30
    %v1173 = vunpack.c.l.b16 %v31
    %v1174 = vunpack.c.h.b16 %v31
    %v1175 = vunpack.c.l.b16 %v32
    %v1176 = vunpack.c.h.b16 %v32
    %v1177 = vunpack.c.l.b16 %v33
    %v1178 = vunpack.c.h.b16 %v33
    %v1179 = vunpack.c.l.b16 %v34
    %v1180 = vunpack.c.h.b16 %v34
    %v1181 = vunpack.c.l.b16 %v35
    %v1182 = vunpack.c.h.b16 %v35
    %v1183 = vunpack.c.l.b16 %v36
    %v1184 = vunpack.c.h.b16 %v36
    %v1185 = vunpack.c.l.b16 %v37
    %v1186 = vunpack.c.h.b16 %v37
    %v1187 = vunpack.c.l.b16 %v38
    %v1188 = vunpack.c.h.b16 %v38
    %v1189 = vunpack.c.l.b16 %v39
    %v1190 = vunpack.c.h.b16 %v39
    %v1191 = vunpack.c.l.b16 %v40
    %v1192 = vunpack.c.h.b16 %v40
    %v1193 = vunpack.c.l.b16 %v41
    %v1194 = vunpack.c.h.b16 %v41
    %v1195 = vunpack.c.l.b16 %v42
    %v1196 = vunpack.c.h.b16 %v42
    %v1197 = vunpack.c.l.b16 %v43
    %v1198 = vunpack.c.h.b16 %v43
    %v1199 = vunpack.c.l.b16 %v44
    %v1200 = vunpack.c.h.b16 %v44
    %v1201 = vunpack.c.l.b16 %v45
    %v1202 = vunpack.c.h.b16 %v45
    %v1203 = vunpack.c.l.b16 %v46
    %v1204 = vunpack.c.h.b16 %v46
    %v1205 = vunpack.c.l.b16 %v47
    %v1206 = vunpack.c.h.b16 %v47
    %v1207 = vunpack.c.l.b16 %v48
    %v1208 = vunpack.c.h.b16 %v48
    %v1209 = vunpack.c.l.b16 %v49
    %v1210 = vunpack.c.h.b16 %v49
    %v1211 = vunpack.c.l.b16 %v50
    %v1212 = vunpack.c.h.b16 %v50
    %v1213 = vunpack.c.l.b16 %v51
    %v1214 = vunpack.c.h.b16 %v51
    %v1215 = vunpack.c.l.b16 %v52
    %v1216 = vunpack.c.h.b16 %v52
    %v1217 = vunpack.c.l.b16 %v53
    %v1218 = vunpack.c.h.b16 %v53
    %v1219 = vunpack.c.l.b16 %v54
    %v1220 = vunpack.c.h.b16 %v54
    %v1221 = vunpack.c.l.b16 %v55
    %v1222 = vunpack.c.h.b16 %v55
    %v1223 = vunpack.c.l.b16 %v56
    %v1224 = vunpack.c.h.b16 %v56
    %v1225 = vunpack.c.l.b16 %v57
    %v1226 = vunpack.c.h.b16 %v57
    %v1227 = vunpack.c.l.b16 %v58
    %v1228 = vunpack.c.h.b16 %v58
    %v1229 = vunpack.c.l.b16 %v59
    %v1230 = vunpack.c.h.b16 %v59
    %v1231 = vunpack.c.l.b16 %v60
    %v1232 = vunpack.c.h.b16 %v60
    %v1233 = vunpack.c.l.b16 %v61
    %v1234 = vunpack.c.h.b16 %v61
    %v1235 = vunpack.c.l.b16 %v62
    %v1236 = vunpack.c.h.b16 %v62
    %v1237 = vunpack.c.l.b16 %v63
    %v1238 = vunpack.c.h.b16 %v63
    %v1239 = vunpack.c.l.b16 %v64
    %v1240 = vunpack.c.h.b16 %v64
    %v1241 = vunpack.c.l.b16 %v65
    %v1242 = vunpack.c.h.b16 %v65
    %v1243 = vunpack.c.l.b16 %v66
    %v1244 = vunpack.c.h.b16 %v66
    %v1245 = vunpack.c.l.b16 %v67
    %v1246 = vunpack.c.h.b16 %v67
    %v1247 = vunpack.c.l.b16 %v68
    %v1248 = vunpack.c.h.b16 %v68
    %v1249 = vunpack.c.l.b16 %v69
    %v1250 = vunpack.c.h.b16 %v69
    %v1251 = vunpack.c.l.b16 %v70
    %v1252 = vunpack.c.h.b16 %v70
    %v1253 = vunpack.c.l.b16 %v71
    %v1254 = vunpack.c.h.b16 %v71
    %v1255 = vunpack.c.l.b16 %v72
    %v1256 = vunpack.c.h.b16 %v72
    %v1257 = vunpack.c.l.b16 %v73
    %v1258 = vunpack.c.h.b16 %v73
    %v1259 = vunpack.c.l.b16 %v74
    %v1260 = vunpack.c.h.b16 %v74
    %v1261 = vunpack.c.l.b16 %v75
    %v1262 = vunpack.c.h.b16 %v75
    %v1263 = vunpack.c.l.b16 %v76
    %v1264 = vunpack.c.h.b16 %v76
    %v1265 = vunpack.c.l.b16 %v77
    %v1266 = vunpack.c.h.b16 %v77
    %v1267 = vunpack.c.l.b16 %v78
    %v1268 = vunpack.c.h.b16 %v78
    %v1269 = vunpack.c.l.b16 %v79
    %v1270 = vunpack.c.h.b16 %v79
    %v1271 = vunpack.c.l.b16 %v80
    %v1272 = vunpack.c.h.b16 %v80
    %v1273 = vunpack.c.l.b16 %v81
    %v1274 = vunpack.c.h.b16 %v81
    %v1275 = vunpack.c.l.b16 %v82
    %v1276 = vunpack.c.h.b16 %v82
    %v1277 = vunpack.c.l.b16 %v83
    %v1278 = vunpack.c.h.b16 %v83
    %v1279 = vunpack.c.l.b16 %v84
    %v1280 = vunpack.c.h.b16 %v84
    %v1281 = vunpack.c.l.b16 %v85
    %v1282 = vunpack.c.h.b16 %v85
    %v1283 = vunpack.c.l.b16 %v86
    %v1284 = vunpack.c.h.b16 %v86
    %v1285 = vunpack.c.l.b16 %v87
    %v1286 = vunpack.c.h.b16 %v87
    %v1287 = vunpack.c.l.b16 %v88
    %v1288 = vunpack.c.h.b16 %v88
    %v1289 = vunpack.c.l.b16 %v89
    %v1290 = vunpack.c.h.b16 %v89
    %v1291 = vunpack.c.l.b16 %v90
    %v1292 = vunpack.c.h.b16 %v90
    %v1293 = vunpack.c.l.b16 %v91
    %v1294 = vunpack.c.h.b16 %v91
    %v1295 = vunpack.c.l.b16 %v92
    %v1296 = vunpack.c.h.b16 %v92
    %v1297 = vunpack.c.l.b16 %v93
    %v1298 = vunpack.c.h.b16 %v93
    %v1299 = vunpack.c.l.b16 %v94
    %v1300 = vunpack.c.h.b16 %v94
    %v1301 = vunpack.c.l.b16 %v95
    %v1302 = vunpack.c.h.b16 %v95
    %v1303 = vunpack.c.l.b16 %v96
    %v1304 = vunpack.c.h.b16 %v96
    %v1305 = vunpack.c.l.b16 %v97
    %v1306 = vunpack.c.h.b16 %v97
    %v1307 = vunpack.c.l.b16 %v98
    %v1308 = vunpack.c.h.b16 %v98
    %v1309 = vunpack.c.l.b16 %v99
    %v1310 = vunpack.c.h.b16 %v99
    %v1311 = vunpack.c.l.b16 %v100
    %v1312 = vunpack.c.h.b16 %v100
    %v1313 = vunpack.c.l.b16 %v101
    %v1314 = vunpack.c.h.b16 %v101
    %v1315 = vunpack.c.l.b16 %v102
    %v1316 = vunpack.c.h.b16 %v102
    %v1317 = vunpack.c.l.b16 %v103
    %v1318 = vunpack.c.h.b16 %v103
    %v1319 = vunpack.c.l.b16 %v104
    %v1320 = vunpack.c.h.b16 %v104
    %v1321 = vunpack.c.l.b16 %v105
    %v1322 = vunpack.c.h.b16 %v105
    %v1323 = vunpack.c.l.b16 %v106
    %v1324 = vunpack.c.h.b16 %v106
    %v1325 = vunpack.c.l.b16 %v107
    %v1326 = vunpack.c.h.b16 %v107
    %v1327 = vunpack.c.l.b16 %v108
    %v1328 = vunpack.c.h.b16 %v108
    %v1329 = vunpack.c.l.b16 %v109
    %v1330 = vunpack.c.h.b16 %v109
    %v1331 = vunpack.c.l.b16 %v110
    %v1332 = vunpack.c.h.b16 %v110
    %v1333 = vunpack.c.l.b16 %v111
    %v1334 = vunpack.c.h.b16 %v111
    %v1335 = vunpack.c.l.b16 %v112
    %v1336 = vunpack.c.h.b16 %v112
    %v1337 = vunpack.c.l.b16 %v113
    %v1338 = vunpack.c.h.b16 %v113
    %v1339 = vunpack.c.l.b16 %v114
    %v1340 = vunpack.c.h.b16 %v114
    %v1341 = vunpack.c.l.b16 %v115
    %v1342 = vunpack.c.h.b16 %v115
    %v1343 = vunpack.c.l.b16 %v116
    %v1344 = vunpack.c.h.b16 %v116
    %v1345 = vunpack.c.l.b16 %v117
    %v1346 = vunpack.c.h.b16 %v117
    %v1347 = vunpack.c.l.b16 %v118
    %v1348 = vunpack.c.h.b16 %v118
    %v1349 = vunpack.c.l.b16 %v119
    %v1350 = vunpack.c.h.b16 %v119
    %v1351 = vunpack.c.l.b16 %v120
    %v1352 = vunpack.c.h.b16 %v120
    %v1353 = vunpack.c.l.b16 %v121
    %v1354 = vunpack.c.h.b16 %v121
    %v1355 = vunpack.c.l.b16 %v122
    %v1356 = vunpack.c.h.b16 %v122
    %v1357 = vunpack.c.l.b16 %v123
    %v1358 = vunpack.c.h.b16 %v123
    %v1359 = vunpack.c.l.b16 %v124
    %v1360 = vunpack.c.h.b16 %v124
    %v1361 = vunpack.c.l.b16 %v125
    %v1362 = vunpack.c.h.b16 %v125
    %v1363 = vunpack.c.l.b16 %v126
    %v1364 = vunpack.c.h.b16 %v126
    %v1365 = vunpack.c.l.b16 %v127
    %v1366 = vunpack.c.h.b16 %v127
    %v1367 = vunpack.c.l.b16 %v128
    %v1368 = vunpack.c.h.b16 %v128
    %v1369 = vunpack.c.l.b16 %v129
    %v1370 = vunpack.c.h.b16 %v129
    %v1371 = vunpack.c.l.b16 %v130
    %v1372 = vunpack.c.h.b16 %v130
    %v1373 = vunpack.c.l.b16 %v131
    %v1374 = vunpack.c.h.b16 %v131
    %v1375 = vunpack.c.l.b16 %v132
    %v1376 = vunpack.c.h.b16 %v132
    %v1377 = vunpack.c.l.b16 %v133
    %v1378 = vunpack.c.h.b16 %v133
    %v1379 = vunpack.c.l.b16 %v134
    %v1380 = vunpack.c.h.b16 %v134
    %v1381 = vunpack.c.l.b16 %v135
    %v1382 = vunpack.c.h.b16 %v135
    %v1383 = vunpack.c.l.b16 %v136
    %v1384 = vunpack.c.h.b16 %v136
    %v1385 = vunpack.c.l.b16 %v137
    %v1386 = vunpack.c.h.b16 %v137
    %v1387 = vunpack.c.l.b16 %v138
    %v1388 = vunpack.c.h.b16 %v138
    %v1389 = vunpack.c.l.b16 %v139
    %v1390 = vunpack.c.h.b16 %v139
    %v1391 = vunpack.c.l.b16 %v140
    %v1392 = vunpack.c.h.b16 %v140
    %v1393 = vunpack.c.l.b16 %v141
    %v1394 = vunpack.c.h.b16 %v141
    %v1395 = vunpack.c.l.b16 %v142
    %v1396 = vunpack.c.h.b16 %v142
    %v1397 = vunpack.c.l.b16 %v143
    %v1398 = vunpack.c.h.b16 %v143
    %v1399 = vunpack.c.l.b16 %v144
    %v1400 = vunpack.c.h.b16 %v144
    %v1401 = vunpack.c.l.b16 %v145
    %v1402 = vunpack.c.h.b16 %v145
    %v1403 = vunpack.c.l.b16 %v146
    %v1404 = vunpack.c.h.b16 %v146
    %v1405 = vunpack.c.l.b16 %v147
    %v1406 = vunpack.c.h.b16 %v147
    %v1407 = vunpack.c.l.b16 %v148
    %v1408 = vunpack.c.h.b16 %v148
    %v1409 = vunpack.c.l.b16 %v149
    %v1410 = vunpack.c.h.b16 %v149
    %v1411 = vunpack.c.l.b16 %v150
    %v1412 = vunpack.c.h.b16 %v150
    %v1413 = vunpack.c.l.b16 %v151
    %v1414 = vunpack.c.h.b16 %v151
    %v1415 = vunpack.c.l.b16 %v152
    %v1416 = vunpack.c.h.b16 %v152
    %v1417 = vunpack.c.l.b16 %v153
    %v1418 = vunpack.c.h.b16 %v153
    %v1419 = vunpack.c.l.b16 %v154
    %v1420 = vunpack.c.h.b16 %v154
    %v1421 = vunpack.c.l.b16 %v155
    %v1422 = vunpack.c.h.b16 %v155
    %v1423 = vunpack.c.l.b16 %v156
    %v1424 = vunpack.c.h.b16 %v156
    %v1425 = vunpack.c.l.b16 %v157
    %v1426 = vunpack.c.h.b16 %v157
    %v1427 = vunpack.c.l.b16 %v158
    %v1428 = vunpack.c.h.b16 %v158
    %v1429 = vunpack.c.l.b16 %v159
    %v1430 = vunpack.c.h.b16 %v159
    %v1431 = vunpack.c.l.b16 %v160
    %v1432 = vunpack.c.h.b16 %v160
    %v1433 = vunpack.c.l.b16 %v161
    %v1434 = vunpack.c.h.b16 %v161
    %v1435 = vunpack.c.l.b16 %v162
    %v1436 = vunpack.c.h.b16 %v162
    %v1437 = vunpack.c.l.b16 %v163
    %v1438 = vunpack.c.h.b16 %v163
    %v1439 = vunpack.c.l.b16 %v164
    %v1440 = vunpack.c.h.b16 %v164
    %v1441 = vunpack.c.l.b16 %v165
    %v1442 = vunpack.c.h.b16 %v165
    %v1443 = vunpack.c.l.b16 %v166
    %v1444 = vunpack.c.h.b16 %v166
    %v1445 = vunpack.c.l.b16 %v167
    %v1446 = vunpack.c.h.b16 %v167
    %v1447 = vunpack.c.l.b16 %v168
    %v1448 = vunpack.c.h.b16 %v168
    %v1449 = vunpack.c.l.b16 %v169
    %v1450 = vunpack.c.h.b16 %v169
    %v1451 = vunpack.c.l.b16 %v170
    %v1452 = vunpack.c.h.b16 %v170
    %v1453 = vunpack.c.l.b16 %v171
    %v1454 = vunpack.c.h.b16 %v171
    %v1455 = vunpack.c.l.b16 %v172
    %v1456 = vunpack.c.h.b16 %v172
    %v1457 = vunpack.c.l.b16 %v173
    %v1458 = vunpack.c.h.b16 %v173
    %v1459 = vunpack.c.l.b16 %v174
    %v1460 = vunpack.c.h.b16 %v174
    %v1461 = vunpack.c.l.b16 %v175
    %v1462 = vunpack.c.h.b16 %v175
    %v1463 = vunpack.c.l.b16 %v176
    %v1464 = vunpack.c.h.b16 %v176
    %v1465 = vunpack.c.l.b16 %v177
    %v1466 = vunpack.c.h.b16 %v177
    %v1467 = vunpack.c.l.b16 %v178
    %v1468 = vunpack.c.h.b16 %v178
    %v1469 = vunpack.c.l.b16 %v179
    %v1470 = vunpack.c.h.b16 %v179
    %v1471 = vunpack.c.l.b16 %v180
    %v1472 = vunpack.c.h.b16 %v180
    %v1473 = vunpack.c.l.b16 %v181
    %v1474 = vunpack.c.h.b16 %v181
    %v1475 = vunpack.c.l.b16 %v182
    %v1476 = vunpack.c.h.b16 %v182
    %v1477 = vunpack.c.l.b16 %v183
    %v1478 = vunpack.c.h.b16 %v183
    %v1479 = vunpack.c.l.b16 %v184
    %v1480 = vunpack.c.h.b16 %v184
    %v1481 = vunpack.c.l.b16 %v185
    %v1482 = vunpack.c.h.b16 %v185
    %v1483 = vunpack.c.l.b16 %v186
    %v1484 = vunpack.c.h.b16 %v186
    %v1485 = vunpack.c.l.b16 %v187
    %v1486 = vunpack.c.h.b16 %v187
    %v1487 = vunpack.c.l.b16 %v188
    %v1488 = vunpack.c.h.b16 %v188
    %v1489 = vunpack.c.l.b16 %v189
    %v1490 = vunpack.c.h.b16 %v189
    %v1491 = vunpack.c.l.b16 %v190
    %v1492 = vunpack.c.h.b16 %v190
    %v1493 = vunpack.c.l.b16 %v191
    %v1494 = vunpack.c.h.b16 %v191
    %v1495 = vunpack.c.l.b16 %v192
    %v1496 = vunpack.c.h.b16 %v192
    %v1497 = vunpack.c.l.b16 %v193
    %v1498 = vunpack.c.h.b16 %v193
    %v1499 = vunpack.c.l.b16 %v194
    %v1500 = vunpack.c.h.b16 %v194
    %v1501 = vunpack.c.l.b16 %v195
    %v1502 = vunpack.c.h.b16 %v195
    %v1503 = vunpack.c.l.b16 %v196
    %v1504 = vunpack.c.h.b16 %v196
    %v1505 = vunpack.c.l.b16 %v197
    %v1506 = vunpack.c.h.b16 %v197
    %v1507 = vunpack.c.l.b16 %v198
    %v1508 = vunpack.c.h.b16 %v198
    %v1509 = vunpack.c.l.b16 %v199
    %v1510 = vunpack.c.h.b16 %v199
    %v1511 = vunpack.c.l.b16 %v200
    %v1512 = vunpack.c.h.b16 %v200
    %v1513 = vunpack.c.l.b16 %v201
    %v1514 = vunpack.c.h.b16 %v201
    %v1515 = vunpack.c.l.b16 %v202
    %v1516 = vunpack.c.h.b16 %v202
    %v1517 = vunpack.c.l.b16 %v203
    %v1518 = vunpack.c.h.b16 %v203
    %v1519 = vunpack.c.l.b16 %v204
    %v1520 = vunpack.c.h.b16 %v204
    %v1521 = vunpack.c.l.b16 %v205
    %v1522 = vunpack.c.h.b16 %v205
    %v1523 = vunpack.c.l.b16 %v206
    %v1524 = vunpack.c.h.b16 %v206
    %v1525 = vunpack.c.l.b16 %v207
    %v1526 = vunpack.c.h.b16 %v207
    %v1527 = vunpack.c.l.b16 %v208
    %v1528 = vunpack.c.h.b16 %v208
    %v1529 = vunpack.c.l.b16 %v209
    %v1530 = vunpack.c.h.b16 %v209
    %v1531 = vunpack.c.l.b16 %v210
    %v1532 = vunpack.c.h.b16 %v210
    %v1533 = vunpack.c.l.b16 %v211
    %v1534 = vunpack.c.h.b16 %v211
    %v1535 = vunpack.c.l.b16 %v212
    %v1536 = vunpack.c.h.b16 %v212
    %v1537 = vunpack.c.l.b16 %v213
    %v1538 = vunpack.c.h.b16 %v213
    %v1539 = vunpack.c.l.b16 %v214
    %v1540 = vunpack.c.h.b16 %v214
    %v1541 = vunpack.c.l.b16 %v215
    %v1542 = vunpack.c.h.b16 %v215
    %v1543 = vunpack.c.l.b16 %v216
    %v1544 = vunpack.c.h.b16 %v216
    %v1545 = vunpack.c.l.b16 %v217
    %v1546 = vunpack.c.h.b16 %v217
    %v1547 = vunpack.c.l.b16 %v218
    %v1548 = vunpack.c.h.b16 %v218
    %v1549 = vunpack.c.l.b16 %v219
    %v1550 = vunpack.c.h.b16 %v219
    %v1551 = vunpack.c.l.b16 %v220
    %v1552 = vunpack.c.h.b16 %v220
    %v1553 = vunpack.c.l.b16 %v221
    %v1554 = vunpack.c.h.b16 %v221
    %v1555 = vunpack.c.l.b16 %v222
    %v1556 = vunpack.c.h.b16 %v222
    %v1557 = vunpack.c.l.b16 %v223
    %v1558 = vunpack.c.h.b16 %v223
    %v1559 = vunpack.c.l.b16 %v224
    %v1560 = vunpack.c.h.b16 %v224
    %v1561 = vunpack.c.l.b16 %v225
    %v1562 = vunpack.c.h.b16 %v225
    %v1563 = vunpack.c.l.b16 %v226
    %v1564 = vunpack.c.h.b16 %v226
    %v1565 = vunpack.c.l.b16 %v227
    %v1566 = vunpack.c.h.b16 %v227
    %v1567 = vunpack.c.l.b16 %v228
    %v1568 = vunpack.c.h.b16 %v228
    %v1569 = vunpack.c.l.b16 %v229
    %v1570 = vunpack.c.h.b16 %v229
    %v1571 = vunpack.c.l.b16 %v230
    %v1572 = vunpack.c.h.b16 %v230
    %v1573 = vunpack.c.l.b16 %v231
    %v1574 = vunpack.c.h.b16 %v231
    %v1575 = vunpack.c.l.b16 %v232
    %v1576 = vunpack.c.h.b16 %v232
    %v1577 = vunpack.c.l.b16 %v233
    %v1578 = vunpack.c.h.b16 %v233
    %v1579 = vunpack.c.l.b16 %v234
    %v1580 = vunpack.c.h.b16 %v234
    %v1581 = vunpack.c.l.b16 %v235
    %v1582 = vunpack.c.h.b16 %v235
    %v1583 = vunpack.c.l.b16 %v236
    %v1584 = vunpack.c.h.b16 %v236
    %v1585 = vunpack.c.l.b16 %v237
    %v1586 = vunpack.c.h.b16 %v237
    %v1587 = vunpack.c.l.b16 %v238
    %v1588 = vunpack.c.h.b16 %v238
    %v1589 = vunpack.c.l.b16 %v239
    %v1590 = vunpack.c.h.b16 %v239
    %v1591 = vunpack.c.l.b16 %v240
    %v1592 = vunpack.c.h.b16 %v240
    %v1593 = vunpack.c.l.b16 %v241
    %v1594 = vunpack.c.h.b16 %v241
    %v1595 = vunpack.c.l.b16 %v242
    %v1596 = vunpack.c.h.b16 %v242
    %v1597 = vunpack.c.l.b16 %v243
    %v1598 = vunpack.c.h.b16 %v243
    %v1599 = vunpack.c.l.b16 %v244
    %v1600 = vunpack.c.h.b16 %v244
    %v1601 = vunpack.c.l.b16 %v245
    %v1602 = vunpack.c.h.b16 %v245
    %v1603 = vunpack.c.l.b16 %v246
    %v1604 = vunpack.c.h.b16 %v246
    %v1605 = vunpack.c.l.b16 %v247
    %v1606 = vunpack.c.h.b16 %v247
    %v1607 = vunpack.c.l.b16 %v248
    %v1608 = vunpack.c.h.b16 %v248
    %v1609 = vunpack.c.l.b16 %v249
    %v1610 = vunpack.c.h.b16 %v249
    %v1611 = vunpack.c.l.b16 %v250
    %v1612 = vunpack.c.h.b16 %v250
    %v1613 = vunpack.c.l.b16 %v251
    %v1614 = vunpack.c.h.b16 %v251
    %v1615 = vunpack.c.l.b16 %v252
    %v1616 = vunpack.c.h.b16 %v252
    %v1617 = vunpack.c.l.b16 %v253
    %v1618 = vunpack.c.h.b16 %v253
    %v1619 = vunpack.c.l.b16 %v254
    %v1620 = vunpack.c.h.b16 %v254
    %v1621 = vunpack.c.l.b16 %v255
    %v1622 = vunpack.c.h.b16 %v255
    %v1623 = vunpack.c.l.b16 %v256
    %v1624 = vunpack.c.h.b16 %v256
    %v1625 = vunpack.c.l.b16 %v257
    %v1626 = vunpack.c.h.b16 %v257
    %v1627 = vunpack.c.l.b16 %v258
    %v1628 = vunpack.c.h.b16 %v258
    %v1629 = vunpack.c.l.b16 %v259
    %v1630 = vunpack.c.h.b16 %v259
    %v1631 = vunpack.c.l.b16 %v260
    %v1632 = vunpack.c.h.b16 %v260
    %v1633 = vunpack.c.l.b16 %v261
    %v1634 = vunpack.c.h.b16 %v261
    %v1635 = vunpack.c.l.b16 %v262
    %v1636 = vunpack.c.h.b16 %v262
    %v1637 = vunpack.c.l.b16 %v263
    %v1638 = vunpack.c.h.b16 %v263
    %v1639 = vunpack.c.l.b16 %v264
    %v1640 = vunpack.c.h.b16 %v264
    %v1641 = vunpack.c.l.b16 %v265
    %v1642 = vunpack.c.h.b16 %v265
    %v1643 = vunpack.c.l.b16 %v266
    %v1644 = vunpack.c.h.b16 %v266
    %v1645 = vunpack.c.l.b16 %v267
    %v1646 = vunpack.c.h.b16 %v267
    %v1647 = vunpack.c.l.b16 %v268
    %v1648 = vunpack.c.h.b16 %v268
    %v1649 = vunpack.c.l.b16 %v269
    %v1650 = vunpack.c.h.b16 %v269
    %v1651 = vunpack.c.l.b16 %v270
    %v1652 = vunpack.c.h.b16 %v270
    %v1653 = vunpack.c.l.b16 %v271
    %v1654 = vunpack.c.h.b16 %v271
    %v1655 = vunpack.c.l.b16 %v272
    %v1656 = vunpack.c.h.b16 %v272
    %v1657 = vunpack.c.l.b16 %v273
    %v1658 = vunpack.c.h.b16 %v273
    %v1659 = vunpack.c.l.b16 %v274
    %v1660 = vunpack.c.h.b16 %v274
    %v1661 = vunpack.c.l.b16 %v275
    %v1662 = vunpack.c.h.b16 %v275
    %v1663 = vunpack.c.l.b16 %v276
    %v1664 = vunpack.c.h.b16 %v276
    %v1665 = vunpack.c.l.b16 %v277
    %v1666 = vunpack.c.h.b16 %v277
    %v1667 = vunpack.c.l.b16 %v278
    %v1668 = vunpack.c.h.b16 %v278
    %v1669 = vunpack.c.l.b16 %v279
    %v1670 = vunpack.c.h.b16 %v279
    %v1671 = vunpack.c.l.b16 %v280
    %v1672 = vunpack.c.h.b16 %v280
    %v1673 = vunpack.c.l.b16 %v281
    %v1674 = vunpack.c.h.b16 %v281
    %v1675 = vunpack.c.l.b16 %v282
    %v1676 = vunpack.c.h.b16 %v282
    %v1677 = vunpack.c.l.b16 %v283
    %v1678 = vunpack.c.h.b16 %v283
    %v1679 = vunpack.c.l.b16 %v284
    %v1680 = vunpack.c.h.b16 %v284
    %v1681 = vunpack.c.l.b16 %v285
    %v1682 = vunpack.c.h.b16 %v285
    %v1683 = vunpack.c.l.b16 %v286
    %v1684 = vunpack.c.h.b16 %v286
    %v1685 = vunpack.c.l.b16 %v287
    %v1686 = vunpack.c.h.b16 %v287
    %v1687 = vunpack.c.l.b16 %v288
    %v1688 = vunpack.c.h.b16 %v288
    %v1689 = vunpack.c.l.b16 %v289
    %v1690 = vunpack.c.h.b16 %v289
    %v1691 = vunpack.c.l.b16 %v290
    %v1692 = vunpack.c.h.b16 %v290
    %v1693 = vunpack.c.l.b16 %v291
    %v1694 = vunpack.c.h.b16 %v291
    %v1695 = vunpack.c.l.b16 %v292
    %v1696 = vunpack.c.h.b16 %v292
    %v1697 = vunpack.c.l.b16 %v293
    %v1698 = vunpack.c.h.b16 %v293
    %v1699 = vunpack.c.l.b16 %v294
    %v1700 = vunpack.c.h.b16 %v294
    %v1701 = vunpack.c.l.b16 %v295
    %v1702 = vunpack.c.h.b16 %v295
    %v1703 = vunpack.c.l.b16 %v296
    %v1704 = vunpack.c.h.b16 %v296
    %v1705 = vunpack.c.l.b16 %v297
    %v1706 = vunpack.c.h.b16 %v297
    %v1707 = vunpack.c.l.b16 %v298
    %v1708 = vunpack.c.h.b16 %v298
    %v1709 = vunpack.c.l.b16 %v299
    %v1710 = vunpack.c.h.b16 %v299
    %v1711 = vunpack.c.l.b16 %v300
    %v1712 = vunpack.c.h.b16 %v300
    %v1713 = vunpack.c.l.b16 %v301
    %v1714 = vunpack.c.h.b16 %v301
    %v1715 = vunpack.c.l.b16 %v302
    %v1716 = vunpack.c.h.b16 %v302
    %v1717 = vunpack.c.l.b16 %v303
    %v1718 = vunpack.c.h.b16 %v303
    %v1719 = vunpack.c.l.b16 %v304
    %v1720 = vunpack.c.h.b16 %v304
    %v1721 = vunpack.c.l.b16 %v305
    %v1722 = vunpack.c.h.b16 %v305
    %v1723 = vunpack.c.l.b16 %v306
    %v1724 = vunpack.c.h.b16 %v306
    %v1725 = vunpack.c.l.b16 %v307
    %v1726 = vunpack.c.h.b16 %v307
    %v1727 = vunpack.c.l.b16 %v308
    %v1728 = vunpack.c.h.b16 %v308
    %v1729 = vunpack.c.l.b16 %v309
    %v1730 = vunpack.c.h.b16 %v309
    %v1731 = vunpack.c.l.b16 %v310
    %v1732 = vunpack.c.h.b16 %v310
    %v1733 = vunpack.c.l.b16 %v311
    %v1734 = vunpack.c.h.b16 %v311
    %v1735 = vunpack.c.l.b16 %v312
    %v1736 = vunpack.c.h.b16 %v312
    %v1737 = vunpack.c.l.b16 %v313
    %v1738 = vunpack.c.h.b16 %v313
    %v1739 = vunpack.c.l.b16 %v314
    %v1740 = vunpack.c.h.b16 %v314
    %v1741 = vunpack.c.l.b16 %v315
    %v1742 = vunpack.c.h.b16 %v315
    %v1743 = vunpack.c.l.b16 %v316
    %v1744 = vunpack.c.h.b16 %v316
    %v1745 = vunpack.c.l.b16 %v317
    %v1746 = vunpack.c.h.b16 %v317
    %v1747 = vunpack.c.l.b16 %v318
    %v1748 = vunpack.c.h.b16 %v318
    %v1749 = vunpack.c.l.b16 %v319
    %v1750 = vunpack.c.h.b16 %v319
    %v1751 = vunpack.c.l.b16 %v320
    %v1752 = vunpack.c.h.b16 %v320
    %v1753 = vunpack.c.l.b16 %v321
    %v1754 = vunpack.c.h.b16 %v321
    %v1755 = vunpack.c.l.b16 %v322
    %v1756 = vunpack.c.h.b16 %v322
    %v1757 = vunpack.c.l.b16 %v323
    %v1758 = vunpack.c.h.b16 %v323
    %v1759 = vunpack.c.l.b16 %v324
    %v1760 = vunpack.c.h.b16 %v324
    %v1761 = vunpack.c.l.b16 %v325
    %v1762 = vunpack.c.h.b16 %v325
    %v1763 = vunpack.c.l.b16 %v326
    %v1764 = vunpack.c.h.b16 %v326
    %v1765 = vunpack.c.l.b16 %v327
    %v1766 = vunpack.c.h.b16 %v327
    %v1767 = vunpack.c.l.b16 %v328
    %v1768 = vunpack.c.h.b16 %v328
    %v1769 = vunpack.c.l.b16 %v329
    %v1770 = vunpack.c.h.b16 %v329
    %v1771 = vunpack.c.l.b16 %v330
    %v1772 = vunpack.c.h.b16 %v330
    %v1773 = vunpack.c.l.b16 %v331
    %v1774 = vunpack.c.h.b16 %v331
    %v1775 = vunpack.c.l.b16 %v332
    %v1776 = vunpack.c.h.b16 %v332
    %v1777 = vunpack.c.l.b16 %v333
    %v1778 = vunpack.c.h.b16 %v333
    %v1779 = vunpack.c.l.b16 %v334
    %v1780 = vunpack.c.h.b16 %v334
    %v1781 = vunpack.c.l.b16 %v335
    %v1782 = vunpack.c.h.b16 %v335
    %v1783 = vunpack.c.l.b16 %v336
    %v1784 = vunpack.c.h.b16 %v336
    %v1785 = vunpack.c.l.b16 %v337
    %v1786 = vunpack.c.h.b16 %v337
    %v1787 = vunpack.c.l.b16 %v338
    %v1788 = vunpack.c.h.b16 %v338
    %v1789 = vunpack.c.l.b16 %v339
    %v1790 = vunpack.c.h.b16 %v339
    %v1791 = vunpack.c.l.b16 %v340
    %v1792 = vunpack.c.h.b16 %v340
    %v1793 = vunpack.c.l.b16 %v341
    %v1794 = vunpack.c.h.b16 %v341
    %v1795 = vunpack.c.l.b16 %v342
    %v1796 = vunpack.c.h.b16 %v342
    %v1797 = vunpack.c.l.b16 %v343
    %v1798 = vunpack.c.h.b16 %v343
    %v1799 = vunpack.c.l.b16 %v344
    %v1800 = vunpack.c.h.b16 %v344
    %v1801 = vunpack.c.l.b16 %v345
    %v1802 = vunpack.c.h.b16 %v345
    %v1803 = vunpack.c.l.b16 %v346
    %v1804 = vunpack.c.h.b16 %v346
    %v1805 = vunpack.c.l.b16 %v347
    %v1806 = vunpack.c.h.b16 %v347
    %v1807 = vunpack.c.l.b16 %v348
    %v1808 = vunpack.c.h.b16 %v348
    %v1809 = vunpack.c.l.b16 %v349
    %v1810 = vunpack.c.h.b16 %v349
    %v1811 = vunpack.c.l.b16 %v350
    %v1812 = vunpack.c.h.b16 %v350
    %v1813 = vunpack.c.l.b16 %v351
    %v1814 = vunpack.c.h.b16 %v351
    %v1815 = vunpack.c.l.b16 %v352
    %v1816 = vunpack.c.h.b16 %v352
    %v1817 = vunpack.c.l.b16 %v353
    %v1818 = vunpack.c.h.b16 %v353
    %v1819 = vunpack.c.l.b16 %v354
    %v1820 = vunpack.c.h.b16 %v354
    %v1821 = vunpack.c.l.b16 %v355
    %v1822 = vunpack.c.h.b16 %v355
    %v1823 = vunpack.c.l.b16 %v356
    %v1824 = vunpack.c.h.b16 %v356
    %v1825 = vunpack.c.l.b16 %v357
    %v1826 = vunpack.c.h.b16 %v357
    %v1827 = vunpack.c.l.b16 %v358
    %v1828 = vunpack.c.h.b16 %v358
    %v1829 = vunpack.c.l.b16 %v359
    %v1830 = vunpack.c.h.b16 %v359
    %v1831 = vunpack.c.l.b16 %v360
    %v1832 = vunpack.c.h.b16 %v360
    %v1833 = vunpack.c.l.b16 %v361
    %v1834 = vunpack.c.h.b16 %v361
    %v1835 = vunpack.c.l.b16 %v362
    %v1836 = vunpack.c.h.b16 %v362
    %v1837 = vunpack.c.l.b16 %v363
    %v1838 = vunpack.c.h.b16 %v363
    %v1839 = vunpack.c.l.b16 %v364
    %v1840 = vunpack.c.h.b16 %v364
    %v1841 = vunpack.c.l.b16 %v365
    %v1842 = vunpack.c.h.b16 %v365
    %v1843 = vunpack.c.l.b16 %v366
    %v1844 = vunpack.c.h.b16 %v366
    %v1845 = vunpack.c.l.b16 %v367
    %v1846 = vunpack.c.h.b16 %v367
    %v1847 = vunpack.c.l.b16 %v368
    %v1848 = vunpack.c.h.b16 %v368
    %v1849 = vunpack.c.l.b16 %v369
    %v1850 = vunpack.c.h.b16 %v369
    %v1851 = vunpack.c.l.b16 %v370
    %v1852 = vunpack.c.h.b16 %v370
    %v1853 = vunpack.c.l.b16 %v371
    %v1854 = vunpack.c.h.b16 %v371
    %v1855 = vunpack.c.l.b16 %v372
    %v1856 = vunpack.c.h.b16 %v372
    %v1857 = vunpack.c.l.b16 %v373
    %v1858 = vunpack.c.h.b16 %v373
    %v1859 = vunpack.c.l.b16 %v374
    %v1860 = vunpack.c.h.b16 %v374
    %v1861 = vunpack.c.l.b16 %v375
    %v1862 = vunpack.c.h.b16 %v375
    %v1863 = vunpack.c.l.b16 %v376
    %v1864 = vunpack.c.h.b16 %v376
    %v1865 = vunpack.c.l.b16 %v377
    %v1866 = vunpack.c.h.b16 %v377
    %v1867 = vunpack.c.l.b16 %v378
    %v1868 = vunpack.c.h.b16 %v378
    %v1869 = vunpack.c.l.b16 %v379
    %v1870 = vunpack.c.h.b16 %v379
    %v1871 = vunpack.c.l.b16 %v380
    %v1872 = vunpack.c.h.b16 %v380
    %v1873 = vunpack.c.l.b16 %v381
    %v1874 = vunpack.c.h.b16 %v381
    %v1875 = vunpack.c.l.b16 %v382
    %v1876 = vunpack.c.h.b16 %v382
    %v1877 = vunpack.c.l.b16 %v383
    %v1878 = vunpack.c.h.b16 %v383
    %v1879 = vunpack.c.l.b16 %v384
    %v1880 = vunpack.c.h.b16 %v384
    %v1881 = vunpack.c.l.b16 %v385
    %v1882 = vunpack.c.h.b16 %v385
    %v1883 = vunpack.c.l.b16 %v386
    %v1884 = vunpack.c.h.b16 %v386
    %v1885 = vunpack.c.l.b16 %v387
    %v1886 = vunpack.c.h.b16 %v387
    %v1887 = vunpack.c.l.b16 %v388
    %v1888 = vunpack.c.h.b16 %v388
    %v1889 = vunpack.c.l.b16 %v389
    %v1890 = vunpack.c.h.b16 %v389
    %v1891 = vunpack.c.l.b16 %v390
    %v1892 = vunpack.c.h.b16 %v390
    %v1893 = vunpack.c.l.b16 %v391
    %v1894 = vunpack.c.h.b16 %v391
    %v1895 = vunpack.c.l.b16 %v392
    %v1896 = vunpack.c.h.b16 %v392
    %v1897 = vunpack.c.l.b16 %v393
    %v1898 = vunpack.c.h.b16 %v393
    %v1899 = vunpack.c.l.b16 %v394
    %v1900 = vunpack.c.h.b16 %v394
    %v1901 = vunpack.c.l.b16 %v395
    %v1902 = vunpack.c.h.b16 %v395
    %v1903 = vunpack.c.l.b16 %v396
    %v1904 = vunpack.c.h.b16 %v396
    %v1905 = vunpack.c.l.b16 %v397
    %v1906 = vunpack.c.h.b16 %v397
    %v1907 = vunpack.c.l.b16 %v398
    %v1908 = vunpack.c.h.b16 %v398
    %v1909 = vunpack.c.l.b16 %v399
    %v1910 = vunpack.c.h.b16 %v399
    %v1911 = vunpack.c.l.b16 %v400
    %v1912 = vunpack.c.h.b16 %v400
    %v1913 = vunpack.c.l.b16 %v401
    %v1914 = vunpack.c.h.b16 %v401
    %v1915 = vunpack.c.l.b16 %v402
    %v1916 = vunpack.c.h.b16 %v402
    %v1917 = vunpack.c.l.b16 %v403
    %v1918 = vunpack.c.h.b16 %v403
    %v1919 = vunpack.c.l.b16 %v404
    %v1920 = vunpack.c.h.b16 %v404
    %v1921 = vunpack.c.l.b16 %v405
    %v1922 = vunpack.c.h.b16 %v405
    %v1923 = vunpack.c.l.b16 %v406
    %v1924 = vunpack.c.h.b16 %v406
    %v1925 = vunpack.c.l.b16 %v407
    %v1926 = vunpack.c.h.b16 %v407
    %v1927 = vunpack.c.l.b16 %v408
    %v1928 = vunpack.c.h.b16 %v408
    %v1929 = vunpack.c.l.b16 %v409
    %v1930 = vunpack.c.h.b16 %v409
    %v1931 = vunpack.c.l.b16 %v410
    %v1932 = vunpack.c.h.b16 %v410
    %v1933 = vunpack.c.l.b16 %v411
    %v1934 = vunpack.c.h.b16 %v411
    %v1935 = vunpack.c.l.b16 %v412
    %v1936 = vunpack.c.h.b16 %v412
    %v1937 = vunpack.c.l.b16 %v413
    %v1938 = vunpack.c.h.b16 %v413
    %v1939 = vunpack.c.l.b16 %v414
    %v1940 = vunpack.c.h.b16 %v414
    %v1941 = vunpack.c.l.b16 %v415
    %v1942 = vunpack.c.h.b16 %v415
    %v1943 = vunpack.c.l.b16 %v416
    %v1944 = vunpack.c.h.b16 %v416
    %v1945 = vunpack.c.l.b16 %v417
    %v1946 = vunpack.c.h.b16 %v417
    %v1947 = vunpack.c.l.b16 %v418
    %v1948 = vunpack.c.h.b16 %v418
    %v1949 = vunpack.c.l.b16 %v419
    %v1950 = vunpack.c.h.b16 %v419
    %v1951 = vunpack.c.l.b16 %v420
    %v1952 = vunpack.c.h.b16 %v420
    %v1953 = vunpack.c.l.b16 %v421
    %v1954 = vunpack.c.h.b16 %v421
    %v1955 = vunpack.c.l.b16 %v422
    %v1956 = vunpack.c.h.b16 %v422
    %v1957 = vunpack.c.l.b16 %v423
    %v1958 = vunpack.c.h.b16 %v423
    %v1959 = vunpack.c.l.b16 %v424
    %v1960 = vunpack.c.h.b16 %v424
    %v1961 = vunpack.c.l.b16 %v425
    %v1962 = vunpack.c.h.b16 %v425
    %v1963 = vunpack.c.l.b16 %v426
    %v1964 = vunpack.c.h.b16 %v426
    %v1965 = vunpack.c.l.b16 %v427
    %v1966 = vunpack.c.h.b16 %v427
    %v1967 = vunpack.c.l.b16 %v428
    %v1968 = vunpack.c.h.b16 %v428
    %v1969 = vunpack.c.l.b16 %v429
    %v1970 = vunpack.c.h.b16 %v429
    %v1971 = vunpack.c.l.b16 %v430
    %v1972 = vunpack.c.h.b16 %v430
    %v1973 = vunpack.c.l.b16 %v431
    %v1974 = vunpack.c.h.b16 %v431
    %v1975 = vunpack.c.l.b16 %v432
    %v1976 = vunpack.c.h.b16 %v432
    %v1977 = vunpack.c.l.b16 %v433
    %v1978 = vunpack.c.h.b16 %v433
    %v1979 = vunpack.c.l.b16 %v434
    %v1980 = vunpack.c.h.b16 %v434
    %v1981 = vunpack.c.l.b16 %v435
    %v1982 = vunpack.c.h.b16 %v435
    %v1983 = vunpack.c.l.b16 %v436
    %v1984 = vunpack.c.h.b16 %v436
    %v1985 = vunpack.c.l.b16 %v437
    %v1986 = vunpack.c.h.b16 %v437
    %v1987 = vunpack.c.l.b16 %v438
    %v1988 = vunpack.c.h.b16 %v438
    %v1989 = vunpack.c.l.b16 %v439
    %v1990 = vunpack.c.h.b16 %v439
    %v1991 = vunpack.c.l.b16 %v440
    %v1992 = vunpack.c.h.b16 %v440
    %v1993 = vunpack.c.l.b16 %v441
    %v1994 = vunpack.c.h.b16 %v441
    %v1995 = vunpack.c.l.b16 %v442
    %v1996 = vunpack.c.h.b16 %v442
    %v1997 = vunpack.c.l.b16 %v443
    %v1998 = vunpack.c.h.b16 %v443
    %v1999 = vunpack.c.l.b16 %v444
    %v2000 = vunpack.c.h.b16 %v444
    %v2001 = vunpack.c.l.b16 %v445
    %v2002 = vunpack.c.h.b16 %v445
    %v2003 = vunpack.c.l.b16 %v446
    %v2004 = vunpack.c.h.b16 %v446
    %v2005 = vunpack.c.l.b16 %v447
    %v2006 = vunpack.c.h.b16 %v447
    %v2007 = vunpack.c.l.b16 %v448
    %v2008 = vunpack.c.h.b16 %v448
    %v2009 = vunpack.c.l.b16 %v449
    %v2010 = vunpack.c.h.b16 %v449
    %v2011 = vunpack.c.l.b16 %v450
    %v2012 = vunpack.c.h.b16 %v450
    %v2013 = vunpack.c.l.b16 %v451
    %v2014 = vunpack.c.h.b16 %v451
    %v2015 = vunpack.c.l.b16 %v452
    %v2016 = vunpack.c.h.b16 %v452
    %v2017 = vunpack.c.l.b16 %v453
    %v2018 = vunpack.c.h.b16 %v453
    %v2019 = vunpack.c.l.b16 %v454
    %v2020 = vunpack.c.h.b16 %v454
    %v2021 = vunpack.c.l.b16 %v455
    %v2022 = vunpack.c.h.b16 %v455
    %v2023 = vunpack.c.l.b16 %v456
    %v2024 = vunpack.c.h.b16 %v456
    %v2025 = vunpack.c.l.b16 %v457
    %v2026 = vunpack.c.h.b16 %v457
    %v2027 = vunpack.c.l.b16 %v458
    %v2028 = vunpack.c.h.b16 %v458
    %v2029 = vunpack.c.l.b16 %v459
    %v2030 = vunpack.c.h.b16 %v459
    %v2031 = vunpack.c.l.b16 %v460
    %v2032 = vunpack.c.h.b16 %v460
    %v2033 = vunpack.c.l.b16 %v461
    %v2034 = vunpack.c.h.b16 %v461
    %v2035 = vunpack.c.l.b16 %v462
    %v2036 = vunpack.c.h.b16 %v462
    %v2037 = vunpack.c.l.b16 %v463
    %v2038 = vunpack.c.h.b16 %v463
    %v2039 = vunpack.c.l.b16 %v464
    %v2040 = vunpack.c.h.b16 %v464
    %v2041 = vunpack.c.l.b16 %v465
    %v2042 = vunpack.c.h.b16 %v465
    %v2043 = vunpack.c.l.b16 %v466
    %v2044 = vunpack.c.h.b16 %v466
    %v2045 = vunpack.c.l.b16 %v467
    %v2046 = vunpack.c.h.b16 %v467
    %v2047 = vunpack.c.l.b16 %v468
    %v2048 = vunpack.c.h.b16 %v468
    %v2049 = vunpack.c.l.b16 %v469
    %v2050 = vunpack.c.h.b16 %v469
    %v2051 = vunpack.c.l.b16 %v470
    %v2052 = vunpack.c.h.b16 %v470
    %v2053 = vunpack.c.l.b16 %v471
    %v2054 = vunpack.c.h.b16 %v471
    %v2055 = vunpack.c.l.b16 %v472
    %v2056 = vunpack.c.h.b16 %v472
    %v2057 = vunpack.c.l.b16 %v473
    %v2058 = vunpack.c.h.b16 %v473
    %v2059 = vunpack.c.l.b16 %v474
    %v2060 = vunpack.c.h.b16 %v474
    %v2061 = vunpack.c.l.b16 %v475
    %v2062 = vunpack.c.h.b16 %v475
    %v2063 = vunpack.c.l.b16 %v476
    %v2064 = vunpack.c.h.b16 %v476
    %v2065 = vunpack.c.l.b16 %v477
    %v2066 = vunpack.c.h.b16 %v477
    %v2067 = vunpack.c.l.b16 %v478
    %v2068 = vunpack.c.h.b16 %v478
    %v2069 = vunpack.c.l.b16 %v479
    %v2070 = vunpack.c.h.b16 %v479
    %v2071 = vunpack.c.l.b16 %v480
    %v2072 = vunpack.c.h.b16 %v480
    %v2073 = vunpack.c.l.b16 %v481
    %v2074 = vunpack.c.h.b16 %v481
    %v2075 = vunpack.c.l.b16 %v482
    %v2076 = vunpack.c.h.b16 %v482
    %v2077 = vunpack.c.l.b16 %v483
    %v2078 = vunpack.c.h.b16 %v483
    %v2079 = vunpack.c.l.b16 %v484
    %v2080 = vunpack.c.h.b16 %v484
    %v2081 = vunpack.c.l.b16 %v485
    %v2082 = vunpack.c.h.b16 %v485
    %v2083 = vunpack.c.l.b16 %v486
    %v2084 = vunpack.c.h.b16 %v486
    %v2085 = vunpack.c.l.b16 %v487
    %v2086 = vunpack.c.h.b16 %v487
    %v2087 = vunpack.c.l.b16 %v488
    %v2088 = vunpack.c.h.b16 %v488
    %v2089 = vunpack.c.l.b16 %v489
    %v2090 = vunpack.c.h.b16 %v489
    %v2091 = vunpack.c.l.b16 %v490
    %v2092 = vunpack.c.h.b16 %v490
    %v2093 = vunpack.c.l.b16 %v491
    %v2094 = vunpack.c.h.b16 %v491
    %v2095 = vunpack.c.l.b16 %v492
    %v2096 = vunpack.c.h.b16 %v492
    %v2097 = vunpack.c.l.b16 %v493
    %v2098 = vunpack.c.h.b16 %v493
    %v2099 = vunpack.c.l.b16 %v494
    %v2100 = vunpack.c.h.b16 %v494
    %v2101 = vunpack.c.l.b16 %v495
    %v2102 = vunpack.c.h.b16 %v495
    %v2103 = vunpack.c.l.b16 %v496
    %v2104 = vunpack.c.h.b16 %v496
    %v2105 = vunpack.c.l.b16 %v497
    %v2106 = vunpack.c.h.b16 %v497
    %v2107 = vunpack.c.l.b16 %v498
    %v2108 = vunpack.c.h.b16 %v498
    %v2109 = vunpack.c.l.b16 %v499
    %v2110 = vunpack.c.h.b16 %v499
    %v2111 = vunpack.c.l.b16 %v500
    %v2112 = vunpack.c.h.b16 %v500
    %v2113 = vunpack.c.l.b16 %v501
    %v2114 = vunpack.c.h.b16 %v501
    %v2115 = vunpack.c.l.b16 %v502
    %v2116 = vunpack.c.h.b16 %v502
    %v2117 = vunpack.c.l.b16 %v503
    %v2118 = vunpack.c.h.b16 %v503
    %v2119 = vunpack.c.l.b16 %v504
    %v2120 = vunpack.c.h.b16 %v504
    %v2121 = vunpack.c.l.b16 %v505
    %v2122 = vunpack.c.h.b16 %v505
    %v2123 = vunpack.c.l.b16 %v506
    %v2124 = vunpack.c.h.b16 %v506
    %v2125 = vunpack.c.l.b16 %v507
    %v2126 = vunpack.c.h.b16 %v507
    %v2127 = vunpack.c.l.b16 %v508
    %v2128 = vunpack.c.h.b16 %v508
    %v2129 = vunpack.c.l.b16 %v509
    %v2130 = vunpack.c.h.b16 %v509
    %v2131 = vunpack.c.l.b16 %v510
    %v2132 = vunpack.c.h.b16 %v510
    %v2133 = vunpack.c.l.b16 %v511
    %v2134 = vunpack.c.h.b16 %v511
    %v2135 = vunpack.c.l.b16 %v512
    %v2136 = vunpack.c.h.b16 %v512
    %v2137 = vunpack.c.l.b16 %v513
    %v2138 = vunpack.c.h.b16 %v513
    %v2139 = vunpack.c.l.b16 %v514
    %v2140 = vunpack.c.h.b16 %v514
    %v2141 = vunpack.c.l.b16 %v515
    %v2142 = vunpack.c.h.b16 %v515
    %v2143 = vunpack.c.l.b16 %v516
    %v2144 = vunpack.c.h.b16 %v516
    %v2145 = vunpack.c.l.b16 %v517
    %v2146 = vunpack.c.h.b16 %v517
    %v2147 = vunpack.c.l.b16 %v518
    %v2148 = vunpack.c.h.b16 %v518
    %v2149 = vunpack.c.l.b16 %v519
    %v2150 = vunpack.c.h.b16 %v519
    %v2151 = vunpack.c.l.b16 %v520
    %v2152 = vunpack.c.h.b16 %v520
    %v2153 = vunpack.c.l.b16 %v521
    %v2154 = vunpack.c.h.b16 %v521
    %v2155 = vunpack.c.l.b16 %v522
    %v2156 = vunpack.c.h.b16 %v522
    %v2157 = vunpack.c.l.b16 %v523
    %v2158 = vunpack.c.h.b16 %v523
    %v2159 = vunpack.c.l.b16 %v524
    %v2160 = vunpack.c.h.b16 %v524
    %v2161 = vunpack.c.l.b16 %v525
    %v2162 = vunpack.c.h.b16 %v525
    %v2163 = vunpack.c.l.b16 %v526
    %v2164 = vunpack.c.h.b16 %v526
    %v2165 = vunpack.c.l.b16 %v527
    %v2166 = vunpack.c.h.b16 %v527
    %v2167 = vunpack.c.l.b16 %v528
    %v2168 = vunpack.c.h.b16 %v528
    %v2169 = vunpack.c.l.b16 %v529
    %v2170 = vunpack.c.h.b16 %v529
    %v2171 = vunpack.c.l.b16 %v530
    %v2172 = vunpack.c.h.b16 %v530
    %v2173 = vunpack.c.l.b16 %v531
    %v2174 = vunpack.c.h.b16 %v531
    %v2175 = vunpack.c.l.b16 %v532
    %v2176 = vunpack.c.h.b16 %v532
    %v2177 = vunpack.c.l.b16 %v533
    %v2178 = vunpack.c.h.b16 %v533
    %v2179 = vunpack.c.l.b16 %v534
    %v2180 = vunpack.c.h.b16 %v534
    %v2181 = vunpack.c.l.b16 %v535
    %v2182 = vunpack.c.h.b16 %v535
    %v2183 = vunpack.c.l.b16 %v536
    %v2184 = vunpack.c.h.b16 %v536
    %v2185 = vunpack.c.l.b16 %v537
    %v2186 = vunpack.c.h.b16 %v537
    %v2187 = vunpack.c.l.b16 %v538
    %v2188 = vunpack.c.h.b16 %v538
    %v2189 = vunpack.c.l.b16 %v539
    %v2190 = vunpack.c.h.b16 %v539
    %v2191 = vunpack.c.l.b16 %v540
    %v2192 = vunpack.c.h.b16 %v540
    %v2193 = vpack.c.b16 %v1173, %v1169
    %v2194 = vpack.c.b16 %v1174, %v1170
    %v2195 = vpack.c.b16 %v1175, %v1171
    %v2196 = vpack.c.b16 %v1176, %v1172
    %v2197 = vpack.c.b16 %v1181, %v1177
    %v2198 = vpack.c.b16 %v1182, %v1178
    %v2199 = vpack.c.b16 %v1183, %v1179
    %v2200 = vpack.c.b16 %v1184, %v1180
    %v2201 = vpack.c.b16 %v1189, %v1185
    %v2202 = vpack.c.b16 %v1190, %v1186
    %v2203 = vpack.c.b16 %v1191, %v1187
    %v2204 = vpack.c.b16 %v1192, %v1188
    %v2205 = vpack.c.b16 %v1197, %v1193
    %v2206 = vpack.c.b16 %v1198, %v1194
    %v2207 = vpack.c.b16 %v1199, %v1195
    %v2208 = vpack.c.b16 %v1200, %v1196
    %v2209 = vpack.c.b16 %v1205, %v1201
    %v2210 = vpack.c.b16 %v1206, %v1202
    %v2211 = vpack.c.b16 %v1207, %v1203
    %v2212 = vpack.c.b16 %v1208, %v1204
    %v2213 = vpack.c.b16 %v1213, %v1209
    %v2214 = vpack.c.b16 %v1214, %v1210
    %v2215 = vpack.c.b16 %v1215, %v1211
    %v2216 = vpack.c.b16 %v1216, %v1212
    %v2217 = vpack.c.b16 %v1221, %v1217
    %v2218 = vpack.c.b16 %v1222, %v1218
    %v2219 = vpack.c.b16 %v1223, %v1219
    %v2220 = vpack.c.b16 %v1224, %v1220
    %v2221 = vpack.c.b16 %v1229, %v1225
    %v2222 = vpack.c.b16 %v1230, %v1226
    %v2223 = vpack.c.b16 %v1231, %v1227
    %v2224 = vpack.c.b16 %v1232, %v1228
    %v2225 = vpack.c.b16 %v1237, %v1233
    %v2226 = vpack.c.b16 %v1238, %v1234
    %v2227 = vpack.c.b16 %v1239, %v1235
    %v2228 = vpack.c.b16 %v1240, %v1236
    %v2229 = vpack.c.b16 %v1245, %v1241
    %v2230 = vpack.c.b16 %v1246, %v1242
    %v2231 = vpack.c.b16 %v1247, %v1243
    %v2232 = vpack.c.b16 %v1248, %v1244
    %v2233 = vpack.c.b16 %v1253, %v1249
    %v2234 = vpack.c.b16 %v1254, %v1250
    %v2235 = vpack.c.b16 %v1255, %v1251
    %v2236 = vpack.c.b16 %v1256, %v1252
    %v2237 = vpack.c.b16 %v1261, %v1257
    %v2238 = vpack.c.b16 %v1262, %v1258
    %v2239 = vpack.c.b16 %v1263, %v1259
    %v2240 = vpack.c.b16 %v1264, %v1260
    %v2241 = vpack.c.b16 %v1269, %v1265
    %v2242 = vpack.c.b16 %v1270, %v1266
    %v2243 = vpack.c.b16 %v1271, %v1267
    %v2244 = vpack.c.b16 %v1272, %v1268
    %v2245 = vpack.c.b16 %v1277, %v1273
    %v2246 = vpack.c.b16 %v1278, %v1274
    %v2247 = vpack.c.b16 %v1279, %v1275
    %v2248 = vpack.c.b16 %v1280, %v1276
    %v2249 = vpack.c.b16 %v1285, %v1281
    %v2250 = vpack.c.b16 %v1286, %v1282
    %v2251 = vpack.c.b16 %v1287, %v1283
    %v2252 = vpack.c.b16 %v1288, %v1284
    %v2253 = vpack.c.b16 %v1293, %v1289
    %v2254 = vpack.c.b16 %v1294, %v1290
    %v2255 = vpack.c.b16 %v1295, %v1291
    %v2256 = vpack.c.b16 %v1296, %v1292
    %v2257 = vpack.c.b16 %v1301, %v1297
    %v2258 = vpack.c.b16 %v1302, %v1298
    %v2259 = vpack.c.b16 %v1303, %v1299
    %v2260 = vpack.c.b16 %v1304, %v1300
    %v2261 = vpack.c.b16 %v1309, %v1305
    %v2262 = vpack.c.b16 %v1310, %v1306
    %v2263 = vpack.c.b16 %v1311, %v1307
    %v2264 = vpack.c.b16 %v1312, %v1308
    %v2265 = vpack.c.b16 %v1317, %v1313
    %v2266 = vpack.c.b16 %v1318, %v1314
    %v2267 = vpack.c.b16 %v1319, %v1315
    %v2268 = vpack.c.b16 %v1320, %v1316
    %v2269 = vpack.c.b16 %v1325, %v1321
    %v2270 = vpack.c.b16 %v1326, %v1322
    %v2271 = vpack.c.b16 %v1327, %v1323
    %v2272 = vpack.c.b16 %v1328, %v1324
    %v2273 = vpack.c.b16 %v1333, %v1329
    %v2274 = vpack.c.b16 %v1334, %v1330
    %v2275 = vpack.c.b16 %v1335, %v1331
    %v2276 = vpack.c.b16 %v1336, %v1332
    %v2277 = vpack.c.b16 %v1341, %v1337
    %v2278 = vpack.c.b16 %v1342, %v1338
    %v2279 = vpack.c.b16 %v1343, %v1339
    %v2280 = vpack.c.b16 %v1344, %v1340
    %v2281 = vpack.c.b16 %v1349, %v1345
    %v2282 = vpack.c.b16 %v1350, %v1346
    %v2283 = vpack.c.b16 %v1351, %v1347
    %v2284 = vpack.c.b16 %v1352, %v1348
    %v2285 = vpack.c.b16 %v1357, %v1353
    %v2286 = vpack.c.b16 %v1358, %v1354
    %v2287 = vpack.c.b16 %v1359, %v1355
    %v2288 = vpack.c.b16 %v1360, %v1356
    %v2289 = vpack.c.b16 %v1365, %v1361
    %v2290 = vpack.c.b16 %v1366, %v1362
    %v2291 = vpack.c.b16 %v1367, %v1363
    %v2292 = vpack.c.b16 %v1368, %v1364
    %v2293 = vpack.c.b16 %v1373, %v1369
    %v2294 = vpack.c.b16 %v1374, %v1370
    %v2295 = vpack.c.b16 %v1375, %v1371
    %v2296 = vpack.c.b16 %v1376, %v1372
    %v2297 = vpack.c.b16 %v1381, %v1377
    %v2298 = vpack.c.b16 %v1382, %v1378
    %v2299 = vpack.c.b16 %v1383, %v1379
    %v2300 = vpack.c.b16 %v1384, %v1380
    %v2301 = vpack.c.b16 %v1389, %v1385
    %v2302 = vpack.c.b16 %v1390, %v1386
    %v2303 = vpack.c.b16 %v1391, %v1387
    %v2304 = vpack.c.b16 %v1392, %v1388
    %v2305 = vpack.c.b16 %v1397, %v1393
    %v2306 = vpack.c.b16 %v1398, %v1394
    %v2307 = vpack.c.b16 %v1399, %v1395
    %v2308 = vpack.c.b16 %v1400, %v1396
    %v2309 = vpack.c.b16 %v1405, %v1401
    %v2310 = vpack.c.b16 %v1406, %v1402
    %v2311 = vpack.c.b16 %v1407, %v1403
    %v2312 = vpack.c.b16 %v1408, %v1404
    %v2313 = vpack.c.b16 %v1413, %v1409
    %v2314 = vpack.c.b16 %v1414, %v1410
    %v2315 = vpack.c.b16 %v1415, %v1411
    %v2316 = vpack.c.b16 %v1416, %v1412
    %v2317 = vpack.c.b16 %v1421, %v1417
    %v2318 = vpack.c.b16 %v1422, %v1418
    %v2319 = vpack.c.b16 %v1423, %v1419
    %v2320 = vpack.c.b16 %v1424, %v1420
    %v2321 = vpack.c.b16 %v1429, %v1425
    %v2322 = vpack.c.b16 %v1430, %v1426
    %v2323 = vpack.c.b16 %v1431, %v1427
    %v2324 = vpack.c.b16 %v1432, %v1428
    %v2325 = vpack.c.b16 %v1437, %v1433
    %v2326 = vpack.c.b16 %v1438, %v1434
    %v2327 = vpack.c.b16 %v1439, %v1435
    %v2328 = vpack.c.b16 %v1440, %v1436
    %v2329 = vpack.c.b16 %v1445, %v1441
    %v2330 = vpack.c.b16 %v1446, %v1442
    %v2331 = vpack.c.b16 %v1447, %v1443
    %v2332 = vpack.c.b16 %v1448, %v1444
    %v2333 = vpack.c.b16 %v1453, %v1449
    %v2334 = vpack.c.b16 %v1454, %v1450
    %v2335 = vpack.c.b16 %v1455, %v1451
    %v2336 = vpack.c.b16 %v1456, %v1452
    %v2337 = vpack.c.b16 %v1461, %v1457
    %v2338 = vpack.c.b16 %v1462, %v1458
    %v2339 = vpack.c.b16 %v1463, %v1459
    %v2340 = vpack.c.b16 %v1464, %v1460
    %v2341 = vpack.c.b16 %v1469, %v1465
    %v2342 = vpack.c.b16 %v1470, %v1466
    %v2343 = vpack.c.b16 %v1471, %v1467
    %v2344 = vpack.c.b16 %v1472, %v1468
    %v2345 = vpack.c.b16 %v1477, %v1473
    %v2346 = vpack.c.b16 %v1478, %v1474
    %v2347 = vpack.c.b16 %v1479, %v1475
    %v2348 = vpack.c.b16 %v1480, %v1476
    %v2349 = vpack.c.b16 %v1485, %v1481
    %v2350 = vpack.c.b16 %v1486, %v1482
    %v2351 = vpack.c.b16 %v1487, %v1483
    %v2352 = vpack.c.b16 %v1488, %v1484
    %v2353 = vpack.c.b16 %v1493, %v1489
    %v2354 = vpack.c.b16 %v1494, %v1490
    %v2355 = vpack.c.b16 %v1495, %v1491
    %v2356 = vpack.c.b16 %v1496, %v1492
    %v2357 = vpack.c.b16 %v1501, %v1497
    %v2358 = vpack.c.b16 %v1502, %v1498
    %v2359 = vpack.c.b16 %v1503, %v1499
    %v2360 = vpack.c.b16 %v1504, %v1500
    %v2361 = vpack.c.b16 %v1509, %v1505
    %v2362 = vpack.c.b16 %v1510, %v1506
    %v2363 = vpack.c.b16 %v1511, %v1507
    %v2364 = vpack.c.b16 %v1512, %v1508
    %v2365 = vpack.c.b16 %v1517, %v1513
    %v2366 = vpack.c.b16 %v1518, %v1514
    %v2367 = vpack.c.b16 %v1519, %v1515
    %v2368 = vpack.c.b16 %v1520, %v1516
    %v2369 = vpack.c.b16 %v1525, %v1521
    %v2370 = vpack.c.b16 %v1526, %v1522
    %v2371 = vpack.c.b16 %v1527, %v1523
    %v2372 = vpack.c.b16 %v1528, %v1524
    %v2373 = vpack.c.b16 %v1533, %v1529
    %v2374 = vpack.c.b16 %v1534, %v1530
    %v2375 = vpack.c.b16 %v1535, %v1531
    %v2376 = vpack.c.b16 %v1536, %v1532
    %v2377 = vpack.c.b16 %v1541, %v1537
    %v2378 = vpack.c.b16 %v1542, %v1538
    %v2379 = vpack.c.b16 %v1543, %v1539
    %v2380 = vpack.c.b16 %v1544, %v1540
    %v2381 = vpack.c.b16 %v1549, %v1545
    %v2382 = vpack.c.b16 %v1550, %v1546
    %v2383 = vpack.c.b16 %v1551, %v1547
    %v2384 = vpack.c.b16 %v1552, %v1548
    %v2385 = vpack.c.b16 %v1557, %v1553
    %v2386 = vpack.c.b16 %v1558, %v1554
    %v2387 = vpack.c.b16 %v1559, %v1555
    %v2388 = vpack.c.b16 %v1560, %v1556
    %v2389 = vpack.c.b16 %v1565, %v1561
    %v2390 = vpack.c.b16 %v1566, %v1562
    %v2391 = vpack.c.b16 %v1567, %v1563
    %v2392 = vpack.c.b16 %v1568, %v1564
    %v2393 = vpack.c.b16 %v1573, %v1569
    %v2394 = vpack.c.b16 %v1574, %v1570
    %v2395 = vpack.c.b16 %v1575, %v1571
    %v2396 = vpack.c.b16 %v1576, %v1572
    %v2397 = vpack.c.b16 %v1581, %v1577
    %v2398 = vpack.c.b16 %v1582, %v1578
    %v2399 = vpack.c.b16 %v1583, %v1579
    %v2400 = vpack.c.b16 %v1584, %v1580
    %v2401 = vpack.c.b16 %v1589, %v1585
    %v2402 = vpack.c.b16 %v1590, %v1586
    %v2403 = vpack.c.b16 %v1591, %v1587
    %v2404 = vpack.c.b16 %v1592, %v1588
    %v2405 = vpack.c.b16 %v1597, %v1593
    %v2406 = vpack.c.b16 %v1598, %v1594
    %v2407 = vpack.c.b16 %v1599, %v1595
    %v2408 = vpack.c.b16 %v1600, %v1596
    %v2409 = vpack.c.b16 %v1605, %v1601
    %v2410 = vpack.c.b16 %v1606, %v1602
    %v2411 = vpack.c.b16 %v1607, %v1603
    %v2412 = vpack.c.b16 %v1608, %v1604
    %v2413 = vpack.c.b16 %v1613, %v1609
    %v2414 = vpack.c.b16 %v1614, %v1610
    %v2415 = vpack.c.b16 %v1615, %v1611
    %v2416 = vpack.c.b16 %v1616, %v1612
    %v2417 = vpack.c.b16 %v1621, %v1617
    %v2418 = vpack.c.b16 %v1622, %v1618
    %v2419 = vpack.c.b16 %v1623, %v1619
    %v2420 = vpack.c.b16 %v1624, %v1620
    %v2421 = vpack.c.b16 %v1629, %v1625
    %v2422 = vpack.c.b16 %v1630, %v1626
    %v2423 = vpack.c.b16 %v1631, %v1627
    %v2424 = vpack.c.b16 %v1632, %v1628
    %v2425 = vpack.c.b16 %v1637, %v1633
    %v2426 = vpack.c.b16 %v1638, %v1634
    %v2427 = vpack.c.b16 %v1639, %v1635
    %v2428 = vpack.c.b16 %v1640, %v1636
    %v2429 = vpack.c.b16 %v1645, %v1641
    %v2430 = vpack.c.b16 %v1646, %v1642
    %v2431 = vpack.c.b16 %v1647, %v1643
    %v2432 = vpack.c.b16 %v1648, %v1644
    %v2433 = vpack.c.b16 %v1653, %v1649
    %v2434 = vpack.c.b16 %v1654, %v1650
    %v2435 = vpack.c.b16 %v1655, %v1651
    %v2436 = vpack.c.b16 %v1656, %v1652
    %v2437 = vpack.c.b16 %v1661, %v1657
    %v2438 = vpack.c.b16 %v1662, %v1658
    %v2439 = vpack.c.b16 %v1663, %v1659
    %v2440 = vpack.c.b16 %v1664, %v1660
    %v2441 = vpack.c.b16 %v1669, %v1665
    %v2442 = vpack.c.b16 %v1670, %v1666
    %v2443 = vpack.c.b16 %v1671, %v1667
    %v2444 = vpack.c.b16 %v1672, %v1668
    %v2445 = vpack.c.b16 %v1677, %v1673
    %v2446 = vpack.c.b16 %v1678, %v1674
    %v2447 = vpack.c.b16 %v1679, %v1675
    %v2448 = vpack.c.b16 %v1680, %v1676
    %v2449 = vpack.c.b16 %v1685, %v1681
    %v2450 = vpack.c.b16 %v1686, %v1682
    %v2451 = vpack.c.b16 %v1687, %v1683
    %v2452 = vpack.c.b16 %v1688, %v1684
    %v2453 = vpack.c.b16 %v1693, %v1689
    %v2454 = vpack.c.b16 %v1694, %v1690
    %v2455 = vpack.c.b16 %v1695, %v1691
    %v2456 = vpack.c.b16 %v1696, %v1692
    %v2457 = vpack.c.b16 %v1701, %v1697
    %v2458 = vpack.c.b16 %v1702, %v1698
    %v2459 = vpack.c.b16 %v1703, %v1699
    %v2460 = vpack.c.b16 %v1704, %v1700
    %v2461 = vpack.c.b16 %v1709, %v1705
    %v2462 = vpack.c.b16 %v1710, %v1706
    %v2463 = vpack.c.b16 %v1711, %v1707
    %v2464 = vpack.c.b16 %v1712, %v1708
    %v2465 = vpack.c.b16 %v1717, %v1713
    %v2466 = vpack.c.b16 %v1718, %v1714
    %v2467 = vpack.c.b16 %v1719, %v1715
    %v2468 = vpack.c.b16 %v1720, %v1716
    %v2469 = vpack.c.b16 %v1725, %v1721
    %v2470 = vpack.c.b16 %v1726, %v1722
    %v2471 = vpack.c.b16 %v1727, %v1723
    %v2472 = vpack.c.b16 %v1728, %v1724
    %v2473 = vpack.c.b16 %v1733, %v1729
    %v2474 = vpack.c.b16 %v1734, %v1730
    %v2475 = vpack.c.b16 %v1735, %v1731
    %v2476 = vpack.c.b16 %v1736, %v1732
    %v2477 = vpack.c.b16 %v1741, %v1737
    %v2478 = vpack.c.b16 %v1742, %v1738
    %v2479 = vpack.c.b16 %v1743, %v1739
    %v2480 = vpack.c.b16 %v1744, %v1740
    %v2481 = vpack.c.b16 %v1749, %v1745
    %v2482 = vpack.c.b16 %v1750, %v1746
    %v2483 = vpack.c.b16 %v1751, %v1747
    %v2484 = vpack.c.b16 %v1752, %v1748
    %v2485 = vpack.c.b16 %v1757, %v1753
    %v2486 = vpack.c.b16 %v1758, %v1754
    %v2487 = vpack.c.b16 %v1759, %v1755
    %v2488 = vpack.c.b16 %v1760, %v1756
    %v2489 = vpack.c.b16 %v1765, %v1761
    %v2490 = vpack.c.b16 %v1766, %v1762
    %v2491 = vpack.c.b16 %v1767, %v1763
    %v2492 = vpack.c.b16 %v1768, %v1764
    %v2493 = vpack.c.b16 %v1773, %v1769
    %v2494 = vpack.c.b16 %v1774, %v1770
    %v2495 = vpack.c.b16 %v1775, %v1771
    %v2496 = vpack.c.b16 %v1776, %v1772
    %v2497 = vpack.c.b16 %v1781, %v1777
    %v2498 = vpack.c.b16 %v1782, %v1778
    %v2499 = vpack.c.b16 %v1783, %v1779
    %v2500 = vpack.c.b16 %v1784, %v1780
    %v2501 = vpack.c.b16 %v1789, %v1785
    %v2502 = vpack.c.b16 %v1790, %v1786
    %v2503 = vpack.c.b16 %v1791, %v1787
    %v2504 = vpack.c.b16 %v1792, %v1788
    %v2505 = vpack.c.b16 %v1797, %v1793
    %v2506 = vpack.c.b16 %v1798, %v1794
    %v2507 = vpack.c.b16 %v1799, %v1795
    %v2508 = vpack.c.b16 %v1800, %v1796
    %v2509 = vpack.c.b16 %v1805, %v1801
    %v2510 = vpack.c.b16 %v1806, %v1802
    %v2511 = vpack.c.b16 %v1807, %v1803
    %v2512 = vpack.c.b16 %v1808, %v1804
    %v2513 = vpack.c.b16 %v1813, %v1809
    %v2514 = vpack.c.b16 %v1814, %v1810
    %v2515 = vpack.c.b16 %v1815, %v1811
    %v2516 = vpack.c.b16 %v1816, %v1812
    %v2517 = vpack.c.b16 %v1821, %v1817
    %v2518 = vpack.c.b16 %v1822, %v1818
    %v2519 = vpack.c.b16 %v1823, %v1819
    %v2520 = vpack.c.b16 %v1824, %v1820
    %v2521 = vpack.c.b16 %v1829, %v1825
    %v2522 = vpack.c.b16 %v1830, %v1826
    %v2523 = vpack.c.b16 %v1831, %v1827
    %v2524 = vpack.c.b16 %v1832, %v1828
    %v2525 = vpack.c.b16 %v1837, %v1833
    %v2526 = vpack.c.b16 %v1838, %v1834
    %v2527 = vpack.c.b16 %v1839, %v1835
    %v2528 = vpack.c.b16 %v1840, %v1836
    %v2529 = vpack.c.b16 %v1845, %v1841
    %v2530 = vpack.c.b16 %v1846, %v1842
    %v2531 = vpack.c.b16 %v1847, %v1843
    %v2532 = vpack.c.b16 %v1848, %v1844
    %v2533 = vpack.c.b16 %v1853, %v1849
    %v2534 = vpack.c.b16 %v1854, %v1850
    %v2535 = vpack.c.b16 %v1855, %v1851
    %v2536 = vpack.c.b16 %v1856, %v1852
    %v2537 = vpack.c.b16 %v1861, %v1857
    %v2538 = vpack.c.b16 %v1862, %v1858
    %v2539 = vpack.c.b16 %v1863, %v1859
    %v2540 = vpack.c.b16 %v1864, %v1860
    %v2541 = vpack.c.b16 %v1869, %v1865
    %v2542 = vpack.c.b16 %v1870, %v1866
    %v2543 = vpack.c.b16 %v1871, %v1867
    %v2544 = vpack.c.b16 %v1872, %v1868
    %v2545 = vpack.c.b16 %v1877, %v1873
    %v2546 = vpack.c.b16 %v1878, %v1874
    %v2547 = vpack.c.b16 %v1879, %v1875
    %v2548 = vpack.c.b16 %v1880, %v1876
    %v2549 = vpack.c.b16 %v1885, %v1881
    %v2550 = vpack.c.b16 %v1886, %v1882
    %v2551 = vpack.c.b16 %v1887, %v1883
    %v2552 = vpack.c.b16 %v1888, %v1884
    %v2553 = vpack.c.b16 %v1893, %v1889
    %v2554 = vpack.c.b16 %v1894, %v1890
    %v2555 = vpack.c.b16 %v1895, %v1891
    %v2556 = vpack.c.b16 %v1896, %v1892
    %v2557 = vpack.c.b16 %v1901, %v1897
    %v2558 = vpack.c.b16 %v1902, %v1898
    %v2559 = vpack.c.b16 %v1903, %v1899
    %v2560 = vpack.c.b16 %v1904, %v1900
    %v2561 = vpack.c.b16 %v1909, %v1905
    %v2562 = vpack.c.b16 %v1910, %v1906
    %v2563 = vpack.c.b16 %v1911, %v1907
    %v2564 = vpack.c.b16 %v1912, %v1908
    %v2565 = vpack.c.b16 %v1917, %v1913
    %v2566 = vpack.c.b16 %v1918, %v1914
    %v2567 = vpack.c.b16 %v1919, %v1915
    %v2568 = vpack.c.b16 %v1920, %v1916
    %v2569 = vpack.c.b16 %v1925, %v1921
    %v2570 = vpack.c.b16 %v1926, %v1922
    %v2571 = vpack.c.b16 %v1927, %v1923
    %v2572 = vpack.c.b16 %v1928, %v1924
    %v2573 = vpack.c.b16 %v1933, %v1929
    %v2574 = vpack.c.b16 %v1934, %v1930
    %v2575 = vpack.c.b16 %v1935, %v1931
    %v2576 = vpack.c.b16 %v1936, %v1932
    %v2577 = vpack.c.b16 %v1941, %v1937
    %v2578 = vpack.c.b16 %v1942, %v1938
    %v2579 = vpack.c.b16 %v1943, %v1939
    %v2580 = vpack.c.b16 %v1944, %v1940
    %v2581 = vpack.c.b16 %v1949, %v1945
    %v2582 = vpack.c.b16 %v1950, %v1946
    %v2583 = vpack.c.b16 %v1951, %v1947
    %v2584 = vpack.c.b16 %v1952, %v1948
    %v2585 = vpack.c.b16 %v1957, %v1953
    %v2586 = vpack.c.b16 %v1958, %v1954
    %v2587 = vpack.c.b16 %v1959, %v1955
    %v2588 = vpack.c.b16 %v1960, %v1956
    %v2589 = vpack.c.b16 %v1965, %v1961
    %v2590 = vpack.c.b16 %v1966, %v1962
    %v2591 = vpack.c.b16 %v1967, %v1963
    %v2592 = vpack.c.b16 %v1968, %v1964
    %v2593 = vpack.c.b16 %v1973, %v1969
    %v2594 = vpack.c.b16 %v1974, %v1970
    %v2595 = vpack.c.b16 %v1975, %v1971
    %v2596 = vpack.c.b16 %v1976, %v1972
    %v2597 = vpack.c.b16 %v1981, %v1977
    %v2598 = vpack.c.b16 %v1982, %v1978
    %v2599 = vpack.c.b16 %v1983, %v1979
    %v2600 = vpack.c.b16 %v1984, %v1980
    %v2601 = vpack.c.b16 %v1989, %v1985
    %v2602 = vpack.c.b16 %v1990, %v1986
    %v2603 = vpack.c.b16 %v1991, %v1987
    %v2604 = vpack.c.b16 %v1992, %v1988
    %v2605 = vpack.c.b16 %v1997, %v1993
    %v2606 = vpack.c.b16 %v1998, %v1994
    %v2607 = vpack.c.b16 %v1999, %v1995
    %v2608 = vpack.c.b16 %v2000, %v1996
    %v2609 = vpack.c.b16 %v2005, %v2001
    %v2610 = vpack.c.b16 %v2006, %v2002
    %v2611 = vpack.c.b16 %v2007, %v2003
    %v2612 = vpack.c.b16 %v2008, %v2004
    %v2613 = vpack.c.b16 %v2013, %v2009
    %v2614 = vpack.c.b16 %v2014, %v2010
    %v2615 = vpack.c.b16 %v2015, %v2011
    %v2616 = vpack.c.b16 %v2016, %v2012
    %v2617 = vpack.c.b16 %v2021, %v2017
    %v2618 = vpack.c.b16 %v2022, %v2018
    %v2619 = vpack.c.b16 %v2023, %v2019
    %v2620 = vpack.c.b16 %v2024, %v2020
    %v2621 = vpack.c.b16 %v2029, %v2025
    %v2622 = vpack.c.b16 %v2030, %v2026
    %v2623 = vpack.c.b16 %v2031, %v2027
    %v2624 = vpack.c.b16 %v2032, %v2028
    %v2625 = vpack.c.b16 %v2037, %v2033
    %v2626 = vpack.c.b16 %v2038, %v2034
    %v2627 = vpack.c.b16 %v2039, %v2035
    %v2628 = vpack.c.b16 %v2040, %v2036
    %v2629 = vpack.c.b16 %v2045, %v2041
    %v2630 = vpack.c.b16 %v2046, %v2042
    %v2631 = vpack.c.b16 %v2047, %v2043
    %v2632 = vpack.c.b16 %v2048, %v2044
    %v2633 = vpack.c.b16 %v2053, %v2049
    %v2634 = vpack.c.b16 %v2054, %v2050
    %v2635 = vpack.c.b16 %v2055, %v2051
    %v2636 = vpack.c.b16 %v2056, %v2052
    %v2637 = vpack.c.b16 %v2061, %v2057
    %v2638 = vpack.c.b16 %v2062, %v2058
    %v2639 = vpack.c.b16 %v2063, %v2059
    %v2640 = vpack.c.b16 %v2064, %v2060
    %v2641 = vpack.c.b16 %v2069, %v2065
    %v2642 = vpack.c.b16 %v2070, %v2066
    %v2643 = vpack.c.b16 %v2071, %v2067
    %v2644 = vpack.c.b16 %v2072, %v2068
    %v2645 = vpack.c.b16 %v2077, %v2073
    %v2646 = vpack.c.b16 %v2078, %v2074
    %v2647 = vpack.c.b16 %v2079, %v2075
    %v2648 = vpack.c.b16 %v2080, %v2076
    %v2649 = vpack.c.b16 %v2085, %v2081
    %v2650 = vpack.c.b16 %v2086, %v2082
    %v2651 = vpack.c.b16 %v2087, %v2083
    %v2652 = vpack.c.b16 %v2088, %v2084
    %v2653 = vpack.c.b16 %v2093, %v2089
    %v2654 = vpack.c.b16 %v2094, %v2090
    %v2655 = vpack.c.b16 %v2095, %v2091
    %v2656 = vpack.c.b16 %v2096, %v2092
    %v2657 = vpack.c.b16 %v2101, %v2097
    %v2658 = vpack.c.b16 %v2102, %v2098
    %v2659 = vpack.c.b16 %v2103, %v2099
    %v2660 = vpack.c.b16 %v2104, %v2100
    %v2661 = vpack.c.b16 %v2109, %v2105
    %v2662 = vpack.c.b16 %v2110, %v2106
    %v2663 = vpack.c.b16 %v2111, %v2107
    %v2664 = vpack.c.b16 %v2112, %v2108
    %v2665 = vpack.c.b16 %v2117, %v2113
    %v2666 = vpack.c.b16 %v2118, %v2114
    %v2667 = vpack.c.b16 %v2119, %v2115
    %v2668 = vpack.c.b16 %v2120, %v2116
    %v2669 = vpack.c.b16 %v2125, %v2121
    %v2670 = vpack.c.b16 %v2126, %v2122
    %v2671 = vpack.c.b16 %v2127, %v2123
    %v2672 = vpack.c.b16 %v2128, %v2124
    %v2673 = vpack.c.b16 %v2133, %v2129
    %v2674 = vpack.c.b16 %v2134, %v2130
    %v2675 = vpack.c.b16 %v2135, %v2131
    %v2676 = vpack.c.b16 %v2136, %v2132
    %v2677 = vpack.c.b16 %v2141, %v2137
    %v2678 = vpack.c.b16 %v2142, %v2138
    %v2679 = vpack.c.b16 %v2143, %v2139
    %v2680 = vpack.c.b16 %v2144, %v2140
    %v2681 = vpack.c.b16 %v2149, %v2145
    %v2682 = vpack.c.b16 %v2150, %v2146
    %v2683 = vpack.c.b16 %v2151, %v2147
    %v2684 = vpack.c.b16 %v2152, %v2148
    %v2685 = vpack.c.b16 %v2157, %v2153
    %v2686 = vpack.c.b16 %v2158, %v2154
    %v2687 = vpack.c.b16 %v2159, %v2155
    %v2688 = vpack.c.b16 %v2160, %v2156
    %v2689 = vpack.c.b16 %v2165, %v2161
    %v2690 = vpack.c.b16 %v2166, %v2162
    %v2691 = vpack.c.b16 %v2167, %v2163
    %v2692 = vpack.c.b16 %v2168, %v2164
    %v2693 = vpack.c.b16 %v2173, %v2169
    %v2694 = vpack.c.b16 %v2174, %v2170
    %v2695 = vpack.c.b16 %v2175, %v2171
    %v2696 = vpack.c.b16 %v2176, %v2172
    %v2697 = vpack.c.b16 %v2181, %v2177
    %v2698 = vpack.c.b16 %v2182, %v2178
    %v2699 = vpack.c.b16 %v2183, %v2179
    %v2700 = vpack.c.b16 %v2184, %v2180
    %v2701 = vpack.c.b16 %v2189, %v2185
    %v2702 = vpack.c.b16 %v2190, %v2186
    %v2703 = vpack.c.b16 %v2191, %v2187
    %v2704 = vpack.c.b16 %v2192, %v2188
    %3217 = vmatprep.subr.bf16.mxu0 %v2194
    %3218 = vmatpush1.bf16.msra.mxu0 %v2193
    %3219 = vmatprep.subr.bf16.mxu0 %v2198
    %3220 = vmatpush1.bf16.msra.mxu0 %v2197
    %3221 = vmatprep.subr.bf16.mxu0 %v2202
    %3222 = vmatpush1.bf16.msra.mxu0 %v2201
    %3223 = vmatprep.subr.bf16.mxu0 %v2206
    %3224 = vmatpush1.bf16.msra.mxu0 %v2205
    %3225 = vmatprep.subr.bf16.mxu0 %v2210
    %3226 = vmatpush1.bf16.msra.mxu0 %v2209
    %3227 = vmatprep.subr.bf16.mxu0 %v2214
    %3228 = vmatpush1.bf16.msra.mxu0 %v2213
    %3229 = vmatprep.subr.bf16.mxu0 %v2218
    %3230 = vmatpush1.bf16.msra.mxu0 %v2217
    %3231 = vmatprep.subr.bf16.mxu0 %v2222
    %3232 = vmatpush1.bf16.msra.mxu0 %v2221
    %3233 = vmatprep.subr.bf16.mxu0 %v2226
    %3234 = vmatpush1.bf16.msra.mxu0 %v2225
    %3235 = vmatprep.subr.bf16.mxu0 %v2230
    %3236 = vmatpush1.bf16.msra.mxu0 %v2229
    %3237 = vmatprep.subr.bf16.mxu0 %v2234
    %3238 = vmatpush1.bf16.msra.mxu0 %v2233
    %3239 = vmatprep.subr.bf16.mxu0 %v2238
    %3240 = vmatpush1.bf16.msra.mxu0 %v2237
    %3241 = vmatprep.subr.bf16.mxu0 %v2242
    %3242 = vmatpush1.bf16.msra.mxu0 %v2241
    %3243 = vmatprep.subr.bf16.mxu0 %v2246
    %3244 = vmatpush1.bf16.msra.mxu0 %v2245
    %3245 = vmatprep.subr.bf16.mxu0 %v2250
    %3246 = vmatpush1.bf16.msra.mxu0 %v2249
    %3247 = vmatprep.subr.bf16.mxu0 %v2254
    %3248 = vmatpush1.bf16.msra.mxu0 %v2253
    %3249 = vmatprep.mubr.bf16.mxu0 %v580
    %3250 = vmatmul.mubr.bf16.gmra.mrb[0].mxu0 %v566
    %v3251 = vpop.f32.mrb[0].mxu0
    %v3252 = vadd.f32 0.0, %v3251
    %v3253 = vpop.f32.mrb[0].mxu0
    %v3254 = vadd.f32 0.0, %v3253
    %v3255 = vpop.f32.mrb[0].mxu0
    %v3256 = vpop.f32.mrb[0].mxu0
    %3257 = vdwg.mxu0
    %3258 = vmatprep.subr.bf16.mxu0 %v2258
    %3259 = vmatpush1.bf16.msra.mxu0 %v2257
    %3260 = vmatprep.subr.bf16.mxu0 %v2262
    %3261 = vmatpush1.bf16.msra.mxu0 %v2261
    %3262 = vmatprep.subr.bf16.mxu0 %v2266
    %3263 = vmatpush1.bf16.msra.mxu0 %v2265
    %3264 = vmatprep.subr.bf16.mxu0 %v2270
    %3265 = vmatpush1.bf16.msra.mxu0 %v2269
    %3266 = vmatprep.subr.bf16.mxu0 %v2274
    %3267 = vmatpush1.bf16.msra.mxu0 %v2273
    %3268 = vmatprep.subr.bf16.mxu0 %v2278
    %3269 = vmatpush1.bf16.msra.mxu0 %v2277
    %3270 = vmatprep.subr.bf16.mxu0 %v2282
    %3271 = vmatpush1.bf16.msra.mxu0 %v2281
    %3272 = vmatprep.subr.bf16.mxu0 %v2286
    %3273 = vmatpush1.bf16.msra.mxu0 %v2285
    %3274 = vmatprep.subr.bf16.mxu0 %v2290
    %3275 = vmatpush1.bf16.msra.mxu0 %v2289
    %3276 = vmatprep.subr.bf16.mxu0 %v2294
    %3277 = vmatpush1.bf16.msra.mxu0 %v2293
    %3278 = vmatprep.subr.bf16.mxu0 %v2298
    %3279 = vmatpush1.bf16.msra.mxu0 %v2297
    %3280 = vmatprep.subr.bf16.mxu0 %v2302
    %3281 = vmatpush1.bf16.msra.mxu0 %v2301
    %3282 = vmatprep.subr.bf16.mxu0 %v2306
    %3283 = vmatpush1.bf16.msra.mxu0 %v2305
    %3284 = vmatprep.subr.bf16.mxu0 %v2310
    %3285 = vmatpush1.bf16.msra.mxu0 %v2309
    %3286 = vmatprep.subr.bf16.mxu0 %v2314
    %3287 = vmatpush1.bf16.msra.mxu0 %v2313
    %3288 = vmatprep.subr.bf16.mxu0 %v2318
    %3289 = vmatpush1.bf16.msra.mxu0 %v2317
    %3290 = vmatprep.mubr.bf16.mxu0 %v590
    %3291 = vmatmul.mubr.bf16.gmra.mrb[0].mxu0 %v588
    %v3292 = vpop.f32.mrb[0].mxu0
    %v3293 = vadd.f32 %v3252, %v3292
    %v3294 = vpop.f32.mrb[0].mxu0
    %v3295 = vadd.f32 %v3254, %v3294
    %v3296 = vpop.f32.mrb[0].mxu0
    %v3297 = vpop.f32.mrb[0].mxu0
    %3298 = vdwg.mxu0
    %3299 = vmatprep.subr.bf16.mxu0 %v2322
    %3300 = vmatpush1.bf16.msra.mxu0 %v2321
    %3301 = vmatprep.subr.bf16.mxu0 %v2326
    %3302 = vmatpush1.bf16.msra.mxu0 %v2325
    %3303 = vmatprep.subr.bf16.mxu0 %v2330
    %3304 = vmatpush1.bf16.msra.mxu0 %v2329
    %3305 = vmatprep.subr.bf16.mxu0 %v2334
    %3306 = vmatpush1.bf16.msra.mxu0 %v2333
    %3307 = vmatprep.subr.bf16.mxu0 %v2338
    %3308 = vmatpush1.bf16.msra.mxu0 %v2337
    %3309 = vmatprep.subr.bf16.mxu0 %v2342
    %3310 = vmatpush1.bf16.msra.mxu0 %v2341
    %3311 = vmatprep.subr.bf16.mxu0 %v2346
    %3312 = vmatpush1.bf16.msra.mxu0 %v2345
    %3313 = vmatprep.subr.bf16.mxu0 %v2350
    %3314 = vmatpush1.bf16.msra.mxu0 %v2349
    %3315 = vmatprep.subr.bf16.mxu0 %v2354
    %3316 = vmatpush1.bf16.msra.mxu0 %v2353
    %3317 = vmatprep.subr.bf16.mxu0 %v2358
    %3318 = vmatpush1.bf16.msra.mxu0 %v2357
    %3319 = vmatprep.subr.bf16.mxu0 %v2362
    %3320 = vmatpush1.bf16.msra.mxu0 %v2361
    %3321 = vmatprep.subr.bf16.mxu0 %v2366
    %3322 = vmatpush1.bf16.msra.mxu0 %v2365
    %3323 = vmatprep.subr.bf16.mxu0 %v2370
    %3324 = vmatpush1.bf16.msra.mxu0 %v2369
    %3325 = vmatprep.subr.bf16.mxu0 %v2374
    %3326 = vmatpush1.bf16.msra.mxu0 %v2373
    %3327 = vmatprep.subr.bf16.mxu0 %v2378
    %3328 = vmatpush1.bf16.msra.mxu0 %v2377
    %3329 = vmatprep.subr.bf16.mxu0 %v2382
    %3330 = vmatpush1.bf16.msra.mxu0 %v2381
    %3331 = vmatprep.mubr.bf16.mxu0 %v587
    %3332 = vmatmul.mubr.bf16.gmra.mrb[0].mxu0 %v573
    %v3333 = vpop.f32.mrb[0].mxu0
    %v3334 = vadd.f32 %v3293, %v3333
    %v3335 = vpop.f32.mrb[0].mxu0
    %v3336 = vadd.f32 %v3295, %v3335
    %v3337 = vpop.f32.mrb[0].mxu0
    %v3338 = vpop.f32.mrb[0].mxu0
    %3339 = vdwg.mxu0
    %3340 = vmatprep.subr.bf16.mxu0 %v2386
    %3341 = vmatpush1.bf16.msra.mxu0 %v2385
    %3342 = vmatprep.subr.bf16.mxu0 %v2390
    %3343 = vmatpush1.bf16.msra.mxu0 %v2389
    %3344 = vmatprep.subr.bf16.mxu0 %v2394
    %3345 = vmatpush1.bf16.msra.mxu0 %v2393
    %3346 = vmatprep.subr.bf16.mxu0 %v2398
    %3347 = vmatpush1.bf16.msra.mxu0 %v2397
    %3348 = vmatprep.subr.bf16.mxu0 %v2402
    %3349 = vmatpush1.bf16.msra.mxu0 %v2401
    %3350 = vmatprep.subr.bf16.mxu0 %v2406
    %3351 = vmatpush1.bf16.msra.mxu0 %v2405
    %3352 = vmatprep.subr.bf16.mxu0 %v2410
    %3353 = vmatpush1.bf16.msra.mxu0 %v2409
    %3354 = vmatprep.subr.bf16.mxu0 %v2414
    %3355 = vmatpush1.bf16.msra.mxu0 %v2413
    %3356 = vmatprep.subr.bf16.mxu0 %v2418
    %3357 = vmatpush1.bf16.msra.mxu0 %v2417
    %3358 = vmatprep.subr.bf16.mxu0 %v2422
    %3359 = vmatpush1.bf16.msra.mxu0 %v2421
    %3360 = vmatprep.subr.bf16.mxu0 %v2426
    %3361 = vmatpush1.bf16.msra.mxu0 %v2425
    %3362 = vmatprep.subr.bf16.mxu0 %v2430
    %3363 = vmatpush1.bf16.msra.mxu0 %v2429
    %3364 = vmatprep.subr.bf16.mxu0 %v2434
    %3365 = vmatpush1.bf16.msra.mxu0 %v2433
    %3366 = vmatprep.subr.bf16.mxu0 %v2438
    %3367 = vmatpush1.bf16.msra.mxu0 %v2437
    %3368 = vmatprep.subr.bf16.mxu0 %v2442
    %3369 = vmatpush1.bf16.msra.mxu0 %v2441
    %3370 = vmatprep.subr.bf16.mxu0 %v2446
    %3371 = vmatpush1.bf16.msra.mxu0 %v2445
    %3372 = vmatprep.mubr.bf16.mxu0 %v591
    %3373 = vmatmul.mubr.bf16.gmra.mrb[0].mxu0 %v589
    %v3374 = vpop.f32.mrb[0].mxu0
    %v3375 = vadd.f32 %v3334, %v3374
    %v3376 = vpop.f32.mrb[0].mxu0
    %v3377 = vadd.f32 %v3336, %v3376
    %v3378 = vpop.f32.mrb[0].mxu0
    %v3379 = vpop.f32.mrb[0].mxu0
    %3380 = vdwg.mxu0
    %3381 = vmatprep.subr.bf16.mxu0 %v2450
    %3382 = vmatpush1.bf16.msra.mxu0 %v2449
    %3383 = vmatprep.subr.bf16.mxu0 %v2454
    %3384 = vmatpush1.bf16.msra.mxu0 %v2453
    %3385 = vmatprep.subr.bf16.mxu0 %v2458
    %3386 = vmatpush1.bf16.msra.mxu0 %v2457
    %3387 = vmatprep.subr.bf16.mxu0 %v2462
    %3388 = vmatpush1.bf16.msra.mxu0 %v2461
    %3389 = vmatprep.subr.bf16.mxu0 %v2466
    %3390 = vmatpush1.bf16.msra.mxu0 %v2465
    %3391 = vmatprep.subr.bf16.mxu0 %v2470
    %3392 = vmatpush1.bf16.msra.mxu0 %v2469
    %3393 = vmatprep.subr.bf16.mxu0 %v2474
    %3394 = vmatpush1.bf16.msra.mxu0 %v2473
    %3395 = vmatprep.subr.bf16.mxu0 %v2478
    %3396 = vmatpush1.bf16.msra.mxu0 %v2477
    %3397 = vmatprep.subr.bf16.mxu0 %v2482
    %3398 = vmatpush1.bf16.msra.mxu0 %v2481
    %3399 = vmatprep.subr.bf16.mxu0 %v2486
    %3400 = vmatpush1.bf16.msra.mxu0 %v2485
    %3401 = vmatprep.subr.bf16.mxu0 %v2490
    %3402 = vmatpush1.bf16.msra.mxu0 %v2489
    %3403 = vmatprep.subr.bf16.mxu0 %v2494
    %3404 = vmatpush1.bf16.msra.mxu0 %v2493
    %3405 = vmatprep.subr.bf16.mxu0 %v2498
    %3406 = vmatpush1.bf16.msra.mxu0 %v2497
    %3407 = vmatprep.subr.bf16.mxu0 %v2502
    %3408 = vmatpush1.bf16.msra.mxu0 %v2501
    %3409 = vmatprep.subr.bf16.mxu0 %v2506
    %3410 = vmatpush1.bf16.msra.mxu0 %v2505
    %3411 = vmatprep.subr.bf16.mxu0 %v2510
    %3412 = vmatpush1.bf16.msra.mxu0 %v2509
    %3413 = vmatprep.mubr.bf16.mxu0 %v629
    %3414 = vmatmul.mubr.bf16.gmra.mrb[0].mxu0 %v615
    %v3415 = vpop.f32.mrb[0].mxu0
    %v3416 = vadd.f32 %v3375, %v3415
    %v3417 = vpop.f32.mrb[0].mxu0
    %v3418 = vadd.f32 %v3377, %v3417
    %v3419 = vpop.f32.mrb[0].mxu0
    %v3420 = vpop.f32.mrb[0].mxu0
    %3421 = vdwg.mxu0
    %3422 = vmatprep.subr.bf16.mxu0 %v2514
    %3423 = vmatpush1.bf16.msra.mxu0 %v2513
    %3424 = vmatprep.subr.bf16.mxu0 %v2518
    %3425 = vmatpush1.bf16.msra.mxu0 %v2517
    %3426 = vmatprep.subr.bf16.mxu0 %v2522
    %3427 = vmatpush1.bf16.msra.mxu0 %v2521
    %3428 = vmatprep.subr.bf16.mxu0 %v2526
    %3429 = vmatpush1.bf16.msra.mxu0 %v2525
    %3430 = vmatprep.subr.bf16.mxu0 %v2530
    %3431 = vmatpush1.bf16.msra.mxu0 %v2529
    %3432 = vmatprep.subr.bf16.mxu0 %v2534
    %3433 = vmatpush1.bf16.msra.mxu0 %v2533
    %3434 = vmatprep.subr.bf16.mxu0 %v2538
    %3435 = vmatpush1.bf16.msra.mxu0 %v2537
    %3436 = vmatprep.subr.bf16.mxu0 %v2542
    %3437 = vmatpush1.bf16.msra.mxu0 %v2541
    %3438 = vmatprep.subr.bf16.mxu0 %v2546
    %3439 = vmatpush1.bf16.msra.mxu0 %v2545
    %3440 = vmatprep.subr.bf16.mxu0 %v2550
    %3441 = vmatpush1.bf16.msra.mxu0 %v2549
    %3442 = vmatprep.subr.bf16.mxu0 %v2554
    %3443 = vmatpush1.bf16.msra.mxu0 %v2553
    %3444 = vmatprep.subr.bf16.mxu0 %v2558
    %3445 = vmatpush1.bf16.msra.mxu0 %v2557
    %3446 = vmatprep.subr.bf16.mxu0 %v2562
    %3447 = vmatpush1.bf16.msra.mxu0 %v2561
    %3448 = vmatprep.subr.bf16.mxu0 %v2566
    %3449 = vmatpush1.bf16.msra.mxu0 %v2565
    %3450 = vmatprep.subr.bf16.mxu0 %v2570
    %3451 = vmatpush1.bf16.msra.mxu0 %v2569
    %3452 = vmatprep.subr.bf16.mxu0 %v2574
    %3453 = vmatpush1.bf16.msra.mxu0 %v2573
    %3454 = vmatprep.mubr.bf16.mxu0 %v639
    %3455 = vmatmul.mubr.bf16.gmra.mrb[0].mxu0 %v637
    %v3456 = vpop.f32.mrb[0].mxu0
    %v3457 = vadd.f32 %v3416, %v3456
    %v3458 = vpop.f32.mrb[0].mxu0
    %v3459 = vadd.f32 %v3418, %v3458
    %v3460 = vpop.f32.mrb[0].mxu0
    %v3461 = vpop.f32.mrb[0].mxu0
    %3462 = vdwg.mxu0
    %3463 = vmatprep.subr.bf16.mxu0 %v2578
    %3464 = vmatpush1.bf16.msra.mxu0 %v2577
    %3465 = vmatprep.subr.bf16.mxu0 %v2582
    %3466 = vmatpush1.bf16.msra.mxu0 %v2581
    %3467 = vmatprep.subr.bf16.mxu0 %v2586
    %3468 = vmatpush1.bf16.msra.mxu0 %v2585
    %3469 = vmatprep.subr.bf16.mxu0 %v2590
    %3470 = vmatpush1.bf16.msra.mxu0 %v2589
    %3471 = vmatprep.subr.bf16.mxu0 %v2594
    %3472 = vmatpush1.bf16.msra.mxu0 %v2593
    %3473 = vmatprep.subr.bf16.mxu0 %v2598
    %3474 = vmatpush1.bf16.msra.mxu0 %v2597
    %3475 = vmatprep.subr.bf16.mxu0 %v2602
    %3476 = vmatpush1.bf16.msra.mxu0 %v2601
    %3477 = vmatprep.subr.bf16.mxu0 %v2606
    %3478 = vmatpush1.bf16.msra.mxu0 %v2605
    %3479 = vmatprep.subr.bf16.mxu0 %v2610
    %3480 = vmatpush1.bf16.msra.mxu0 %v2609
    %3481 = vmatprep.subr.bf16.mxu0 %v2614
    %3482 = vmatpush1.bf16.msra.mxu0 %v2613
    %3483 = vmatprep.subr.bf16.mxu0 %v2618
    %3484 = vmatpush1.bf16.msra.mxu0 %v2617
    %3485 = vmatprep.subr.bf16.mxu0 %v2622
    %3486 = vmatpush1.bf16.msra.mxu0 %v2621
    %3487 = vmatprep.subr.bf16.mxu0 %v2626
    %3488 = vmatpush1.bf16.msra.mxu0 %v2625
    %3489 = vmatprep.subr.bf16.mxu0 %v2630
    %3490 = vmatpush1.bf16.msra.mxu0 %v2629
    %3491 = vmatprep.subr.bf16.mxu0 %v2634
    %3492 = vmatpush1.bf16.msra.mxu0 %v2633
    %3493 = vmatprep.subr.bf16.mxu0 %v2638
    %3494 = vmatpush1.bf16.msra.mxu0 %v2637
    %3495 = vmatprep.mubr.bf16.mxu0 %v636
    %3496 = vmatmul.mubr.bf16.gmra.mrb[0].mxu0 %v622
    %v3497 = vpop.f32.mrb[0].mxu0
    %v3498 = vadd.f32 %v3457, %v3497
    %v3499 = vpop.f32.mrb[0].mxu0
    %v3500 = vadd.f32 %v3459, %v3499
    %v3501 = vpop.f32.mrb[0].mxu0
    %v3502 = vpop.f32.mrb[0].mxu0
    %3503 = vdwg.mxu0
    %3504 = vmatprep.subr.bf16.mxu0 %v2642
    %3505 = vmatpush1.bf16.msra.mxu0 %v2641
    %3506 = vmatprep.subr.bf16.mxu0 %v2646
    %3507 = vmatpush1.bf16.msra.mxu0 %v2645
    %3508 = vmatprep.subr.bf16.mxu0 %v2650
    %3509 = vmatpush1.bf16.msra.mxu0 %v2649
    %3510 = vmatprep.subr.bf16.mxu0 %v2654
    %3511 = vmatpush1.bf16.msra.mxu0 %v2653
    %3512 = vmatprep.subr.bf16.mxu0 %v2658
    %3513 = vmatpush1.bf16.msra.mxu0 %v2657
    %3514 = vmatprep.subr.bf16.mxu0 %v2662
    %3515 = vmatpush1.bf16.msra.mxu0 %v2661
    %3516 = vmatprep.subr.bf16.mxu0 %v2666
    %3517 = vmatpush1.bf16.msra.mxu0 %v2665
    %3518 = vmatprep.subr.bf16.mxu0 %v2670
    %3519 = vmatpush1.bf16.msra.mxu0 %v2669
    %3520 = vmatprep.subr.bf16.mxu0 %v2674
    %3521 = vmatpush1.bf16.msra.mxu0 %v2673
    %3522 = vmatprep.subr.bf16.mxu0 %v2678
    %3523 = vmatpush1.bf16.msra.mxu0 %v2677
    %3524 = vmatprep.subr.bf16.mxu0 %v2682
    %3525 = vmatpush1.bf16.msra.mxu0 %v2681
    %3526 = vmatprep.subr.bf16.mxu0 %v2686
    %3527 = vmatpush1.bf16.msra.mxu0 %v2685
    %3528 = vmatprep.subr.bf16.mxu0 %v2690
    %3529 = vmatpush1.bf16.msra.mxu0 %v2689
    %3530 = vmatprep.subr.bf16.mxu0 %v2694
    %3531 = vmatpush1.bf16.msra.mxu0 %v2693
    %3532 = vmatprep.subr.bf16.mxu0 %v2698
    %3533 = vmatpush1.bf16.msra.mxu0 %v2697
    %3534 = vmatprep.subr.bf16.mxu0 %v2702
    %3535 = vmatpush1.bf16.msra.mxu0 %v2701
    %3536 = vmatprep.mubr.bf16.mxu0 %v640
    %3537 = vmatmul.mubr.bf16.gmra.mrb[0].mxu0 %v638
    %v3538 = vpop.f32.mrb[0].mxu0
    %v3539 = vadd.f32 %v3498, %v3538
    %v3540 = vpop.f32.mrb[0].mxu0
    %v3541 = vadd.f32 %v3500, %v3540
    %v3542 = vpop.f32.mrb[0].mxu0
    %v3543 = vpop.f32.mrb[0].mxu0
    %3544 = vdwg.mxu0
    %3545 = vmatprep.subr.bf16.mxu0 %v2196
    %3546 = vmatpush1.bf16.msra.mxu0 %v2195
    %3547 = vmatprep.subr.bf16.mxu0 %v2200
    %3548 = vmatpush1.bf16.msra.mxu0 %v2199
    %3549 = vmatprep.subr.bf16.mxu0 %v2204
    %3550 = vmatpush1.bf16.msra.mxu0 %v2203
    %3551 = vmatprep.subr.bf16.mxu0 %v2208
    %3552 = vmatpush1.bf16.msra.mxu0 %v2207
    %3553 = vmatprep.subr.bf16.mxu0 %v2212
    %3554 = vmatpush1.bf16.msra.mxu0 %v2211
    %3555 = vmatprep.subr.bf16.mxu0 %v2216
    %3556 = vmatpush1.bf16.msra.mxu0 %v2215
    %3557 = vmatprep.subr.bf16.mxu0 %v2220
    %3558 = vmatpush1.bf16.msra.mxu0 %v2219
    %3559 = vmatprep.subr.bf16.mxu0 %v2224
    %3560 = vmatpush1.bf16.msra.mxu0 %v2223
    %3561 = vmatprep.subr.bf16.mxu0 %v2228
    %3562 = vmatpush1.bf16.msra.mxu0 %v2227
    %3563 = vmatprep.subr.bf16.mxu0 %v2232
    %3564 = vmatpush1.bf16.msra.mxu0 %v2231
    %3565 = vmatprep.subr.bf16.mxu0 %v2236
    %3566 = vmatpush1.bf16.msra.mxu0 %v2235
    %3567 = vmatprep.subr.bf16.mxu0 %v2240
    %3568 = vmatpush1.bf16.msra.mxu0 %v2239
    %3569 = vmatprep.subr.bf16.mxu0 %v2244
    %3570 = vmatpush1.bf16.msra.mxu0 %v2243
    %3571 = vmatprep.subr.bf16.mxu0 %v2248
    %3572 = vmatpush1.bf16.msra.mxu0 %v2247
    %3573 = vmatprep.subr.bf16.mxu0 %v2252
    %3574 = vmatpush1.bf16.msra.mxu0 %v2251
    %3575 = vmatprep.subr.bf16.mxu0 %v2256
    %3576 = vmatpush1.bf16.msra.mxu0 %v2255
    %3577 = vmatprep.mubr.bf16.mxu0 %v580
    %3578 = vmatmul.mubr.bf16.gmra.mrb[0].mxu0 %v566
    %v3579 = vpop.f32.mrb[0].mxu0
    %v3580 = vadd.f32 0.0, %v3579
    %v3581 = vpop.f32.mrb[0].mxu0
    %v3582 = vadd.f32 0.0, %v3581
    %v3583 = vpop.f32.mrb[0].mxu0
    %v3584 = vpop.f32.mrb[0].mxu0
    %3585 = vdwg.mxu0
    %3586 = vmatprep.subr.bf16.mxu0 %v2260
    %3587 = vmatpush1.bf16.msra.mxu0 %v2259
    %3588 = vmatprep.subr.bf16.mxu0 %v2264
    %3589 = vmatpush1.bf16.msra.mxu0 %v2263
    %3590 = vmatprep.subr.bf16.mxu0 %v2268
    %3591 = vmatpush1.bf16.msra.mxu0 %v2267
    %3592 = vmatprep.subr.bf16.mxu0 %v2272
    %3593 = vmatpush1.bf16.msra.mxu0 %v2271
    %3594 = vmatprep.subr.bf16.mxu0 %v2276
    %3595 = vmatpush1.bf16.msra.mxu0 %v2275
    %3596 = vmatprep.subr.bf16.mxu0 %v2280
    %3597 = vmatpush1.bf16.msra.mxu0 %v2279
    %3598 = vmatprep.subr.bf16.mxu0 %v2284
    %3599 = vmatpush1.bf16.msra.mxu0 %v2283
    %3600 = vmatprep.subr.bf16.mxu0 %v2288
    %3601 = vmatpush1.bf16.msra.mxu0 %v2287
    %3602 = vmatprep.subr.bf16.mxu0 %v2292
    %3603 = vmatpush1.bf16.msra.mxu0 %v2291
    %3604 = vmatprep.subr.bf16.mxu0 %v2296
    %3605 = vmatpush1.bf16.msra.mxu0 %v2295
    %3606 = vmatprep.subr.bf16.mxu0 %v2300
    %3607 = vmatpush1.bf16.msra.mxu0 %v2299
    %3608 = vmatprep.subr.bf16.mxu0 %v2304
    %3609 = vmatpush1.bf16.msra.mxu0 %v2303
    %3610 = vmatprep.subr.bf16.mxu0 %v2308
    %3611 = vmatpush1.bf16.msra.mxu0 %v2307
    %3612 = vmatprep.subr.bf16.mxu0 %v2312
    %3613 = vmatpush1.bf16.msra.mxu0 %v2311
    %3614 = vmatprep.subr.bf16.mxu0 %v2316
    %3615 = vmatpush1.bf16.msra.mxu0 %v2315
    %3616 = vmatprep.subr.bf16.mxu0 %v2320
    %3617 = vmatpush1.bf16.msra.mxu0 %v2319
    %3618 = vmatprep.mubr.bf16.mxu0 %v590
    %3619 = vmatmul.mubr.bf16.gmra.mrb[0].mxu0 %v588
    %v3620 = vpop.f32.mrb[0].mxu0
    %v3621 = vadd.f32 %v3580, %v3620
    %v3622 = vpop.f32.mrb[0].mxu0
    %v3623 = vadd.f32 %v3582, %v3622
    %v3624 = vpop.f32.mrb[0].mxu0
    %v3625 = vpop.f32.mrb[0].mxu0
    %3626 = vdwg.mxu0
    %3627 = vmatprep.subr.bf16.mxu0 %v2324
    %3628 = vmatpush1.bf16.msra.mxu0 %v2323
    %3629 = vmatprep.subr.bf16.mxu0 %v2328
    %3630 = vmatpush1.bf16.msra.mxu0 %v2327
    %3631 = vmatprep.subr.bf16.mxu0 %v2332
    %3632 = vmatpush1.bf16.msra.mxu0 %v2331
    %3633 = vmatprep.subr.bf16.mxu0 %v2336
    %3634 = vmatpush1.bf16.msra.mxu0 %v2335
    %3635 = vmatprep.subr.bf16.mxu0 %v2340
    %3636 = vmatpush1.bf16.msra.mxu0 %v2339
    %3637 = vmatprep.subr.bf16.mxu0 %v2344
    %3638 = vmatpush1.bf16.msra.mxu0 %v2343
    %3639 = vmatprep.subr.bf16.mxu0 %v2348
    %3640 = vmatpush1.bf16.msra.mxu0 %v2347
    %3641 = vmatprep.subr.bf16.mxu0 %v2352
    %3642 = vmatpush1.bf16.msra.mxu0 %v2351
    %3643 = vmatprep.subr.bf16.mxu0 %v2356
    %3644 = vmatpush1.bf16.msra.mxu0 %v2355
    %3645 = vmatprep.subr.bf16.mxu0 %v2360
    %3646 = vmatpush1.bf16.msra.mxu0 %v2359
    %3647 = vmatprep.subr.bf16.mxu0 %v2364
    %3648 = vmatpush1.bf16.msra.mxu0 %v2363
    %3649 = vmatprep.subr.bf16.mxu0 %v2368
    %3650 = vmatpush1.bf16.msra.mxu0 %v2367
    %3651 = vmatprep.subr.bf16.mxu0 %v2372
    %3652 = vmatpush1.bf16.msra.mxu0 %v2371
    %3653 = vmatprep.subr.bf16.mxu0 %v2376
    %3654 = vmatpush1.bf16.msra.mxu0 %v2375
    %3655 = vmatprep.subr.bf16.mxu0 %v2380
    %3656 = vmatpush1.bf16.msra.mxu0 %v2379
    %3657 = vmatprep.subr.bf16.mxu0 %v2384
    %3658 = vmatpush1.bf16.msra.mxu0 %v2383
    %3659 = vmatprep.mubr.bf16.mxu0 %v587
    %3660 = vmatmul.mubr.bf16.gmra.mrb[0].mxu0 %v573
    %v3661 = vpop.f32.mrb[0].mxu0
    %v3662 = vadd.f32 %v3621, %v3661
    %v3663 = vpop.f32.mrb[0].mxu0
    %v3664 = vadd.f32 %v3623, %v3663
    %v3665 = vpop.f32.mrb[0].mxu0
    %v3666 = vpop.f32.mrb[0].mxu0
    %3667 = vdwg.mxu0
    %3668 = vmatprep.subr.bf16.mxu0 %v2388
    %3669 = vmatpush1.bf16.msra.mxu0 %v2387
    %3670 = vmatprep.subr.bf16.mxu0 %v2392
    %3671 = vmatpush1.bf16.msra.mxu0 %v2391
    %3672 = vmatprep.subr.bf16.mxu0 %v2396
    %3673 = vmatpush1.bf16.msra.mxu0 %v2395
    %3674 = vmatprep.subr.bf16.mxu0 %v2400
    %3675 = vmatpush1.bf16.msra.mxu0 %v2399
    %3676 = vmatprep.subr.bf16.mxu0 %v2404
    %3677 = vmatpush1.bf16.msra.mxu0 %v2403
    %3678 = vmatprep.subr.bf16.mxu0 %v2408
    %3679 = vmatpush1.bf16.msra.mxu0 %v2407
    %3680 = vmatprep.subr.bf16.mxu0 %v2412
    %3681 = vmatpush1.bf16.msra.mxu0 %v2411
    %3682 = vmatprep.subr.bf16.mxu0 %v2416
    %3683 = vmatpush1.bf16.msra.mxu0 %v2415
    %3684 = vmatprep.subr.bf16.mxu0 %v2420
    %3685 = vmatpush1.bf16.msra.mxu0 %v2419
    %3686 = vmatprep.subr.bf16.mxu0 %v2424
    %3687 = vmatpush1.bf16.msra.mxu0 %v2423
    %3688 = vmatprep.subr.bf16.mxu0 %v2428
    %3689 = vmatpush1.bf16.msra.mxu0 %v2427
    %3690 = vmatprep.subr.bf16.mxu0 %v2432
    %3691 = vmatpush1.bf16.msra.mxu0 %v2431
    %3692 = vmatprep.subr.bf16.mxu0 %v2436
    %3693 = vmatpush1.bf16.msra.mxu0 %v2435
    %3694 = vmatprep.subr.bf16.mxu0 %v2440
    %3695 = vmatpush1.bf16.msra.mxu0 %v2439
    %3696 = vmatprep.subr.bf16.mxu0 %v2444
    %3697 = vmatpush1.bf16.msra.mxu0 %v2443
    %3698 = vmatprep.subr.bf16.mxu0 %v2448
    %3699 = vmatpush1.bf16.msra.mxu0 %v2447
    %3700 = vmatprep.mubr.bf16.mxu0 %v591
    %3701 = vmatmul.mubr.bf16.gmra.mrb[0].mxu0 %v589
    %v3702 = vpop.f32.mrb[0].mxu0
    %v3703 = vadd.f32 %v3662, %v3702
    %v3704 = vpop.f32.mrb[0].mxu0
    %v3705 = vadd.f32 %v3664, %v3704
    %v3706 = vpop.f32.mrb[0].mxu0
    %v3707 = vpop.f32.mrb[0].mxu0
    %3708 = vdwg.mxu0
    %3709 = vmatprep.subr.bf16.mxu0 %v2452
    %3710 = vmatpush1.bf16.msra.mxu0 %v2451
    %3711 = vmatprep.subr.bf16.mxu0 %v2456
    %3712 = vmatpush1.bf16.msra.mxu0 %v2455
    %3713 = vmatprep.subr.bf16.mxu0 %v2460
    %3714 = vmatpush1.bf16.msra.mxu0 %v2459
    %3715 = vmatprep.subr.bf16.mxu0 %v2464
    %3716 = vmatpush1.bf16.msra.mxu0 %v2463
    %3717 = vmatprep.subr.bf16.mxu0 %v2468
    %3718 = vmatpush1.bf16.msra.mxu0 %v2467
    %3719 = vmatprep.subr.bf16.mxu0 %v2472
    %3720 = vmatpush1.bf16.msra.mxu0 %v2471
    %3721 = vmatprep.subr.bf16.mxu0 %v2476
    %3722 = vmatpush1.bf16.msra.mxu0 %v2475
    %3723 = vmatprep.subr.bf16.mxu0 %v2480
    %3724 = vmatpush1.bf16.msra.mxu0 %v2479
    %3725 = vmatprep.subr.bf16.mxu0 %v2484
    %3726 = vmatpush1.bf16.msra.mxu0 %v2483
    %3727 = vmatprep.subr.bf16.mxu0 %v2488
    %3728 = vmatpush1.bf16.msra.mxu0 %v2487
    %3729 = vmatprep.subr.bf16.mxu0 %v2492
    %3730 = vmatpush1.bf16.msra.mxu0 %v2491
    %3731 = vmatprep.subr.bf16.mxu0 %v2496
    %3732 = vmatpush1.bf16.msra.mxu0 %v2495
    %3733 = vmatprep.subr.bf16.mxu0 %v2500
    %3734 = vmatpush1.bf16.msra.mxu0 %v2499
    %3735 = vmatprep.subr.bf16.mxu0 %v2504
    %3736 = vmatpush1.bf16.msra.mxu0 %v2503
    %3737 = vmatprep.subr.bf16.mxu0 %v2508
    %3738 = vmatpush1.bf16.msra.mxu0 %v2507
    %3739 = vmatprep.subr.bf16.mxu0 %v2512
    %3740 = vmatpush1.bf16.msra.mxu0 %v2511
    %3741 = vmatprep.mubr.bf16.mxu0 %v629
    %3742 = vmatmul.mubr.bf16.gmra.mrb[0].mxu0 %v615
    %v3743 = vpop.f32.mrb[0].mxu0
    %v3744 = vadd.f32 %v3703, %v3743
    %v3745 = vpop.f32.mrb[0].mxu0
    %v3746 = vadd.f32 %v3705, %v3745
    %v3747 = vpop.f32.mrb[0].mxu0
    %v3748 = vpop.f32.mrb[0].mxu0
    %3749 = vdwg.mxu0
    %3750 = vmatprep.subr.bf16.mxu0 %v2516
    %3751 = vmatpush1.bf16.msra.mxu0 %v2515
    %3752 = vmatprep.subr.bf16.mxu0 %v2520
    %3753 = vmatpush1.bf16.msra.mxu0 %v2519
    %3754 = vmatprep.subr.bf16.mxu0 %v2524
    %3755 = vmatpush1.bf16.msra.mxu0 %v2523
    %3756 = vmatprep.subr.bf16.mxu0 %v2528
    %3757 = vmatpush1.bf16.msra.mxu0 %v2527
    %3758 = vmatprep.subr.bf16.mxu0 %v2532
    %3759 = vmatpush1.bf16.msra.mxu0 %v2531
    %3760 = vmatprep.subr.bf16.mxu0 %v2536
    %3761 = vmatpush1.bf16.msra.mxu0 %v2535
    %3762 = vmatprep.subr.bf16.mxu0 %v2540
    %3763 = vmatpush1.bf16.msra.mxu0 %v2539
    %3764 = vmatprep.subr.bf16.mxu0 %v2544
    %3765 = vmatpush1.bf16.msra.mxu0 %v2543
    %3766 = vmatprep.subr.bf16.mxu0 %v2548
    %3767 = vmatpush1.bf16.msra.mxu0 %v2547
    %3768 = vmatprep.subr.bf16.mxu0 %v2552
    %3769 = vmatpush1.bf16.msra.mxu0 %v2551
    %3770 = vmatprep.subr.bf16.mxu0 %v2556
    %3771 = vmatpush1.bf16.msra.mxu0 %v2555
    %3772 = vmatprep.subr.bf16.mxu0 %v2560
    %3773 = vmatpush1.bf16.msra.mxu0 %v2559
    %3774 = vmatprep.subr.bf16.mxu0 %v2564
    %3775 = vmatpush1.bf16.msra.mxu0 %v2563
    %3776 = vmatprep.subr.bf16.mxu0 %v2568
    %3777 = vmatpush1.bf16.msra.mxu0 %v2567
    %3778 = vmatprep.subr.bf16.mxu0 %v2572
    %3779 = vmatpush1.bf16.msra.mxu0 %v2571
    %3780 = vmatprep.subr.bf16.mxu0 %v2576
    %3781 = vmatpush1.bf16.msra.mxu0 %v2575
    %3782 = vmatprep.mubr.bf16.mxu0 %v639
    %3783 = vmatmul.mubr.bf16.gmra.mrb[0].mxu0 %v637
    %v3784 = vpop.f32.mrb[0].mxu0
    %v3785 = vadd.f32 %v3744, %v3784
    %v3786 = vpop.f32.mrb[0].mxu0
    %v3787 = vadd.f32 %v3746, %v3786
    %v3788 = vpop.f32.mrb[0].mxu0
    %v3789 = vpop.f32.mrb[0].mxu0
    %3790 = vdwg.mxu0
    %3791 = vmatprep.subr.bf16.mxu0 %v2580
    %3792 = vmatpush1.bf16.msra.mxu0 %v2579
    %3793 = vmatprep.subr.bf16.mxu0 %v2584
    %3794 = vmatpush1.bf16.msra.mxu0 %v2583
    %3795 = vmatprep.subr.bf16.mxu0 %v2588
    %3796 = vmatpush1.bf16.msra.mxu0 %v2587
    %3797 = vmatprep.subr.bf16.mxu0 %v2592
    %3798 = vmatpush1.bf16.msra.mxu0 %v2591
    %3799 = vmatprep.subr.bf16.mxu0 %v2596
    %3800 = vmatpush1.bf16.msra.mxu0 %v2595
    %3801 = vmatprep.subr.bf16.mxu0 %v2600
    %3802 = vmatpush1.bf16.msra.mxu0 %v2599
    %3803 = vmatprep.subr.bf16.mxu0 %v2604
    %3804 = vmatpush1.bf16.msra.mxu0 %v2603
    %3805 = vmatprep.subr.bf16.mxu0 %v2608
    %3806 = vmatpush1.bf16.msra.mxu0 %v2607
    %3807 = vmatprep.subr.bf16.mxu0 %v2612
    %3808 = vmatpush1.bf16.msra.mxu0 %v2611
    %3809 = vmatprep.subr.bf16.mxu0 %v2616
    %3810 = vmatpush1.bf16.msra.mxu0 %v2615
    %3811 = vmatprep.subr.bf16.mxu0 %v2620
    %3812 = vmatpush1.bf16.msra.mxu0 %v2619
    %3813 = vmatprep.subr.bf16.mxu0 %v2624
    %3814 = vmatpush1.bf16.msra.mxu0 %v2623
    %3815 = vmatprep.subr.bf16.mxu0 %v2628
    %3816 = vmatpush1.bf16.msra.mxu0 %v2627
    %3817 = vmatprep.subr.bf16.mxu0 %v2632
    %3818 = vmatpush1.bf16.msra.mxu0 %v2631
    %3819 = vmatprep.subr.bf16.mxu0 %v2636
    %3820 = vmatpush1.bf16.msra.mxu0 %v2635
    %3821 = vmatprep.subr.bf16.mxu0 %v2640
    %3822 = vmatpush1.bf16.msra.mxu0 %v2639
    %3823 = vmatprep.mubr.bf16.mxu0 %v636
    %3824 = vmatmul.mubr.bf16.gmra.mrb[0].mxu0 %v622
    %v3825 = vpop.f32.mrb[0].mxu0
    %v3826 = vadd.f32 %v3785, %v3825
    %v3827 = vpop.f32.mrb[0].mxu0
    %v3828 = vadd.f32 %v3787, %v3827
    %v3829 = vpop.f32.mrb[0].mxu0
    %v3830 = vpop.f32.mrb[0].mxu0
    %3831 = vdwg.mxu0
    %3832 = vmatprep.subr.bf16.mxu0 %v2644
    %3833 = vmatpush1.bf16.msra.mxu0 %v2643
    %3834 = vmatprep.subr.bf16.mxu0 %v2648
    %3835 = vmatpush1.bf16.msra.mxu0 %v2647
    %3836 = vmatprep.subr.bf16.mxu0 %v2652
    %3837 = vmatpush1.bf16.msra.mxu0 %v2651
    %3838 = vmatprep.subr.bf16.mxu0 %v2656
    %3839 = vmatpush1.bf16.msra.mxu0 %v2655
    %3840 = vmatprep.subr.bf16.mxu0 %v2660
    %3841 = vmatpush1.bf16.msra.mxu0 %v2659
    %3842 = vmatprep.subr.bf16.mxu0 %v2664
    %3843 = vmatpush1.bf16.msra.mxu0 %v2663
    %3844 = vmatprep.subr.bf16.mxu0 %v2668
    %3845 = vmatpush1.bf16.msra.mxu0 %v2667
    %3846 = vmatprep.subr.bf16.mxu0 %v2672
    %3847 = vmatpush1.bf16.msra.mxu0 %v2671
    %3848 = vmatprep.subr.bf16.mxu0 %v2676
    %3849 = vmatpush1.bf16.msra.mxu0 %v2675
    %3850 = vmatprep.subr.bf16.mxu0 %v2680
    %3851 = vmatpush1.bf16.msra.mxu0 %v2679
    %3852 = vmatprep.subr.bf16.mxu0 %v2684
    %3853 = vmatpush1.bf16.msra.mxu0 %v2683
    %3854 = vmatprep.subr.bf16.mxu0 %v2688
    %3855 = vmatpush1.bf16.msra.mxu0 %v2687
    %3856 = vmatprep.subr.bf16.mxu0 %v2692
    %3857 = vmatpush1.bf16.msra.mxu0 %v2691
    %3858 = vmatprep.subr.bf16.mxu0 %v2696
    %3859 = vmatpush1.bf16.msra.mxu0 %v2695
    %3860 = vmatprep.subr.bf16.mxu0 %v2700
    %3861 = vmatpush1.bf16.msra.mxu0 %v2699
    %3862 = vmatprep.subr.bf16.mxu0 %v2704
    %3863 = vmatpush1.bf16.msra.mxu0 %v2703
    %3864 = vmatprep.mubr.bf16.mxu0 %v640
    %3865 = vmatmul.mubr.bf16.gmra.mrb[0].mxu0 %v638
    %v3866 = vpop.f32.mrb[0].mxu0
    %v3867 = vadd.f32 %v3826, %v3866
    %v3868 = vpop.f32.mrb[0].mxu0
    %v3869 = vadd.f32 %v3828, %v3868
    %v3870 = vpop.f32.mrb[0].mxu0
    %v3871 = vpop.f32.mrb[0].mxu0
    %3872 = vdwg.mxu0
    %v3877 = vcombine.low %v3539, %v3541
    %v3878 = vcombine.low %v3867, %v3869
    %v3880 = vunpack.c.l.s4 1983009808
    %v3881 = vunpack.c.0.s8 %v3880
    %v3882 = vlaneseq
    %v3883 = vshrl.u32 %v3882, 7
    %v3884 = vsub.s32 %v3881, %v3883
    %v3885 = vrot.slane %v3877, %v3884
    %v3887 = vunpack.c.l.s4 1983009808
    %v3888 = vunpack.c.0.s8 %v3887
    %v3889 = vlaneseq
    %v3890 = vshrl.u32 %v3889, 7
    %v3891 = vsub.s32 %v3888, %v3890
    %v3892 = vrot.slane %v3878, %v3891
    %v3893 = vcombine.low %v3885, %v3892
    %v3895 = vadd.f32 %v26, %v3893
    %3896 = vst [vmem:[#allocation2] sm:$0xff] %v3895
    // Predicated region
    $region26: #{simple_cnn_forward.13} parent=1 // pred_check
      %p3897 = pneg %p21
    $region27: #{simple_cnn_forward.13} parent=1 // pred_check_branch
      %3899 = sbr.rel (%p3897) target = $region29
    $region28: #{simple_cnn_forward.13} parent=1 // pred_region
      %v3900 = vld [vmem:[#allocation2] sm:$0xff]
      %v3901 = vld [vmem:[%s2] sm:$0xf]
      %v3903 = vlaneseq
      %v3904 = vshrl.u32 %v3903, 7
      %v3905 = vsub.s32 0, %v3904
      %v3906 = vrot.slane %v3901, %v3905
      %v3907 = vlaneseq
      %v3908 = vshrl.u32 %v3907, 7
      %v3909 = vsub.s32 1, %v3908
      %v3910 = vrot.slane %v3901, %v3909
      %v3911 = vlaneseq
      %v3912 = vshrl.u32 %v3911, 7
      %v3913 = vsub.s32 2, %v3912
      %v3914 = vrot.slane %v3901, %v3913
      %v3915 = vlaneseq
      %v3916 = vshrl.u32 %v3915, 7
      %v3917 = vsub.s32 3, %v3916
      %v3918 = vrot.slane %v3901, %v3917
      %v3919 = vcombine.low %v3906, %v3910
      %v3920 = vcombine.low %v3914, %v3918
      %v3922 = vunpack.c.l.s4 1983009808
      %v3923 = vunpack.c.0.s8 %v3922
      %v3924 = vlaneseq
      %v3925 = vshrl.u32 %v3924, 7
      %v3926 = vsub.s32 %v3923, %v3925
      %v3927 = vrot.slane %v3919, %v3926
      %v3929 = vunpack.c.l.s4 1983009808
      %v3930 = vunpack.c.0.s8 %v3929
      %v3931 = vlaneseq
      %v3932 = vshrl.u32 %v3931, 7
      %v3933 = vsub.s32 %v3930, %v3932
      %v3934 = vrot.slane %v3920, %v3933
      %v3935 = vcombine.low %v3927, %v3934
      %v3937 = vadd.f32 %v3900, %v3935
      %v3938 = vmax.f32 %v3937, 0.0
      %v3939 = vld [vmem:[%s3] sm:$0xff]
      %v3940 = vld [vmem:[%s3 + $0x8] sm:$0xff]
      %v3941 = vld [vmem:[%s3 + $0x10] sm:$0xff]
      %v3942 = vld [vmem:[%s3 + $0x18] sm:$0xff]
      %v3943 = vld [vmem:[%s3 + $0x20] sm:$0xff]
      %v3944 = vld [vmem:[%s3 + $0x28] sm:$0xff]
      %v3945 = vld [vmem:[%s3 + $0x30] sm:$0xff]
      %v3946 = vld [vmem:[%s3 + $0x38] sm:$0xff]
      %v3947 = vld [vmem:[%s3 + $0x40] sm:$0xff]
      %v3948 = vld [vmem:[%s3 + $0x48] sm:$0xff]
      %v3949 = vld [vmem:[%s3 + $0x50] sm:$0xff]
      %v3950 = vld [vmem:[%s3 + $0x58] sm:$0xff]
      %v3951 = vld [vmem:[%s3 + $0x60] sm:$0xff]
      %v3952 = vld [vmem:[%s3 + $0x68] sm:$0xff]
      %v3953 = vld [vmem:[%s3 + $0x70] sm:$0xff]
      %v3954 = vld [vmem:[%s3 + $0x78] sm:$0xff]
      %v3955 = vld [vmem:[%s3 + $0x80] sm:$0xff]
      %v3956 = vld [vmem:[%s3 + $0x88] sm:$0xff]
      %v3957 = vld [vmem:[%s3 + $0x90] sm:$0xff]
      %v3958 = vld [vmem:[%s3 + $0x98] sm:$0xff]
      %v3959 = vld [vmem:[%s3 + $0xa0] sm:$0xff]
      %v3960 = vld [vmem:[%s3 + $0xa8] sm:$0xff]
      %v3961 = vld [vmem:[%s3 + $0xb0] sm:$0xff]
      %v3962 = vld [vmem:[%s3 + $0xb8] sm:$0xff]
      %v3963 = vld [vmem:[%s3 + $0xc0] sm:$0xff]
      %v3964 = vld [vmem:[%s3 + $0xc8] sm:$0xff]
      %v3965 = vld [vmem:[%s3 + $0xd0] sm:$0xff]
      %v3966 = vld [vmem:[%s3 + $0xd8] sm:$0xff]
      %v3967 = vld [vmem:[%s3 + $0xe0] sm:$0xff]
      %v3968 = vld [vmem:[%s3 + $0xe8] sm:$0xff]
      %v3969 = vld [vmem:[%s3 + $0xf0] sm:$0xff]
      %v3970 = vld [vmem:[%s3 + $0xf8] sm:$0xff]
      %v3971 = vld [vmem:[%s3 + $0x100] sm:$0xff]
      %v3972 = vld [vmem:[%s3 + $0x108] sm:$0xff]
      %v3973 = vld [vmem:[%s3 + $0x110] sm:$0xff]
      %v3974 = vld [vmem:[%s3 + $0x118] sm:$0xff]
      %v3975 = vld [vmem:[%s3 + $0x120] sm:$0xff]
      %v3976 = vld [vmem:[%s3 + $0x128] sm:$0xff]
      %v3977 = vld [vmem:[%s3 + $0x130] sm:$0xff]
      %v3978 = vld [vmem:[%s3 + $0x138] sm:$0xff]
      %v3979 = vld [vmem:[%s3 + $0x140] sm:$0xff]
      %v3980 = vld [vmem:[%s3 + $0x148] sm:$0xff]
      %v3981 = vld [vmem:[%s3 + $0x150] sm:$0xff]
      %v3982 = vld [vmem:[%s3 + $0x158] sm:$0xff]
      %v3983 = vld [vmem:[%s3 + $0x160] sm:$0xff]
      %v3984 = vld [vmem:[%s3 + $0x168] sm:$0xff]
      %v3985 = vld [vmem:[%s3 + $0x170] sm:$0xff]
      %v3986 = vld [vmem:[%s3 + $0x178] sm:$0xff]
      %v3987 = vld [vmem:[%s3 + $0x180] sm:$0xff]
      %v3988 = vld [vmem:[%s3 + $0x188] sm:$0xff]
      %v3989 = vld [vmem:[%s3 + $0x190] sm:$0xff]
      %v3990 = vld [vmem:[%s3 + $0x198] sm:$0xff]
      %v3991 = vld [vmem:[%s3 + $0x1a0] sm:$0xff]
      %v3992 = vld [vmem:[%s3 + $0x1a8] sm:$0xff]
      %v3993 = vld [vmem:[%s3 + $0x1b0] sm:$0xff]
      %v3994 = vld [vmem:[%s3 + $0x1b8] sm:$0xff]
      %v3995 = vld [vmem:[%s3 + $0x1c0] sm:$0xff]
      %v3996 = vld [vmem:[%s3 + $0x1c8] sm:$0xff]
      %v3997 = vld [vmem:[%s3 + $0x1d0] sm:$0xff]
      %v3998 = vld [vmem:[%s3 + $0x1d8] sm:$0xff]
      %v3999 = vld [vmem:[%s3 + $0x1e0] sm:$0xff]
      %v4000 = vld [vmem:[%s3 + $0x1e8] sm:$0xff]
      %v4001 = vld [vmem:[%s3 + $0x1f0] sm:$0xff]
      %v4002 = vld [vmem:[%s3 + $0x1f8] sm:$0xff]
      %v4003 = vld [vmem:[%s4] sm:$0x1]
      %v4005 = vlaneseq
      %v4006 = vshrl.u32 %v4005, 7
      %v4007 = vsub.s32 0, %v4006
      %v4008 = vrot.slane %v4003, %v4007
      %v4011 = vcombine.high %v3938, %v3938
      %v4013 = vunpack.c.l.s4 1983009808
      %v4014 = vunpack.c.0.s8 %v4013
      %v4015 = vlaneseq
      %v4016 = vshrl.u32 %v4015, 7
      %v4017 = vsub.s32 %v4014, %v4016
      %v4018 = vrot.slane %v3938, %v4017
      %v4020 = vunpack.c.l.s4 1983009808
      %v4021 = vunpack.c.0.s8 %v4020
      %v4022 = vlaneseq
      %v4023 = vshrl.u32 %v4022, 7
      %v4024 = vsub.s32 %v4021, %v4023
      %v4025 = vrot.slane %v4011, %v4024
      %v4026 = vcombine.high %v4018, %v4018
      %v4027 = vcombine.high %v4025, %v4025
      %4032 = vmatprep.subr.mxu0 0.0
      %4033 = vmatpush1.msra.mxu0 %v3939
      %4034 = vmatprep.subr.mxu0 0.0
      %4035 = vmatpush1.msra.mxu0 %v3940
      %4036 = vmatprep.subr.mxu0 0.0
      %4037 = vmatpush1.msra.mxu0 %v3941
      %4038 = vmatprep.subr.mxu0 0.0
      %4039 = vmatpush1.msra.mxu0 %v3942
      %4040 = vmatprep.subr.mxu0 0.0
      %4041 = vmatpush1.msra.mxu0 %v3943
      %4042 = vmatprep.subr.mxu0 0.0
      %4043 = vmatpush1.msra.mxu0 %v3944
      %4044 = vmatprep.subr.mxu0 0.0
      %4045 = vmatpush1.msra.mxu0 %v3945
      %4046 = vmatprep.subr.mxu0 0.0
      %4047 = vmatpush1.msra.mxu0 %v3946
      %4048 = vmatprep.subr.mxu0 0.0
      %4049 = vmatpush1.msra.mxu0 %v3947
      %4050 = vmatprep.subr.mxu0 0.0
      %4051 = vmatpush1.msra.mxu0 %v3948
      %4052 = vmatprep.subr.mxu0 0.0
      %4053 = vmatpush1.msra.mxu0 %v3949
      %4054 = vmatprep.subr.mxu0 0.0
      %4055 = vmatpush1.msra.mxu0 %v3950
      %4056 = vmatprep.subr.mxu0 0.0
      %4057 = vmatpush1.msra.mxu0 %v3951
      %4058 = vmatprep.subr.mxu0 0.0
      %4059 = vmatpush1.msra.mxu0 %v3952
      %4060 = vmatprep.subr.mxu0 0.0
      %4061 = vmatpush1.msra.mxu0 %v3953
      %4062 = vmatprep.subr.mxu0 0.0
      %4063 = vmatpush1.msra.mxu0 %v3954
      %4064 = vmatprep.subr.mxu0 0.0
      %4065 = vmatpush1.msra.mxu0 %v3955
      %4066 = vmatprep.subr.mxu0 0.0
      %4067 = vmatpush1.msra.mxu0 %v3956
      %4068 = vmatprep.subr.mxu0 0.0
      %4069 = vmatpush1.msra.mxu0 %v3957
      %4070 = vmatprep.subr.mxu0 0.0
      %4071 = vmatpush1.msra.mxu0 %v3958
      %4072 = vmatprep.subr.mxu0 0.0
      %4073 = vmatpush1.msra.mxu0 %v3959
      %4074 = vmatprep.subr.mxu0 0.0
      %4075 = vmatpush1.msra.mxu0 %v3960
      %4076 = vmatprep.subr.mxu0 0.0
      %4077 = vmatpush1.msra.mxu0 %v3961
      %4078 = vmatprep.subr.mxu0 0.0
      %4079 = vmatpush1.msra.mxu0 %v3962
      %4080 = vmatprep.subr.mxu0 0.0
      %4081 = vmatpush1.msra.mxu0 %v3963
      %4082 = vmatprep.subr.mxu0 0.0
      %4083 = vmatpush1.msra.mxu0 %v3964
      %4084 = vmatprep.subr.mxu0 0.0
      %4085 = vmatpush1.msra.mxu0 %v3965
      %4086 = vmatprep.subr.mxu0 0.0
      %4087 = vmatpush1.msra.mxu0 %v3966
      %4088 = vmatprep.subr.mxu0 0.0
      %4089 = vmatpush1.msra.mxu0 %v3967
      %4090 = vmatprep.subr.mxu0 0.0
      %4091 = vmatpush1.msra.mxu0 %v3968
      %4092 = vmatprep.subr.mxu0 0.0
      %4093 = vmatpush1.msra.mxu0 %v3969
      %4094 = vmatprep.subr.mxu0 0.0
      %4095 = vmatpush1.msra.mxu0 %v3970
      %4096 = vmatprep.mubr.f32.mxu0 %v4026
      %4097 = vmatmul.mubr.f32.gmra.mrb[0].mxu0 %v4018
      %v4098 = vpop.f32.mrb[0].mxu0
      %v4099 = vadd.f32 %v4008, %v4098
      %v4100 = vpop.f32.mrb[0].mxu0
      %4101 = vdwg.mxu0
      %4102 = vmatprep.subr.mxu0 0.0
      %4103 = vmatpush1.msra.mxu0 %v3971
      %4104 = vmatprep.subr.mxu0 0.0
      %4105 = vmatpush1.msra.mxu0 %v3972
      %4106 = vmatprep.subr.mxu0 0.0
      %4107 = vmatpush1.msra.mxu0 %v3973
      %4108 = vmatprep.subr.mxu0 0.0
      %4109 = vmatpush1.msra.mxu0 %v3974
      %4110 = vmatprep.subr.mxu0 0.0
      %4111 = vmatpush1.msra.mxu0 %v3975
      %4112 = vmatprep.subr.mxu0 0.0
      %4113 = vmatpush1.msra.mxu0 %v3976
      %4114 = vmatprep.subr.mxu0 0.0
      %4115 = vmatpush1.msra.mxu0 %v3977
      %4116 = vmatprep.subr.mxu0 0.0
      %4117 = vmatpush1.msra.mxu0 %v3978
      %4118 = vmatprep.subr.mxu0 0.0
      %4119 = vmatpush1.msra.mxu0 %v3979
      %4120 = vmatprep.subr.mxu0 0.0
      %4121 = vmatpush1.msra.mxu0 %v3980
      %4122 = vmatprep.subr.mxu0 0.0
      %4123 = vmatpush1.msra.mxu0 %v3981
      %4124 = vmatprep.subr.mxu0 0.0
      %4125 = vmatpush1.msra.mxu0 %v3982
      %4126 = vmatprep.subr.mxu0 0.0
      %4127 = vmatpush1.msra.mxu0 %v3983
      %4128 = vmatprep.subr.mxu0 0.0
      %4129 = vmatpush1.msra.mxu0 %v3984
      %4130 = vmatprep.subr.mxu0 0.0
      %4131 = vmatpush1.msra.mxu0 %v3985
      %4132 = vmatprep.subr.mxu0 0.0
      %4133 = vmatpush1.msra.mxu0 %v3986
      %4134 = vmatprep.subr.mxu0 0.0
      %4135 = vmatpush1.msra.mxu0 %v3987
      %4136 = vmatprep.subr.mxu0 0.0
      %4137 = vmatpush1.msra.mxu0 %v3988
      %4138 = vmatprep.subr.mxu0 0.0
      %4139 = vmatpush1.msra.mxu0 %v3989
      %4140 = vmatprep.subr.mxu0 0.0
      %4141 = vmatpush1.msra.mxu0 %v3990
      %4142 = vmatprep.subr.mxu0 0.0
      %4143 = vmatpush1.msra.mxu0 %v3991
      %4144 = vmatprep.subr.mxu0 0.0
      %4145 = vmatpush1.msra.mxu0 %v3992
      %4146 = vmatprep.subr.mxu0 0.0
      %4147 = vmatpush1.msra.mxu0 %v3993
      %4148 = vmatprep.subr.mxu0 0.0
      %4149 = vmatpush1.msra.mxu0 %v3994
      %4150 = vmatprep.subr.mxu0 0.0
      %4151 = vmatpush1.msra.mxu0 %v3995
      %4152 = vmatprep.subr.mxu0 0.0
      %4153 = vmatpush1.msra.mxu0 %v3996
      %4154 = vmatprep.subr.mxu0 0.0
      %4155 = vmatpush1.msra.mxu0 %v3997
      %4156 = vmatprep.subr.mxu0 0.0
      %4157 = vmatpush1.msra.mxu0 %v3998
      %4158 = vmatprep.subr.mxu0 0.0
      %4159 = vmatpush1.msra.mxu0 %v3999
      %4160 = vmatprep.subr.mxu0 0.0
      %4161 = vmatpush1.msra.mxu0 %v4000
      %4162 = vmatprep.subr.mxu0 0.0
      %4163 = vmatpush1.msra.mxu0 %v4001
      %4164 = vmatprep.subr.mxu0 0.0
      %4165 = vmatpush1.msra.mxu0 %v4002
      %4166 = vmatprep.mubr.f32.mxu0 %v4027
      %4167 = vmatmul.mubr.f32.gmra.mrb[0].mxu0 %v4025
      %v4168 = vpop.f32.mrb[0].mxu0
      %v4169 = vadd.f32 %v4099, %v4168
      %v4170 = vpop.f32.mrb[0].mxu0
      %4171 = vdwg.mxu0
      %vm4172 = vcmask 9216
      %4173 = vst.msk [vmem:[#allocation3] sm:$0x3] %vm4172, %v4169
    $region29: #{simple_cnn_forward.13} parent=1 // pred_fallthru
      _
    // Predicated region
    $region30: #{simple_cnn_forward.13} parent=1 // pred_check
      _
    $region31: #{simple_cnn_forward.13} parent=1 // pred_check_branch
      %4175 = sbr.rel (0) target = $region33
    $region32: #{simple_cnn_forward.13} parent=1 // pred_region
      %s4177 = ssub.s32 32, 32
      %4178 = vsyncadd [#allocation4], %s4177
      %s4180 = sshll.u32 [#allocation3], 4
      %s4181 = int_to_ptr.vmem [resolvable:$true] %s4180
      %4183 = dma.vmem_to_hbm [thread:$0]  %s4181, 32, %s5, [#allocation4]
    $region33: #{simple_cnn_forward.13} parent=1 // pred_fallthru
      _
    // Predicated region
    $region34: #{simple_cnn_forward.13} parent=1 // pred_check
      _
    $region35: #{simple_cnn_forward.13} parent=1 // pred_check_branch
      %4185 = sbr.rel (0) target = $region37
    $region36: #{simple_cnn_forward.13} parent=1 // pred_region
      %4186 = dma.done [#allocation4], 32
    $region37: #{simple_cnn_forward.13} parent=1 // pred_fallthru
      _
    %4187 = vsyncpa [#allocation4], 1

</llo_original>
